<compile_context>
chip_gen: v7x
topology: tpu7x:2x2x1
jax: 0.10.0
libtpu: 0.0.40
codegen_flags: <defaults>
</compile_context>

<pallas_src>
import math

import jax
import jax.numpy as jnp
from jax.experimental import pallas as pl
from jax.experimental.pallas import tpu as pltpu

BN_EPS = 1e-5


# ----------------------------- fused Pallas kernel --------------------------

def _bn_relu(y, gamma, beta, rows):
    """Training-mode BatchNorm (biased batch variance, single pass) + ReLU."""
    inv_n = 1.0 / float(rows)
    s1 = jnp.sum(y, axis=0, keepdims=True)
    s2 = jnp.sum(y * y, axis=0, keepdims=True)
    mean = s1 * inv_n
    var = jnp.maximum(s2 * inv_n - mean * mean, 0.0)
    scale = gamma * jax.lax.rsqrt(var + BN_EPS)
    return jnp.maximum((y - mean) * scale + beta, 0.0)


def _fused_forward_kernel(x_ref, w1_ref, g1_ref, be1_ref,
                          w2_ref, g2_ref, be2_ref,
                          wl_ref, bl_ref, o_ref,
                          xp1, pat1, mh1, xp2, pat2, mw2, feat):
    N, H, W, Cin = x_ref.shape
    C1 = w1_ref.shape[1]
    C2 = w2_ref.shape[1]
    K = o_ref.shape[1]
    H2, W2 = H // 2, W // 2
    H4, W4 = H2 // 2, W2 // 2

    # ---------------- stage 1: conv1 (3x3 SAME) + BN + ReLU + 2x2 max-pool --
    # Zero-padded halo + in-kernel im2col (never touches HBM).
    xp1[...] = jnp.zeros_like(xp1)
    xp1[:, 1:H + 1, 1:W + 1, :] = x_ref[...]
    for kh in range(3):
        for kw in range(3):
            k = kh * 3 + kw
            pat1[:, :, :, k * Cin:(k + 1) * Cin] = xp1[:, kh:kh + H, kw:kw + W, :]
    p1 = pat1[...].reshape(N * H * W, 9 * Cin).astype(jnp.bfloat16)
    # NOTE: conv bias omitted on purpose -- training-mode BatchNorm subtracts the
    # per-channel batch mean, which cancels the bias exactly.
    y1 = jnp.dot(p1, w1_ref[...], preferred_element_type=jnp.float32)
    a1 = _bn_relu(y1, g1_ref[...], be1_ref[...], N * H * W)          # (N*H*W, C1)

    # Max over vertical (h) pairs: rows are (n, h, w)-ordered, so the two image
    # rows of each pooling window are the two contiguous halves of a 2W group.
    v1 = a1.reshape(N * H2, 2 * W, C1)
    mh1[...] = jnp.maximum(v1[:, :W, :], v1[:, W:, :])               # (N*H2, W, C1)

    # Max over horizontal (w) pairs, written into the (spatially transposed,
    # w-major) zero-padded stage-2 input so every store is a contiguous strip.
    xp2[...] = jnp.zeros_like(xp2)
    for w2 in range(W2):
        a = mh1[:, 2 * w2, :]
        b = mh1[:, 2 * w2 + 1, :]
        pooled = jnp.maximum(a, b).reshape(N, H2, C1)
        xp2[:, 1 + w2, 1:H2 + 1, :] = pooled

    # ---------------- stage 2: conv2 (3x3 SAME) + BN + ReLU + 2x2 max-pool --
    for kh in range(3):
        for kw in range(3):
            k = kh * 3 + kw
            pat2[:, :, :, k * C1:(k + 1) * C1] = xp2[:, kw:kw + W2, kh:kh + H2, :]
    p2 = pat2[...].reshape(N * W2 * H2, 9 * C1).astype(jnp.bfloat16)
    y2 = jnp.dot(p2, w2_ref[...], preferred_element_type=jnp.float32)
    a2 = _bn_relu(y2, g2_ref[...], be2_ref[...], N * W2 * H2)        # rows (n, w2, h2)

    # Max over w2 pairs (contiguous halves of each 2*H2 group), per image.
    for n in range(N):
        vn = a2[n * W2 * H2:(n + 1) * W2 * H2, :].reshape(W4, 2 * H2, C2)
        mw2[n] = jnp.maximum(vn[:, :H2, :], vn[:, H2:, :])           # (W4, H2, C2)
    # Max over h2 pairs; pooled features are stored in (h4, w4)-major order,
    # matching the host-side permutation of the linear weight.
    for n in range(N):
        for h4 in range(H4):
            a = mw2[n, :, 2 * h4, :]
            b = mw2[n, :, 2 * h4 + 1, :]
            feat[n, h4 * W4:(h4 + 1) * W4, :] = jnp.maximum(a, b)    # (W4, C2)

    # ---------------- gaussian_linear + softmax(dim=1) ----------------------
    acc = jnp.zeros((N, K), jnp.float32)
    for s in range(H4 * W4):
        f = feat[:, s, :].astype(jnp.bfloat16)                       # (N, C2)
        acc = acc + jnp.dot(f, wl_ref[s], preferred_element_type=jnp.float32)
    logits = acc + bl_ref[...]
    m = jnp.max(logits, axis=1, keepdims=True)
    e = jnp.exp(logits - m)
    o_ref[...] = e / jnp.sum(e, axis=1, keepdims=True)


# ----------------------------- wrapper ---------------------------------------

def gaussian_classifier_forward(x_nchw, params):
    N, Cin, H, W = x_nchw.shape
    assert H % 4 == 0 and W % 4 == 0, "spatial dims must be divisible by 4"
    x = jnp.transpose(x_nchw, (0, 2, 3, 1))                          # NHWC
    C1 = params["w1p"].shape[1]
    C2 = params["w2p"].shape[1]
    K = params["bl"].shape[1]
    H2, W2, H4, W4 = H // 2, W // 2, H // 4, W // 4

    def full(a):
        return pl.BlockSpec(a.shape, lambda i, n=a.ndim: (0,) * n)

    args = (x, params["w1p"], params["g1"], params["be1"],
            params["w2p"], params["g2"], params["be2"],
            params["wlp"], params["bl"])

    return pl.pallas_call(
        _fused_forward_kernel,
        grid=(1,),
        out_shape=jax.ShapeDtypeStruct((N, K), jnp.float32),
        in_specs=[full(a) for a in args],
        out_specs=pl.BlockSpec((N, K), lambda i: (0, 0)),
        scratch_shapes=[
            pltpu.VMEM((N, H + 2, W + 2, Cin), jnp.float32),   # padded input halo
            pltpu.VMEM((N, H, W, 9 * Cin), jnp.float32),       # conv1 im2col patches
            pltpu.VMEM((N * H2, W, C1), jnp.float32),          # stage-1 row-pair max
            pltpu.VMEM((N, W2 + 2, H2 + 2, C1), jnp.float32),  # padded pooled act (w-major)
            pltpu.VMEM((N, W2, H2, 9 * C1), jnp.float32),      # conv2 im2col patches
            pltpu.VMEM((N, W4, H2, C2), jnp.float32),          # stage-2 col-pair max
            pltpu.VMEM((N, H4 * W4, C2), jnp.float32),         # pooled features
        ],
        compiler_params=pltpu.CompilerParams(
            dimension_semantics=("arbitrary",)),
    )(*args)


# ----------------------------- parameters ------------------------------------

def make_params(key, dim_channels, dim_input, n_classes, rho=-5.0):
    """Raw torch-layout parameters with Bayesian sampling w = mu + softplus(rho)*eps."""
    std = math.log(math.exp(rho) + 1.0)
    ks = jax.random.split(key, 16)
    h4 = dim_input // 4
    feat = 32 * h4 * h4

    def sample(mu, k):
        return mu + std * jax.random.normal(k, mu.shape, jnp.float32)

    w1_mu = jax.random.normal(ks[0], (16, dim_channels, 3, 3), jnp.float32) / math.sqrt(dim_channels * 9)
    b1_mu = 0.1 * jax.random.normal(ks[1], (16,), jnp.float32)
    w2_mu = jax.random.normal(ks[2], (32, 16, 3, 3), jnp.float32) / math.sqrt(16 * 9)
    b2_mu = 0.1 * jax.random.normal(ks[3], (32,), jnp.float32)
    wl_mu = jax.random.normal(ks[4], (n_classes, feat), jnp.float32) / math.sqrt(feat)
    bl_mu = 0.1 * jax.random.normal(ks[5], (n_classes,), jnp.float32)

    return dict(
        w1=sample(w1_mu, ks[6]), b1=sample(b1_mu, ks[7]),
        w2=sample(w2_mu, ks[8]), b2=sample(b2_mu, ks[9]),
        wl=sample(wl_mu, ks[10]), bl=sample(bl_mu, ks[11]),
        g1=1.0 + 0.1 * jax.random.normal(ks[12], (16,), jnp.float32),
        be1=0.1 * jax.random.normal(ks[13], (16,), jnp.float32),
        g2=1.0 + 0.1 * jax.random.normal(ks[14], (32,), jnp.float32),
        be2=0.1 * jax.random.normal(ks[15], (32,), jnp.float32),
    )


def prep_params(raw, dim_input):
    """One-time host-side weight re-layout (feedback: precompute, cast MXU operands to bf16)."""
    h4 = w4 = dim_input // 4
    c2 = raw["w2"].shape[0]
    k = raw["wl"].shape[0]
    # conv weights -> rows ordered ((kh*3+kw)*Cin + ci), matching in-kernel patch order.
    w1p = jnp.transpose(raw["w1"], (2, 3, 1, 0)).reshape(-1, raw["w1"].shape[0])
    w2p = jnp.transpose(raw["w2"], (2, 3, 1, 0)).reshape(-1, raw["w2"].shape[0])
    # linear weight: torch flattens NCHW as f = c*H4*W4 + h4*W4 + w4; the kernel
    # consumes one (C2, K) block per spatial position s = h4*W4 + w4.
    wt = raw["wl"].T.reshape(c2, h4, w4, k)
    wlp = jnp.transpose(wt, (1, 2, 0, 3)).reshape(h4 * w4, c2, k)
    return dict(
        w1p=w1p.astype(jnp.bfloat16),
        w2p=w2p.astype(jnp.bfloat16),
        wlp=wlp.astype(jnp.bfloat16),
        g1=raw["g1"][None, :], be1=raw["be1"][None, :],
        g2=raw["g2"][None, :], be2=raw["be2"][None, :],
        bl=raw["bl"][None, :],
        # conv biases intentionally not passed: cancelled exactly by training-mode BN.
    )


# ----------------------------- pure-JAX reference ----------------------------

def reference_forward(x_nchw, raw):
    def conv(x, w, b):
        y = jax.lax.conv_general_dilated(
            x, w, window_strides=(1, 1), padding="SAME",
            dimension_numbers=("NCHW", "OIHW", "NCHW"))
        return y + b[None, :, None, None]

    def bn_train(y, g, be):
        mean = jnp.mean(y, axis=(0, 2, 3), keepdims=True)
        var = jnp.mean((y - mean) ** 2, axis=(0, 2, 3), keepdims=True)
        yn = (y - mean) * jax.lax.rsqrt(var + BN_EPS)
        return yn * g[None, :, None, None] + be[None, :, None, None]

    def pool(y):
        return jax.lax.reduce_window(y, -jnp.inf, jax.lax.max,
                                     (1, 1, 2, 2), (1, 1, 2, 2), "VALID")

    y = pool(jax.nn.relu(bn_train(conv(x_nchw, raw["w1"], raw["b1"]), raw["g1"], raw["be1"])))
    y = pool(jax.nn.relu(bn_train(conv(y, raw["w2"], raw["b2"]), raw["g2"], raw["be2"])))
    feats = y.reshape(y.shape[0], -1)
    logits = feats @ raw["wl"].T + raw["bl"][None, :]
    return jax.nn.softmax(logits, axis=1)


# ----------------------------- main -------------------------------------------

if __name__ == "__main__":
    key = jax.random.PRNGKey(0)
    k_x, k_p = jax.random.split(key)

    N, Cin, H, W = 2, 1, 16, 16          # small MNIST-like: dim_channels=1, dim_input=16
    n_classes = 10

    x = jax.random.normal(k_x, (N, Cin, H, W), jnp.float32)   # NCHW, like torch
    raw = make_params(k_p, Cin, H, n_classes)
    params = prep_params(raw, H)

    fwd = jax.jit(gaussian_classifier_forward)
    probs = fwd(x, params)
    jax.block_until_ready(probs)

    assert probs.shape == (N, n_classes)
    assert bool(jnp.all(jnp.isfinite(probs)))
    assert bool(jnp.allclose(jnp.sum(probs, axis=1), 1.0, atol=1e-4))

    # Cross-check against a pure-JAX f32 reference (kernel uses bf16 MXU operands).
    ref = reference_forward(x, raw)
    err = float(jnp.max(jnp.abs(probs - ref)))
    assert err < 3e-2, f"mismatch vs reference: {err}"

    print("KERNEL_OK")
</pallas_src>

<mosaic_0001>
module attributes {stable_mosaic.version = 11 : i64} {
  func.func @_fused_forward_kernel(%arg0: i32, %arg1: memref<2x16x16x1xf32, #tpu.memory_space<vmem>>, %arg2: memref<9x16xbf16, #tpu.memory_space<vmem>>, %arg3: memref<1x16xf32, #tpu.memory_space<vmem>>, %arg4: memref<1x16xf32, #tpu.memory_space<vmem>>, %arg5: memref<144x32xbf16, #tpu.memory_space<vmem>>, %arg6: memref<1x32xf32, #tpu.memory_space<vmem>>, %arg7: memref<1x32xf32, #tpu.memory_space<vmem>>, %arg8: memref<16x32x10xbf16, #tpu.memory_space<vmem>>, %arg9: memref<1x10xf32, #tpu.memory_space<vmem>>, %arg10: memref<2x10xf32, #tpu.memory_space<vmem>>, %arg11: memref<2x18x18x1xf32, #tpu.memory_space<vmem>>, %arg12: memref<2x16x16x9xf32, #tpu.memory_space<vmem>>, %arg13: memref<16x16x16xf32, #tpu.memory_space<vmem>>, %arg14: memref<2x10x10x16xf32, #tpu.memory_space<vmem>>, %arg15: memref<2x8x8x144xf32, #tpu.memory_space<vmem>>, %arg16: memref<2x4x8x32xf32, #tpu.memory_space<vmem>>, %arg17: memref<2x16x32xf32, #tpu.memory_space<vmem>>) attributes {dimension_semantics = [#tpu.dimension_semantics<arbitrary>], iteration_bounds = array<i64: 1>, scalar_prefetch = 0 : i64, scratch_operands = 7 : i64, tpu.core_type = #tpu.core_type<tc>, window_params = [{pipeline_mode = #tpu.pipeline_mode<synchronous>, transform_indices = @transform_0, window_bounds = array<i64: 2, 16, 16, 1>}, {pipeline_mode = #tpu.pipeline_mode<synchronous>, transform_indices = @transform_1, window_bounds = array<i64: 9, 16>}, {pipeline_mode = #tpu.pipeline_mode<synchronous>, transform_indices = @transform_2, window_bounds = array<i64: 1, 16>}, {pipeline_mode = #tpu.pipeline_mode<synchronous>, transform_indices = @transform_3, window_bounds = array<i64: 1, 16>}, {pipeline_mode = #tpu.pipeline_mode<synchronous>, transform_indices = @transform_4, window_bounds = array<i64: 144, 32>}, {pipeline_mode = #tpu.pipeline_mode<synchronous>, transform_indices = @transform_5, window_bounds = array<i64: 1, 32>}, {pipeline_mode = #tpu.pipeline_mode<synchronous>, transform_indices = @transform_6, window_bounds = array<i64: 1, 32>}, {pipeline_mode = #tpu.pipeline_mode<synchronous>, transform_indices = @transform_7, window_bounds = array<i64: 16, 32, 10>}, {pipeline_mode = #tpu.pipeline_mode<synchronous>, transform_indices = @transform_8, window_bounds = array<i64: 1, 10>}, {pipeline_mode = #tpu.pipeline_mode<synchronous>, transform_indices = @transform_9, window_bounds = array<i64: 2, 10>}]} {
    %cst = arith.constant 0.000000e+00 : f32
    %0 = vector.broadcast %cst : f32 to vector<2x18x18x1xf32>
    %c0 = arith.constant 0 : index
    %c0_0 = arith.constant 0 : index
    %c0_1 = arith.constant 0 : index
    %c0_2 = arith.constant 0 : index
    %1 = vector.load %arg11[%c0, %c0_0, %c0_1, %c0_2] : memref<2x18x18x1xf32, #tpu.memory_space<vmem>>, vector<2x18x18x1xf32>
    tpu.vector_store %arg11[%c0, %c0_0, %c0_1, %c0_2], %0 {strides = array<i32>} : memref<2x18x18x1xf32, #tpu.memory_space<vmem>>, vector<2x18x18x1xf32>,
    %c0_3 = arith.constant 0 : index
    %c0_4 = arith.constant 0 : index
    %c0_5 = arith.constant 0 : index
    %c0_6 = arith.constant 0 : index
    %2 = vector.load %arg1[%c0_3, %c0_4, %c0_5, %c0_6] : memref<2x16x16x1xf32, #tpu.memory_space<vmem>>, vector<2x16x16x1xf32>
    %c0_7 = arith.constant 0 : index
    %c1 = arith.constant 1 : index
    %c1_8 = arith.constant 1 : index
    %c0_9 = arith.constant 0 : index
    %3 = vector.load %arg11[%c0_7, %c1, %c1_8, %c0_9] : memref<2x18x18x1xf32, #tpu.memory_space<vmem>>, vector<2x16x16x1xf32>
    tpu.vector_store %arg11[%c0_7, %c1, %c1_8, %c0_9], %2 {strides = array<i32>} : memref<2x18x18x1xf32, #tpu.memory_space<vmem>>, vector<2x16x16x1xf32>,
    %c0_10 = arith.constant 0 : index
    %c0_11 = arith.constant 0 : index
    %c0_12 = arith.constant 0 : index
    %c0_13 = arith.constant 0 : index
    %4 = vector.load %arg11[%c0_10, %c0_11, %c0_12, %c0_13] : memref<2x18x18x1xf32, #tpu.memory_space<vmem>>, vector<2x16x16x1xf32>
    %c0_14 = arith.constant 0 : index
    %c0_15 = arith.constant 0 : index
    %c0_16 = arith.constant 0 : index
    %c0_17 = arith.constant 0 : index
    %5 = vector.load %arg12[%c0_14, %c0_15, %c0_16, %c0_17] : memref<2x16x16x9xf32, #tpu.memory_space<vmem>>, vector<2x16x16x1xf32>
    tpu.vector_store %arg12[%c0_14, %c0_15, %c0_16, %c0_17], %4 {strides = array<i32>} : memref<2x16x16x9xf32, #tpu.memory_space<vmem>>, vector<2x16x16x1xf32>,
    %c0_18 = arith.constant 0 : index
    %c0_19 = arith.constant 0 : index
    %c1_20 = arith.constant 1 : index
    %c0_21 = arith.constant 0 : index
    %6 = vector.load %arg11[%c0_18, %c0_19, %c1_20, %c0_21] : memref<2x18x18x1xf32, #tpu.memory_space<vmem>>, vector<2x16x16x1xf32>
    %c0_22 = arith.constant 0 : index
    %c0_23 = arith.constant 0 : index
    %c0_24 = arith.constant 0 : index
    %c1_25 = arith.constant 1 : index
    %7 = vector.load %arg12[%c0_22, %c0_23, %c0_24, %c1_25] : memref<2x16x16x9xf32, #tpu.memory_space<vmem>>, vector<2x16x16x1xf32>
    tpu.vector_store %arg12[%c0_22, %c0_23, %c0_24, %c1_25], %6 {strides = array<i32>} : memref<2x16x16x9xf32, #tpu.memory_space<vmem>>, vector<2x16x16x1xf32>,
    %c0_26 = arith.constant 0 : index
    %c0_27 = arith.constant 0 : index
    %c2 = arith.constant 2 : index
    %c0_28 = arith.constant 0 : index
    %8 = vector.load %arg11[%c0_26, %c0_27, %c2, %c0_28] : memref<2x18x18x1xf32, #tpu.memory_space<vmem>>, vector<2x16x16x1xf32>
    %c0_29 = arith.constant 0 : index
    %c0_30 = arith.constant 0 : index
    %c0_31 = arith.constant 0 : index
    %c2_32 = arith.constant 2 : index
    %9 = vector.load %arg12[%c0_29, %c0_30, %c0_31, %c2_32] : memref<2x16x16x9xf32, #tpu.memory_space<vmem>>, vector<2x16x16x1xf32>
    tpu.vector_store %arg12[%c0_29, %c0_30, %c0_31, %c2_32], %8 {strides = array<i32>} : memref<2x16x16x9xf32, #tpu.memory_space<vmem>>, vector<2x16x16x1xf32>,
    %c0_33 = arith.constant 0 : index
    %c1_34 = arith.constant 1 : index
    %c0_35 = arith.constant 0 : index
    %c0_36 = arith.constant 0 : index
    %10 = vector.load %arg11[%c0_33, %c1_34, %c0_35, %c0_36] : memref<2x18x18x1xf32, #tpu.memory_space<vmem>>, vector<2x16x16x1xf32>
    %c0_37 = arith.constant 0 : index
    %c0_38 = arith.constant 0 : index
    %c0_39 = arith.constant 0 : index
    %c3 = arith.constant 3 : index
    %11 = vector.load %arg12[%c0_37, %c0_38, %c0_39, %c3] : memref<2x16x16x9xf32, #tpu.memory_space<vmem>>, vector<2x16x16x1xf32>
    tpu.vector_store %arg12[%c0_37, %c0_38, %c0_39, %c3], %10 {strides = array<i32>} : memref<2x16x16x9xf32, #tpu.memory_space<vmem>>, vector<2x16x16x1xf32>,
    %c0_40 = arith.constant 0 : index
    %c1_41 = arith.constant 1 : index
    %c1_42 = arith.constant 1 : index
    %c0_43 = arith.constant 0 : index
    %12 = vector.load %arg11[%c0_40, %c1_41, %c1_42, %c0_43] : memref<2x18x18x1xf32, #tpu.memory_space<vmem>>, vector<2x16x16x1xf32>
    %c0_44 = arith.constant 0 : index
    %c0_45 = arith.constant 0 : index
    %c0_46 = arith.constant 0 : index
    %c4 = arith.constant 4 : index
    %13 = vector.load %arg12[%c0_44, %c0_45, %c0_46, %c4] : memref<2x16x16x9xf32, #tpu.memory_space<vmem>>, vector<2x16x16x1xf32>
    tpu.vector_store %arg12[%c0_44, %c0_45, %c0_46, %c4], %12 {strides = array<i32>} : memref<2x16x16x9xf32, #tpu.memory_space<vmem>>, vector<2x16x16x1xf32>,
    %c0_47 = arith.constant 0 : index
    %c1_48 = arith.constant 1 : index
    %c2_49 = arith.constant 2 : index
    %c0_50 = arith.constant 0 : index
    %14 = vector.load %arg11[%c0_47, %c1_48, %c2_49, %c0_50] : memref<2x18x18x1xf32, #tpu.memory_space<vmem>>, vector<2x16x16x1xf32>
    %c0_51 = arith.constant 0 : index
    %c0_52 = arith.constant 0 : index
    %c0_53 = arith.constant 0 : index
    %c5 = arith.constant 5 : index
    %15 = vector.load %arg12[%c0_51, %c0_52, %c0_53, %c5] : memref<2x16x16x9xf32, #tpu.memory_space<vmem>>, vector<2x16x16x1xf32>
    tpu.vector_store %arg12[%c0_51, %c0_52, %c0_53, %c5], %14 {strides = array<i32>} : memref<2x16x16x9xf32, #tpu.memory_space<vmem>>, vector<2x16x16x1xf32>,
    %c0_54 = arith.constant 0 : index
    %c2_55 = arith.constant 2 : index
    %c0_56 = arith.constant 0 : index
    %c0_57 = arith.constant 0 : index
    %16 = vector.load %arg11[%c0_54, %c2_55, %c0_56, %c0_57] : memref<2x18x18x1xf32, #tpu.memory_space<vmem>>, vector<2x16x16x1xf32>
    %c0_58 = arith.constant 0 : index
    %c0_59 = arith.constant 0 : index
    %c0_60 = arith.constant 0 : index
    %c6 = arith.constant 6 : index
    %17 = vector.load %arg12[%c0_58, %c0_59, %c0_60, %c6] : memref<2x16x16x9xf32, #tpu.memory_space<vmem>>, vector<2x16x16x1xf32>
    tpu.vector_store %arg12[%c0_58, %c0_59, %c0_60, %c6], %16 {strides = array<i32>} : memref<2x16x16x9xf32, #tpu.memory_space<vmem>>, vector<2x16x16x1xf32>,
    %c0_61 = arith.constant 0 : index
    %c2_62 = arith.constant 2 : index
    %c1_63 = arith.constant 1 : index
    %c0_64 = arith.constant 0 : index
    %18 = vector.load %arg11[%c0_61, %c2_62, %c1_63, %c0_64] : memref<2x18x18x1xf32, #tpu.memory_space<vmem>>, vector<2x16x16x1xf32>
    %c0_65 = arith.constant 0 : index
    %c0_66 = arith.constant 0 : index
    %c0_67 = arith.constant 0 : index
    %c7 = arith.constant 7 : index
    %19 = vector.load %arg12[%c0_65, %c0_66, %c0_67, %c7] : memref<2x16x16x9xf32, #tpu.memory_space<vmem>>, vector<2x16x16x1xf32>
    tpu.vector_store %arg12[%c0_65, %c0_66, %c0_67, %c7], %18 {strides = array<i32>} : memref<2x16x16x9xf32, #tpu.memory_space<vmem>>, vector<2x16x16x1xf32>,
    %c0_68 = arith.constant 0 : index
    %c2_69 = arith.constant 2 : index
    %c2_70 = arith.constant 2 : index
    %c0_71 = arith.constant 0 : index
    %20 = vector.load %arg11[%c0_68, %c2_69, %c2_70, %c0_71] : memref<2x18x18x1xf32, #tpu.memory_space<vmem>>, vector<2x16x16x1xf32>
    %c0_72 = arith.constant 0 : index
    %c0_73 = arith.constant 0 : index
    %c0_74 = arith.constant 0 : index
    %c8 = arith.constant 8 : index
    %21 = vector.load %arg12[%c0_72, %c0_73, %c0_74, %c8] : memref<2x16x16x9xf32, #tpu.memory_space<vmem>>, vector<2x16x16x1xf32>
    tpu.vector_store %arg12[%c0_72, %c0_73, %c0_74, %c8], %20 {strides = array<i32>} : memref<2x16x16x9xf32, #tpu.memory_space<vmem>>, vector<2x16x16x1xf32>,
    %c0_75 = arith.constant 0 : index
    %c0_76 = arith.constant 0 : index
    %c0_77 = arith.constant 0 : index
    %c0_78 = arith.constant 0 : index
    %22 = vector.load %arg12[%c0_75, %c0_76, %c0_77, %c0_78] : memref<2x16x16x9xf32, #tpu.memory_space<vmem>>, vector<2x16x16x9xf32>
    %23 = vector.shape_cast %22 : vector<2x16x16x9xf32> to vector<512x9xf32>
    %24 = arith.truncf %23 : vector<512x9xf32> to vector<512x9xbf16>
    %c0_79 = arith.constant 0 : index
    %c0_80 = arith.constant 0 : index
    %25 = vector.load %arg2[%c0_79, %c0_80] : memref<9x16xbf16, #tpu.memory_space<vmem>>, vector<9x16xbf16>
    %cst_81 = arith.constant dense<0.000000e+00> : vector<512x16xf32>
    %26 = tpu.matmul %24, %25, %cst_81 {dimension_numbers = #tpu.dot_dimension_numbers<[1], [0], [0], [1], [0, 0, 1, 1], [], []>} : vector<512x9xbf16>, vector<9x16xbf16>, vector<512x16xf32> -> vector<512x16xf32>
    %c0_82 = arith.constant 0 : index
    %c0_83 = arith.constant 0 : index
    %27 = vector.load %arg3[%c0_82, %c0_83] : memref<1x16xf32, #tpu.memory_space<vmem>>, vector<1x16xf32>
    %c0_84 = arith.constant 0 : index
    %c0_85 = arith.constant 0 : index
    %28 = vector.load %arg4[%c0_84, %c0_85] : memref<1x16xf32, #tpu.memory_space<vmem>>, vector<1x16xf32>
    %cst_86 = arith.constant dense<0.000000e+00> : vector<16xf32>
    %29 = vector.multi_reduction <add>, %26, %cst_86 [0] : vector<512x16xf32> to vector<16xf32>
    %30 = vector.shape_cast %29 : vector<16xf32> to vector<1x16xf32>
    %31 = arith.mulf %26, %26 : vector<512x16xf32>
    %cst_87 = arith.constant dense<0.000000e+00> : vector<16xf32>
    %32 = vector.multi_reduction <add>, %31, %cst_87 [0] : vector<512x16xf32> to vector<16xf32>
    %33 = vector.shape_cast %32 : vector<16xf32> to vector<1x16xf32>
    %cst_88 = arith.constant 0.001953125 : f32
    %34 = vector.broadcast %cst_88 : f32 to vector<1x16xf32>
    %35 = arith.mulf %30, %34 : vector<1x16xf32>
    %cst_89 = arith.constant 0.001953125 : f32
    %36 = vector.broadcast %cst_89 : f32 to vector<1x16xf32>
    %37 = arith.mulf %33, %36 : vector<1x16xf32>
    %38 = arith.mulf %35, %35 : vector<1x16xf32>
    %39 = arith.subf %37, %38 : vector<1x16xf32>
    %cst_90 = arith.constant 0.000000e+00 : f32
    %40 = vector.broadcast %cst_90 : f32 to vector<1x16xf32>
    %41 = arith.maximumf %39, %40 : vector<1x16xf32>
    %cst_91 = arith.constant 9.99999974E-6 : f32
    %42 = vector.broadcast %cst_91 : f32 to vector<1x16xf32>
    %43 = arith.addf %41, %42 : vector<1x16xf32>
    %44 = math.rsqrt %43 : vector<1x16xf32>
    %45 = arith.mulf %27, %44 : vector<1x16xf32>
    %46 = vector.broadcast %35 : vector<1x16xf32> to vector<512x16xf32>
    %47 = arith.subf %26, %46 : vector<512x16xf32>
    %48 = vector.broadcast %45 : vector<1x16xf32> to vector<512x16xf32>
    %49 = arith.mulf %47, %48 : vector<512x16xf32>
    %50 = vector.broadcast %28 : vector<1x16xf32> to vector<512x16xf32>
    %51 = arith.addf %49, %50 : vector<512x16xf32>
    %cst_92 = arith.constant 0.000000e+00 : f32
    %52 = vector.broadcast %cst_92 : f32 to vector<512x16xf32>
    %53 = arith.maximumf %51, %52 : vector<512x16xf32>
    %54 = vector.shape_cast %53 : vector<512x16xf32> to vector<16x32x16xf32>
    %55 = vector.extract_strided_slice %54 {offsets = [0, 0, 0], sizes = [16, 16, 16], strides = [1, 1, 1]} : vector<16x32x16xf32> to vector<16x16x16xf32>
    %56 = vector.extract_strided_slice %54 {offsets = [0, 16, 0], sizes = [16, 16, 16], strides = [1, 1, 1]} : vector<16x32x16xf32> to vector<16x16x16xf32>
    %57 = arith.maximumf %55, %56 : vector<16x16x16xf32>
    %c0_93 = arith.constant 0 : index
    %c0_94 = arith.constant 0 : index
    %c0_95 = arith.constant 0 : index
    %58 = vector.load %arg13[%c0_93, %c0_94, %c0_95] : memref<16x16x16xf32, #tpu.memory_space<vmem>>, vector<16x16x16xf32>
    tpu.vector_store %arg13[%c0_93, %c0_94, %c0_95], %57 {strides = array<i32>} : memref<16x16x16xf32, #tpu.memory_space<vmem>>, vector<16x16x16xf32>,
    %cst_96 = arith.constant 0.000000e+00 : f32
    %59 = vector.broadcast %cst_96 : f32 to vector<2x10x10x16xf32>
    %c0_97 = arith.constant 0 : index
    %c0_98 = arith.constant 0 : index
    %c0_99 = arith.constant 0 : index
    %c0_100 = arith.constant 0 : index
    %60 = vector.load %arg14[%c0_97, %c0_98, %c0_99, %c0_100] : memref<2x10x10x16xf32, #tpu.memory_space<vmem>>, vector<2x10x10x16xf32>
    tpu.vector_store %arg14[%c0_97, %c0_98, %c0_99, %c0_100], %59 {strides = array<i32>} : memref<2x10x10x16xf32, #tpu.memory_space<vmem>>, vector<2x10x10x16xf32>,
    %c0_101 = arith.constant 0 : index
    %c0_102 = arith.constant 0 : index
    %c0_103 = arith.constant 0 : index
    %61 = vector.load %arg13[%c0_101, %c0_102, %c0_103] : memref<16x16x16xf32, #tpu.memory_space<vmem>>, vector<16x1x16xf32>
    %62 = vector.shape_cast %61 : vector<16x1x16xf32> to vector<16x16xf32>
    %c0_104 = arith.constant 0 : index
    %c1_105 = arith.constant 1 : index
    %c0_106 = arith.constant 0 : index
    %63 = vector.load %arg13[%c0_104, %c1_105, %c0_106] : memref<16x16x16xf32, #tpu.memory_space<vmem>>, vector<16x1x16xf32>
    %64 = vector.shape_cast %63 : vector<16x1x16xf32> to vector<16x16xf32>
    %65 = arith.maximumf %62, %64 : vector<16x16xf32>
    %66 = vector.shape_cast %65 : vector<16x16xf32> to vector<2x8x16xf32>
    %c0_107 = arith.constant 0 : index
    %c1_108 = arith.constant 1 : index
    %c1_109 = arith.constant 1 : index
    %c0_110 = arith.constant 0 : index
    %67 = vector.load %arg14[%c0_107, %c1_108, %c1_109, %c0_110] : memref<2x10x10x16xf32, #tpu.memory_space<vmem>>, vector<2x1x8x16xf32>
    %68 = vector.shape_cast %67 : vector<2x1x8x16xf32> to vector<2x8x16xf32>
    %69 = vector.shape_cast %66 : vector<2x8x16xf32> to vector<2x1x8x16xf32>
    tpu.vector_store %arg14[%c0_107, %c1_108, %c1_109, %c0_110], %69 {strides = array<i32>} : memref<2x10x10x16xf32, #tpu.memory_space<vmem>>, vector<2x1x8x16xf32>,
    %c0_111 = arith.constant 0 : index
    %c2_112 = arith.constant 2 : index
    %c0_113 = arith.constant 0 : index
    %70 = vector.load %arg13[%c0_111, %c2_112, %c0_113] : memref<16x16x16xf32, #tpu.memory_space<vmem>>, vector<16x1x16xf32>
    %71 = vector.shape_cast %70 : vector<16x1x16xf32> to vector<16x16xf32>
    %c0_114 = arith.constant 0 : index
    %c3_115 = arith.constant 3 : index
    %c0_116 = arith.constant 0 : index
    %72 = vector.load %arg13[%c0_114, %c3_115, %c0_116] : memref<16x16x16xf32, #tpu.memory_space<vmem>>, vector<16x1x16xf32>
    %73 = vector.shape_cast %72 : vector<16x1x16xf32> to vector<16x16xf32>
    %74 = arith.maximumf %71, %73 : vector<16x16xf32>
    %75 = vector.shape_cast %74 : vector<16x16xf32> to vector<2x8x16xf32>
    %c0_117 = arith.constant 0 : index
    %c2_118 = arith.constant 2 : index
    %c1_119 = arith.constant 1 : index
    %c0_120 = arith.constant 0 : index
    %76 = vector.load %arg14[%c0_117, %c2_118, %c1_119, %c0_120] : memref<2x10x10x16xf32, #tpu.memory_space<vmem>>, vector<2x1x8x16xf32>
    %77 = vector.shape_cast %76 : vector<2x1x8x16xf32> to vector<2x8x16xf32>
    %78 = vector.shape_cast %75 : vector<2x8x16xf32> to vector<2x1x8x16xf32>
    tpu.vector_store %arg14[%c0_117, %c2_118, %c1_119, %c0_120], %78 {strides = array<i32>} : memref<2x10x10x16xf32, #tpu.memory_space<vmem>>, vector<2x1x8x16xf32>,
    %c0_121 = arith.constant 0 : index
    %c4_122 = arith.constant 4 : index
    %c0_123 = arith.constant 0 : index
    %79 = vector.load %arg13[%c0_121, %c4_122, %c0_123] : memref<16x16x16xf32, #tpu.memory_space<vmem>>, vector<16x1x16xf32>
    %80 = vector.shape_cast %79 : vector<16x1x16xf32> to vector<16x16xf32>
    %c0_124 = arith.constant 0 : index
    %c5_125 = arith.constant 5 : index
    %c0_126 = arith.constant 0 : index
    %81 = vector.load %arg13[%c0_124, %c5_125, %c0_126] : memref<16x16x16xf32, #tpu.memory_space<vmem>>, vector<16x1x16xf32>
    %82 = vector.shape_cast %81 : vector<16x1x16xf32> to vector<16x16xf32>
    %83 = arith.maximumf %80, %82 : vector<16x16xf32>
    %84 = vector.shape_cast %83 : vector<16x16xf32> to vector<2x8x16xf32>
    %c0_127 = arith.constant 0 : index
    %c3_128 = arith.constant 3 : index
    %c1_129 = arith.constant 1 : index
    %c0_130 = arith.constant 0 : index
    %85 = vector.load %arg14[%c0_127, %c3_128, %c1_129, %c0_130] : memref<2x10x10x16xf32, #tpu.memory_space<vmem>>, vector<2x1x8x16xf32>
    %86 = vector.shape_cast %85 : vector<2x1x8x16xf32> to vector<2x8x16xf32>
    %87 = vector.shape_cast %84 : vector<2x8x16xf32> to vector<2x1x8x16xf32>
    tpu.vector_store %arg14[%c0_127, %c3_128, %c1_129, %c0_130], %87 {strides = array<i32>} : memref<2x10x10x16xf32, #tpu.memory_space<vmem>>, vector<2x1x8x16xf32>,
    %c0_131 = arith.constant 0 : index
    %c6_132 = arith.constant 6 : index
    %c0_133 = arith.constant 0 : index
    %88 = vector.load %arg13[%c0_131, %c6_132, %c0_133] : memref<16x16x16xf32, #tpu.memory_space<vmem>>, vector<16x1x16xf32>
    %89 = vector.shape_cast %88 : vector<16x1x16xf32> to vector<16x16xf32>
    %c0_134 = arith.constant 0 : index
    %c7_135 = arith.constant 7 : index
    %c0_136 = arith.constant 0 : index
    %90 = vector.load %arg13[%c0_134, %c7_135, %c0_136] : memref<16x16x16xf32, #tpu.memory_space<vmem>>, vector<16x1x16xf32>
    %91 = vector.shape_cast %90 : vector<16x1x16xf32> to vector<16x16xf32>
    %92 = arith.maximumf %89, %91 : vector<16x16xf32>
    %93 = vector.shape_cast %92 : vector<16x16xf32> to vector<2x8x16xf32>
    %c0_137 = arith.constant 0 : index
    %c4_138 = arith.constant 4 : index
    %c1_139 = arith.constant 1 : index
    %c0_140 = arith.constant 0 : index
    %94 = vector.load %arg14[%c0_137, %c4_138, %c1_139, %c0_140] : memref<2x10x10x16xf32, #tpu.memory_space<vmem>>, vector<2x1x8x16xf32>
    %95 = vector.shape_cast %94 : vector<2x1x8x16xf32> to vector<2x8x16xf32>
    %96 = vector.shape_cast %93 : vector<2x8x16xf32> to vector<2x1x8x16xf32>
    tpu.vector_store %arg14[%c0_137, %c4_138, %c1_139, %c0_140], %96 {strides = array<i32>} : memref<2x10x10x16xf32, #tpu.memory_space<vmem>>, vector<2x1x8x16xf32>,
    %c0_141 = arith.constant 0 : index
    %c8_142 = arith.constant 8 : index
    %c0_143 = arith.constant 0 : index
    %97 = vector.load %arg13[%c0_141, %c8_142, %c0_143] : memref<16x16x16xf32, #tpu.memory_space<vmem>>, vector<16x1x16xf32>
    %98 = vector.shape_cast %97 : vector<16x1x16xf32> to vector<16x16xf32>
    %c0_144 = arith.constant 0 : index
    %c9 = arith.constant 9 : index
    %c0_145 = arith.constant 0 : index
    %99 = vector.load %arg13[%c0_144, %c9, %c0_145] : memref<16x16x16xf32, #tpu.memory_space<vmem>>, vector<16x1x16xf32>
    %100 = vector.shape_cast %99 : vector<16x1x16xf32> to vector<16x16xf32>
    %101 = arith.maximumf %98, %100 : vector<16x16xf32>
    %102 = vector.shape_cast %101 : vector<16x16xf32> to vector<2x8x16xf32>
    %c0_146 = arith.constant 0 : index
    %c5_147 = arith.constant 5 : index
    %c1_148 = arith.constant 1 : index
    %c0_149 = arith.constant 0 : index
    %103 = vector.load %arg14[%c0_146, %c5_147, %c1_148, %c0_149] : memref<2x10x10x16xf32, #tpu.memory_space<vmem>>, vector<2x1x8x16xf32>
    %104 = vector.shape_cast %103 : vector<2x1x8x16xf32> to vector<2x8x16xf32>
    %105 = vector.shape_cast %102 : vector<2x8x16xf32> to vector<2x1x8x16xf32>
    tpu.vector_store %arg14[%c0_146, %c5_147, %c1_148, %c0_149], %105 {strides = array<i32>} : memref<2x10x10x16xf32, #tpu.memory_space<vmem>>, vector<2x1x8x16xf32>,
    %c0_150 = arith.constant 0 : index
    %c10 = arith.constant 10 : index
    %c0_151 = arith.constant 0 : index
    %106 = vector.load %arg13[%c0_150, %c10, %c0_151] : memref<16x16x16xf32, #tpu.memory_space<vmem>>, vector<16x1x16xf32>
    %107 = vector.shape_cast %106 : vector<16x1x16xf32> to vector<16x16xf32>
    %c0_152 = arith.constant 0 : index
    %c11 = arith.constant 11 : index
    %c0_153 = arith.constant 0 : index
    %108 = vector.load %arg13[%c0_152, %c11, %c0_153] : memref<16x16x16xf32, #tpu.memory_space<vmem>>, vector<16x1x16xf32>
    %109 = vector.shape_cast %108 : vector<16x1x16xf32> to vector<16x16xf32>
    %110 = arith.maximumf %107, %109 : vector<16x16xf32>
    %111 = vector.shape_cast %110 : vector<16x16xf32> to vector<2x8x16xf32>
    %c0_154 = arith.constant 0 : index
    %c6_155 = arith.constant 6 : index
    %c1_156 = arith.constant 1 : index
    %c0_157 = arith.constant 0 : index
    %112 = vector.load %arg14[%c0_154, %c6_155, %c1_156, %c0_157] : memref<2x10x10x16xf32, #tpu.memory_space<vmem>>, vector<2x1x8x16xf32>
    %113 = vector.shape_cast %112 : vector<2x1x8x16xf32> to vector<2x8x16xf32>
    %114 = vector.shape_cast %111 : vector<2x8x16xf32> to vector<2x1x8x16xf32>
    tpu.vector_store %arg14[%c0_154, %c6_155, %c1_156, %c0_157], %114 {strides = array<i32>} : memref<2x10x10x16xf32, #tpu.memory_space<vmem>>, vector<2x1x8x16xf32>,
    %c0_158 = arith.constant 0 : index
    %c12 = arith.constant 12 : index
    %c0_159 = arith.constant 0 : index
    %115 = vector.load %arg13[%c0_158, %c12, %c0_159] : memref<16x16x16xf32, #tpu.memory_space<vmem>>, vector<16x1x16xf32>
    %116 = vector.shape_cast %115 : vector<16x1x16xf32> to vector<16x16xf32>
    %c0_160 = arith.constant 0 : index
    %c13 = arith.constant 13 : index
    %c0_161 = arith.constant 0 : index
    %117 = vector.load %arg13[%c0_160, %c13, %c0_161] : memref<16x16x16xf32, #tpu.memory_space<vmem>>, vector<16x1x16xf32>
    %118 = vector.shape_cast %117 : vector<16x1x16xf32> to vector<16x16xf32>
    %119 = arith.maximumf %116, %118 : vector<16x16xf32>
    %120 = vector.shape_cast %119 : vector<16x16xf32> to vector<2x8x16xf32>
    %c0_162 = arith.constant 0 : index
    %c7_163 = arith.constant 7 : index
    %c1_164 = arith.constant 1 : index
    %c0_165 = arith.constant 0 : index
    %121 = vector.load %arg14[%c0_162, %c7_163, %c1_164, %c0_165] : memref<2x10x10x16xf32, #tpu.memory_space<vmem>>, vector<2x1x8x16xf32>
    %122 = vector.shape_cast %121 : vector<2x1x8x16xf32> to vector<2x8x16xf32>
    %123 = vector.shape_cast %120 : vector<2x8x16xf32> to vector<2x1x8x16xf32>
    tpu.vector_store %arg14[%c0_162, %c7_163, %c1_164, %c0_165], %123 {strides = array<i32>} : memref<2x10x10x16xf32, #tpu.memory_space<vmem>>, vector<2x1x8x16xf32>,
    %c0_166 = arith.constant 0 : index
    %c14 = arith.constant 14 : index
    %c0_167 = arith.constant 0 : index
    %124 = vector.load %arg13[%c0_166, %c14, %c0_167] : memref<16x16x16xf32, #tpu.memory_space<vmem>>, vector<16x1x16xf32>
    %125 = vector.shape_cast %124 : vector<16x1x16xf32> to vector<16x16xf32>
    %c0_168 = arith.constant 0 : index
    %c15 = arith.constant 15 : index
    %c0_169 = arith.constant 0 : index
    %126 = vector.load %arg13[%c0_168, %c15, %c0_169] : memref<16x16x16xf32, #tpu.memory_space<vmem>>, vector<16x1x16xf32>
    %127 = vector.shape_cast %126 : vector<16x1x16xf32> to vector<16x16xf32>
    %128 = arith.maximumf %125, %127 : vector<16x16xf32>
    %129 = vector.shape_cast %128 : vector<16x16xf32> to vector<2x8x16xf32>
    %c0_170 = arith.constant 0 : index
    %c8_171 = arith.constant 8 : index
    %c1_172 = arith.constant 1 : index
    %c0_173 = arith.constant 0 : index
    %130 = vector.load %arg14[%c0_170, %c8_171, %c1_172, %c0_173] : memref<2x10x10x16xf32, #tpu.memory_space<vmem>>, vector<2x1x8x16xf32>
    %131 = vector.shape_cast %130 : vector<2x1x8x16xf32> to vector<2x8x16xf32>
    %132 = vector.shape_cast %129 : vector<2x8x16xf32> to vector<2x1x8x16xf32>
    tpu.vector_store %arg14[%c0_170, %c8_171, %c1_172, %c0_173], %132 {strides = array<i32>} : memref<2x10x10x16xf32, #tpu.memory_space<vmem>>, vector<2x1x8x16xf32>,
    %c0_174 = arith.constant 0 : index
    %c0_175 = arith.constant 0 : index
    %c0_176 = arith.constant 0 : index
    %c0_177 = arith.constant 0 : index
    %133 = vector.load %arg14[%c0_174, %c0_175, %c0_176, %c0_177] : memref<2x10x10x16xf32, #tpu.memory_space<vmem>>, vector<2x8x8x16xf32>
    %c0_178 = arith.constant 0 : index
    %c0_179 = arith.constant 0 : index
    %c0_180 = arith.constant 0 : index
    %c0_181 = arith.constant 0 : index
    %134 = vector.load %arg15[%c0_178, %c0_179, %c0_180, %c0_181] : memref<2x8x8x144xf32, #tpu.memory_space<vmem>>, vector<2x8x8x16xf32>
    tpu.vector_store %arg15[%c0_178, %c0_179, %c0_180, %c0_181], %133 {strides = array<i32>} : memref<2x8x8x144xf32, #tpu.memory_space<vmem>>, vector<2x8x8x16xf32>,
    %c0_182 = arith.constant 0 : index
    %c1_183 = arith.constant 1 : index
    %c0_184 = arith.constant 0 : index
    %c0_185 = arith.constant 0 : index
    %135 = vector.load %arg14[%c0_182, %c1_183, %c0_184, %c0_185] : memref<2x10x10x16xf32, #tpu.memory_space<vmem>>, vector<2x8x8x16xf32>
    %c0_186 = arith.constant 0 : index
    %c0_187 = arith.constant 0 : index
    %c0_188 = arith.constant 0 : index
    %c16 = arith.constant 16 : index
    %136 = vector.load %arg15[%c0_186, %c0_187, %c0_188, %c16] : memref<2x8x8x144xf32, #tpu.memory_space<vmem>>, vector<2x8x8x16xf32>
    tpu.vector_store %arg15[%c0_186, %c0_187, %c0_188, %c16], %135 {strides = array<i32>} : memref<2x8x8x144xf32, #tpu.memory_space<vmem>>, vector<2x8x8x16xf32>,
    %c0_189 = arith.constant 0 : index
    %c2_190 = arith.constant 2 : index
    %c0_191 = arith.constant 0 : index
    %c0_192 = arith.constant 0 : index
    %137 = vector.load %arg14[%c0_189, %c2_190, %c0_191, %c0_192] : memref<2x10x10x16xf32, #tpu.memory_space<vmem>>, vector<2x8x8x16xf32>
    %c0_193 = arith.constant 0 : index
    %c0_194 = arith.constant 0 : index
    %c0_195 = arith.constant 0 : index
    %c32 = arith.constant 32 : index
    %138 = vector.load %arg15[%c0_193, %c0_194, %c0_195, %c32] : memref<2x8x8x144xf32, #tpu.memory_space<vmem>>, vector<2x8x8x16xf32>
    tpu.vector_store %arg15[%c0_193, %c0_194, %c0_195, %c32], %137 {strides = array<i32>} : memref<2x8x8x144xf32, #tpu.memory_space<vmem>>, vector<2x8x8x16xf32>,
    %c0_196 = arith.constant 0 : index
    %c0_197 = arith.constant 0 : index
    %c1_198 = arith.constant 1 : index
    %c0_199 = arith.constant 0 : index
    %139 = vector.load %arg14[%c0_196, %c0_197, %c1_198, %c0_199] : memref<2x10x10x16xf32, #tpu.memory_space<vmem>>, vector<2x8x8x16xf32>
    %c0_200 = arith.constant 0 : index
    %c0_201 = arith.constant 0 : index
    %c0_202 = arith.constant 0 : index
    %c48 = arith.constant 48 : index
    %140 = vector.load %arg15[%c0_200, %c0_201, %c0_202, %c48] : memref<2x8x8x144xf32, #tpu.memory_space<vmem>>, vector<2x8x8x16xf32>
    tpu.vector_store %arg15[%c0_200, %c0_201, %c0_202, %c48], %139 {strides = array<i32>} : memref<2x8x8x144xf32, #tpu.memory_space<vmem>>, vector<2x8x8x16xf32>,
    %c0_203 = arith.constant 0 : index
    %c1_204 = arith.constant 1 : index
    %c1_205 = arith.constant 1 : index
    %c0_206 = arith.constant 0 : index
    %141 = vector.load %arg14[%c0_203, %c1_204, %c1_205, %c0_206] : memref<2x10x10x16xf32, #tpu.memory_space<vmem>>, vector<2x8x8x16xf32>
    %c0_207 = arith.constant 0 : index
    %c0_208 = arith.constant 0 : index
    %c0_209 = arith.constant 0 : index
    %c64 = arith.constant 64 : index
    %142 = vector.load %arg15[%c0_207, %c0_208, %c0_209, %c64] : memref<2x8x8x144xf32, #tpu.memory_space<vmem>>, vector<2x8x8x16xf32>
    tpu.vector_store %arg15[%c0_207, %c0_208, %c0_209, %c64], %141 {strides = array<i32>} : memref<2x8x8x144xf32, #tpu.memory_space<vmem>>, vector<2x8x8x16xf32>,
    %c0_210 = arith.constant 0 : index
    %c2_211 = arith.constant 2 : index
    %c1_212 = arith.constant 1 : index
    %c0_213 = arith.constant 0 : index
    %143 = vector.load %arg14[%c0_210, %c2_211, %c1_212, %c0_213] : memref<2x10x10x16xf32, #tpu.memory_space<vmem>>, vector<2x8x8x16xf32>
    %c0_214 = arith.constant 0 : index
    %c0_215 = arith.constant 0 : index
    %c0_216 = arith.constant 0 : index
    %c80 = arith.constant 80 : index
    %144 = vector.load %arg15[%c0_214, %c0_215, %c0_216, %c80] : memref<2x8x8x144xf32, #tpu.memory_space<vmem>>, vector<2x8x8x16xf32>
    tpu.vector_store %arg15[%c0_214, %c0_215, %c0_216, %c80], %143 {strides = array<i32>} : memref<2x8x8x144xf32, #tpu.memory_space<vmem>>, vector<2x8x8x16xf32>,
    %c0_217 = arith.constant 0 : index
    %c0_218 = arith.constant 0 : index
    %c2_219 = arith.constant 2 : index
    %c0_220 = arith.constant 0 : index
    %145 = vector.load %arg14[%c0_217, %c0_218, %c2_219, %c0_220] : memref<2x10x10x16xf32, #tpu.memory_space<vmem>>, vector<2x8x8x16xf32>
    %c0_221 = arith.constant 0 : index
    %c0_222 = arith.constant 0 : index
    %c0_223 = arith.constant 0 : index
    %c96 = arith.constant 96 : index
    %146 = vector.load %arg15[%c0_221, %c0_222, %c0_223, %c96] : memref<2x8x8x144xf32, #tpu.memory_space<vmem>>, vector<2x8x8x16xf32>
    tpu.vector_store %arg15[%c0_221, %c0_222, %c0_223, %c96], %145 {strides = array<i32>} : memref<2x8x8x144xf32, #tpu.memory_space<vmem>>, vector<2x8x8x16xf32>,
    %c0_224 = arith.constant 0 : index
    %c1_225 = arith.constant 1 : index
    %c2_226 = arith.constant 2 : index
    %c0_227 = arith.constant 0 : index
    %147 = vector.load %arg14[%c0_224, %c1_225, %c2_226, %c0_227] : memref<2x10x10x16xf32, #tpu.memory_space<vmem>>, vector<2x8x8x16xf32>
    %c0_228 = arith.constant 0 : index
    %c0_229 = arith.constant 0 : index
    %c0_230 = arith.constant 0 : index
    %c112 = arith.constant 112 : index
    %148 = vector.load %arg15[%c0_228, %c0_229, %c0_230, %c112] : memref<2x8x8x144xf32, #tpu.memory_space<vmem>>, vector<2x8x8x16xf32>
    tpu.vector_store %arg15[%c0_228, %c0_229, %c0_230, %c112], %147 {strides = array<i32>} : memref<2x8x8x144xf32, #tpu.memory_space<vmem>>, vector<2x8x8x16xf32>,
    %c0_231 = arith.constant 0 : index
    %c2_232 = arith.constant 2 : index
    %c2_233 = arith.constant 2 : index
    %c0_234 = arith.constant 0 : index
    %149 = vector.load %arg14[%c0_231, %c2_232, %c2_233, %c0_234] : memref<2x10x10x16xf32, #tpu.memory_space<vmem>>, vector<2x8x8x16xf32>
    %c0_235 = arith.constant 0 : index
    %c0_236 = arith.constant 0 : index
    %c0_237 = arith.constant 0 : index
    %c128 = arith.constant 128 : index
    %150 = vector.load %arg15[%c0_235, %c0_236, %c0_237, %c128] : memref<2x8x8x144xf32, #tpu.memory_space<vmem>>, vector<2x8x8x16xf32>
    tpu.vector_store %arg15[%c0_235, %c0_236, %c0_237, %c128], %149 {strides = array<i32>} : memref<2x8x8x144xf32, #tpu.memory_space<vmem>>, vector<2x8x8x16xf32>,
    %c0_238 = arith.constant 0 : index
    %c0_239 = arith.constant 0 : index
    %c0_240 = arith.constant 0 : index
    %c0_241 = arith.constant 0 : index
    %151 = vector.load %arg15[%c0_238, %c0_239, %c0_240, %c0_241] : memref<2x8x8x144xf32, #tpu.memory_space<vmem>>, vector<2x8x8x144xf32>
    %152 = vector.shape_cast %151 : vector<2x8x8x144xf32> to vector<128x144xf32>
    %153 = arith.truncf %152 : vector<128x144xf32> to vector<128x144xbf16>
    %c0_242 = arith.constant 0 : index
    %c0_243 = arith.constant 0 : index
    %154 = vector.load %arg5[%c0_242, %c0_243] : memref<144x32xbf16, #tpu.memory_space<vmem>>, vector<144x32xbf16>
    %cst_244 = arith.constant dense<0.000000e+00> : vector<128x32xf32>
    %155 = tpu.matmul %153, %154, %cst_244 {dimension_numbers = #tpu.dot_dimension_numbers<[1], [0], [0], [1], [0, 0, 1, 1], [], []>} : vector<128x144xbf16>, vector<144x32xbf16>, vector<128x32xf32> -> vector<128x32xf32>
    %c0_245 = arith.constant 0 : index
    %c0_246 = arith.constant 0 : index
    %156 = vector.load %arg6[%c0_245, %c0_246] : memref<1x32xf32, #tpu.memory_space<vmem>>, vector<1x32xf32>
    %c0_247 = arith.constant 0 : index
    %c0_248 = arith.constant 0 : index
    %157 = vector.load %arg7[%c0_247, %c0_248] : memref<1x32xf32, #tpu.memory_space<vmem>>, vector<1x32xf32>
    %cst_249 = arith.constant dense<0.000000e+00> : vector<32xf32>
    %158 = vector.multi_reduction <add>, %155, %cst_249 [0] : vector<128x32xf32> to vector<32xf32>
    %159 = vector.shape_cast %158 : vector<32xf32> to vector<1x32xf32>
    %160 = arith.mulf %155, %155 : vector<128x32xf32>
    %cst_250 = arith.constant dense<0.000000e+00> : vector<32xf32>
    %161 = vector.multi_reduction <add>, %160, %cst_250 [0] : vector<128x32xf32> to vector<32xf32>
    %162 = vector.shape_cast %161 : vector<32xf32> to vector<1x32xf32>
    %cst_251 = arith.constant 7.812500e-03 : f32
    %163 = vector.broadcast %cst_251 : f32 to vector<1x32xf32>
    %164 = arith.mulf %159, %163 : vector<1x32xf32>
    %cst_252 = arith.constant 7.812500e-03 : f32
    %165 = vector.broadcast %cst_252 : f32 to vector<1x32xf32>
    %166 = arith.mulf %162, %165 : vector<1x32xf32>
    %167 = arith.mulf %164, %164 : vector<1x32xf32>
    %168 = arith.subf %166, %167 : vector<1x32xf32>
    %cst_253 = arith.constant 0.000000e+00 : f32
    %169 = vector.broadcast %cst_253 : f32 to vector<1x32xf32>
    %170 = arith.maximumf %168, %169 : vector<1x32xf32>
    %cst_254 = arith.constant 9.99999974E-6 : f32
    %171 = vector.broadcast %cst_254 : f32 to vector<1x32xf32>
    %172 = arith.addf %170, %171 : vector<1x32xf32>
    %173 = math.rsqrt %172 : vector<1x32xf32>
    %174 = arith.mulf %156, %173 : vector<1x32xf32>
    %175 = vector.broadcast %164 : vector<1x32xf32> to vector<128x32xf32>
    %176 = arith.subf %155, %175 : vector<128x32xf32>
    %177 = vector.broadcast %174 : vector<1x32xf32> to vector<128x32xf32>
    %178 = arith.mulf %176, %177 : vector<128x32xf32>
    %179 = vector.broadcast %157 : vector<1x32xf32> to vector<128x32xf32>
    %180 = arith.addf %178, %179 : vector<128x32xf32>
    %cst_255 = arith.constant 0.000000e+00 : f32
    %181 = vector.broadcast %cst_255 : f32 to vector<128x32xf32>
    %182 = arith.maximumf %180, %181 : vector<128x32xf32>
    %183 = vector.extract_strided_slice %182 {offsets = [0, 0], sizes = [64, 32], strides = [1, 1]} : vector<128x32xf32> to vector<64x32xf32>
    %184 = vector.shape_cast %183 : vector<64x32xf32> to vector<4x16x32xf32>
    %185 = vector.extract_strided_slice %184 {offsets = [0, 0, 0], sizes = [4, 8, 32], strides = [1, 1, 1]} : vector<4x16x32xf32> to vector<4x8x32xf32>
    %186 = vector.extract_strided_slice %184 {offsets = [0, 8, 0], sizes = [4, 8, 32], strides = [1, 1, 1]} : vector<4x16x32xf32> to vector<4x8x32xf32>
    %187 = arith.maximumf %185, %186 : vector<4x8x32xf32>
    %c0_256 = arith.constant 0 : index
    %c0_257 = arith.constant 0 : index
    %c0_258 = arith.constant 0 : index
    %c0_259 = arith.constant 0 : index
    %188 = vector.load %arg16[%c0_256, %c0_257, %c0_258, %c0_259] : memref<2x4x8x32xf32, #tpu.memory_space<vmem>>, vector<1x4x8x32xf32>
    %189 = vector.shape_cast %188 : vector<1x4x8x32xf32> to vector<4x8x32xf32>
    %190 = vector.shape_cast %187 : vector<4x8x32xf32> to vector<1x4x8x32xf32>
    tpu.vector_store %arg16[%c0_256, %c0_257, %c0_258, %c0_259], %190 {strides = array<i32>} : memref<2x4x8x32xf32, #tpu.memory_space<vmem>>, vector<1x4x8x32xf32>,
    %191 = vector.extract_strided_slice %182 {offsets = [64, 0], sizes = [64, 32], strides = [1, 1]} : vector<128x32xf32> to vector<64x32xf32>
    %192 = vector.shape_cast %191 : vector<64x32xf32> to vector<4x16x32xf32>
    %193 = vector.extract_strided_slice %192 {offsets = [0, 0, 0], sizes = [4, 8, 32], strides = [1, 1, 1]} : vector<4x16x32xf32> to vector<4x8x32xf32>
    %194 = vector.extract_strided_slice %192 {offsets = [0, 8, 0], sizes = [4, 8, 32], strides = [1, 1, 1]} : vector<4x16x32xf32> to vector<4x8x32xf32>
    %195 = arith.maximumf %193, %194 : vector<4x8x32xf32>
    %c1_260 = arith.constant 1 : index
    %c0_261 = arith.constant 0 : index
    %c0_262 = arith.constant 0 : index
    %c0_263 = arith.constant 0 : index
    %196 = vector.load %arg16[%c1_260, %c0_261, %c0_262, %c0_263] : memref<2x4x8x32xf32, #tpu.memory_space<vmem>>, vector<1x4x8x32xf32>
    %197 = vector.shape_cast %196 : vector<1x4x8x32xf32> to vector<4x8x32xf32>
    %198 = vector.shape_cast %195 : vector<4x8x32xf32> to vector<1x4x8x32xf32>
    tpu.vector_store %arg16[%c1_260, %c0_261, %c0_262, %c0_263], %198 {strides = array<i32>} : memref<2x4x8x32xf32, #tpu.memory_space<vmem>>, vector<1x4x8x32xf32>,
    %c0_264 = arith.constant 0 : index
    %c0_265 = arith.constant 0 : index
    %c0_266 = arith.constant 0 : index
    %c0_267 = arith.constant 0 : index
    %199 = vector.load %arg16[%c0_264, %c0_265, %c0_266, %c0_267] : memref<2x4x8x32xf32, #tpu.memory_space<vmem>>, vector<1x4x1x32xf32>
    %200 = vector.shape_cast %199 : vector<1x4x1x32xf32> to vector<4x32xf32>
    %c0_268 = arith.constant 0 : index
    %c0_269 = arith.constant 0 : index
    %c1_270 = arith.constant 1 : index
    %c0_271 = arith.constant 0 : index
    %201 = vector.load %arg16[%c0_268, %c0_269, %c1_270, %c0_271] : memref<2x4x8x32xf32, #tpu.memory_space<vmem>>, vector<1x4x1x32xf32>
    %202 = vector.shape_cast %201 : vector<1x4x1x32xf32> to vector<4x32xf32>
    %203 = arith.maximumf %200, %202 : vector<4x32xf32>
    %c0_272 = arith.constant 0 : index
    %c0_273 = arith.constant 0 : index
    %c0_274 = arith.constant 0 : index
    %204 = vector.load %arg17[%c0_272, %c0_273, %c0_274] : memref<2x16x32xf32, #tpu.memory_space<vmem>>, vector<1x4x32xf32>
    %205 = vector.shape_cast %204 : vector<1x4x32xf32> to vector<4x32xf32>
    %206 = vector.shape_cast %203 : vector<4x32xf32> to vector<1x4x32xf32>
    tpu.vector_store %arg17[%c0_272, %c0_273, %c0_274], %206 {strides = array<i32>} : memref<2x16x32xf32, #tpu.memory_space<vmem>>, vector<1x4x32xf32>,
    %c0_275 = arith.constant 0 : index
    %c0_276 = arith.constant 0 : index
    %c2_277 = arith.constant 2 : index
    %c0_278 = arith.constant 0 : index
    %207 = vector.load %arg16[%c0_275, %c0_276, %c2_277, %c0_278] : memref<2x4x8x32xf32, #tpu.memory_space<vmem>>, vector<1x4x1x32xf32>
    %208 = vector.shape_cast %207 : vector<1x4x1x32xf32> to vector<4x32xf32>
    %c0_279 = arith.constant 0 : index
    %c0_280 = arith.constant 0 : index
    %c3_281 = arith.constant 3 : index
    %c0_282 = arith.constant 0 : index
    %209 = vector.load %arg16[%c0_279, %c0_280, %c3_281, %c0_282] : memref<2x4x8x32xf32, #tpu.memory_space<vmem>>, vector<1x4x1x32xf32>
    %210 = vector.shape_cast %209 : vector<1x4x1x32xf32> to vector<4x32xf32>
    %211 = arith.maximumf %208, %210 : vector<4x32xf32>
    %c0_283 = arith.constant 0 : index
    %c4_284 = arith.constant 4 : index
    %c0_285 = arith.constant 0 : index
    %212 = vector.load %arg17[%c0_283, %c4_284, %c0_285] : memref<2x16x32xf32, #tpu.memory_space<vmem>>, vector<1x4x32xf32>
    %213 = vector.shape_cast %212 : vector<1x4x32xf32> to vector<4x32xf32>
    %214 = vector.shape_cast %211 : vector<4x32xf32> to vector<1x4x32xf32>
    tpu.vector_store %arg17[%c0_283, %c4_284, %c0_285], %214 {strides = array<i32>} : memref<2x16x32xf32, #tpu.memory_space<vmem>>, vector<1x4x32xf32>,
    %c0_286 = arith.constant 0 : index
    %c0_287 = arith.constant 0 : index
    %c4_288 = arith.constant 4 : index
    %c0_289 = arith.constant 0 : index
    %215 = vector.load %arg16[%c0_286, %c0_287, %c4_288, %c0_289] : memref<2x4x8x32xf32, #tpu.memory_space<vmem>>, vector<1x4x1x32xf32>
    %216 = vector.shape_cast %215 : vector<1x4x1x32xf32> to vector<4x32xf32>
    %c0_290 = arith.constant 0 : index
    %c0_291 = arith.constant 0 : index
    %c5_292 = arith.constant 5 : index
    %c0_293 = arith.constant 0 : index
    %217 = vector.load %arg16[%c0_290, %c0_291, %c5_292, %c0_293] : memref<2x4x8x32xf32, #tpu.memory_space<vmem>>, vector<1x4x1x32xf32>
    %218 = vector.shape_cast %217 : vector<1x4x1x32xf32> to vector<4x32xf32>
    %219 = arith.maximumf %216, %218 : vector<4x32xf32>
    %c0_294 = arith.constant 0 : index
    %c8_295 = arith.constant 8 : index
    %c0_296 = arith.constant 0 : index
    %220 = vector.load %arg17[%c0_294, %c8_295, %c0_296] : memref<2x16x32xf32, #tpu.memory_space<vmem>>, vector<1x4x32xf32>
    %221 = vector.shape_cast %220 : vector<1x4x32xf32> to vector<4x32xf32>
    %222 = vector.shape_cast %219 : vector<4x32xf32> to vector<1x4x32xf32>
    tpu.vector_store %arg17[%c0_294, %c8_295, %c0_296], %222 {strides = array<i32>} : memref<2x16x32xf32, #tpu.memory_space<vmem>>, vector<1x4x32xf32>,
    %c0_297 = arith.constant 0 : index
    %c0_298 = arith.constant 0 : index
    %c6_299 = arith.constant 6 : index
    %c0_300 = arith.constant 0 : index
    %223 = vector.load %arg16[%c0_297, %c0_298, %c6_299, %c0_300] : memref<2x4x8x32xf32, #tpu.memory_space<vmem>>, vector<1x4x1x32xf32>
    %224 = vector.shape_cast %223 : vector<1x4x1x32xf32> to vector<4x32xf32>
    %c0_301 = arith.constant 0 : index
    %c0_302 = arith.constant 0 : index
    %c7_303 = arith.constant 7 : index
    %c0_304 = arith.constant 0 : index
    %225 = vector.load %arg16[%c0_301, %c0_302, %c7_303, %c0_304] : memref<2x4x8x32xf32, #tpu.memory_space<vmem>>, vector<1x4x1x32xf32>
    %226 = vector.shape_cast %225 : vector<1x4x1x32xf32> to vector<4x32xf32>
    %227 = arith.maximumf %224, %226 : vector<4x32xf32>
    %c0_305 = arith.constant 0 : index
    %c12_306 = arith.constant 12 : index
    %c0_307 = arith.constant 0 : index
    %228 = vector.load %arg17[%c0_305, %c12_306, %c0_307] : memref<2x16x32xf32, #tpu.memory_space<vmem>>, vector<1x4x32xf32>
    %229 = vector.shape_cast %228 : vector<1x4x32xf32> to vector<4x32xf32>
    %230 = vector.shape_cast %227 : vector<4x32xf32> to vector<1x4x32xf32>
    tpu.vector_store %arg17[%c0_305, %c12_306, %c0_307], %230 {strides = array<i32>} : memref<2x16x32xf32, #tpu.memory_space<vmem>>, vector<1x4x32xf32>,
    %c1_308 = arith.constant 1 : index
    %c0_309 = arith.constant 0 : index
    %c0_310 = arith.constant 0 : index
    %c0_311 = arith.constant 0 : index
    %231 = vector.load %arg16[%c1_308, %c0_309, %c0_310, %c0_311] : memref<2x4x8x32xf32, #tpu.memory_space<vmem>>, vector<1x4x1x32xf32>
    %232 = vector.shape_cast %231 : vector<1x4x1x32xf32> to vector<4x32xf32>
    %c1_312 = arith.constant 1 : index
    %c0_313 = arith.constant 0 : index
    %c1_314 = arith.constant 1 : index
    %c0_315 = arith.constant 0 : index
    %233 = vector.load %arg16[%c1_312, %c0_313, %c1_314, %c0_315] : memref<2x4x8x32xf32, #tpu.memory_space<vmem>>, vector<1x4x1x32xf32>
    %234 = vector.shape_cast %233 : vector<1x4x1x32xf32> to vector<4x32xf32>
    %235 = arith.maximumf %232, %234 : vector<4x32xf32>
    %c1_316 = arith.constant 1 : index
    %c0_317 = arith.constant 0 : index
    %c0_318 = arith.constant 0 : index
    %236 = vector.load %arg17[%c1_316, %c0_317, %c0_318] : memref<2x16x32xf32, #tpu.memory_space<vmem>>, vector<1x4x32xf32>
    %237 = vector.shape_cast %236 : vector<1x4x32xf32> to vector<4x32xf32>
    %238 = vector.shape_cast %235 : vector<4x32xf32> to vector<1x4x32xf32>
    tpu.vector_store %arg17[%c1_316, %c0_317, %c0_318], %238 {strides = array<i32>} : memref<2x16x32xf32, #tpu.memory_space<vmem>>, vector<1x4x32xf32>,
    %c1_319 = arith.constant 1 : index
    %c0_320 = arith.constant 0 : index
    %c2_321 = arith.constant 2 : index
    %c0_322 = arith.constant 0 : index
    %239 = vector.load %arg16[%c1_319, %c0_320, %c2_321, %c0_322] : memref<2x4x8x32xf32, #tpu.memory_space<vmem>>, vector<1x4x1x32xf32>
    %240 = vector.shape_cast %239 : vector<1x4x1x32xf32> to vector<4x32xf32>
    %c1_323 = arith.constant 1 : index
    %c0_324 = arith.constant 0 : index
    %c3_325 = arith.constant 3 : index
    %c0_326 = arith.constant 0 : index
    %241 = vector.load %arg16[%c1_323, %c0_324, %c3_325, %c0_326] : memref<2x4x8x32xf32, #tpu.memory_space<vmem>>, vector<1x4x1x32xf32>
    %242 = vector.shape_cast %241 : vector<1x4x1x32xf32> to vector<4x32xf32>
    %243 = arith.maximumf %240, %242 : vector<4x32xf32>
    %c1_327 = arith.constant 1 : index
    %c4_328 = arith.constant 4 : index
    %c0_329 = arith.constant 0 : index
    %244 = vector.load %arg17[%c1_327, %c4_328, %c0_329] : memref<2x16x32xf32, #tpu.memory_space<vmem>>, vector<1x4x32xf32>
    %245 = vector.shape_cast %244 : vector<1x4x32xf32> to vector<4x32xf32>
    %246 = vector.shape_cast %243 : vector<4x32xf32> to vector<1x4x32xf32>
    tpu.vector_store %arg17[%c1_327, %c4_328, %c0_329], %246 {strides = array<i32>} : memref<2x16x32xf32, #tpu.memory_space<vmem>>, vector<1x4x32xf32>,
    %c1_330 = arith.constant 1 : index
    %c0_331 = arith.constant 0 : index
    %c4_332 = arith.constant 4 : index
    %c0_333 = arith.constant 0 : index
    %247 = vector.load %arg16[%c1_330, %c0_331, %c4_332, %c0_333] : memref<2x4x8x32xf32, #tpu.memory_space<vmem>>, vector<1x4x1x32xf32>
    %248 = vector.shape_cast %247 : vector<1x4x1x32xf32> to vector<4x32xf32>
    %c1_334 = arith.constant 1 : index
    %c0_335 = arith.constant 0 : index
    %c5_336 = arith.constant 5 : index
    %c0_337 = arith.constant 0 : index
    %249 = vector.load %arg16[%c1_334, %c0_335, %c5_336, %c0_337] : memref<2x4x8x32xf32, #tpu.memory_space<vmem>>, vector<1x4x1x32xf32>
    %250 = vector.shape_cast %249 : vector<1x4x1x32xf32> to vector<4x32xf32>
    %251 = arith.maximumf %248, %250 : vector<4x32xf32>
    %c1_338 = arith.constant 1 : index
    %c8_339 = arith.constant 8 : index
    %c0_340 = arith.constant 0 : index
    %252 = vector.load %arg17[%c1_338, %c8_339, %c0_340] : memref<2x16x32xf32, #tpu.memory_space<vmem>>, vector<1x4x32xf32>
    %253 = vector.shape_cast %252 : vector<1x4x32xf32> to vector<4x32xf32>
    %254 = vector.shape_cast %251 : vector<4x32xf32> to vector<1x4x32xf32>
    tpu.vector_store %arg17[%c1_338, %c8_339, %c0_340], %254 {strides = array<i32>} : memref<2x16x32xf32, #tpu.memory_space<vmem>>, vector<1x4x32xf32>,
    %c1_341 = arith.constant 1 : index
    %c0_342 = arith.constant 0 : index
    %c6_343 = arith.constant 6 : index
    %c0_344 = arith.constant 0 : index
    %255 = vector.load %arg16[%c1_341, %c0_342, %c6_343, %c0_344] : memref<2x4x8x32xf32, #tpu.memory_space<vmem>>, vector<1x4x1x32xf32>
    %256 = vector.shape_cast %255 : vector<1x4x1x32xf32> to vector<4x32xf32>
    %c1_345 = arith.constant 1 : index
    %c0_346 = arith.constant 0 : index
    %c7_347 = arith.constant 7 : index
    %c0_348 = arith.constant 0 : index
    %257 = vector.load %arg16[%c1_345, %c0_346, %c7_347, %c0_348] : memref<2x4x8x32xf32, #tpu.memory_space<vmem>>, vector<1x4x1x32xf32>
    %258 = vector.shape_cast %257 : vector<1x4x1x32xf32> to vector<4x32xf32>
    %259 = arith.maximumf %256, %258 : vector<4x32xf32>
    %c1_349 = arith.constant 1 : index
    %c12_350 = arith.constant 12 : index
    %c0_351 = arith.constant 0 : index
    %260 = vector.load %arg17[%c1_349, %c12_350, %c0_351] : memref<2x16x32xf32, #tpu.memory_space<vmem>>, vector<1x4x32xf32>
    %261 = vector.shape_cast %260 : vector<1x4x32xf32> to vector<4x32xf32>
    %262 = vector.shape_cast %259 : vector<4x32xf32> to vector<1x4x32xf32>
    tpu.vector_store %arg17[%c1_349, %c12_350, %c0_351], %262 {strides = array<i32>} : memref<2x16x32xf32, #tpu.memory_space<vmem>>, vector<1x4x32xf32>,
    %cst_352 = arith.constant 0.000000e+00 : f32
    %263 = vector.broadcast %cst_352 : f32 to vector<2x10xf32>
    %c0_353 = arith.constant 0 : index
    %c0_354 = arith.constant 0 : index
    %c0_355 = arith.constant 0 : index
    %264 = vector.load %arg17[%c0_353, %c0_354, %c0_355] : memref<2x16x32xf32, #tpu.memory_space<vmem>>, vector<2x1x32xf32>
    %265 = vector.shape_cast %264 : vector<2x1x32xf32> to vector<2x32xf32>
    %266 = arith.truncf %265 : vector<2x32xf32> to vector<2x32xbf16>
    %c0_356 = arith.constant 0 : index
    %c0_357 = arith.constant 0 : index
    %c0_358 = arith.constant 0 : index
    %267 = vector.load %arg8[%c0_356, %c0_357, %c0_358] : memref<16x32x10xbf16, #tpu.memory_space<vmem>>, vector<1x32x10xbf16>
    %268 = vector.shape_cast %267 : vector<1x32x10xbf16> to vector<32x10xbf16>
    %cst_359 = arith.constant dense<0.000000e+00> : vector<2x10xf32>
    %269 = tpu.matmul %266, %268, %cst_359 {dimension_numbers = #tpu.dot_dimension_numbers<[1], [0], [0], [1], [0, 0, 1, 1], [], []>} : vector<2x32xbf16>, vector<32x10xbf16>, vector<2x10xf32> -> vector<2x10xf32>
    %270 = arith.addf %263, %269 : vector<2x10xf32>
    %c0_360 = arith.constant 0 : index
    %c1_361 = arith.constant 1 : index
    %c0_362 = arith.constant 0 : index
    %271 = vector.load %arg17[%c0_360, %c1_361, %c0_362] : memref<2x16x32xf32, #tpu.memory_space<vmem>>, vector<2x1x32xf32>
    %272 = vector.shape_cast %271 : vector<2x1x32xf32> to vector<2x32xf32>
    %273 = arith.truncf %272 : vector<2x32xf32> to vector<2x32xbf16>
    %c1_363 = arith.constant 1 : index
    %c0_364 = arith.constant 0 : index
    %c0_365 = arith.constant 0 : index
    %274 = vector.load %arg8[%c1_363, %c0_364, %c0_365] : memref<16x32x10xbf16, #tpu.memory_space<vmem>>, vector<1x32x10xbf16>
    %275 = vector.shape_cast %274 : vector<1x32x10xbf16> to vector<32x10xbf16>
    %cst_366 = arith.constant dense<0.000000e+00> : vector<2x10xf32>
    %276 = tpu.matmul %273, %275, %cst_366 {dimension_numbers = #tpu.dot_dimension_numbers<[1], [0], [0], [1], [0, 0, 1, 1], [], []>} : vector<2x32xbf16>, vector<32x10xbf16>, vector<2x10xf32> -> vector<2x10xf32>
    %277 = arith.addf %270, %276 : vector<2x10xf32>
    %c0_367 = arith.constant 0 : index
    %c2_368 = arith.constant 2 : index
    %c0_369 = arith.constant 0 : index
    %278 = vector.load %arg17[%c0_367, %c2_368, %c0_369] : memref<2x16x32xf32, #tpu.memory_space<vmem>>, vector<2x1x32xf32>
    %279 = vector.shape_cast %278 : vector<2x1x32xf32> to vector<2x32xf32>
    %280 = arith.truncf %279 : vector<2x32xf32> to vector<2x32xbf16>
    %c2_370 = arith.constant 2 : index
    %c0_371 = arith.constant 0 : index
    %c0_372 = arith.constant 0 : index
    %281 = vector.load %arg8[%c2_370, %c0_371, %c0_372] : memref<16x32x10xbf16, #tpu.memory_space<vmem>>, vector<1x32x10xbf16>
    %282 = vector.shape_cast %281 : vector<1x32x10xbf16> to vector<32x10xbf16>
    %cst_373 = arith.constant dense<0.000000e+00> : vector<2x10xf32>
    %283 = tpu.matmul %280, %282, %cst_373 {dimension_numbers = #tpu.dot_dimension_numbers<[1], [0], [0], [1], [0, 0, 1, 1], [], []>} : vector<2x32xbf16>, vector<32x10xbf16>, vector<2x10xf32> -> vector<2x10xf32>
    %284 = arith.addf %277, %283 : vector<2x10xf32>
    %c0_374 = arith.constant 0 : index
    %c3_375 = arith.constant 3 : index
    %c0_376 = arith.constant 0 : index
    %285 = vector.load %arg17[%c0_374, %c3_375, %c0_376] : memref<2x16x32xf32, #tpu.memory_space<vmem>>, vector<2x1x32xf32>
    %286 = vector.shape_cast %285 : vector<2x1x32xf32> to vector<2x32xf32>
    %287 = arith.truncf %286 : vector<2x32xf32> to vector<2x32xbf16>
    %c3_377 = arith.constant 3 : index
    %c0_378 = arith.constant 0 : index
    %c0_379 = arith.constant 0 : index
    %288 = vector.load %arg8[%c3_377, %c0_378, %c0_379] : memref<16x32x10xbf16, #tpu.memory_space<vmem>>, vector<1x32x10xbf16>
    %289 = vector.shape_cast %288 : vector<1x32x10xbf16> to vector<32x10xbf16>
    %cst_380 = arith.constant dense<0.000000e+00> : vector<2x10xf32>
    %290 = tpu.matmul %287, %289, %cst_380 {dimension_numbers = #tpu.dot_dimension_numbers<[1], [0], [0], [1], [0, 0, 1, 1], [], []>} : vector<2x32xbf16>, vector<32x10xbf16>, vector<2x10xf32> -> vector<2x10xf32>
    %291 = arith.addf %284, %290 : vector<2x10xf32>
    %c0_381 = arith.constant 0 : index
    %c4_382 = arith.constant 4 : index
    %c0_383 = arith.constant 0 : index
    %292 = vector.load %arg17[%c0_381, %c4_382, %c0_383] : memref<2x16x32xf32, #tpu.memory_space<vmem>>, vector<2x1x32xf32>
    %293 = vector.shape_cast %292 : vector<2x1x32xf32> to vector<2x32xf32>
    %294 = arith.truncf %293 : vector<2x32xf32> to vector<2x32xbf16>
    %c4_384 = arith.constant 4 : index
    %c0_385 = arith.constant 0 : index
    %c0_386 = arith.constant 0 : index
    %295 = vector.load %arg8[%c4_384, %c0_385, %c0_386] : memref<16x32x10xbf16, #tpu.memory_space<vmem>>, vector<1x32x10xbf16>
    %296 = vector.shape_cast %295 : vector<1x32x10xbf16> to vector<32x10xbf16>
    %cst_387 = arith.constant dense<0.000000e+00> : vector<2x10xf32>
    %297 = tpu.matmul %294, %296, %cst_387 {dimension_numbers = #tpu.dot_dimension_numbers<[1], [0], [0], [1], [0, 0, 1, 1], [], []>} : vector<2x32xbf16>, vector<32x10xbf16>, vector<2x10xf32> -> vector<2x10xf32>
    %298 = arith.addf %291, %297 : vector<2x10xf32>
    %c0_388 = arith.constant 0 : index
    %c5_389 = arith.constant 5 : index
    %c0_390 = arith.constant 0 : index
    %299 = vector.load %arg17[%c0_388, %c5_389, %c0_390] : memref<2x16x32xf32, #tpu.memory_space<vmem>>, vector<2x1x32xf32>
    %300 = vector.shape_cast %299 : vector<2x1x32xf32> to vector<2x32xf32>
    %301 = arith.truncf %300 : vector<2x32xf32> to vector<2x32xbf16>
    %c5_391 = arith.constant 5 : index
    %c0_392 = arith.constant 0 : index
    %c0_393 = arith.constant 0 : index
    %302 = vector.load %arg8[%c5_391, %c0_392, %c0_393] : memref<16x32x10xbf16, #tpu.memory_space<vmem>>, vector<1x32x10xbf16>
    %303 = vector.shape_cast %302 : vector<1x32x10xbf16> to vector<32x10xbf16>
    %cst_394 = arith.constant dense<0.000000e+00> : vector<2x10xf32>
    %304 = tpu.matmul %301, %303, %cst_394 {dimension_numbers = #tpu.dot_dimension_numbers<[1], [0], [0], [1], [0, 0, 1, 1], [], []>} : vector<2x32xbf16>, vector<32x10xbf16>, vector<2x10xf32> -> vector<2x10xf32>
    %305 = arith.addf %298, %304 : vector<2x10xf32>
    %c0_395 = arith.constant 0 : index
    %c6_396 = arith.constant 6 : index
    %c0_397 = arith.constant 0 : index
    %306 = vector.load %arg17[%c0_395, %c6_396, %c0_397] : memref<2x16x32xf32, #tpu.memory_space<vmem>>, vector<2x1x32xf32>
    %307 = vector.shape_cast %306 : vector<2x1x32xf32> to vector<2x32xf32>
    %308 = arith.truncf %307 : vector<2x32xf32> to vector<2x32xbf16>
    %c6_398 = arith.constant 6 : index
    %c0_399 = arith.constant 0 : index
    %c0_400 = arith.constant 0 : index
    %309 = vector.load %arg8[%c6_398, %c0_399, %c0_400] : memref<16x32x10xbf16, #tpu.memory_space<vmem>>, vector<1x32x10xbf16>
    %310 = vector.shape_cast %309 : vector<1x32x10xbf16> to vector<32x10xbf16>
    %cst_401 = arith.constant dense<0.000000e+00> : vector<2x10xf32>
    %311 = tpu.matmul %308, %310, %cst_401 {dimension_numbers = #tpu.dot_dimension_numbers<[1], [0], [0], [1], [0, 0, 1, 1], [], []>} : vector<2x32xbf16>, vector<32x10xbf16>, vector<2x10xf32> -> vector<2x10xf32>
    %312 = arith.addf %305, %311 : vector<2x10xf32>
    %c0_402 = arith.constant 0 : index
    %c7_403 = arith.constant 7 : index
    %c0_404 = arith.constant 0 : index
    %313 = vector.load %arg17[%c0_402, %c7_403, %c0_404] : memref<2x16x32xf32, #tpu.memory_space<vmem>>, vector<2x1x32xf32>
    %314 = vector.shape_cast %313 : vector<2x1x32xf32> to vector<2x32xf32>
    %315 = arith.truncf %314 : vector<2x32xf32> to vector<2x32xbf16>
    %c7_405 = arith.constant 7 : index
    %c0_406 = arith.constant 0 : index
    %c0_407 = arith.constant 0 : index
    %316 = vector.load %arg8[%c7_405, %c0_406, %c0_407] : memref<16x32x10xbf16, #tpu.memory_space<vmem>>, vector<1x32x10xbf16>
    %317 = vector.shape_cast %316 : vector<1x32x10xbf16> to vector<32x10xbf16>
    %cst_408 = arith.constant dense<0.000000e+00> : vector<2x10xf32>
    %318 = tpu.matmul %315, %317, %cst_408 {dimension_numbers = #tpu.dot_dimension_numbers<[1], [0], [0], [1], [0, 0, 1, 1], [], []>} : vector<2x32xbf16>, vector<32x10xbf16>, vector<2x10xf32> -> vector<2x10xf32>
    %319 = arith.addf %312, %318 : vector<2x10xf32>
    %c0_409 = arith.constant 0 : index
    %c8_410 = arith.constant 8 : index
    %c0_411 = arith.constant 0 : index
    %320 = vector.load %arg17[%c0_409, %c8_410, %c0_411] : memref<2x16x32xf32, #tpu.memory_space<vmem>>, vector<2x1x32xf32>
    %321 = vector.shape_cast %320 : vector<2x1x32xf32> to vector<2x32xf32>
    %322 = arith.truncf %321 : vector<2x32xf32> to vector<2x32xbf16>
    %c8_412 = arith.constant 8 : index
    %c0_413 = arith.constant 0 : index
    %c0_414 = arith.constant 0 : index
    %323 = vector.load %arg8[%c8_412, %c0_413, %c0_414] : memref<16x32x10xbf16, #tpu.memory_space<vmem>>, vector<1x32x10xbf16>
    %324 = vector.shape_cast %323 : vector<1x32x10xbf16> to vector<32x10xbf16>
    %cst_415 = arith.constant dense<0.000000e+00> : vector<2x10xf32>
    %325 = tpu.matmul %322, %324, %cst_415 {dimension_numbers = #tpu.dot_dimension_numbers<[1], [0], [0], [1], [0, 0, 1, 1], [], []>} : vector<2x32xbf16>, vector<32x10xbf16>, vector<2x10xf32> -> vector<2x10xf32>
    %326 = arith.addf %319, %325 : vector<2x10xf32>
    %c0_416 = arith.constant 0 : index
    %c9_417 = arith.constant 9 : index
    %c0_418 = arith.constant 0 : index
    %327 = vector.load %arg17[%c0_416, %c9_417, %c0_418] : memref<2x16x32xf32, #tpu.memory_space<vmem>>, vector<2x1x32xf32>
    %328 = vector.shape_cast %327 : vector<2x1x32xf32> to vector<2x32xf32>
    %329 = arith.truncf %328 : vector<2x32xf32> to vector<2x32xbf16>
    %c9_419 = arith.constant 9 : index
    %c0_420 = arith.constant 0 : index
    %c0_421 = arith.constant 0 : index
    %330 = vector.load %arg8[%c9_419, %c0_420, %c0_421] : memref<16x32x10xbf16, #tpu.memory_space<vmem>>, vector<1x32x10xbf16>
    %331 = vector.shape_cast %330 : vector<1x32x10xbf16> to vector<32x10xbf16>
    %cst_422 = arith.constant dense<0.000000e+00> : vector<2x10xf32>
    %332 = tpu.matmul %329, %331, %cst_422 {dimension_numbers = #tpu.dot_dimension_numbers<[1], [0], [0], [1], [0, 0, 1, 1], [], []>} : vector<2x32xbf16>, vector<32x10xbf16>, vector<2x10xf32> -> vector<2x10xf32>
    %333 = arith.addf %326, %332 : vector<2x10xf32>
    %c0_423 = arith.constant 0 : index
    %c10_424 = arith.constant 10 : index
    %c0_425 = arith.constant 0 : index
    %334 = vector.load %arg17[%c0_423, %c10_424, %c0_425] : memref<2x16x32xf32, #tpu.memory_space<vmem>>, vector<2x1x32xf32>
    %335 = vector.shape_cast %334 : vector<2x1x32xf32> to vector<2x32xf32>
    %336 = arith.truncf %335 : vector<2x32xf32> to vector<2x32xbf16>
    %c10_426 = arith.constant 10 : index
    %c0_427 = arith.constant 0 : index
    %c0_428 = arith.constant 0 : index
    %337 = vector.load %arg8[%c10_426, %c0_427, %c0_428] : memref<16x32x10xbf16, #tpu.memory_space<vmem>>, vector<1x32x10xbf16>
    %338 = vector.shape_cast %337 : vector<1x32x10xbf16> to vector<32x10xbf16>
    %cst_429 = arith.constant dense<0.000000e+00> : vector<2x10xf32>
    %339 = tpu.matmul %336, %338, %cst_429 {dimension_numbers = #tpu.dot_dimension_numbers<[1], [0], [0], [1], [0, 0, 1, 1], [], []>} : vector<2x32xbf16>, vector<32x10xbf16>, vector<2x10xf32> -> vector<2x10xf32>
    %340 = arith.addf %333, %339 : vector<2x10xf32>
    %c0_430 = arith.constant 0 : index
    %c11_431 = arith.constant 11 : index
    %c0_432 = arith.constant 0 : index
    %341 = vector.load %arg17[%c0_430, %c11_431, %c0_432] : memref<2x16x32xf32, #tpu.memory_space<vmem>>, vector<2x1x32xf32>
    %342 = vector.shape_cast %341 : vector<2x1x32xf32> to vector<2x32xf32>
    %343 = arith.truncf %342 : vector<2x32xf32> to vector<2x32xbf16>
    %c11_433 = arith.constant 11 : index
    %c0_434 = arith.constant 0 : index
    %c0_435 = arith.constant 0 : index
    %344 = vector.load %arg8[%c11_433, %c0_434, %c0_435] : memref<16x32x10xbf16, #tpu.memory_space<vmem>>, vector<1x32x10xbf16>
    %345 = vector.shape_cast %344 : vector<1x32x10xbf16> to vector<32x10xbf16>
    %cst_436 = arith.constant dense<0.000000e+00> : vector<2x10xf32>
    %346 = tpu.matmul %343, %345, %cst_436 {dimension_numbers = #tpu.dot_dimension_numbers<[1], [0], [0], [1], [0, 0, 1, 1], [], []>} : vector<2x32xbf16>, vector<32x10xbf16>, vector<2x10xf32> -> vector<2x10xf32>
    %347 = arith.addf %340, %346 : vector<2x10xf32>
    %c0_437 = arith.constant 0 : index
    %c12_438 = arith.constant 12 : index
    %c0_439 = arith.constant 0 : index
    %348 = vector.load %arg17[%c0_437, %c12_438, %c0_439] : memref<2x16x32xf32, #tpu.memory_space<vmem>>, vector<2x1x32xf32>
    %349 = vector.shape_cast %348 : vector<2x1x32xf32> to vector<2x32xf32>
    %350 = arith.truncf %349 : vector<2x32xf32> to vector<2x32xbf16>
    %c12_440 = arith.constant 12 : index
    %c0_441 = arith.constant 0 : index
    %c0_442 = arith.constant 0 : index
    %351 = vector.load %arg8[%c12_440, %c0_441, %c0_442] : memref<16x32x10xbf16, #tpu.memory_space<vmem>>, vector<1x32x10xbf16>
    %352 = vector.shape_cast %351 : vector<1x32x10xbf16> to vector<32x10xbf16>
    %cst_443 = arith.constant dense<0.000000e+00> : vector<2x10xf32>
    %353 = tpu.matmul %350, %352, %cst_443 {dimension_numbers = #tpu.dot_dimension_numbers<[1], [0], [0], [1], [0, 0, 1, 1], [], []>} : vector<2x32xbf16>, vector<32x10xbf16>, vector<2x10xf32> -> vector<2x10xf32>
    %354 = arith.addf %347, %353 : vector<2x10xf32>
    %c0_444 = arith.constant 0 : index
    %c13_445 = arith.constant 13 : index
    %c0_446 = arith.constant 0 : index
    %355 = vector.load %arg17[%c0_444, %c13_445, %c0_446] : memref<2x16x32xf32, #tpu.memory_space<vmem>>, vector<2x1x32xf32>
    %356 = vector.shape_cast %355 : vector<2x1x32xf32> to vector<2x32xf32>
    %357 = arith.truncf %356 : vector<2x32xf32> to vector<2x32xbf16>
    %c13_447 = arith.constant 13 : index
    %c0_448 = arith.constant 0 : index
    %c0_449 = arith.constant 0 : index
    %358 = vector.load %arg8[%c13_447, %c0_448, %c0_449] : memref<16x32x10xbf16, #tpu.memory_space<vmem>>, vector<1x32x10xbf16>
    %359 = vector.shape_cast %358 : vector<1x32x10xbf16> to vector<32x10xbf16>
    %cst_450 = arith.constant dense<0.000000e+00> : vector<2x10xf32>
    %360 = tpu.matmul %357, %359, %cst_450 {dimension_numbers = #tpu.dot_dimension_numbers<[1], [0], [0], [1], [0, 0, 1, 1], [], []>} : vector<2x32xbf16>, vector<32x10xbf16>, vector<2x10xf32> -> vector<2x10xf32>
    %361 = arith.addf %354, %360 : vector<2x10xf32>
    %c0_451 = arith.constant 0 : index
    %c14_452 = arith.constant 14 : index
    %c0_453 = arith.constant 0 : index
    %362 = vector.load %arg17[%c0_451, %c14_452, %c0_453] : memref<2x16x32xf32, #tpu.memory_space<vmem>>, vector<2x1x32xf32>
    %363 = vector.shape_cast %362 : vector<2x1x32xf32> to vector<2x32xf32>
    %364 = arith.truncf %363 : vector<2x32xf32> to vector<2x32xbf16>
    %c14_454 = arith.constant 14 : index
    %c0_455 = arith.constant 0 : index
    %c0_456 = arith.constant 0 : index
    %365 = vector.load %arg8[%c14_454, %c0_455, %c0_456] : memref<16x32x10xbf16, #tpu.memory_space<vmem>>, vector<1x32x10xbf16>
    %366 = vector.shape_cast %365 : vector<1x32x10xbf16> to vector<32x10xbf16>
    %cst_457 = arith.constant dense<0.000000e+00> : vector<2x10xf32>
    %367 = tpu.matmul %364, %366, %cst_457 {dimension_numbers = #tpu.dot_dimension_numbers<[1], [0], [0], [1], [0, 0, 1, 1], [], []>} : vector<2x32xbf16>, vector<32x10xbf16>, vector<2x10xf32> -> vector<2x10xf32>
    %368 = arith.addf %361, %367 : vector<2x10xf32>
    %c0_458 = arith.constant 0 : index
    %c15_459 = arith.constant 15 : index
    %c0_460 = arith.constant 0 : index
    %369 = vector.load %arg17[%c0_458, %c15_459, %c0_460] : memref<2x16x32xf32, #tpu.memory_space<vmem>>, vector<2x1x32xf32>
    %370 = vector.shape_cast %369 : vector<2x1x32xf32> to vector<2x32xf32>
    %371 = arith.truncf %370 : vector<2x32xf32> to vector<2x32xbf16>
    %c15_461 = arith.constant 15 : index
    %c0_462 = arith.constant 0 : index
    %c0_463 = arith.constant 0 : index
    %372 = vector.load %arg8[%c15_461, %c0_462, %c0_463] : memref<16x32x10xbf16, #tpu.memory_space<vmem>>, vector<1x32x10xbf16>
    %373 = vector.shape_cast %372 : vector<1x32x10xbf16> to vector<32x10xbf16>
    %cst_464 = arith.constant dense<0.000000e+00> : vector<2x10xf32>
    %374 = tpu.matmul %371, %373, %cst_464 {dimension_numbers = #tpu.dot_dimension_numbers<[1], [0], [0], [1], [0, 0, 1, 1], [], []>} : vector<2x32xbf16>, vector<32x10xbf16>, vector<2x10xf32> -> vector<2x10xf32>
    %375 = arith.addf %368, %374 : vector<2x10xf32>
    %c0_465 = arith.constant 0 : index
    %c0_466 = arith.constant 0 : index
    %376 = vector.load %arg9[%c0_465, %c0_466] : memref<1x10xf32, #tpu.memory_space<vmem>>, vector<1x10xf32>
    %377 = vector.broadcast %376 : vector<1x10xf32> to vector<2x10xf32>
    %378 = arith.addf %375, %377 : vector<2x10xf32>
    %cst_467 = arith.constant dense<0xFF800000> : vector<2xf32>
    %379 = vector.multi_reduction <maximumf>, %378, %cst_467 [1] : vector<2x10xf32> to vector<2xf32>
    %380 = vector.shape_cast %379 : vector<2xf32> to vector<2x1xf32>
    %381 = vector.broadcast %380 : vector<2x1xf32> to vector<2x10xf32>
    %382 = arith.subf %378, %381 : vector<2x10xf32>
    %383 = math.exp %382 : vector<2x10xf32>
    %cst_468 = arith.constant dense<0.000000e+00> : vector<2xf32>
    %384 = vector.multi_reduction <add>, %383, %cst_468 [1] : vector<2x10xf32> to vector<2xf32>
    %385 = vector.shape_cast %384 : vector<2xf32> to vector<2x1xf32>
    %386 = vector.broadcast %385 : vector<2x1xf32> to vector<2x10xf32>
    %387 = arith.divf %383, %386 : vector<2x10xf32>
    %c0_469 = arith.constant 0 : index
    %c0_470 = arith.constant 0 : index
    %388 = vector.load %arg10[%c0_469, %c0_470] : memref<2x10xf32, #tpu.memory_space<vmem>>, vector<2x10xf32>
    tpu.vector_store %arg10[%c0_469, %c0_470], %387 {strides = array<i32>} : memref<2x10xf32, #tpu.memory_space<vmem>>, vector<2x10xf32>,
    return
  }
  func.func @transform_0(%arg0: i32) -> (i32, i32, i32, i32) {
    %c0_i32 = arith.constant 0 : i32
    %c0_i32_0 = arith.constant 0 : i32
    %c0_i32_1 = arith.constant 0 : i32
    %c0_i32_2 = arith.constant 0 : i32
    %c0_i32_3 = arith.constant 0 : i32
    return %c0_i32, %c0_i32_0, %c0_i32_1, %c0_i32_2 : i32, i32, i32, i32
  }
  func.func @transform_1(%arg0: i32) -> (i32, i32) {
    %c0_i32 = arith.constant 0 : i32
    %c0_i32_0 = arith.constant 0 : i32
    %c0_i32_1 = arith.constant 0 : i32
    return %c0_i32, %c0_i32_0 : i32, i32
  }
  func.func @transform_2(%arg0: i32) -> (i32, i32) {
    %c0_i32 = arith.constant 0 : i32
    %c0_i32_0 = arith.constant 0 : i32
    %c0_i32_1 = arith.constant 0 : i32
    return %c0_i32, %c0_i32_0 : i32, i32
  }
  func.func @transform_3(%arg0: i32) -> (i32, i32) {
    %c0_i32 = arith.constant 0 : i32
    %c0_i32_0 = arith.constant 0 : i32
    %c0_i32_1 = arith.constant 0 : i32
    return %c0_i32, %c0_i32_0 : i32, i32
  }
  func.func @transform_4(%arg0: i32) -> (i32, i32) {
    %c0_i32 = arith.constant 0 : i32
    %c0_i32_0 = arith.constant 0 : i32
    %c0_i32_1 = arith.constant 0 : i32
    return %c0_i32, %c0_i32_0 : i32, i32
  }
  func.func @transform_5(%arg0: i32) -> (i32, i32) {
    %c0_i32 = arith.constant 0 : i32
    %c0_i32_0 = arith.constant 0 : i32
    %c0_i32_1 = arith.constant 0 : i32
    return %c0_i32, %c0_i32_0 : i32, i32
  }
  func.func @transform_6(%arg0: i32) -> (i32, i32) {
    %c0_i32 = arith.constant 0 : i32
    %c0_i32_0 = arith.constant 0 : i32
    %c0_i32_1 = arith.constant 0 : i32
    return %c0_i32, %c0_i32_0 : i32, i32
  }
  func.func @transform_7(%arg0: i32) -> (i32, i32, i32) {
    %c0_i32 = arith.constant 0 : i32
    %c0_i32_0 = arith.constant 0 : i32
    %c0_i32_1 = arith.constant 0 : i32
    %c0_i32_2 = arith.constant 0 : i32
    return %c0_i32, %c0_i32_0, %c0_i32_1 : i32, i32, i32
  }
  func.func @transform_8(%arg0: i32) -> (i32, i32) {
    %c0_i32 = arith.constant 0 : i32
    %c0_i32_0 = arith.constant 0 : i32
    %c0_i32_1 = arith.constant 0 : i32
    return %c0_i32, %c0_i32_0 : i32, i32
  }
  func.func @transform_9(%arg0: i32) -> (i32, i32) {
    %c0_i32 = arith.constant 0 : i32
    %c0_i32_0 = arith.constant 0 : i32
    %c0_i32_1 = arith.constant 0 : i32
    return %c0_i32, %c0_i32_0 : i32, i32
  }
}

</mosaic_0001>

<llo_original>
// kernel: gaussian_classifier_forward.1
$region0: #{gaussian_classifier_forward.1}
  #allocation0 [shape = 'u32[]', space=smem, size = 0x4, offset = 0x4, fixed_abs, tag = 'smem constant byte address 0x4 - core index']
  #allocation1 [shape = 'u32[144,128]{1,0:T(1,128)}', space=vmem, size = 0x12000, scoped, tag = 'internal scratch']
  #allocation2 [shape = 'f32[2,18,18,1]{3,2,1,0:T(8,128)}', space=vmem, size = 0x6c000, scoped, tag = 'scratch operand']
  #allocation3 [shape = 'f32[2,16,16,9]{3,2,1,0:T(8,128)}', space=vmem, size = 0x40000, scoped, tag = 'scratch operand']
  #allocation4 [shape = 'f32[16,16,16]{2,1,0:T(8,128)}', space=vmem, size = 0x20000, scoped, tag = 'scratch operand']
  #allocation5 [shape = 'f32[2,10,10,16]{3,2,1,0:T(8,128)}', space=vmem, size = 0x28000, scoped, tag = 'scratch operand']
  #allocation6 [shape = 'f32[2,8,8,144]{3,2,1,0:T(8,128)}', space=vmem, size = 0x20000, scoped, tag = 'scratch operand']
  #allocation7 [shape = 'f32[2,4,8,32]{3,2,1,0:T(8,128)}', space=vmem, size = 0x8000, scoped, tag = 'scratch operand']
  #allocation8 [shape = 'f32[2,16,32]{2,1,0:T(8,128)}', space=vmem, size = 0x4000, scoped, tag = 'scratch operand']
  %s0 = inlined_call_operand.vmem [shape: f32[2,16,16,1], index: 0, kind: input, shape index: {}]
  %s1 = inlined_call_operand.vmem [shape: bf16[9,16], index: 1, kind: input, shape index: {}]
  %s2 = inlined_call_operand.vmem [shape: f32[1,16], index: 2, kind: input, shape index: {}]
  %s3 = inlined_call_operand.vmem [shape: f32[1,16], index: 3, kind: input, shape index: {}]
  %s4 = inlined_call_operand.vmem [shape: bf16[144,32], index: 4, kind: input, shape index: {}]
  %s5 = inlined_call_operand.vmem [shape: f32[1,32], index: 5, kind: input, shape index: {}]
  %s6 = inlined_call_operand.vmem [shape: f32[1,32], index: 6, kind: input, shape index: {}]
  %s7 = inlined_call_operand.vmem [shape: bf16[16,32,10], index: 7, kind: input, shape index: {}]
  %s8 = inlined_call_operand.vmem [shape: f32[1,10], index: 8, kind: input, shape index: {}]
  %s9 = inlined_call_operand.hbm [shape: f32[2,10], index: 9, kind: output, shape index: {}]
  %s10 = sld [smem:[#allocation0]]
  $region46: #{gaussian_classifier_forward.1} parent=0
    _
  %s12 = ssub.s32 1, %s10
  %s13 = scalar_select 0, %s12, %s10
  $region1: #{gaussian_classifier_forward.1} parent=0
    #allocation9 [shape = 'u8[1024]{0}', space=vmem, size = 0x400, scoped, tag = 'output window, operand 0, single buffered']
    #allocation10 [shape = 's32[1]{0}', space=sflag, size = 0x4, scoped, tag = 'scoped memory for gaussian_classifier_forward.1']
    %14 = vsyncpa [#allocation10], 0
    // Predicated region
    $region2: #{gaussian_classifier_forward.1} parent=1 // pred_check
      _
    $region3: #{gaussian_classifier_forward.1} parent=1 // pred_check_branch
      %16 = sbr.rel (0) target = $region5
    $region4: #{gaussian_classifier_forward.1} parent=1 // pred_region
      _
    $region5: #{gaussian_classifier_forward.1} parent=1 // pred_fallthru
      _
    // Predicated region
    $region6: #{gaussian_classifier_forward.1} parent=1 // pred_check
      _
    $region7: #{gaussian_classifier_forward.1} parent=1 // pred_check_branch
      %18 = sbr.rel (0) target = $region9
    $region8: #{gaussian_classifier_forward.1} parent=1 // pred_region
      _
    $region9: #{gaussian_classifier_forward.1} parent=1 // pred_fallthru
      _
    // Predicated region
    $region10: #{gaussian_classifier_forward.1} parent=1 // pred_check
      _
    $region11: #{gaussian_classifier_forward.1} parent=1 // pred_check_branch
      %20 = sbr.rel (0) target = $region13
    $region12: #{gaussian_classifier_forward.1} parent=1 // pred_region
      _
    $region13: #{gaussian_classifier_forward.1} parent=1 // pred_fallthru
      _
    // Predicated region
    $region14: #{gaussian_classifier_forward.1} parent=1 // pred_check
      _
    $region15: #{gaussian_classifier_forward.1} parent=1 // pred_check_branch
      %22 = sbr.rel (0) target = $region17
    $region16: #{gaussian_classifier_forward.1} parent=1 // pred_region
      _
    $region17: #{gaussian_classifier_forward.1} parent=1 // pred_fallthru
      _
    // Predicated region
    $region18: #{gaussian_classifier_forward.1} parent=1 // pred_check
      _
    $region19: #{gaussian_classifier_forward.1} parent=1 // pred_check_branch
      %24 = sbr.rel (0) target = $region21
    $region20: #{gaussian_classifier_forward.1} parent=1 // pred_region
      _
    $region21: #{gaussian_classifier_forward.1} parent=1 // pred_fallthru
      _
    // Predicated region
    $region22: #{gaussian_classifier_forward.1} parent=1 // pred_check
      _
    $region23: #{gaussian_classifier_forward.1} parent=1 // pred_check_branch
      %26 = sbr.rel (0) target = $region25
    $region24: #{gaussian_classifier_forward.1} parent=1 // pred_region
      _
    $region25: #{gaussian_classifier_forward.1} parent=1 // pred_fallthru
      _
    // Predicated region
    $region26: #{gaussian_classifier_forward.1} parent=1 // pred_check
      _
    $region27: #{gaussian_classifier_forward.1} parent=1 // pred_check_branch
      %28 = sbr.rel (0) target = $region29
    $region28: #{gaussian_classifier_forward.1} parent=1 // pred_region
      _
    $region29: #{gaussian_classifier_forward.1} parent=1 // pred_fallthru
      _
    // Predicated region
    $region30: #{gaussian_classifier_forward.1} parent=1 // pred_check
      _
    $region31: #{gaussian_classifier_forward.1} parent=1 // pred_check_branch
      %30 = sbr.rel (0) target = $region33
    $region32: #{gaussian_classifier_forward.1} parent=1 // pred_region
      _
    $region33: #{gaussian_classifier_forward.1} parent=1 // pred_fallthru
      _
    // Predicated region
    $region34: #{gaussian_classifier_forward.1} parent=1 // pred_check
      _
    $region35: #{gaussian_classifier_forward.1} parent=1 // pred_check_branch
      %32 = sbr.rel (0) target = $region37
    $region36: #{gaussian_classifier_forward.1} parent=1 // pred_region
      _
    $region37: #{gaussian_classifier_forward.1} parent=1 // pred_fallthru
      _
    %vm34 = vcmask 7168
    %35 = vst.msk [vmem:[#allocation2] sm:$0xff] %vm34, 0.0
    %36 = vst.msk [vmem:[#allocation2 + $0x8] sm:$0xff] %vm34, 0.0
    %vm37 = vcmask 1024
    %38 = vst.msk [vmem:[#allocation2 + $0x10] sm:$0x3] %vm37, 0.0
    %39 = vst.msk [vmem:[#allocation2 + $0x18] sm:$0xff] %vm34, 0.0
    %40 = vst.msk [vmem:[#allocation2 + $0x20] sm:$0xff] %vm34, 0.0
    %41 = vst.msk [vmem:[#allocation2 + $0x28] sm:$0x3] %vm37, 0.0
    %42 = vst.msk [vmem:[#allocation2 + $0x30] sm:$0xff] %vm34, 0.0
    %43 = vst.msk [vmem:[#allocation2 + $0x38] sm:$0xff] %vm34, 0.0
    %44 = vst.msk [vmem:[#allocation2 + $0x40] sm:$0x3] %vm37, 0.0
    %45 = vst.msk [vmem:[#allocation2 + $0x48] sm:$0xff] %vm34, 0.0
    %46 = vst.msk [vmem:[#allocation2 + $0x50] sm:$0xff] %vm34, 0.0
    %47 = vst.msk [vmem:[#allocation2 + $0x58] sm:$0x3] %vm37, 0.0
    %48 = vst.msk [vmem:[#allocation2 + $0x60] sm:$0xff] %vm34, 0.0
    %49 = vst.msk [vmem:[#allocation2 + $0x68] sm:$0xff] %vm34, 0.0
    %50 = vst.msk [vmem:[#allocation2 + $0x70] sm:$0x3] %vm37, 0.0
    %51 = vst.msk [vmem:[#allocation2 + $0x78] sm:$0xff] %vm34, 0.0
    %52 = vst.msk [vmem:[#allocation2 + $0x80] sm:$0xff] %vm34, 0.0
    %53 = vst.msk [vmem:[#allocation2 + $0x88] sm:$0x3] %vm37, 0.0
    %54 = vst.msk [vmem:[#allocation2 + $0x90] sm:$0xff] %vm34, 0.0
    %55 = vst.msk [vmem:[#allocation2 + $0x98] sm:$0xff] %vm34, 0.0
    %56 = vst.msk [vmem:[#allocation2 + $0xa0] sm:$0x3] %vm37, 0.0
    %57 = vst.msk [vmem:[#allocation2 + $0xa8] sm:$0xff] %vm34, 0.0
    %58 = vst.msk [vmem:[#allocation2 + $0xb0] sm:$0xff] %vm34, 0.0
    %59 = vst.msk [vmem:[#allocation2 + $0xb8] sm:$0x3] %vm37, 0.0
    %60 = vst.msk [vmem:[#allocation2 + $0xc0] sm:$0xff] %vm34, 0.0
    %61 = vst.msk [vmem:[#allocation2 + $0xc8] sm:$0xff] %vm34, 0.0
    %62 = vst.msk [vmem:[#allocation2 + $0xd0] sm:$0x3] %vm37, 0.0
    %63 = vst.msk [vmem:[#allocation2 + $0xd8] sm:$0xff] %vm34, 0.0
    %64 = vst.msk [vmem:[#allocation2 + $0xe0] sm:$0xff] %vm34, 0.0
    %65 = vst.msk [vmem:[#allocation2 + $0xe8] sm:$0x3] %vm37, 0.0
    %66 = vst.msk [vmem:[#allocation2 + $0xf0] sm:$0xff] %vm34, 0.0
    %67 = vst.msk [vmem:[#allocation2 + $0xf8] sm:$0xff] %vm34, 0.0
    %68 = vst.msk [vmem:[#allocation2 + $0x100] sm:$0x3] %vm37, 0.0
    %69 = vst.msk [vmem:[#allocation2 + $0x108] sm:$0xff] %vm34, 0.0
    %70 = vst.msk [vmem:[#allocation2 + $0x110] sm:$0xff] %vm34, 0.0
    %71 = vst.msk [vmem:[#allocation2 + $0x118] sm:$0x3] %vm37, 0.0
    %72 = vst.msk [vmem:[#allocation2 + $0x120] sm:$0xff] %vm34, 0.0
    %73 = vst.msk [vmem:[#allocation2 + $0x128] sm:$0xff] %vm34, 0.0
    %74 = vst.msk [vmem:[#allocation2 + $0x130] sm:$0x3] %vm37, 0.0
    %75 = vst.msk [vmem:[#allocation2 + $0x138] sm:$0xff] %vm34, 0.0
    %76 = vst.msk [vmem:[#allocation2 + $0x140] sm:$0xff] %vm34, 0.0
    %77 = vst.msk [vmem:[#allocation2 + $0x148] sm:$0x3] %vm37, 0.0
    %78 = vst.msk [vmem:[#allocation2 + $0x150] sm:$0xff] %vm34, 0.0
    %79 = vst.msk [vmem:[#allocation2 + $0x158] sm:$0xff] %vm34, 0.0
    %80 = vst.msk [vmem:[#allocation2 + $0x160] sm:$0x3] %vm37, 0.0
    %81 = vst.msk [vmem:[#allocation2 + $0x168] sm:$0xff] %vm34, 0.0
    %82 = vst.msk [vmem:[#allocation2 + $0x170] sm:$0xff] %vm34, 0.0
    %83 = vst.msk [vmem:[#allocation2 + $0x178] sm:$0x3] %vm37, 0.0
    %84 = vst.msk [vmem:[#allocation2 + $0x180] sm:$0xff] %vm34, 0.0
    %85 = vst.msk [vmem:[#allocation2 + $0x188] sm:$0xff] %vm34, 0.0
    %86 = vst.msk [vmem:[#allocation2 + $0x190] sm:$0x3] %vm37, 0.0
    %87 = vst.msk [vmem:[#allocation2 + $0x198] sm:$0xff] %vm34, 0.0
    %88 = vst.msk [vmem:[#allocation2 + $0x1a0] sm:$0xff] %vm34, 0.0
    %89 = vst.msk [vmem:[#allocation2 + $0x1a8] sm:$0x3] %vm37, 0.0
    %90 = vst.msk [vmem:[#allocation2 + $0x1b0] sm:$0xff] %vm34, 0.0
    %91 = vst.msk [vmem:[#allocation2 + $0x1b8] sm:$0xff] %vm34, 0.0
    %92 = vst.msk [vmem:[#allocation2 + $0x1c0] sm:$0x3] %vm37, 0.0
    %93 = vst.msk [vmem:[#allocation2 + $0x1c8] sm:$0xff] %vm34, 0.0
    %94 = vst.msk [vmem:[#allocation2 + $0x1d0] sm:$0xff] %vm34, 0.0
    %95 = vst.msk [vmem:[#allocation2 + $0x1d8] sm:$0x3] %vm37, 0.0
    %96 = vst.msk [vmem:[#allocation2 + $0x1e0] sm:$0xff] %vm34, 0.0
    %97 = vst.msk [vmem:[#allocation2 + $0x1e8] sm:$0xff] %vm34, 0.0
    %98 = vst.msk [vmem:[#allocation2 + $0x1f0] sm:$0x3] %vm37, 0.0
    %99 = vst.msk [vmem:[#allocation2 + $0x1f8] sm:$0xff] %vm34, 0.0
    %100 = vst.msk [vmem:[#allocation2 + $0x200] sm:$0xff] %vm34, 0.0
    %101 = vst.msk [vmem:[#allocation2 + $0x208] sm:$0x3] %vm37, 0.0
    %102 = vst.msk [vmem:[#allocation2 + $0x210] sm:$0xff] %vm34, 0.0
    %103 = vst.msk [vmem:[#allocation2 + $0x218] sm:$0xff] %vm34, 0.0
    %104 = vst.msk [vmem:[#allocation2 + $0x220] sm:$0x3] %vm37, 0.0
    %105 = vst.msk [vmem:[#allocation2 + $0x228] sm:$0xff] %vm34, 0.0
    %106 = vst.msk [vmem:[#allocation2 + $0x230] sm:$0xff] %vm34, 0.0
    %107 = vst.msk [vmem:[#allocation2 + $0x238] sm:$0x3] %vm37, 0.0
    %108 = vst.msk [vmem:[#allocation2 + $0x240] sm:$0xff] %vm34, 0.0
    %109 = vst.msk [vmem:[#allocation2 + $0x248] sm:$0xff] %vm34, 0.0
    %110 = vst.msk [vmem:[#allocation2 + $0x250] sm:$0x3] %vm37, 0.0
    %111 = vst.msk [vmem:[#allocation2 + $0x258] sm:$0xff] %vm34, 0.0
    %112 = vst.msk [vmem:[#allocation2 + $0x260] sm:$0xff] %vm34, 0.0
    %113 = vst.msk [vmem:[#allocation2 + $0x268] sm:$0x3] %vm37, 0.0
    %114 = vst.msk [vmem:[#allocation2 + $0x270] sm:$0xff] %vm34, 0.0
    %115 = vst.msk [vmem:[#allocation2 + $0x278] sm:$0xff] %vm34, 0.0
    %116 = vst.msk [vmem:[#allocation2 + $0x280] sm:$0x3] %vm37, 0.0
    %117 = vst.msk [vmem:[#allocation2 + $0x288] sm:$0xff] %vm34, 0.0
    %118 = vst.msk [vmem:[#allocation2 + $0x290] sm:$0xff] %vm34, 0.0
    %119 = vst.msk [vmem:[#allocation2 + $0x298] sm:$0x3] %vm37, 0.0
    %120 = vst.msk [vmem:[#allocation2 + $0x2a0] sm:$0xff] %vm34, 0.0
    %121 = vst.msk [vmem:[#allocation2 + $0x2a8] sm:$0xff] %vm34, 0.0
    %122 = vst.msk [vmem:[#allocation2 + $0x2b0] sm:$0x3] %vm37, 0.0
    %123 = vst.msk [vmem:[#allocation2 + $0x2b8] sm:$0xff] %vm34, 0.0
    %124 = vst.msk [vmem:[#allocation2 + $0x2c0] sm:$0xff] %vm34, 0.0
    %125 = vst.msk [vmem:[#allocation2 + $0x2c8] sm:$0x3] %vm37, 0.0
    %126 = vst.msk [vmem:[#allocation2 + $0x2d0] sm:$0xff] %vm34, 0.0
    %127 = vst.msk [vmem:[#allocation2 + $0x2d8] sm:$0xff] %vm34, 0.0
    %128 = vst.msk [vmem:[#allocation2 + $0x2e0] sm:$0x3] %vm37, 0.0
    %129 = vst.msk [vmem:[#allocation2 + $0x2e8] sm:$0xff] %vm34, 0.0
    %130 = vst.msk [vmem:[#allocation2 + $0x2f0] sm:$0xff] %vm34, 0.0
    %131 = vst.msk [vmem:[#allocation2 + $0x2f8] sm:$0x3] %vm37, 0.0
    %132 = vst.msk [vmem:[#allocation2 + $0x300] sm:$0xff] %vm34, 0.0
    %133 = vst.msk [vmem:[#allocation2 + $0x308] sm:$0xff] %vm34, 0.0
    %134 = vst.msk [vmem:[#allocation2 + $0x310] sm:$0x3] %vm37, 0.0
    %135 = vst.msk [vmem:[#allocation2 + $0x318] sm:$0xff] %vm34, 0.0
    %136 = vst.msk [vmem:[#allocation2 + $0x320] sm:$0xff] %vm34, 0.0
    %137 = vst.msk [vmem:[#allocation2 + $0x328] sm:$0x3] %vm37, 0.0
    %138 = vst.msk [vmem:[#allocation2 + $0x330] sm:$0xff] %vm34, 0.0
    %139 = vst.msk [vmem:[#allocation2 + $0x338] sm:$0xff] %vm34, 0.0
    %140 = vst.msk [vmem:[#allocation2 + $0x340] sm:$0x3] %vm37, 0.0
    %141 = vst.msk [vmem:[#allocation2 + $0x348] sm:$0xff] %vm34, 0.0
    %142 = vst.msk [vmem:[#allocation2 + $0x350] sm:$0xff] %vm34, 0.0
    %143 = vst.msk [vmem:[#allocation2 + $0x358] sm:$0x3] %vm37, 0.0
    %v144 = vld [vmem:[%s0] sm:$0xff]
    %v145 = vld [vmem:[%s0 + $0x8] sm:$0xff]
    %v146 = vld [vmem:[%s0 + $0x10] sm:$0xff]
    %v147 = vld [vmem:[%s0 + $0x18] sm:$0xff]
    %v148 = vld [vmem:[%s0 + $0x20] sm:$0xff]
    %v149 = vld [vmem:[%s0 + $0x28] sm:$0xff]
    %v150 = vld [vmem:[%s0 + $0x30] sm:$0xff]
    %v151 = vld [vmem:[%s0 + $0x38] sm:$0xff]
    %v152 = vld [vmem:[%s0 + $0x40] sm:$0xff]
    %v153 = vld [vmem:[%s0 + $0x48] sm:$0xff]
    %v154 = vld [vmem:[%s0 + $0x50] sm:$0xff]
    %v155 = vld [vmem:[%s0 + $0x58] sm:$0xff]
    %v156 = vld [vmem:[%s0 + $0x60] sm:$0xff]
    %v157 = vld [vmem:[%s0 + $0x68] sm:$0xff]
    %v158 = vld [vmem:[%s0 + $0x70] sm:$0xff]
    %v159 = vld [vmem:[%s0 + $0x78] sm:$0xff]
    %v160 = vld [vmem:[%s0 + $0x80] sm:$0xff]
    %v161 = vld [vmem:[%s0 + $0x88] sm:$0xff]
    %v162 = vld [vmem:[%s0 + $0x90] sm:$0xff]
    %v163 = vld [vmem:[%s0 + $0x98] sm:$0xff]
    %v164 = vld [vmem:[%s0 + $0xa0] sm:$0xff]
    %v165 = vld [vmem:[%s0 + $0xa8] sm:$0xff]
    %v166 = vld [vmem:[%s0 + $0xb0] sm:$0xff]
    %v167 = vld [vmem:[%s0 + $0xb8] sm:$0xff]
    %v168 = vld [vmem:[%s0 + $0xc0] sm:$0xff]
    %v169 = vld [vmem:[%s0 + $0xc8] sm:$0xff]
    %v170 = vld [vmem:[%s0 + $0xd0] sm:$0xff]
    %v171 = vld [vmem:[%s0 + $0xd8] sm:$0xff]
    %v172 = vld [vmem:[%s0 + $0xe0] sm:$0xff]
    %v173 = vld [vmem:[%s0 + $0xe8] sm:$0xff]
    %v174 = vld [vmem:[%s0 + $0xf0] sm:$0xff]
    %v175 = vld [vmem:[%s0 + $0xf8] sm:$0xff]
    %v176 = vld [vmem:[%s0 + $0x100] sm:$0xff]
    %v177 = vld [vmem:[%s0 + $0x108] sm:$0xff]
    %v178 = vld [vmem:[%s0 + $0x110] sm:$0xff]
    %v179 = vld [vmem:[%s0 + $0x118] sm:$0xff]
    %v180 = vld [vmem:[%s0 + $0x120] sm:$0xff]
    %v181 = vld [vmem:[%s0 + $0x128] sm:$0xff]
    %v182 = vld [vmem:[%s0 + $0x130] sm:$0xff]
    %v183 = vld [vmem:[%s0 + $0x138] sm:$0xff]
    %v184 = vld [vmem:[%s0 + $0x140] sm:$0xff]
    %v185 = vld [vmem:[%s0 + $0x148] sm:$0xff]
    %v186 = vld [vmem:[%s0 + $0x150] sm:$0xff]
    %v187 = vld [vmem:[%s0 + $0x158] sm:$0xff]
    %v188 = vld [vmem:[%s0 + $0x160] sm:$0xff]
    %v189 = vld [vmem:[%s0 + $0x168] sm:$0xff]
    %v190 = vld [vmem:[%s0 + $0x170] sm:$0xff]
    %v191 = vld [vmem:[%s0 + $0x178] sm:$0xff]
    %v192 = vld [vmem:[%s0 + $0x180] sm:$0xff]
    %v193 = vld [vmem:[%s0 + $0x188] sm:$0xff]
    %v194 = vld [vmem:[%s0 + $0x190] sm:$0xff]
    %v195 = vld [vmem:[%s0 + $0x198] sm:$0xff]
    %v196 = vld [vmem:[%s0 + $0x1a0] sm:$0xff]
    %v197 = vld [vmem:[%s0 + $0x1a8] sm:$0xff]
    %v198 = vld [vmem:[%s0 + $0x1b0] sm:$0xff]
    %v199 = vld [vmem:[%s0 + $0x1b8] sm:$0xff]
    %v200 = vld [vmem:[%s0 + $0x1c0] sm:$0xff]
    %v201 = vld [vmem:[%s0 + $0x1c8] sm:$0xff]
    %v202 = vld [vmem:[%s0 + $0x1d0] sm:$0xff]
    %v203 = vld [vmem:[%s0 + $0x1d8] sm:$0xff]
    %v204 = vld [vmem:[%s0 + $0x1e0] sm:$0xff]
    %v205 = vld [vmem:[%s0 + $0x1e8] sm:$0xff]
    %v206 = vld [vmem:[%s0 + $0x1f0] sm:$0xff]
    %v207 = vld [vmem:[%s0 + $0x1f8] sm:$0xff]
    %s208 = scalar_lea.vmem [#allocation2], 24
    %209 = vst.msk [vmem:[%s208 + $0x1] sm:$0xff] %vm34, %v144
    %210 = vst.msk [vmem:[%s208 + $0x9] sm:$0xff] %vm34, %v145
    %211 = vst.msk [vmem:[%s208 + $0x19] sm:$0xff] %vm34, %v146
    %212 = vst.msk [vmem:[%s208 + $0x21] sm:$0xff] %vm34, %v147
    %213 = vst.msk [vmem:[%s208 + $0x31] sm:$0xff] %vm34, %v148
    %214 = vst.msk [vmem:[%s208 + $0x39] sm:$0xff] %vm34, %v149
    %215 = vst.msk [vmem:[%s208 + $0x49] sm:$0xff] %vm34, %v150
    %216 = vst.msk [vmem:[%s208 + $0x51] sm:$0xff] %vm34, %v151
    %217 = vst.msk [vmem:[%s208 + $0x61] sm:$0xff] %vm34, %v152
    %218 = vst.msk [vmem:[%s208 + $0x69] sm:$0xff] %vm34, %v153
    %219 = vst.msk [vmem:[%s208 + $0x79] sm:$0xff] %vm34, %v154
    %220 = vst.msk [vmem:[%s208 + $0x81] sm:$0xff] %vm34, %v155
    %221 = vst.msk [vmem:[%s208 + $0x91] sm:$0xff] %vm34, %v156
    %222 = vst.msk [vmem:[%s208 + $0x99] sm:$0xff] %vm34, %v157
    %223 = vst.msk [vmem:[%s208 + $0xa9] sm:$0xff] %vm34, %v158
    %224 = vst.msk [vmem:[%s208 + $0xb1] sm:$0xff] %vm34, %v159
    %225 = vst.msk [vmem:[%s208 + $0xc1] sm:$0xff] %vm34, %v160
    %226 = vst.msk [vmem:[%s208 + $0xc9] sm:$0xff] %vm34, %v161
    %227 = vst.msk [vmem:[%s208 + $0xd9] sm:$0xff] %vm34, %v162
    %228 = vst.msk [vmem:[%s208 + $0xe1] sm:$0xff] %vm34, %v163
    %229 = vst.msk [vmem:[%s208 + $0xf1] sm:$0xff] %vm34, %v164
    %230 = vst.msk [vmem:[%s208 + $0xf9] sm:$0xff] %vm34, %v165
    %231 = vst.msk [vmem:[%s208 + $0x109] sm:$0xff] %vm34, %v166
    %232 = vst.msk [vmem:[%s208 + $0x111] sm:$0xff] %vm34, %v167
    %233 = vst.msk [vmem:[%s208 + $0x121] sm:$0xff] %vm34, %v168
    %234 = vst.msk [vmem:[%s208 + $0x129] sm:$0xff] %vm34, %v169
    %235 = vst.msk [vmem:[%s208 + $0x139] sm:$0xff] %vm34, %v170
    %236 = vst.msk [vmem:[%s208 + $0x141] sm:$0xff] %vm34, %v171
    %237 = vst.msk [vmem:[%s208 + $0x151] sm:$0xff] %vm34, %v172
    %238 = vst.msk [vmem:[%s208 + $0x159] sm:$0xff] %vm34, %v173
    %239 = vst.msk [vmem:[%s208 + $0x169] sm:$0xff] %vm34, %v174
    %240 = vst.msk [vmem:[%s208 + $0x171] sm:$0xff] %vm34, %v175
    %241 = vst.msk [vmem:[%s208 + $0x1b1] sm:$0xff] %vm34, %v176
    %242 = vst.msk [vmem:[%s208 + $0x1b9] sm:$0xff] %vm34, %v177
    %243 = vst.msk [vmem:[%s208 + $0x1c9] sm:$0xff] %vm34, %v178
    %244 = vst.msk [vmem:[%s208 + $0x1d1] sm:$0xff] %vm34, %v179
    %245 = vst.msk [vmem:[%s208 + $0x1e1] sm:$0xff] %vm34, %v180
    %246 = vst.msk [vmem:[%s208 + $0x1e9] sm:$0xff] %vm34, %v181
    %247 = vst.msk [vmem:[%s208 + $0x1f9] sm:$0xff] %vm34, %v182
    %248 = vst.msk [vmem:[%s208 + $0x201] sm:$0xff] %vm34, %v183
    %249 = vst.msk [vmem:[%s208 + $0x211] sm:$0xff] %vm34, %v184
    %250 = vst.msk [vmem:[%s208 + $0x219] sm:$0xff] %vm34, %v185
    %251 = vst.msk [vmem:[%s208 + $0x229] sm:$0xff] %vm34, %v186
    %252 = vst.msk [vmem:[%s208 + $0x231] sm:$0xff] %vm34, %v187
    %253 = vst.msk [vmem:[%s208 + $0x241] sm:$0xff] %vm34, %v188
    %254 = vst.msk [vmem:[%s208 + $0x249] sm:$0xff] %vm34, %v189
    %255 = vst.msk [vmem:[%s208 + $0x259] sm:$0xff] %vm34, %v190
    %256 = vst.msk [vmem:[%s208 + $0x261] sm:$0xff] %vm34, %v191
    %257 = vst.msk [vmem:[%s208 + $0x271] sm:$0xff] %vm34, %v192
    %258 = vst.msk [vmem:[%s208 + $0x279] sm:$0xff] %vm34, %v193
    %259 = vst.msk [vmem:[%s208 + $0x289] sm:$0xff] %vm34, %v194
    %260 = vst.msk [vmem:[%s208 + $0x291] sm:$0xff] %vm34, %v195
    %261 = vst.msk [vmem:[%s208 + $0x2a1] sm:$0xff] %vm34, %v196
    %262 = vst.msk [vmem:[%s208 + $0x2a9] sm:$0xff] %vm34, %v197
    %263 = vst.msk [vmem:[%s208 + $0x2b9] sm:$0xff] %vm34, %v198
    %264 = vst.msk [vmem:[%s208 + $0x2c1] sm:$0xff] %vm34, %v199
    %265 = vst.msk [vmem:[%s208 + $0x2d1] sm:$0xff] %vm34, %v200
    %266 = vst.msk [vmem:[%s208 + $0x2d9] sm:$0xff] %vm34, %v201
    %267 = vst.msk [vmem:[%s208 + $0x2e9] sm:$0xff] %vm34, %v202
    %268 = vst.msk [vmem:[%s208 + $0x2f1] sm:$0xff] %vm34, %v203
    %269 = vst.msk [vmem:[%s208 + $0x301] sm:$0xff] %vm34, %v204
    %270 = vst.msk [vmem:[%s208 + $0x309] sm:$0xff] %vm34, %v205
    %271 = vst.msk [vmem:[%s208 + $0x319] sm:$0xff] %vm34, %v206
    %272 = vst.msk [vmem:[%s208 + $0x321] sm:$0xff] %vm34, %v207
    %v273 = vld [vmem:[#allocation2] sm:$0xff]
    %v274 = vld [vmem:[#allocation2 + $0x8] sm:$0xff]
    %v275 = vld [vmem:[#allocation2 + $0x18] sm:$0xff]
    %v276 = vld [vmem:[#allocation2 + $0x20] sm:$0xff]
    %v277 = vld [vmem:[#allocation2 + $0x30] sm:$0xff]
    %v278 = vld [vmem:[#allocation2 + $0x38] sm:$0xff]
    %v279 = vld [vmem:[#allocation2 + $0x48] sm:$0xff]
    %v280 = vld [vmem:[#allocation2 + $0x50] sm:$0xff]
    %v281 = vld [vmem:[#allocation2 + $0x60] sm:$0xff]
    %v282 = vld [vmem:[#allocation2 + $0x68] sm:$0xff]
    %v283 = vld [vmem:[#allocation2 + $0x78] sm:$0xff]
    %v284 = vld [vmem:[#allocation2 + $0x80] sm:$0xff]
    %v285 = vld [vmem:[#allocation2 + $0x90] sm:$0xff]
    %v286 = vld [vmem:[#allocation2 + $0x98] sm:$0xff]
    %v287 = vld [vmem:[#allocation2 + $0xa8] sm:$0xff]
    %v288 = vld [vmem:[#allocation2 + $0xb0] sm:$0xff]
    %v289 = vld [vmem:[#allocation2 + $0xc0] sm:$0xff]
    %v290 = vld [vmem:[#allocation2 + $0xc8] sm:$0xff]
    %v291 = vld [vmem:[#allocation2 + $0xd8] sm:$0xff]
    %v292 = vld [vmem:[#allocation2 + $0xe0] sm:$0xff]
    %v293 = vld [vmem:[#allocation2 + $0xf0] sm:$0xff]
    %v294 = vld [vmem:[#allocation2 + $0xf8] sm:$0xff]
    %v295 = vld [vmem:[#allocation2 + $0x108] sm:$0xff]
    %v296 = vld [vmem:[#allocation2 + $0x110] sm:$0xff]
    %v297 = vld [vmem:[#allocation2 + $0x120] sm:$0xff]
    %v298 = vld [vmem:[#allocation2 + $0x128] sm:$0xff]
    %v299 = vld [vmem:[#allocation2 + $0x138] sm:$0xff]
    %v300 = vld [vmem:[#allocation2 + $0x140] sm:$0xff]
    %v301 = vld [vmem:[#allocation2 + $0x150] sm:$0xff]
    %v302 = vld [vmem:[#allocation2 + $0x158] sm:$0xff]
    %v303 = vld [vmem:[#allocation2 + $0x168] sm:$0xff]
    %v304 = vld [vmem:[#allocation2 + $0x170] sm:$0xff]
    %v305 = vld [vmem:[#allocation2 + $0x1b0] sm:$0xff]
    %v306 = vld [vmem:[#allocation2 + $0x1b8] sm:$0xff]
    %v307 = vld [vmem:[#allocation2 + $0x1c8] sm:$0xff]
    %v308 = vld [vmem:[#allocation2 + $0x1d0] sm:$0xff]
    %v309 = vld [vmem:[#allocation2 + $0x1e0] sm:$0xff]
    %v310 = vld [vmem:[#allocation2 + $0x1e8] sm:$0xff]
    %v311 = vld [vmem:[#allocation2 + $0x1f8] sm:$0xff]
    %v312 = vld [vmem:[#allocation2 + $0x200] sm:$0xff]
    %v313 = vld [vmem:[#allocation2 + $0x210] sm:$0xff]
    %v314 = vld [vmem:[#allocation2 + $0x218] sm:$0xff]
    %v315 = vld [vmem:[#allocation2 + $0x228] sm:$0xff]
    %v316 = vld [vmem:[#allocation2 + $0x230] sm:$0xff]
    %v317 = vld [vmem:[#allocation2 + $0x240] sm:$0xff]
    %v318 = vld [vmem:[#allocation2 + $0x248] sm:$0xff]
    %v319 = vld [vmem:[#allocation2 + $0x258] sm:$0xff]
    %v320 = vld [vmem:[#allocation2 + $0x260] sm:$0xff]
    %v321 = vld [vmem:[#allocation2 + $0x270] sm:$0xff]
    %v322 = vld [vmem:[#allocation2 + $0x278] sm:$0xff]
    %v323 = vld [vmem:[#allocation2 + $0x288] sm:$0xff]
    %v324 = vld [vmem:[#allocation2 + $0x290] sm:$0xff]
    %v325 = vld [vmem:[#allocation2 + $0x2a0] sm:$0xff]
    %v326 = vld [vmem:[#allocation2 + $0x2a8] sm:$0xff]
    %v327 = vld [vmem:[#allocation2 + $0x2b8] sm:$0xff]
    %v328 = vld [vmem:[#allocation2 + $0x2c0] sm:$0xff]
    %v329 = vld [vmem:[#allocation2 + $0x2d0] sm:$0xff]
    %v330 = vld [vmem:[#allocation2 + $0x2d8] sm:$0xff]
    %v331 = vld [vmem:[#allocation2 + $0x2e8] sm:$0xff]
    %v332 = vld [vmem:[#allocation2 + $0x2f0] sm:$0xff]
    %v333 = vld [vmem:[#allocation2 + $0x300] sm:$0xff]
    %v334 = vld [vmem:[#allocation2 + $0x308] sm:$0xff]
    %v335 = vld [vmem:[#allocation2 + $0x318] sm:$0xff]
    %v336 = vld [vmem:[#allocation2 + $0x320] sm:$0xff]
    %337 = vst.msk [vmem:[#allocation3] sm:$0xff] %vm34, %v273
    %338 = vst.msk [vmem:[#allocation3 + $0x8] sm:$0xff] %vm34, %v274
    %339 = vst.msk [vmem:[#allocation3 + $0x10] sm:$0xff] %vm34, %v275
    %340 = vst.msk [vmem:[#allocation3 + $0x18] sm:$0xff] %vm34, %v276
    %341 = vst.msk [vmem:[#allocation3 + $0x20] sm:$0xff] %vm34, %v277
    %342 = vst.msk [vmem:[#allocation3 + $0x28] sm:$0xff] %vm34, %v278
    %343 = vst.msk [vmem:[#allocation3 + $0x30] sm:$0xff] %vm34, %v279
    %344 = vst.msk [vmem:[#allocation3 + $0x38] sm:$0xff] %vm34, %v280
    %345 = vst.msk [vmem:[#allocation3 + $0x40] sm:$0xff] %vm34, %v281
    %346 = vst.msk [vmem:[#allocation3 + $0x48] sm:$0xff] %vm34, %v282
    %347 = vst.msk [vmem:[#allocation3 + $0x50] sm:$0xff] %vm34, %v283
    %348 = vst.msk [vmem:[#allocation3 + $0x58] sm:$0xff] %vm34, %v284
    %349 = vst.msk [vmem:[#allocation3 + $0x60] sm:$0xff] %vm34, %v285
    %350 = vst.msk [vmem:[#allocation3 + $0x68] sm:$0xff] %vm34, %v286
    %351 = vst.msk [vmem:[#allocation3 + $0x70] sm:$0xff] %vm34, %v287
    %352 = vst.msk [vmem:[#allocation3 + $0x78] sm:$0xff] %vm34, %v288
    %353 = vst.msk [vmem:[#allocation3 + $0x80] sm:$0xff] %vm34, %v289
    %354 = vst.msk [vmem:[#allocation3 + $0x88] sm:$0xff] %vm34, %v290
    %355 = vst.msk [vmem:[#allocation3 + $0x90] sm:$0xff] %vm34, %v291
    %356 = vst.msk [vmem:[#allocation3 + $0x98] sm:$0xff] %vm34, %v292
    %357 = vst.msk [vmem:[#allocation3 + $0xa0] sm:$0xff] %vm34, %v293
    %358 = vst.msk [vmem:[#allocation3 + $0xa8] sm:$0xff] %vm34, %v294
    %359 = vst.msk [vmem:[#allocation3 + $0xb0] sm:$0xff] %vm34, %v295
    %360 = vst.msk [vmem:[#allocation3 + $0xb8] sm:$0xff] %vm34, %v296
    %361 = vst.msk [vmem:[#allocation3 + $0xc0] sm:$0xff] %vm34, %v297
    %362 = vst.msk [vmem:[#allocation3 + $0xc8] sm:$0xff] %vm34, %v298
    %363 = vst.msk [vmem:[#allocation3 + $0xd0] sm:$0xff] %vm34, %v299
    %364 = vst.msk [vmem:[#allocation3 + $0xd8] sm:$0xff] %vm34, %v300
    %365 = vst.msk [vmem:[#allocation3 + $0xe0] sm:$0xff] %vm34, %v301
    %366 = vst.msk [vmem:[#allocation3 + $0xe8] sm:$0xff] %vm34, %v302
    %367 = vst.msk [vmem:[#allocation3 + $0xf0] sm:$0xff] %vm34, %v303
    %368 = vst.msk [vmem:[#allocation3 + $0xf8] sm:$0xff] %vm34, %v304
    %369 = vst.msk [vmem:[#allocation3 + $0x100] sm:$0xff] %vm34, %v305
    %370 = vst.msk [vmem:[#allocation3 + $0x108] sm:$0xff] %vm34, %v306
    %371 = vst.msk [vmem:[#allocation3 + $0x110] sm:$0xff] %vm34, %v307
    %372 = vst.msk [vmem:[#allocation3 + $0x118] sm:$0xff] %vm34, %v308
    %373 = vst.msk [vmem:[#allocation3 + $0x120] sm:$0xff] %vm34, %v309
    %374 = vst.msk [vmem:[#allocation3 + $0x128] sm:$0xff] %vm34, %v310
    %375 = vst.msk [vmem:[#allocation3 + $0x130] sm:$0xff] %vm34, %v311
    %376 = vst.msk [vmem:[#allocation3 + $0x138] sm:$0xff] %vm34, %v312
    %377 = vst.msk [vmem:[#allocation3 + $0x140] sm:$0xff] %vm34, %v313
    %378 = vst.msk [vmem:[#allocation3 + $0x148] sm:$0xff] %vm34, %v314
    %379 = vst.msk [vmem:[#allocation3 + $0x150] sm:$0xff] %vm34, %v315
    %380 = vst.msk [vmem:[#allocation3 + $0x158] sm:$0xff] %vm34, %v316
    %381 = vst.msk [vmem:[#allocation3 + $0x160] sm:$0xff] %vm34, %v317
    %382 = vst.msk [vmem:[#allocation3 + $0x168] sm:$0xff] %vm34, %v318
    %383 = vst.msk [vmem:[#allocation3 + $0x170] sm:$0xff] %vm34, %v319
    %384 = vst.msk [vmem:[#allocation3 + $0x178] sm:$0xff] %vm34, %v320
    %385 = vst.msk [vmem:[#allocation3 + $0x180] sm:$0xff] %vm34, %v321
    %386 = vst.msk [vmem:[#allocation3 + $0x188] sm:$0xff] %vm34, %v322
    %387 = vst.msk [vmem:[#allocation3 + $0x190] sm:$0xff] %vm34, %v323
    %388 = vst.msk [vmem:[#allocation3 + $0x198] sm:$0xff] %vm34, %v324
    %389 = vst.msk [vmem:[#allocation3 + $0x1a0] sm:$0xff] %vm34, %v325
    %390 = vst.msk [vmem:[#allocation3 + $0x1a8] sm:$0xff] %vm34, %v326
    %391 = vst.msk [vmem:[#allocation3 + $0x1b0] sm:$0xff] %vm34, %v327
    %392 = vst.msk [vmem:[#allocation3 + $0x1b8] sm:$0xff] %vm34, %v328
    %393 = vst.msk [vmem:[#allocation3 + $0x1c0] sm:$0xff] %vm34, %v329
    %394 = vst.msk [vmem:[#allocation3 + $0x1c8] sm:$0xff] %vm34, %v330
    %395 = vst.msk [vmem:[#allocation3 + $0x1d0] sm:$0xff] %vm34, %v331
    %396 = vst.msk [vmem:[#allocation3 + $0x1d8] sm:$0xff] %vm34, %v332
    %397 = vst.msk [vmem:[#allocation3 + $0x1e0] sm:$0xff] %vm34, %v333
    %398 = vst.msk [vmem:[#allocation3 + $0x1e8] sm:$0xff] %vm34, %v334
    %399 = vst.msk [vmem:[#allocation3 + $0x1f0] sm:$0xff] %vm34, %v335
    %400 = vst.msk [vmem:[#allocation3 + $0x1f8] sm:$0xff] %vm34, %v336
    %v401 = vld [vmem:[#allocation2 + $0x1] sm:$0xff]
    %v402 = vld [vmem:[#allocation2 + $0x9] sm:$0xff]
    %v403 = vld [vmem:[#allocation2 + $0x19] sm:$0xff]
    %v404 = vld [vmem:[#allocation2 + $0x21] sm:$0xff]
    %v405 = vld [vmem:[#allocation2 + $0x31] sm:$0xff]
    %v406 = vld [vmem:[#allocation2 + $0x39] sm:$0xff]
    %v407 = vld [vmem:[#allocation2 + $0x49] sm:$0xff]
    %v408 = vld [vmem:[#allocation2 + $0x51] sm:$0xff]
    %v409 = vld [vmem:[#allocation2 + $0x61] sm:$0xff]
    %v410 = vld [vmem:[#allocation2 + $0x69] sm:$0xff]
    %v411 = vld [vmem:[#allocation2 + $0x79] sm:$0xff]
    %v412 = vld [vmem:[#allocation2 + $0x81] sm:$0xff]
    %v413 = vld [vmem:[#allocation2 + $0x91] sm:$0xff]
    %v414 = vld [vmem:[#allocation2 + $0x99] sm:$0xff]
    %v415 = vld [vmem:[#allocation2 + $0xa9] sm:$0xff]
    %v416 = vld [vmem:[#allocation2 + $0xb1] sm:$0xff]
    %v417 = vld [vmem:[#allocation2 + $0xc1] sm:$0xff]
    %v418 = vld [vmem:[#allocation2 + $0xc9] sm:$0xff]
    %v419 = vld [vmem:[#allocation2 + $0xd9] sm:$0xff]
    %v420 = vld [vmem:[#allocation2 + $0xe1] sm:$0xff]
    %v421 = vld [vmem:[#allocation2 + $0xf1] sm:$0xff]
    %v422 = vld [vmem:[#allocation2 + $0xf9] sm:$0xff]
    %v423 = vld [vmem:[#allocation2 + $0x109] sm:$0xff]
    %v424 = vld [vmem:[#allocation2 + $0x111] sm:$0xff]
    %v425 = vld [vmem:[#allocation2 + $0x121] sm:$0xff]
    %v426 = vld [vmem:[#allocation2 + $0x129] sm:$0xff]
    %v427 = vld [vmem:[#allocation2 + $0x139] sm:$0xff]
    %v428 = vld [vmem:[#allocation2 + $0x141] sm:$0xff]
    %v429 = vld [vmem:[#allocation2 + $0x151] sm:$0xff]
    %v430 = vld [vmem:[#allocation2 + $0x159] sm:$0xff]
    %v431 = vld [vmem:[#allocation2 + $0x169] sm:$0xff]
    %v432 = vld [vmem:[#allocation2 + $0x171] sm:$0xff]
    %v433 = vld [vmem:[#allocation2 + $0x1b1] sm:$0xff]
    %v434 = vld [vmem:[#allocation2 + $0x1b9] sm:$0xff]
    %v435 = vld [vmem:[#allocation2 + $0x1c9] sm:$0xff]
    %v436 = vld [vmem:[#allocation2 + $0x1d1] sm:$0xff]
    %v437 = vld [vmem:[#allocation2 + $0x1e1] sm:$0xff]
    %v438 = vld [vmem:[#allocation2 + $0x1e9] sm:$0xff]
    %v439 = vld [vmem:[#allocation2 + $0x1f9] sm:$0xff]
    %v440 = vld [vmem:[#allocation2 + $0x201] sm:$0xff]
    %v441 = vld [vmem:[#allocation2 + $0x211] sm:$0xff]
    %v442 = vld [vmem:[#allocation2 + $0x219] sm:$0xff]
    %v443 = vld [vmem:[#allocation2 + $0x229] sm:$0xff]
    %v444 = vld [vmem:[#allocation2 + $0x231] sm:$0xff]
    %v445 = vld [vmem:[#allocation2 + $0x241] sm:$0xff]
    %v446 = vld [vmem:[#allocation2 + $0x249] sm:$0xff]
    %v447 = vld [vmem:[#allocation2 + $0x259] sm:$0xff]
    %v448 = vld [vmem:[#allocation2 + $0x261] sm:$0xff]
    %v449 = vld [vmem:[#allocation2 + $0x271] sm:$0xff]
    %v450 = vld [vmem:[#allocation2 + $0x279] sm:$0xff]
    %v451 = vld [vmem:[#allocation2 + $0x289] sm:$0xff]
    %v452 = vld [vmem:[#allocation2 + $0x291] sm:$0xff]
    %v453 = vld [vmem:[#allocation2 + $0x2a1] sm:$0xff]
    %v454 = vld [vmem:[#allocation2 + $0x2a9] sm:$0xff]
    %v455 = vld [vmem:[#allocation2 + $0x2b9] sm:$0xff]
    %v456 = vld [vmem:[#allocation2 + $0x2c1] sm:$0xff]
    %v457 = vld [vmem:[#allocation2 + $0x2d1] sm:$0xff]
    %v458 = vld [vmem:[#allocation2 + $0x2d9] sm:$0xff]
    %v459 = vld [vmem:[#allocation2 + $0x2e9] sm:$0xff]
    %v460 = vld [vmem:[#allocation2 + $0x2f1] sm:$0xff]
    %v461 = vld [vmem:[#allocation2 + $0x301] sm:$0xff]
    %v462 = vld [vmem:[#allocation2 + $0x309] sm:$0xff]
    %v463 = vld [vmem:[#allocation2 + $0x319] sm:$0xff]
    %v464 = vld [vmem:[#allocation2 + $0x321] sm:$0xff]
    %529 = vrot.lane.b32.xlu0 %v401, 1
    %v530 = vpop.permute.xlu0 %529
    %531 = vrot.lane.b32.xlu0 %v402, 1
    %v532 = vpop.permute.xlu0 %531
    %533 = vrot.lane.b32.xlu0 %v403, 1
    %v534 = vpop.permute.xlu0 %533
    %535 = vrot.lane.b32.xlu0 %v404, 1
    %v536 = vpop.permute.xlu0 %535
    %537 = vrot.lane.b32.xlu0 %v405, 1
    %v538 = vpop.permute.xlu0 %537
    %539 = vrot.lane.b32.xlu0 %v406, 1
    %v540 = vpop.permute.xlu0 %539
    %541 = vrot.lane.b32.xlu0 %v407, 1
    %v542 = vpop.permute.xlu0 %541
    %543 = vrot.lane.b32.xlu0 %v408, 1
    %v544 = vpop.permute.xlu0 %543
    %545 = vrot.lane.b32.xlu0 %v409, 1
    %v546 = vpop.permute.xlu0 %545
    %547 = vrot.lane.b32.xlu0 %v410, 1
    %v548 = vpop.permute.xlu0 %547
    %549 = vrot.lane.b32.xlu0 %v411, 1
    %v550 = vpop.permute.xlu0 %549
    %551 = vrot.lane.b32.xlu0 %v412, 1
    %v552 = vpop.permute.xlu0 %551
    %553 = vrot.lane.b32.xlu0 %v413, 1
    %v554 = vpop.permute.xlu0 %553
    %555 = vrot.lane.b32.xlu0 %v414, 1
    %v556 = vpop.permute.xlu0 %555
    %557 = vrot.lane.b32.xlu0 %v415, 1
    %v558 = vpop.permute.xlu0 %557
    %559 = vrot.lane.b32.xlu0 %v416, 1
    %v560 = vpop.permute.xlu0 %559
    %561 = vrot.lane.b32.xlu0 %v417, 1
    %v562 = vpop.permute.xlu0 %561
    %563 = vrot.lane.b32.xlu0 %v418, 1
    %v564 = vpop.permute.xlu0 %563
    %565 = vrot.lane.b32.xlu0 %v419, 1
    %v566 = vpop.permute.xlu0 %565
    %567 = vrot.lane.b32.xlu0 %v420, 1
    %v568 = vpop.permute.xlu0 %567
    %569 = vrot.lane.b32.xlu0 %v421, 1
    %v570 = vpop.permute.xlu0 %569
    %571 = vrot.lane.b32.xlu0 %v422, 1
    %v572 = vpop.permute.xlu0 %571
    %573 = vrot.lane.b32.xlu0 %v423, 1
    %v574 = vpop.permute.xlu0 %573
    %575 = vrot.lane.b32.xlu0 %v424, 1
    %v576 = vpop.permute.xlu0 %575
    %577 = vrot.lane.b32.xlu0 %v425, 1
    %v578 = vpop.permute.xlu0 %577
    %579 = vrot.lane.b32.xlu0 %v426, 1
    %v580 = vpop.permute.xlu0 %579
    %581 = vrot.lane.b32.xlu0 %v427, 1
    %v582 = vpop.permute.xlu0 %581
    %583 = vrot.lane.b32.xlu0 %v428, 1
    %v584 = vpop.permute.xlu0 %583
    %585 = vrot.lane.b32.xlu0 %v429, 1
    %v586 = vpop.permute.xlu0 %585
    %587 = vrot.lane.b32.xlu0 %v430, 1
    %v588 = vpop.permute.xlu0 %587
    %589 = vrot.lane.b32.xlu0 %v431, 1
    %v590 = vpop.permute.xlu0 %589
    %591 = vrot.lane.b32.xlu0 %v432, 1
    %v592 = vpop.permute.xlu0 %591
    %593 = vrot.lane.b32.xlu0 %v433, 1
    %v594 = vpop.permute.xlu0 %593
    %595 = vrot.lane.b32.xlu0 %v434, 1
    %v596 = vpop.permute.xlu0 %595
    %597 = vrot.lane.b32.xlu0 %v435, 1
    %v598 = vpop.permute.xlu0 %597
    %599 = vrot.lane.b32.xlu0 %v436, 1
    %v600 = vpop.permute.xlu0 %599
    %601 = vrot.lane.b32.xlu0 %v437, 1
    %v602 = vpop.permute.xlu0 %601
    %603 = vrot.lane.b32.xlu0 %v438, 1
    %v604 = vpop.permute.xlu0 %603
    %605 = vrot.lane.b32.xlu0 %v439, 1
    %v606 = vpop.permute.xlu0 %605
    %607 = vrot.lane.b32.xlu0 %v440, 1
    %v608 = vpop.permute.xlu0 %607
    %609 = vrot.lane.b32.xlu0 %v441, 1
    %v610 = vpop.permute.xlu0 %609
    %611 = vrot.lane.b32.xlu0 %v442, 1
    %v612 = vpop.permute.xlu0 %611
    %613 = vrot.lane.b32.xlu0 %v443, 1
    %v614 = vpop.permute.xlu0 %613
    %615 = vrot.lane.b32.xlu0 %v444, 1
    %v616 = vpop.permute.xlu0 %615
    %617 = vrot.lane.b32.xlu0 %v445, 1
    %v618 = vpop.permute.xlu0 %617
    %619 = vrot.lane.b32.xlu0 %v446, 1
    %v620 = vpop.permute.xlu0 %619
    %621 = vrot.lane.b32.xlu0 %v447, 1
    %v622 = vpop.permute.xlu0 %621
    %623 = vrot.lane.b32.xlu0 %v448, 1
    %v624 = vpop.permute.xlu0 %623
    %625 = vrot.lane.b32.xlu0 %v449, 1
    %v626 = vpop.permute.xlu0 %625
    %627 = vrot.lane.b32.xlu0 %v450, 1
    %v628 = vpop.permute.xlu0 %627
    %629 = vrot.lane.b32.xlu0 %v451, 1
    %v630 = vpop.permute.xlu0 %629
    %631 = vrot.lane.b32.xlu0 %v452, 1
    %v632 = vpop.permute.xlu0 %631
    %633 = vrot.lane.b32.xlu0 %v453, 1
    %v634 = vpop.permute.xlu0 %633
    %635 = vrot.lane.b32.xlu0 %v454, 1
    %v636 = vpop.permute.xlu0 %635
    %637 = vrot.lane.b32.xlu0 %v455, 1
    %v638 = vpop.permute.xlu0 %637
    %639 = vrot.lane.b32.xlu0 %v456, 1
    %v640 = vpop.permute.xlu0 %639
    %641 = vrot.lane.b32.xlu0 %v457, 1
    %v642 = vpop.permute.xlu0 %641
    %643 = vrot.lane.b32.xlu0 %v458, 1
    %v644 = vpop.permute.xlu0 %643
    %645 = vrot.lane.b32.xlu0 %v459, 1
    %v646 = vpop.permute.xlu0 %645
    %647 = vrot.lane.b32.xlu0 %v460, 1
    %v648 = vpop.permute.xlu0 %647
    %649 = vrot.lane.b32.xlu0 %v461, 1
    %v650 = vpop.permute.xlu0 %649
    %651 = vrot.lane.b32.xlu0 %v462, 1
    %v652 = vpop.permute.xlu0 %651
    %653 = vrot.lane.b32.xlu0 %v463, 1
    %v654 = vpop.permute.xlu0 %653
    %655 = vrot.lane.b32.xlu0 %v464, 1
    %v656 = vpop.permute.xlu0 %655
    %vm721 = vcmask 15368
    %722 = vst.msk [vmem:[#allocation3] sm:$0xff] %vm721, %v530
    %723 = vst.msk [vmem:[#allocation3 + $0x8] sm:$0xff] %vm721, %v532
    %724 = vst.msk [vmem:[#allocation3 + $0x10] sm:$0xff] %vm721, %v534
    %725 = vst.msk [vmem:[#allocation3 + $0x18] sm:$0xff] %vm721, %v536
    %726 = vst.msk [vmem:[#allocation3 + $0x20] sm:$0xff] %vm721, %v538
    %727 = vst.msk [vmem:[#allocation3 + $0x28] sm:$0xff] %vm721, %v540
    %728 = vst.msk [vmem:[#allocation3 + $0x30] sm:$0xff] %vm721, %v542
    %729 = vst.msk [vmem:[#allocation3 + $0x38] sm:$0xff] %vm721, %v544
    %730 = vst.msk [vmem:[#allocation3 + $0x40] sm:$0xff] %vm721, %v546
    %731 = vst.msk [vmem:[#allocation3 + $0x48] sm:$0xff] %vm721, %v548
    %732 = vst.msk [vmem:[#allocation3 + $0x50] sm:$0xff] %vm721, %v550
    %733 = vst.msk [vmem:[#allocation3 + $0x58] sm:$0xff] %vm721, %v552
    %734 = vst.msk [vmem:[#allocation3 + $0x60] sm:$0xff] %vm721, %v554
    %735 = vst.msk [vmem:[#allocation3 + $0x68] sm:$0xff] %vm721, %v556
    %736 = vst.msk [vmem:[#allocation3 + $0x70] sm:$0xff] %vm721, %v558
    %737 = vst.msk [vmem:[#allocation3 + $0x78] sm:$0xff] %vm721, %v560
    %738 = vst.msk [vmem:[#allocation3 + $0x80] sm:$0xff] %vm721, %v562
    %739 = vst.msk [vmem:[#allocation3 + $0x88] sm:$0xff] %vm721, %v564
    %740 = vst.msk [vmem:[#allocation3 + $0x90] sm:$0xff] %vm721, %v566
    %741 = vst.msk [vmem:[#allocation3 + $0x98] sm:$0xff] %vm721, %v568
    %742 = vst.msk [vmem:[#allocation3 + $0xa0] sm:$0xff] %vm721, %v570
    %743 = vst.msk [vmem:[#allocation3 + $0xa8] sm:$0xff] %vm721, %v572
    %744 = vst.msk [vmem:[#allocation3 + $0xb0] sm:$0xff] %vm721, %v574
    %745 = vst.msk [vmem:[#allocation3 + $0xb8] sm:$0xff] %vm721, %v576
    %746 = vst.msk [vmem:[#allocation3 + $0xc0] sm:$0xff] %vm721, %v578
    %747 = vst.msk [vmem:[#allocation3 + $0xc8] sm:$0xff] %vm721, %v580
    %748 = vst.msk [vmem:[#allocation3 + $0xd0] sm:$0xff] %vm721, %v582
    %749 = vst.msk [vmem:[#allocation3 + $0xd8] sm:$0xff] %vm721, %v584
    %750 = vst.msk [vmem:[#allocation3 + $0xe0] sm:$0xff] %vm721, %v586
    %751 = vst.msk [vmem:[#allocation3 + $0xe8] sm:$0xff] %vm721, %v588
    %752 = vst.msk [vmem:[#allocation3 + $0xf0] sm:$0xff] %vm721, %v590
    %753 = vst.msk [vmem:[#allocation3 + $0xf8] sm:$0xff] %vm721, %v592
    %754 = vst.msk [vmem:[#allocation3 + $0x100] sm:$0xff] %vm721, %v594
    %755 = vst.msk [vmem:[#allocation3 + $0x108] sm:$0xff] %vm721, %v596
    %756 = vst.msk [vmem:[#allocation3 + $0x110] sm:$0xff] %vm721, %v598
    %757 = vst.msk [vmem:[#allocation3 + $0x118] sm:$0xff] %vm721, %v600
    %758 = vst.msk [vmem:[#allocation3 + $0x120] sm:$0xff] %vm721, %v602
    %759 = vst.msk [vmem:[#allocation3 + $0x128] sm:$0xff] %vm721, %v604
    %760 = vst.msk [vmem:[#allocation3 + $0x130] sm:$0xff] %vm721, %v606
    %761 = vst.msk [vmem:[#allocation3 + $0x138] sm:$0xff] %vm721, %v608
    %762 = vst.msk [vmem:[#allocation3 + $0x140] sm:$0xff] %vm721, %v610
    %763 = vst.msk [vmem:[#allocation3 + $0x148] sm:$0xff] %vm721, %v612
    %764 = vst.msk [vmem:[#allocation3 + $0x150] sm:$0xff] %vm721, %v614
    %765 = vst.msk [vmem:[#allocation3 + $0x158] sm:$0xff] %vm721, %v616
    %766 = vst.msk [vmem:[#allocation3 + $0x160] sm:$0xff] %vm721, %v618
    %767 = vst.msk [vmem:[#allocation3 + $0x168] sm:$0xff] %vm721, %v620
    %768 = vst.msk [vmem:[#allocation3 + $0x170] sm:$0xff] %vm721, %v622
    %769 = vst.msk [vmem:[#allocation3 + $0x178] sm:$0xff] %vm721, %v624
    %770 = vst.msk [vmem:[#allocation3 + $0x180] sm:$0xff] %vm721, %v626
    %771 = vst.msk [vmem:[#allocation3 + $0x188] sm:$0xff] %vm721, %v628
    %772 = vst.msk [vmem:[#allocation3 + $0x190] sm:$0xff] %vm721, %v630
    %773 = vst.msk [vmem:[#allocation3 + $0x198] sm:$0xff] %vm721, %v632
    %774 = vst.msk [vmem:[#allocation3 + $0x1a0] sm:$0xff] %vm721, %v634
    %775 = vst.msk [vmem:[#allocation3 + $0x1a8] sm:$0xff] %vm721, %v636
    %776 = vst.msk [vmem:[#allocation3 + $0x1b0] sm:$0xff] %vm721, %v638
    %777 = vst.msk [vmem:[#allocation3 + $0x1b8] sm:$0xff] %vm721, %v640
    %778 = vst.msk [vmem:[#allocation3 + $0x1c0] sm:$0xff] %vm721, %v642
    %779 = vst.msk [vmem:[#allocation3 + $0x1c8] sm:$0xff] %vm721, %v644
    %780 = vst.msk [vmem:[#allocation3 + $0x1d0] sm:$0xff] %vm721, %v646
    %781 = vst.msk [vmem:[#allocation3 + $0x1d8] sm:$0xff] %vm721, %v648
    %782 = vst.msk [vmem:[#allocation3 + $0x1e0] sm:$0xff] %vm721, %v650
    %783 = vst.msk [vmem:[#allocation3 + $0x1e8] sm:$0xff] %vm721, %v652
    %784 = vst.msk [vmem:[#allocation3 + $0x1f0] sm:$0xff] %vm721, %v654
    %785 = vst.msk [vmem:[#allocation3 + $0x1f8] sm:$0xff] %vm721, %v656
    %v786 = vld [vmem:[#allocation2 + $0x2] sm:$0xff]
    %v787 = vld [vmem:[#allocation2 + $0xa] sm:$0xff]
    %v788 = vld [vmem:[#allocation2 + $0x1a] sm:$0xff]
    %v789 = vld [vmem:[#allocation2 + $0x22] sm:$0xff]
    %v790 = vld [vmem:[#allocation2 + $0x32] sm:$0xff]
    %v791 = vld [vmem:[#allocation2 + $0x3a] sm:$0xff]
    %v792 = vld [vmem:[#allocation2 + $0x4a] sm:$0xff]
    %v793 = vld [vmem:[#allocation2 + $0x52] sm:$0xff]
    %v794 = vld [vmem:[#allocation2 + $0x62] sm:$0xff]
    %v795 = vld [vmem:[#allocation2 + $0x6a] sm:$0xff]
    %v796 = vld [vmem:[#allocation2 + $0x7a] sm:$0xff]
    %v797 = vld [vmem:[#allocation2 + $0x82] sm:$0xff]
    %v798 = vld [vmem:[#allocation2 + $0x92] sm:$0xff]
    %v799 = vld [vmem:[#allocation2 + $0x9a] sm:$0xff]
    %v800 = vld [vmem:[#allocation2 + $0xaa] sm:$0xff]
    %v801 = vld [vmem:[#allocation2 + $0xb2] sm:$0xff]
    %v802 = vld [vmem:[#allocation2 + $0xc2] sm:$0xff]
    %v803 = vld [vmem:[#allocation2 + $0xca] sm:$0xff]
    %v804 = vld [vmem:[#allocation2 + $0xda] sm:$0xff]
    %v805 = vld [vmem:[#allocation2 + $0xe2] sm:$0xff]
    %v806 = vld [vmem:[#allocation2 + $0xf2] sm:$0xff]
    %v807 = vld [vmem:[#allocation2 + $0xfa] sm:$0xff]
    %v808 = vld [vmem:[#allocation2 + $0x10a] sm:$0xff]
    %v809 = vld [vmem:[#allocation2 + $0x112] sm:$0xff]
    %v810 = vld [vmem:[#allocation2 + $0x122] sm:$0xff]
    %v811 = vld [vmem:[#allocation2 + $0x12a] sm:$0xff]
    %v812 = vld [vmem:[#allocation2 + $0x13a] sm:$0xff]
    %v813 = vld [vmem:[#allocation2 + $0x142] sm:$0xff]
    %v814 = vld [vmem:[#allocation2 + $0x152] sm:$0xff]
    %v815 = vld [vmem:[#allocation2 + $0x15a] sm:$0xff]
    %v816 = vld [vmem:[#allocation2 + $0x16a] sm:$0xff]
    %v817 = vld [vmem:[#allocation2 + $0x172] sm:$0xff]
    %v818 = vld [vmem:[#allocation2 + $0x1b2] sm:$0xff]
    %v819 = vld [vmem:[#allocation2 + $0x1ba] sm:$0xff]
    %v820 = vld [vmem:[#allocation2 + $0x1ca] sm:$0xff]
    %v821 = vld [vmem:[#allocation2 + $0x1d2] sm:$0xff]
    %v822 = vld [vmem:[#allocation2 + $0x1e2] sm:$0xff]
    %v823 = vld [vmem:[#allocation2 + $0x1ea] sm:$0xff]
    %v824 = vld [vmem:[#allocation2 + $0x1fa] sm:$0xff]
    %v825 = vld [vmem:[#allocation2 + $0x202] sm:$0xff]
    %v826 = vld [vmem:[#allocation2 + $0x212] sm:$0xff]
    %v827 = vld [vmem:[#allocation2 + $0x21a] sm:$0xff]
    %v828 = vld [vmem:[#allocation2 + $0x22a] sm:$0xff]
    %v829 = vld [vmem:[#allocation2 + $0x232] sm:$0xff]
    %v830 = vld [vmem:[#allocation2 + $0x242] sm:$0xff]
    %v831 = vld [vmem:[#allocation2 + $0x24a] sm:$0xff]
    %v832 = vld [vmem:[#allocation2 + $0x25a] sm:$0xff]
    %v833 = vld [vmem:[#allocation2 + $0x262] sm:$0xff]
    %v834 = vld [vmem:[#allocation2 + $0x272] sm:$0xff]
    %v835 = vld [vmem:[#allocation2 + $0x27a] sm:$0xff]
    %v836 = vld [vmem:[#allocation2 + $0x28a] sm:$0xff]
    %v837 = vld [vmem:[#allocation2 + $0x292] sm:$0xff]
    %v838 = vld [vmem:[#allocation2 + $0x2a2] sm:$0xff]
    %v839 = vld [vmem:[#allocation2 + $0x2aa] sm:$0xff]
    %v840 = vld [vmem:[#allocation2 + $0x2ba] sm:$0xff]
    %v841 = vld [vmem:[#allocation2 + $0x2c2] sm:$0xff]
    %v842 = vld [vmem:[#allocation2 + $0x2d2] sm:$0xff]
    %v843 = vld [vmem:[#allocation2 + $0x2da] sm:$0xff]
    %v844 = vld [vmem:[#allocation2 + $0x2ea] sm:$0xff]
    %v845 = vld [vmem:[#allocation2 + $0x2f2] sm:$0xff]
    %v846 = vld [vmem:[#allocation2 + $0x302] sm:$0xff]
    %v847 = vld [vmem:[#allocation2 + $0x30a] sm:$0xff]
    %v848 = vld [vmem:[#allocation2 + $0x31a] sm:$0xff]
    %v849 = vld [vmem:[#allocation2 + $0x322] sm:$0xff]
    %914 = vrot.lane.b32.xlu0 %v786, 2
    %v915 = vpop.permute.xlu0 %914
    %916 = vrot.lane.b32.xlu0 %v787, 2
    %v917 = vpop.permute.xlu0 %916
    %918 = vrot.lane.b32.xlu0 %v788, 2
    %v919 = vpop.permute.xlu0 %918
    %920 = vrot.lane.b32.xlu0 %v789, 2
    %v921 = vpop.permute.xlu0 %920
    %922 = vrot.lane.b32.xlu0 %v790, 2
    %v923 = vpop.permute.xlu0 %922
    %924 = vrot.lane.b32.xlu0 %v791, 2
    %v925 = vpop.permute.xlu0 %924
    %926 = vrot.lane.b32.xlu0 %v792, 2
    %v927 = vpop.permute.xlu0 %926
    %928 = vrot.lane.b32.xlu0 %v793, 2
    %v929 = vpop.permute.xlu0 %928
    %930 = vrot.lane.b32.xlu0 %v794, 2
    %v931 = vpop.permute.xlu0 %930
    %932 = vrot.lane.b32.xlu0 %v795, 2
    %v933 = vpop.permute.xlu0 %932
    %934 = vrot.lane.b32.xlu0 %v796, 2
    %v935 = vpop.permute.xlu0 %934
    %936 = vrot.lane.b32.xlu0 %v797, 2
    %v937 = vpop.permute.xlu0 %936
    %938 = vrot.lane.b32.xlu0 %v798, 2
    %v939 = vpop.permute.xlu0 %938
    %940 = vrot.lane.b32.xlu0 %v799, 2
    %v941 = vpop.permute.xlu0 %940
    %942 = vrot.lane.b32.xlu0 %v800, 2
    %v943 = vpop.permute.xlu0 %942
    %944 = vrot.lane.b32.xlu0 %v801, 2
    %v945 = vpop.permute.xlu0 %944
    %946 = vrot.lane.b32.xlu0 %v802, 2
    %v947 = vpop.permute.xlu0 %946
    %948 = vrot.lane.b32.xlu0 %v803, 2
    %v949 = vpop.permute.xlu0 %948
    %950 = vrot.lane.b32.xlu0 %v804, 2
    %v951 = vpop.permute.xlu0 %950
    %952 = vrot.lane.b32.xlu0 %v805, 2
    %v953 = vpop.permute.xlu0 %952
    %954 = vrot.lane.b32.xlu0 %v806, 2
    %v955 = vpop.permute.xlu0 %954
    %956 = vrot.lane.b32.xlu0 %v807, 2
    %v957 = vpop.permute.xlu0 %956
    %958 = vrot.lane.b32.xlu0 %v808, 2
    %v959 = vpop.permute.xlu0 %958
    %960 = vrot.lane.b32.xlu0 %v809, 2
    %v961 = vpop.permute.xlu0 %960
    %962 = vrot.lane.b32.xlu0 %v810, 2
    %v963 = vpop.permute.xlu0 %962
    %964 = vrot.lane.b32.xlu0 %v811, 2
    %v965 = vpop.permute.xlu0 %964
    %966 = vrot.lane.b32.xlu0 %v812, 2
    %v967 = vpop.permute.xlu0 %966
    %968 = vrot.lane.b32.xlu0 %v813, 2
    %v969 = vpop.permute.xlu0 %968
    %970 = vrot.lane.b32.xlu0 %v814, 2
    %v971 = vpop.permute.xlu0 %970
    %972 = vrot.lane.b32.xlu0 %v815, 2
    %v973 = vpop.permute.xlu0 %972
    %974 = vrot.lane.b32.xlu0 %v816, 2
    %v975 = vpop.permute.xlu0 %974
    %976 = vrot.lane.b32.xlu0 %v817, 2
    %v977 = vpop.permute.xlu0 %976
    %978 = vrot.lane.b32.xlu0 %v818, 2
    %v979 = vpop.permute.xlu0 %978
    %980 = vrot.lane.b32.xlu0 %v819, 2
    %v981 = vpop.permute.xlu0 %980
    %982 = vrot.lane.b32.xlu0 %v820, 2
    %v983 = vpop.permute.xlu0 %982
    %984 = vrot.lane.b32.xlu0 %v821, 2
    %v985 = vpop.permute.xlu0 %984
    %986 = vrot.lane.b32.xlu0 %v822, 2
    %v987 = vpop.permute.xlu0 %986
    %988 = vrot.lane.b32.xlu0 %v823, 2
    %v989 = vpop.permute.xlu0 %988
    %990 = vrot.lane.b32.xlu0 %v824, 2
    %v991 = vpop.permute.xlu0 %990
    %992 = vrot.lane.b32.xlu0 %v825, 2
    %v993 = vpop.permute.xlu0 %992
    %994 = vrot.lane.b32.xlu0 %v826, 2
    %v995 = vpop.permute.xlu0 %994
    %996 = vrot.lane.b32.xlu0 %v827, 2
    %v997 = vpop.permute.xlu0 %996
    %998 = vrot.lane.b32.xlu0 %v828, 2
    %v999 = vpop.permute.xlu0 %998
    %1000 = vrot.lane.b32.xlu0 %v829, 2
    %v1001 = vpop.permute.xlu0 %1000
    %1002 = vrot.lane.b32.xlu0 %v830, 2
    %v1003 = vpop.permute.xlu0 %1002
    %1004 = vrot.lane.b32.xlu0 %v831, 2
    %v1005 = vpop.permute.xlu0 %1004
    %1006 = vrot.lane.b32.xlu0 %v832, 2
    %v1007 = vpop.permute.xlu0 %1006
    %1008 = vrot.lane.b32.xlu0 %v833, 2
    %v1009 = vpop.permute.xlu0 %1008
    %1010 = vrot.lane.b32.xlu0 %v834, 2
    %v1011 = vpop.permute.xlu0 %1010
    %1012 = vrot.lane.b32.xlu0 %v835, 2
    %v1013 = vpop.permute.xlu0 %1012
    %1014 = vrot.lane.b32.xlu0 %v836, 2
    %v1015 = vpop.permute.xlu0 %1014
    %1016 = vrot.lane.b32.xlu0 %v837, 2
    %v1017 = vpop.permute.xlu0 %1016
    %1018 = vrot.lane.b32.xlu0 %v838, 2
    %v1019 = vpop.permute.xlu0 %1018
    %1020 = vrot.lane.b32.xlu0 %v839, 2
    %v1021 = vpop.permute.xlu0 %1020
    %1022 = vrot.lane.b32.xlu0 %v840, 2
    %v1023 = vpop.permute.xlu0 %1022
    %1024 = vrot.lane.b32.xlu0 %v841, 2
    %v1025 = vpop.permute.xlu0 %1024
    %1026 = vrot.lane.b32.xlu0 %v842, 2
    %v1027 = vpop.permute.xlu0 %1026
    %1028 = vrot.lane.b32.xlu0 %v843, 2
    %v1029 = vpop.permute.xlu0 %1028
    %1030 = vrot.lane.b32.xlu0 %v844, 2
    %v1031 = vpop.permute.xlu0 %1030
    %1032 = vrot.lane.b32.xlu0 %v845, 2
    %v1033 = vpop.permute.xlu0 %1032
    %1034 = vrot.lane.b32.xlu0 %v846, 2
    %v1035 = vpop.permute.xlu0 %1034
    %1036 = vrot.lane.b32.xlu0 %v847, 2
    %v1037 = vpop.permute.xlu0 %1036
    %1038 = vrot.lane.b32.xlu0 %v848, 2
    %v1039 = vpop.permute.xlu0 %1038
    %1040 = vrot.lane.b32.xlu0 %v849, 2
    %v1041 = vpop.permute.xlu0 %1040
    %vm1106 = vcmask 23568
    %1107 = vst.msk [vmem:[#allocation3] sm:$0xff] %vm1106, %v915
    %1108 = vst.msk [vmem:[#allocation3 + $0x8] sm:$0xff] %vm1106, %v917
    %1109 = vst.msk [vmem:[#allocation3 + $0x10] sm:$0xff] %vm1106, %v919
    %1110 = vst.msk [vmem:[#allocation3 + $0x18] sm:$0xff] %vm1106, %v921
    %1111 = vst.msk [vmem:[#allocation3 + $0x20] sm:$0xff] %vm1106, %v923
    %1112 = vst.msk [vmem:[#allocation3 + $0x28] sm:$0xff] %vm1106, %v925
    %1113 = vst.msk [vmem:[#allocation3 + $0x30] sm:$0xff] %vm1106, %v927
    %1114 = vst.msk [vmem:[#allocation3 + $0x38] sm:$0xff] %vm1106, %v929
    %1115 = vst.msk [vmem:[#allocation3 + $0x40] sm:$0xff] %vm1106, %v931
    %1116 = vst.msk [vmem:[#allocation3 + $0x48] sm:$0xff] %vm1106, %v933
    %1117 = vst.msk [vmem:[#allocation3 + $0x50] sm:$0xff] %vm1106, %v935
    %1118 = vst.msk [vmem:[#allocation3 + $0x58] sm:$0xff] %vm1106, %v937
    %1119 = vst.msk [vmem:[#allocation3 + $0x60] sm:$0xff] %vm1106, %v939
    %1120 = vst.msk [vmem:[#allocation3 + $0x68] sm:$0xff] %vm1106, %v941
    %1121 = vst.msk [vmem:[#allocation3 + $0x70] sm:$0xff] %vm1106, %v943
    %1122 = vst.msk [vmem:[#allocation3 + $0x78] sm:$0xff] %vm1106, %v945
    %1123 = vst.msk [vmem:[#allocation3 + $0x80] sm:$0xff] %vm1106, %v947
    %1124 = vst.msk [vmem:[#allocation3 + $0x88] sm:$0xff] %vm1106, %v949
    %1125 = vst.msk [vmem:[#allocation3 + $0x90] sm:$0xff] %vm1106, %v951
    %1126 = vst.msk [vmem:[#allocation3 + $0x98] sm:$0xff] %vm1106, %v953
    %1127 = vst.msk [vmem:[#allocation3 + $0xa0] sm:$0xff] %vm1106, %v955
    %1128 = vst.msk [vmem:[#allocation3 + $0xa8] sm:$0xff] %vm1106, %v957
    %1129 = vst.msk [vmem:[#allocation3 + $0xb0] sm:$0xff] %vm1106, %v959
    %1130 = vst.msk [vmem:[#allocation3 + $0xb8] sm:$0xff] %vm1106, %v961
    %1131 = vst.msk [vmem:[#allocation3 + $0xc0] sm:$0xff] %vm1106, %v963
    %1132 = vst.msk [vmem:[#allocation3 + $0xc8] sm:$0xff] %vm1106, %v965
    %1133 = vst.msk [vmem:[#allocation3 + $0xd0] sm:$0xff] %vm1106, %v967
    %1134 = vst.msk [vmem:[#allocation3 + $0xd8] sm:$0xff] %vm1106, %v969
    %1135 = vst.msk [vmem:[#allocation3 + $0xe0] sm:$0xff] %vm1106, %v971
    %1136 = vst.msk [vmem:[#allocation3 + $0xe8] sm:$0xff] %vm1106, %v973
    %1137 = vst.msk [vmem:[#allocation3 + $0xf0] sm:$0xff] %vm1106, %v975
    %1138 = vst.msk [vmem:[#allocation3 + $0xf8] sm:$0xff] %vm1106, %v977
    %1139 = vst.msk [vmem:[#allocation3 + $0x100] sm:$0xff] %vm1106, %v979
    %1140 = vst.msk [vmem:[#allocation3 + $0x108] sm:$0xff] %vm1106, %v981
    %1141 = vst.msk [vmem:[#allocation3 + $0x110] sm:$0xff] %vm1106, %v983
    %1142 = vst.msk [vmem:[#allocation3 + $0x118] sm:$0xff] %vm1106, %v985
    %1143 = vst.msk [vmem:[#allocation3 + $0x120] sm:$0xff] %vm1106, %v987
    %1144 = vst.msk [vmem:[#allocation3 + $0x128] sm:$0xff] %vm1106, %v989
    %1145 = vst.msk [vmem:[#allocation3 + $0x130] sm:$0xff] %vm1106, %v991
    %1146 = vst.msk [vmem:[#allocation3 + $0x138] sm:$0xff] %vm1106, %v993
    %1147 = vst.msk [vmem:[#allocation3 + $0x140] sm:$0xff] %vm1106, %v995
    %1148 = vst.msk [vmem:[#allocation3 + $0x148] sm:$0xff] %vm1106, %v997
    %1149 = vst.msk [vmem:[#allocation3 + $0x150] sm:$0xff] %vm1106, %v999
    %1150 = vst.msk [vmem:[#allocation3 + $0x158] sm:$0xff] %vm1106, %v1001
    %1151 = vst.msk [vmem:[#allocation3 + $0x160] sm:$0xff] %vm1106, %v1003
    %1152 = vst.msk [vmem:[#allocation3 + $0x168] sm:$0xff] %vm1106, %v1005
    %1153 = vst.msk [vmem:[#allocation3 + $0x170] sm:$0xff] %vm1106, %v1007
    %1154 = vst.msk [vmem:[#allocation3 + $0x178] sm:$0xff] %vm1106, %v1009
    %1155 = vst.msk [vmem:[#allocation3 + $0x180] sm:$0xff] %vm1106, %v1011
    %1156 = vst.msk [vmem:[#allocation3 + $0x188] sm:$0xff] %vm1106, %v1013
    %1157 = vst.msk [vmem:[#allocation3 + $0x190] sm:$0xff] %vm1106, %v1015
    %1158 = vst.msk [vmem:[#allocation3 + $0x198] sm:$0xff] %vm1106, %v1017
    %1159 = vst.msk [vmem:[#allocation3 + $0x1a0] sm:$0xff] %vm1106, %v1019
    %1160 = vst.msk [vmem:[#allocation3 + $0x1a8] sm:$0xff] %vm1106, %v1021
    %1161 = vst.msk [vmem:[#allocation3 + $0x1b0] sm:$0xff] %vm1106, %v1023
    %1162 = vst.msk [vmem:[#allocation3 + $0x1b8] sm:$0xff] %vm1106, %v1025
    %1163 = vst.msk [vmem:[#allocation3 + $0x1c0] sm:$0xff] %vm1106, %v1027
    %1164 = vst.msk [vmem:[#allocation3 + $0x1c8] sm:$0xff] %vm1106, %v1029
    %1165 = vst.msk [vmem:[#allocation3 + $0x1d0] sm:$0xff] %vm1106, %v1031
    %1166 = vst.msk [vmem:[#allocation3 + $0x1d8] sm:$0xff] %vm1106, %v1033
    %1167 = vst.msk [vmem:[#allocation3 + $0x1e0] sm:$0xff] %vm1106, %v1035
    %1168 = vst.msk [vmem:[#allocation3 + $0x1e8] sm:$0xff] %vm1106, %v1037
    %1169 = vst.msk [vmem:[#allocation3 + $0x1f0] sm:$0xff] %vm1106, %v1039
    %1170 = vst.msk [vmem:[#allocation3 + $0x1f8] sm:$0xff] %vm1106, %v1041
    %v1171 = vld [vmem:[%s208] sm:$0xff]
    %v1172 = vld [vmem:[%s208 + $0x8] sm:$0xff]
    %v1173 = vld [vmem:[%s208 + $0x18] sm:$0xff]
    %v1174 = vld [vmem:[%s208 + $0x20] sm:$0xff]
    %v1175 = vld [vmem:[%s208 + $0x30] sm:$0xff]
    %v1176 = vld [vmem:[%s208 + $0x38] sm:$0xff]
    %v1177 = vld [vmem:[%s208 + $0x48] sm:$0xff]
    %v1178 = vld [vmem:[%s208 + $0x50] sm:$0xff]
    %v1179 = vld [vmem:[%s208 + $0x60] sm:$0xff]
    %v1180 = vld [vmem:[%s208 + $0x68] sm:$0xff]
    %v1181 = vld [vmem:[%s208 + $0x78] sm:$0xff]
    %v1182 = vld [vmem:[%s208 + $0x80] sm:$0xff]
    %v1183 = vld [vmem:[%s208 + $0x90] sm:$0xff]
    %v1184 = vld [vmem:[%s208 + $0x98] sm:$0xff]
    %v1185 = vld [vmem:[%s208 + $0xa8] sm:$0xff]
    %v1186 = vld [vmem:[%s208 + $0xb0] sm:$0xff]
    %v1187 = vld [vmem:[%s208 + $0xc0] sm:$0xff]
    %v1188 = vld [vmem:[%s208 + $0xc8] sm:$0xff]
    %v1189 = vld [vmem:[%s208 + $0xd8] sm:$0xff]
    %v1190 = vld [vmem:[%s208 + $0xe0] sm:$0xff]
    %v1191 = vld [vmem:[%s208 + $0xf0] sm:$0xff]
    %v1192 = vld [vmem:[%s208 + $0xf8] sm:$0xff]
    %v1193 = vld [vmem:[%s208 + $0x108] sm:$0xff]
    %v1194 = vld [vmem:[%s208 + $0x110] sm:$0xff]
    %v1195 = vld [vmem:[%s208 + $0x120] sm:$0xff]
    %v1196 = vld [vmem:[%s208 + $0x128] sm:$0xff]
    %v1197 = vld [vmem:[%s208 + $0x138] sm:$0xff]
    %v1198 = vld [vmem:[%s208 + $0x140] sm:$0xff]
    %v1199 = vld [vmem:[%s208 + $0x150] sm:$0xff]
    %v1200 = vld [vmem:[%s208 + $0x158] sm:$0xff]
    %v1201 = vld [vmem:[%s208 + $0x168] sm:$0xff]
    %v1202 = vld [vmem:[%s208 + $0x170] sm:$0xff]
    %v1203 = vld [vmem:[%s208 + $0x1b0] sm:$0xff]
    %v1204 = vld [vmem:[%s208 + $0x1b8] sm:$0xff]
    %v1205 = vld [vmem:[%s208 + $0x1c8] sm:$0xff]
    %v1206 = vld [vmem:[%s208 + $0x1d0] sm:$0xff]
    %v1207 = vld [vmem:[%s208 + $0x1e0] sm:$0xff]
    %v1208 = vld [vmem:[%s208 + $0x1e8] sm:$0xff]
    %v1209 = vld [vmem:[%s208 + $0x1f8] sm:$0xff]
    %v1210 = vld [vmem:[%s208 + $0x200] sm:$0xff]
    %v1211 = vld [vmem:[%s208 + $0x210] sm:$0xff]
    %v1212 = vld [vmem:[%s208 + $0x218] sm:$0xff]
    %v1213 = vld [vmem:[%s208 + $0x228] sm:$0xff]
    %v1214 = vld [vmem:[%s208 + $0x230] sm:$0xff]
    %v1215 = vld [vmem:[%s208 + $0x240] sm:$0xff]
    %v1216 = vld [vmem:[%s208 + $0x248] sm:$0xff]
    %v1217 = vld [vmem:[%s208 + $0x258] sm:$0xff]
    %v1218 = vld [vmem:[%s208 + $0x260] sm:$0xff]
    %v1219 = vld [vmem:[%s208 + $0x270] sm:$0xff]
    %v1220 = vld [vmem:[%s208 + $0x278] sm:$0xff]
    %v1221 = vld [vmem:[%s208 + $0x288] sm:$0xff]
    %v1222 = vld [vmem:[%s208 + $0x290] sm:$0xff]
    %v1223 = vld [vmem:[%s208 + $0x2a0] sm:$0xff]
    %v1224 = vld [vmem:[%s208 + $0x2a8] sm:$0xff]
    %v1225 = vld [vmem:[%s208 + $0x2b8] sm:$0xff]
    %v1226 = vld [vmem:[%s208 + $0x2c0] sm:$0xff]
    %v1227 = vld [vmem:[%s208 + $0x2d0] sm:$0xff]
    %v1228 = vld [vmem:[%s208 + $0x2d8] sm:$0xff]
    %v1229 = vld [vmem:[%s208 + $0x2e8] sm:$0xff]
    %v1230 = vld [vmem:[%s208 + $0x2f0] sm:$0xff]
    %v1231 = vld [vmem:[%s208 + $0x300] sm:$0xff]
    %v1232 = vld [vmem:[%s208 + $0x308] sm:$0xff]
    %v1233 = vld [vmem:[%s208 + $0x318] sm:$0xff]
    %v1234 = vld [vmem:[%s208 + $0x320] sm:$0xff]
    %1299 = vrot.lane.b32.xlu0 %v1171, 3
    %v1300 = vpop.permute.xlu0 %1299
    %1301 = vrot.lane.b32.xlu0 %v1172, 3
    %v1302 = vpop.permute.xlu0 %1301
    %1303 = vrot.lane.b32.xlu0 %v1173, 3
    %v1304 = vpop.permute.xlu0 %1303
    %1305 = vrot.lane.b32.xlu0 %v1174, 3
    %v1306 = vpop.permute.xlu0 %1305
    %1307 = vrot.lane.b32.xlu0 %v1175, 3
    %v1308 = vpop.permute.xlu0 %1307
    %1309 = vrot.lane.b32.xlu0 %v1176, 3
    %v1310 = vpop.permute.xlu0 %1309
    %1311 = vrot.lane.b32.xlu0 %v1177, 3
    %v1312 = vpop.permute.xlu0 %1311
    %1313 = vrot.lane.b32.xlu0 %v1178, 3
    %v1314 = vpop.permute.xlu0 %1313
    %1315 = vrot.lane.b32.xlu0 %v1179, 3
    %v1316 = vpop.permute.xlu0 %1315
    %1317 = vrot.lane.b32.xlu0 %v1180, 3
    %v1318 = vpop.permute.xlu0 %1317
    %1319 = vrot.lane.b32.xlu0 %v1181, 3
    %v1320 = vpop.permute.xlu0 %1319
    %1321 = vrot.lane.b32.xlu0 %v1182, 3
    %v1322 = vpop.permute.xlu0 %1321
    %1323 = vrot.lane.b32.xlu0 %v1183, 3
    %v1324 = vpop.permute.xlu0 %1323
    %1325 = vrot.lane.b32.xlu0 %v1184, 3
    %v1326 = vpop.permute.xlu0 %1325
    %1327 = vrot.lane.b32.xlu0 %v1185, 3
    %v1328 = vpop.permute.xlu0 %1327
    %1329 = vrot.lane.b32.xlu0 %v1186, 3
    %v1330 = vpop.permute.xlu0 %1329
    %1331 = vrot.lane.b32.xlu0 %v1187, 3
    %v1332 = vpop.permute.xlu0 %1331
    %1333 = vrot.lane.b32.xlu0 %v1188, 3
    %v1334 = vpop.permute.xlu0 %1333
    %1335 = vrot.lane.b32.xlu0 %v1189, 3
    %v1336 = vpop.permute.xlu0 %1335
    %1337 = vrot.lane.b32.xlu0 %v1190, 3
    %v1338 = vpop.permute.xlu0 %1337
    %1339 = vrot.lane.b32.xlu0 %v1191, 3
    %v1340 = vpop.permute.xlu0 %1339
    %1341 = vrot.lane.b32.xlu0 %v1192, 3
    %v1342 = vpop.permute.xlu0 %1341
    %1343 = vrot.lane.b32.xlu0 %v1193, 3
    %v1344 = vpop.permute.xlu0 %1343
    %1345 = vrot.lane.b32.xlu0 %v1194, 3
    %v1346 = vpop.permute.xlu0 %1345
    %1347 = vrot.lane.b32.xlu0 %v1195, 3
    %v1348 = vpop.permute.xlu0 %1347
    %1349 = vrot.lane.b32.xlu0 %v1196, 3
    %v1350 = vpop.permute.xlu0 %1349
    %1351 = vrot.lane.b32.xlu0 %v1197, 3
    %v1352 = vpop.permute.xlu0 %1351
    %1353 = vrot.lane.b32.xlu0 %v1198, 3
    %v1354 = vpop.permute.xlu0 %1353
    %1355 = vrot.lane.b32.xlu0 %v1199, 3
    %v1356 = vpop.permute.xlu0 %1355
    %1357 = vrot.lane.b32.xlu0 %v1200, 3
    %v1358 = vpop.permute.xlu0 %1357
    %1359 = vrot.lane.b32.xlu0 %v1201, 3
    %v1360 = vpop.permute.xlu0 %1359
    %1361 = vrot.lane.b32.xlu0 %v1202, 3
    %v1362 = vpop.permute.xlu0 %1361
    %1363 = vrot.lane.b32.xlu0 %v1203, 3
    %v1364 = vpop.permute.xlu0 %1363
    %1365 = vrot.lane.b32.xlu0 %v1204, 3
    %v1366 = vpop.permute.xlu0 %1365
    %1367 = vrot.lane.b32.xlu0 %v1205, 3
    %v1368 = vpop.permute.xlu0 %1367
    %1369 = vrot.lane.b32.xlu0 %v1206, 3
    %v1370 = vpop.permute.xlu0 %1369
    %1371 = vrot.lane.b32.xlu0 %v1207, 3
    %v1372 = vpop.permute.xlu0 %1371
    %1373 = vrot.lane.b32.xlu0 %v1208, 3
    %v1374 = vpop.permute.xlu0 %1373
    %1375 = vrot.lane.b32.xlu0 %v1209, 3
    %v1376 = vpop.permute.xlu0 %1375
    %1377 = vrot.lane.b32.xlu0 %v1210, 3
    %v1378 = vpop.permute.xlu0 %1377
    %1379 = vrot.lane.b32.xlu0 %v1211, 3
    %v1380 = vpop.permute.xlu0 %1379
    %1381 = vrot.lane.b32.xlu0 %v1212, 3
    %v1382 = vpop.permute.xlu0 %1381
    %1383 = vrot.lane.b32.xlu0 %v1213, 3
    %v1384 = vpop.permute.xlu0 %1383
    %1385 = vrot.lane.b32.xlu0 %v1214, 3
    %v1386 = vpop.permute.xlu0 %1385
    %1387 = vrot.lane.b32.xlu0 %v1215, 3
    %v1388 = vpop.permute.xlu0 %1387
    %1389 = vrot.lane.b32.xlu0 %v1216, 3
    %v1390 = vpop.permute.xlu0 %1389
    %1391 = vrot.lane.b32.xlu0 %v1217, 3
    %v1392 = vpop.permute.xlu0 %1391
    %1393 = vrot.lane.b32.xlu0 %v1218, 3
    %v1394 = vpop.permute.xlu0 %1393
    %1395 = vrot.lane.b32.xlu0 %v1219, 3
    %v1396 = vpop.permute.xlu0 %1395
    %1397 = vrot.lane.b32.xlu0 %v1220, 3
    %v1398 = vpop.permute.xlu0 %1397
    %1399 = vrot.lane.b32.xlu0 %v1221, 3
    %v1400 = vpop.permute.xlu0 %1399
    %1401 = vrot.lane.b32.xlu0 %v1222, 3
    %v1402 = vpop.permute.xlu0 %1401
    %1403 = vrot.lane.b32.xlu0 %v1223, 3
    %v1404 = vpop.permute.xlu0 %1403
    %1405 = vrot.lane.b32.xlu0 %v1224, 3
    %v1406 = vpop.permute.xlu0 %1405
    %1407 = vrot.lane.b32.xlu0 %v1225, 3
    %v1408 = vpop.permute.xlu0 %1407
    %1409 = vrot.lane.b32.xlu0 %v1226, 3
    %v1410 = vpop.permute.xlu0 %1409
    %1411 = vrot.lane.b32.xlu0 %v1227, 3
    %v1412 = vpop.permute.xlu0 %1411
    %1413 = vrot.lane.b32.xlu0 %v1228, 3
    %v1414 = vpop.permute.xlu0 %1413
    %1415 = vrot.lane.b32.xlu0 %v1229, 3
    %v1416 = vpop.permute.xlu0 %1415
    %1417 = vrot.lane.b32.xlu0 %v1230, 3
    %v1418 = vpop.permute.xlu0 %1417
    %1419 = vrot.lane.b32.xlu0 %v1231, 3
    %v1420 = vpop.permute.xlu0 %1419
    %1421 = vrot.lane.b32.xlu0 %v1232, 3
    %v1422 = vpop.permute.xlu0 %1421
    %1423 = vrot.lane.b32.xlu0 %v1233, 3
    %v1424 = vpop.permute.xlu0 %1423
    %1425 = vrot.lane.b32.xlu0 %v1234, 3
    %v1426 = vpop.permute.xlu0 %1425
    %vm1491 = vcmask 31768
    %1492 = vst.msk [vmem:[#allocation3] sm:$0xff] %vm1491, %v1300
    %1493 = vst.msk [vmem:[#allocation3 + $0x8] sm:$0xff] %vm1491, %v1302
    %1494 = vst.msk [vmem:[#allocation3 + $0x10] sm:$0xff] %vm1491, %v1304
    %1495 = vst.msk [vmem:[#allocation3 + $0x18] sm:$0xff] %vm1491, %v1306
    %1496 = vst.msk [vmem:[#allocation3 + $0x20] sm:$0xff] %vm1491, %v1308
    %1497 = vst.msk [vmem:[#allocation3 + $0x28] sm:$0xff] %vm1491, %v1310
    %1498 = vst.msk [vmem:[#allocation3 + $0x30] sm:$0xff] %vm1491, %v1312
    %1499 = vst.msk [vmem:[#allocation3 + $0x38] sm:$0xff] %vm1491, %v1314
    %1500 = vst.msk [vmem:[#allocation3 + $0x40] sm:$0xff] %vm1491, %v1316
    %1501 = vst.msk [vmem:[#allocation3 + $0x48] sm:$0xff] %vm1491, %v1318
    %1502 = vst.msk [vmem:[#allocation3 + $0x50] sm:$0xff] %vm1491, %v1320
    %1503 = vst.msk [vmem:[#allocation3 + $0x58] sm:$0xff] %vm1491, %v1322
    %1504 = vst.msk [vmem:[#allocation3 + $0x60] sm:$0xff] %vm1491, %v1324
    %1505 = vst.msk [vmem:[#allocation3 + $0x68] sm:$0xff] %vm1491, %v1326
    %1506 = vst.msk [vmem:[#allocation3 + $0x70] sm:$0xff] %vm1491, %v1328
    %1507 = vst.msk [vmem:[#allocation3 + $0x78] sm:$0xff] %vm1491, %v1330
    %1508 = vst.msk [vmem:[#allocation3 + $0x80] sm:$0xff] %vm1491, %v1332
    %1509 = vst.msk [vmem:[#allocation3 + $0x88] sm:$0xff] %vm1491, %v1334
    %1510 = vst.msk [vmem:[#allocation3 + $0x90] sm:$0xff] %vm1491, %v1336
    %1511 = vst.msk [vmem:[#allocation3 + $0x98] sm:$0xff] %vm1491, %v1338
    %1512 = vst.msk [vmem:[#allocation3 + $0xa0] sm:$0xff] %vm1491, %v1340
    %1513 = vst.msk [vmem:[#allocation3 + $0xa8] sm:$0xff] %vm1491, %v1342
    %1514 = vst.msk [vmem:[#allocation3 + $0xb0] sm:$0xff] %vm1491, %v1344
    %1515 = vst.msk [vmem:[#allocation3 + $0xb8] sm:$0xff] %vm1491, %v1346
    %1516 = vst.msk [vmem:[#allocation3 + $0xc0] sm:$0xff] %vm1491, %v1348
    %1517 = vst.msk [vmem:[#allocation3 + $0xc8] sm:$0xff] %vm1491, %v1350
    %1518 = vst.msk [vmem:[#allocation3 + $0xd0] sm:$0xff] %vm1491, %v1352
    %1519 = vst.msk [vmem:[#allocation3 + $0xd8] sm:$0xff] %vm1491, %v1354
    %1520 = vst.msk [vmem:[#allocation3 + $0xe0] sm:$0xff] %vm1491, %v1356
    %1521 = vst.msk [vmem:[#allocation3 + $0xe8] sm:$0xff] %vm1491, %v1358
    %1522 = vst.msk [vmem:[#allocation3 + $0xf0] sm:$0xff] %vm1491, %v1360
    %1523 = vst.msk [vmem:[#allocation3 + $0xf8] sm:$0xff] %vm1491, %v1362
    %1524 = vst.msk [vmem:[#allocation3 + $0x100] sm:$0xff] %vm1491, %v1364
    %1525 = vst.msk [vmem:[#allocation3 + $0x108] sm:$0xff] %vm1491, %v1366
    %1526 = vst.msk [vmem:[#allocation3 + $0x110] sm:$0xff] %vm1491, %v1368
    %1527 = vst.msk [vmem:[#allocation3 + $0x118] sm:$0xff] %vm1491, %v1370
    %1528 = vst.msk [vmem:[#allocation3 + $0x120] sm:$0xff] %vm1491, %v1372
    %1529 = vst.msk [vmem:[#allocation3 + $0x128] sm:$0xff] %vm1491, %v1374
    %1530 = vst.msk [vmem:[#allocation3 + $0x130] sm:$0xff] %vm1491, %v1376
    %1531 = vst.msk [vmem:[#allocation3 + $0x138] sm:$0xff] %vm1491, %v1378
    %1532 = vst.msk [vmem:[#allocation3 + $0x140] sm:$0xff] %vm1491, %v1380
    %1533 = vst.msk [vmem:[#allocation3 + $0x148] sm:$0xff] %vm1491, %v1382
    %1534 = vst.msk [vmem:[#allocation3 + $0x150] sm:$0xff] %vm1491, %v1384
    %1535 = vst.msk [vmem:[#allocation3 + $0x158] sm:$0xff] %vm1491, %v1386
    %1536 = vst.msk [vmem:[#allocation3 + $0x160] sm:$0xff] %vm1491, %v1388
    %1537 = vst.msk [vmem:[#allocation3 + $0x168] sm:$0xff] %vm1491, %v1390
    %1538 = vst.msk [vmem:[#allocation3 + $0x170] sm:$0xff] %vm1491, %v1392
    %1539 = vst.msk [vmem:[#allocation3 + $0x178] sm:$0xff] %vm1491, %v1394
    %1540 = vst.msk [vmem:[#allocation3 + $0x180] sm:$0xff] %vm1491, %v1396
    %1541 = vst.msk [vmem:[#allocation3 + $0x188] sm:$0xff] %vm1491, %v1398
    %1542 = vst.msk [vmem:[#allocation3 + $0x190] sm:$0xff] %vm1491, %v1400
    %1543 = vst.msk [vmem:[#allocation3 + $0x198] sm:$0xff] %vm1491, %v1402
    %1544 = vst.msk [vmem:[#allocation3 + $0x1a0] sm:$0xff] %vm1491, %v1404
    %1545 = vst.msk [vmem:[#allocation3 + $0x1a8] sm:$0xff] %vm1491, %v1406
    %1546 = vst.msk [vmem:[#allocation3 + $0x1b0] sm:$0xff] %vm1491, %v1408
    %1547 = vst.msk [vmem:[#allocation3 + $0x1b8] sm:$0xff] %vm1491, %v1410
    %1548 = vst.msk [vmem:[#allocation3 + $0x1c0] sm:$0xff] %vm1491, %v1412
    %1549 = vst.msk [vmem:[#allocation3 + $0x1c8] sm:$0xff] %vm1491, %v1414
    %1550 = vst.msk [vmem:[#allocation3 + $0x1d0] sm:$0xff] %vm1491, %v1416
    %1551 = vst.msk [vmem:[#allocation3 + $0x1d8] sm:$0xff] %vm1491, %v1418
    %1552 = vst.msk [vmem:[#allocation3 + $0x1e0] sm:$0xff] %vm1491, %v1420
    %1553 = vst.msk [vmem:[#allocation3 + $0x1e8] sm:$0xff] %vm1491, %v1422
    %1554 = vst.msk [vmem:[#allocation3 + $0x1f0] sm:$0xff] %vm1491, %v1424
    %1555 = vst.msk [vmem:[#allocation3 + $0x1f8] sm:$0xff] %vm1491, %v1426
    %v1556 = vld [vmem:[%s208 + $0x1] sm:$0xff]
    %v1557 = vld [vmem:[%s208 + $0x9] sm:$0xff]
    %v1558 = vld [vmem:[%s208 + $0x19] sm:$0xff]
    %v1559 = vld [vmem:[%s208 + $0x21] sm:$0xff]
    %v1560 = vld [vmem:[%s208 + $0x31] sm:$0xff]
    %v1561 = vld [vmem:[%s208 + $0x39] sm:$0xff]
    %v1562 = vld [vmem:[%s208 + $0x49] sm:$0xff]
    %v1563 = vld [vmem:[%s208 + $0x51] sm:$0xff]
    %v1564 = vld [vmem:[%s208 + $0x61] sm:$0xff]
    %v1565 = vld [vmem:[%s208 + $0x69] sm:$0xff]
    %v1566 = vld [vmem:[%s208 + $0x79] sm:$0xff]
    %v1567 = vld [vmem:[%s208 + $0x81] sm:$0xff]
    %v1568 = vld [vmem:[%s208 + $0x91] sm:$0xff]
    %v1569 = vld [vmem:[%s208 + $0x99] sm:$0xff]
    %v1570 = vld [vmem:[%s208 + $0xa9] sm:$0xff]
    %v1571 = vld [vmem:[%s208 + $0xb1] sm:$0xff]
    %v1572 = vld [vmem:[%s208 + $0xc1] sm:$0xff]
    %v1573 = vld [vmem:[%s208 + $0xc9] sm:$0xff]
    %v1574 = vld [vmem:[%s208 + $0xd9] sm:$0xff]
    %v1575 = vld [vmem:[%s208 + $0xe1] sm:$0xff]
    %v1576 = vld [vmem:[%s208 + $0xf1] sm:$0xff]
    %v1577 = vld [vmem:[%s208 + $0xf9] sm:$0xff]
    %v1578 = vld [vmem:[%s208 + $0x109] sm:$0xff]
    %v1579 = vld [vmem:[%s208 + $0x111] sm:$0xff]
    %v1580 = vld [vmem:[%s208 + $0x121] sm:$0xff]
    %v1581 = vld [vmem:[%s208 + $0x129] sm:$0xff]
    %v1582 = vld [vmem:[%s208 + $0x139] sm:$0xff]
    %v1583 = vld [vmem:[%s208 + $0x141] sm:$0xff]
    %v1584 = vld [vmem:[%s208 + $0x151] sm:$0xff]
    %v1585 = vld [vmem:[%s208 + $0x159] sm:$0xff]
    %v1586 = vld [vmem:[%s208 + $0x169] sm:$0xff]
    %v1587 = vld [vmem:[%s208 + $0x171] sm:$0xff]
    %v1588 = vld [vmem:[%s208 + $0x1b1] sm:$0xff]
    %v1589 = vld [vmem:[%s208 + $0x1b9] sm:$0xff]
    %v1590 = vld [vmem:[%s208 + $0x1c9] sm:$0xff]
    %v1591 = vld [vmem:[%s208 + $0x1d1] sm:$0xff]
    %v1592 = vld [vmem:[%s208 + $0x1e1] sm:$0xff]
    %v1593 = vld [vmem:[%s208 + $0x1e9] sm:$0xff]
    %v1594 = vld [vmem:[%s208 + $0x1f9] sm:$0xff]
    %v1595 = vld [vmem:[%s208 + $0x201] sm:$0xff]
    %v1596 = vld [vmem:[%s208 + $0x211] sm:$0xff]
    %v1597 = vld [vmem:[%s208 + $0x219] sm:$0xff]
    %v1598 = vld [vmem:[%s208 + $0x229] sm:$0xff]
    %v1599 = vld [vmem:[%s208 + $0x231] sm:$0xff]
    %v1600 = vld [vmem:[%s208 + $0x241] sm:$0xff]
    %v1601 = vld [vmem:[%s208 + $0x249] sm:$0xff]
    %v1602 = vld [vmem:[%s208 + $0x259] sm:$0xff]
    %v1603 = vld [vmem:[%s208 + $0x261] sm:$0xff]
    %v1604 = vld [vmem:[%s208 + $0x271] sm:$0xff]
    %v1605 = vld [vmem:[%s208 + $0x279] sm:$0xff]
    %v1606 = vld [vmem:[%s208 + $0x289] sm:$0xff]
    %v1607 = vld [vmem:[%s208 + $0x291] sm:$0xff]
    %v1608 = vld [vmem:[%s208 + $0x2a1] sm:$0xff]
    %v1609 = vld [vmem:[%s208 + $0x2a9] sm:$0xff]
    %v1610 = vld [vmem:[%s208 + $0x2b9] sm:$0xff]
    %v1611 = vld [vmem:[%s208 + $0x2c1] sm:$0xff]
    %v1612 = vld [vmem:[%s208 + $0x2d1] sm:$0xff]
    %v1613 = vld [vmem:[%s208 + $0x2d9] sm:$0xff]
    %v1614 = vld [vmem:[%s208 + $0x2e9] sm:$0xff]
    %v1615 = vld [vmem:[%s208 + $0x2f1] sm:$0xff]
    %v1616 = vld [vmem:[%s208 + $0x301] sm:$0xff]
    %v1617 = vld [vmem:[%s208 + $0x309] sm:$0xff]
    %v1618 = vld [vmem:[%s208 + $0x319] sm:$0xff]
    %v1619 = vld [vmem:[%s208 + $0x321] sm:$0xff]
    %1684 = vrot.lane.b32.xlu0 %v1556, 4
    %v1685 = vpop.permute.xlu0 %1684
    %1686 = vrot.lane.b32.xlu0 %v1557, 4
    %v1687 = vpop.permute.xlu0 %1686
    %1688 = vrot.lane.b32.xlu0 %v1558, 4
    %v1689 = vpop.permute.xlu0 %1688
    %1690 = vrot.lane.b32.xlu0 %v1559, 4
    %v1691 = vpop.permute.xlu0 %1690
    %1692 = vrot.lane.b32.xlu0 %v1560, 4
    %v1693 = vpop.permute.xlu0 %1692
    %1694 = vrot.lane.b32.xlu0 %v1561, 4
    %v1695 = vpop.permute.xlu0 %1694
    %1696 = vrot.lane.b32.xlu0 %v1562, 4
    %v1697 = vpop.permute.xlu0 %1696
    %1698 = vrot.lane.b32.xlu0 %v1563, 4
    %v1699 = vpop.permute.xlu0 %1698
    %1700 = vrot.lane.b32.xlu0 %v1564, 4
    %v1701 = vpop.permute.xlu0 %1700
    %1702 = vrot.lane.b32.xlu0 %v1565, 4
    %v1703 = vpop.permute.xlu0 %1702
    %1704 = vrot.lane.b32.xlu0 %v1566, 4
    %v1705 = vpop.permute.xlu0 %1704
    %1706 = vrot.lane.b32.xlu0 %v1567, 4
    %v1707 = vpop.permute.xlu0 %1706
    %1708 = vrot.lane.b32.xlu0 %v1568, 4
    %v1709 = vpop.permute.xlu0 %1708
    %1710 = vrot.lane.b32.xlu0 %v1569, 4
    %v1711 = vpop.permute.xlu0 %1710
    %1712 = vrot.lane.b32.xlu0 %v1570, 4
    %v1713 = vpop.permute.xlu0 %1712
    %1714 = vrot.lane.b32.xlu0 %v1571, 4
    %v1715 = vpop.permute.xlu0 %1714
    %1716 = vrot.lane.b32.xlu0 %v1572, 4
    %v1717 = vpop.permute.xlu0 %1716
    %1718 = vrot.lane.b32.xlu0 %v1573, 4
    %v1719 = vpop.permute.xlu0 %1718
    %1720 = vrot.lane.b32.xlu0 %v1574, 4
    %v1721 = vpop.permute.xlu0 %1720
    %1722 = vrot.lane.b32.xlu0 %v1575, 4
    %v1723 = vpop.permute.xlu0 %1722
    %1724 = vrot.lane.b32.xlu0 %v1576, 4
    %v1725 = vpop.permute.xlu0 %1724
    %1726 = vrot.lane.b32.xlu0 %v1577, 4
    %v1727 = vpop.permute.xlu0 %1726
    %1728 = vrot.lane.b32.xlu0 %v1578, 4
    %v1729 = vpop.permute.xlu0 %1728
    %1730 = vrot.lane.b32.xlu0 %v1579, 4
    %v1731 = vpop.permute.xlu0 %1730
    %1732 = vrot.lane.b32.xlu0 %v1580, 4
    %v1733 = vpop.permute.xlu0 %1732
    %1734 = vrot.lane.b32.xlu0 %v1581, 4
    %v1735 = vpop.permute.xlu0 %1734
    %1736 = vrot.lane.b32.xlu0 %v1582, 4
    %v1737 = vpop.permute.xlu0 %1736
    %1738 = vrot.lane.b32.xlu0 %v1583, 4
    %v1739 = vpop.permute.xlu0 %1738
    %1740 = vrot.lane.b32.xlu0 %v1584, 4
    %v1741 = vpop.permute.xlu0 %1740
    %1742 = vrot.lane.b32.xlu0 %v1585, 4
    %v1743 = vpop.permute.xlu0 %1742
    %1744 = vrot.lane.b32.xlu0 %v1586, 4
    %v1745 = vpop.permute.xlu0 %1744
    %1746 = vrot.lane.b32.xlu0 %v1587, 4
    %v1747 = vpop.permute.xlu0 %1746
    %1748 = vrot.lane.b32.xlu0 %v1588, 4
    %v1749 = vpop.permute.xlu0 %1748
    %1750 = vrot.lane.b32.xlu0 %v1589, 4
    %v1751 = vpop.permute.xlu0 %1750
    %1752 = vrot.lane.b32.xlu0 %v1590, 4
    %v1753 = vpop.permute.xlu0 %1752
    %1754 = vrot.lane.b32.xlu0 %v1591, 4
    %v1755 = vpop.permute.xlu0 %1754
    %1756 = vrot.lane.b32.xlu0 %v1592, 4
    %v1757 = vpop.permute.xlu0 %1756
    %1758 = vrot.lane.b32.xlu0 %v1593, 4
    %v1759 = vpop.permute.xlu0 %1758
    %1760 = vrot.lane.b32.xlu0 %v1594, 4
    %v1761 = vpop.permute.xlu0 %1760
    %1762 = vrot.lane.b32.xlu0 %v1595, 4
    %v1763 = vpop.permute.xlu0 %1762
    %1764 = vrot.lane.b32.xlu0 %v1596, 4
    %v1765 = vpop.permute.xlu0 %1764
    %1766 = vrot.lane.b32.xlu0 %v1597, 4
    %v1767 = vpop.permute.xlu0 %1766
    %1768 = vrot.lane.b32.xlu0 %v1598, 4
    %v1769 = vpop.permute.xlu0 %1768
    %1770 = vrot.lane.b32.xlu0 %v1599, 4
    %v1771 = vpop.permute.xlu0 %1770
    %1772 = vrot.lane.b32.xlu0 %v1600, 4
    %v1773 = vpop.permute.xlu0 %1772
    %1774 = vrot.lane.b32.xlu0 %v1601, 4
    %v1775 = vpop.permute.xlu0 %1774
    %1776 = vrot.lane.b32.xlu0 %v1602, 4
    %v1777 = vpop.permute.xlu0 %1776
    %1778 = vrot.lane.b32.xlu0 %v1603, 4
    %v1779 = vpop.permute.xlu0 %1778
    %1780 = vrot.lane.b32.xlu0 %v1604, 4
    %v1781 = vpop.permute.xlu0 %1780
    %1782 = vrot.lane.b32.xlu0 %v1605, 4
    %v1783 = vpop.permute.xlu0 %1782
    %1784 = vrot.lane.b32.xlu0 %v1606, 4
    %v1785 = vpop.permute.xlu0 %1784
    %1786 = vrot.lane.b32.xlu0 %v1607, 4
    %v1787 = vpop.permute.xlu0 %1786
    %1788 = vrot.lane.b32.xlu0 %v1608, 4
    %v1789 = vpop.permute.xlu0 %1788
    %1790 = vrot.lane.b32.xlu0 %v1609, 4
    %v1791 = vpop.permute.xlu0 %1790
    %1792 = vrot.lane.b32.xlu0 %v1610, 4
    %v1793 = vpop.permute.xlu0 %1792
    %1794 = vrot.lane.b32.xlu0 %v1611, 4
    %v1795 = vpop.permute.xlu0 %1794
    %1796 = vrot.lane.b32.xlu0 %v1612, 4
    %v1797 = vpop.permute.xlu0 %1796
    %1798 = vrot.lane.b32.xlu0 %v1613, 4
    %v1799 = vpop.permute.xlu0 %1798
    %1800 = vrot.lane.b32.xlu0 %v1614, 4
    %v1801 = vpop.permute.xlu0 %1800
    %1802 = vrot.lane.b32.xlu0 %v1615, 4
    %v1803 = vpop.permute.xlu0 %1802
    %1804 = vrot.lane.b32.xlu0 %v1616, 4
    %v1805 = vpop.permute.xlu0 %1804
    %1806 = vrot.lane.b32.xlu0 %v1617, 4
    %v1807 = vpop.permute.xlu0 %1806
    %1808 = vrot.lane.b32.xlu0 %v1618, 4
    %v1809 = vpop.permute.xlu0 %1808
    %1810 = vrot.lane.b32.xlu0 %v1619, 4
    %v1811 = vpop.permute.xlu0 %1810
    %vm1876 = vcmask 39968
    %1877 = vst.msk [vmem:[#allocation3] sm:$0xff] %vm1876, %v1685
    %1878 = vst.msk [vmem:[#allocation3 + $0x8] sm:$0xff] %vm1876, %v1687
    %1879 = vst.msk [vmem:[#allocation3 + $0x10] sm:$0xff] %vm1876, %v1689
    %1880 = vst.msk [vmem:[#allocation3 + $0x18] sm:$0xff] %vm1876, %v1691
    %1881 = vst.msk [vmem:[#allocation3 + $0x20] sm:$0xff] %vm1876, %v1693
    %1882 = vst.msk [vmem:[#allocation3 + $0x28] sm:$0xff] %vm1876, %v1695
    %1883 = vst.msk [vmem:[#allocation3 + $0x30] sm:$0xff] %vm1876, %v1697
    %1884 = vst.msk [vmem:[#allocation3 + $0x38] sm:$0xff] %vm1876, %v1699
    %1885 = vst.msk [vmem:[#allocation3 + $0x40] sm:$0xff] %vm1876, %v1701
    %1886 = vst.msk [vmem:[#allocation3 + $0x48] sm:$0xff] %vm1876, %v1703
    %1887 = vst.msk [vmem:[#allocation3 + $0x50] sm:$0xff] %vm1876, %v1705
    %1888 = vst.msk [vmem:[#allocation3 + $0x58] sm:$0xff] %vm1876, %v1707
    %1889 = vst.msk [vmem:[#allocation3 + $0x60] sm:$0xff] %vm1876, %v1709
    %1890 = vst.msk [vmem:[#allocation3 + $0x68] sm:$0xff] %vm1876, %v1711
    %1891 = vst.msk [vmem:[#allocation3 + $0x70] sm:$0xff] %vm1876, %v1713
    %1892 = vst.msk [vmem:[#allocation3 + $0x78] sm:$0xff] %vm1876, %v1715
    %1893 = vst.msk [vmem:[#allocation3 + $0x80] sm:$0xff] %vm1876, %v1717
    %1894 = vst.msk [vmem:[#allocation3 + $0x88] sm:$0xff] %vm1876, %v1719
    %1895 = vst.msk [vmem:[#allocation3 + $0x90] sm:$0xff] %vm1876, %v1721
    %1896 = vst.msk [vmem:[#allocation3 + $0x98] sm:$0xff] %vm1876, %v1723
    %1897 = vst.msk [vmem:[#allocation3 + $0xa0] sm:$0xff] %vm1876, %v1725
    %1898 = vst.msk [vmem:[#allocation3 + $0xa8] sm:$0xff] %vm1876, %v1727
    %1899 = vst.msk [vmem:[#allocation3 + $0xb0] sm:$0xff] %vm1876, %v1729
    %1900 = vst.msk [vmem:[#allocation3 + $0xb8] sm:$0xff] %vm1876, %v1731
    %1901 = vst.msk [vmem:[#allocation3 + $0xc0] sm:$0xff] %vm1876, %v1733
    %1902 = vst.msk [vmem:[#allocation3 + $0xc8] sm:$0xff] %vm1876, %v1735
    %1903 = vst.msk [vmem:[#allocation3 + $0xd0] sm:$0xff] %vm1876, %v1737
    %1904 = vst.msk [vmem:[#allocation3 + $0xd8] sm:$0xff] %vm1876, %v1739
    %1905 = vst.msk [vmem:[#allocation3 + $0xe0] sm:$0xff] %vm1876, %v1741
    %1906 = vst.msk [vmem:[#allocation3 + $0xe8] sm:$0xff] %vm1876, %v1743
    %1907 = vst.msk [vmem:[#allocation3 + $0xf0] sm:$0xff] %vm1876, %v1745
    %1908 = vst.msk [vmem:[#allocation3 + $0xf8] sm:$0xff] %vm1876, %v1747
    %1909 = vst.msk [vmem:[#allocation3 + $0x100] sm:$0xff] %vm1876, %v1749
    %1910 = vst.msk [vmem:[#allocation3 + $0x108] sm:$0xff] %vm1876, %v1751
    %1911 = vst.msk [vmem:[#allocation3 + $0x110] sm:$0xff] %vm1876, %v1753
    %1912 = vst.msk [vmem:[#allocation3 + $0x118] sm:$0xff] %vm1876, %v1755
    %1913 = vst.msk [vmem:[#allocation3 + $0x120] sm:$0xff] %vm1876, %v1757
    %1914 = vst.msk [vmem:[#allocation3 + $0x128] sm:$0xff] %vm1876, %v1759
    %1915 = vst.msk [vmem:[#allocation3 + $0x130] sm:$0xff] %vm1876, %v1761
    %1916 = vst.msk [vmem:[#allocation3 + $0x138] sm:$0xff] %vm1876, %v1763
    %1917 = vst.msk [vmem:[#allocation3 + $0x140] sm:$0xff] %vm1876, %v1765
    %1918 = vst.msk [vmem:[#allocation3 + $0x148] sm:$0xff] %vm1876, %v1767
    %1919 = vst.msk [vmem:[#allocation3 + $0x150] sm:$0xff] %vm1876, %v1769
    %1920 = vst.msk [vmem:[#allocation3 + $0x158] sm:$0xff] %vm1876, %v1771
    %1921 = vst.msk [vmem:[#allocation3 + $0x160] sm:$0xff] %vm1876, %v1773
    %1922 = vst.msk [vmem:[#allocation3 + $0x168] sm:$0xff] %vm1876, %v1775
    %1923 = vst.msk [vmem:[#allocation3 + $0x170] sm:$0xff] %vm1876, %v1777
    %1924 = vst.msk [vmem:[#allocation3 + $0x178] sm:$0xff] %vm1876, %v1779
    %1925 = vst.msk [vmem:[#allocation3 + $0x180] sm:$0xff] %vm1876, %v1781
    %1926 = vst.msk [vmem:[#allocation3 + $0x188] sm:$0xff] %vm1876, %v1783
    %1927 = vst.msk [vmem:[#allocation3 + $0x190] sm:$0xff] %vm1876, %v1785
    %1928 = vst.msk [vmem:[#allocation3 + $0x198] sm:$0xff] %vm1876, %v1787
    %1929 = vst.msk [vmem:[#allocation3 + $0x1a0] sm:$0xff] %vm1876, %v1789
    %1930 = vst.msk [vmem:[#allocation3 + $0x1a8] sm:$0xff] %vm1876, %v1791
    %1931 = vst.msk [vmem:[#allocation3 + $0x1b0] sm:$0xff] %vm1876, %v1793
    %1932 = vst.msk [vmem:[#allocation3 + $0x1b8] sm:$0xff] %vm1876, %v1795
    %1933 = vst.msk [vmem:[#allocation3 + $0x1c0] sm:$0xff] %vm1876, %v1797
    %1934 = vst.msk [vmem:[#allocation3 + $0x1c8] sm:$0xff] %vm1876, %v1799
    %1935 = vst.msk [vmem:[#allocation3 + $0x1d0] sm:$0xff] %vm1876, %v1801
    %1936 = vst.msk [vmem:[#allocation3 + $0x1d8] sm:$0xff] %vm1876, %v1803
    %1937 = vst.msk [vmem:[#allocation3 + $0x1e0] sm:$0xff] %vm1876, %v1805
    %1938 = vst.msk [vmem:[#allocation3 + $0x1e8] sm:$0xff] %vm1876, %v1807
    %1939 = vst.msk [vmem:[#allocation3 + $0x1f0] sm:$0xff] %vm1876, %v1809
    %1940 = vst.msk [vmem:[#allocation3 + $0x1f8] sm:$0xff] %vm1876, %v1811
    %v1941 = vld [vmem:[%s208 + $0x2] sm:$0xff]
    %v1942 = vld [vmem:[%s208 + $0xa] sm:$0xff]
    %v1943 = vld [vmem:[%s208 + $0x1a] sm:$0xff]
    %v1944 = vld [vmem:[%s208 + $0x22] sm:$0xff]
    %v1945 = vld [vmem:[%s208 + $0x32] sm:$0xff]
    %v1946 = vld [vmem:[%s208 + $0x3a] sm:$0xff]
    %v1947 = vld [vmem:[%s208 + $0x4a] sm:$0xff]
    %v1948 = vld [vmem:[%s208 + $0x52] sm:$0xff]
    %v1949 = vld [vmem:[%s208 + $0x62] sm:$0xff]
    %v1950 = vld [vmem:[%s208 + $0x6a] sm:$0xff]
    %v1951 = vld [vmem:[%s208 + $0x7a] sm:$0xff]
    %v1952 = vld [vmem:[%s208 + $0x82] sm:$0xff]
    %v1953 = vld [vmem:[%s208 + $0x92] sm:$0xff]
    %v1954 = vld [vmem:[%s208 + $0x9a] sm:$0xff]
    %v1955 = vld [vmem:[%s208 + $0xaa] sm:$0xff]
    %v1956 = vld [vmem:[%s208 + $0xb2] sm:$0xff]
    %v1957 = vld [vmem:[%s208 + $0xc2] sm:$0xff]
    %v1958 = vld [vmem:[%s208 + $0xca] sm:$0xff]
    %v1959 = vld [vmem:[%s208 + $0xda] sm:$0xff]
    %v1960 = vld [vmem:[%s208 + $0xe2] sm:$0xff]
    %v1961 = vld [vmem:[%s208 + $0xf2] sm:$0xff]
    %v1962 = vld [vmem:[%s208 + $0xfa] sm:$0xff]
    %v1963 = vld [vmem:[%s208 + $0x10a] sm:$0xff]
    %v1964 = vld [vmem:[%s208 + $0x112] sm:$0xff]
    %v1965 = vld [vmem:[%s208 + $0x122] sm:$0xff]
    %v1966 = vld [vmem:[%s208 + $0x12a] sm:$0xff]
    %v1967 = vld [vmem:[%s208 + $0x13a] sm:$0xff]
    %v1968 = vld [vmem:[%s208 + $0x142] sm:$0xff]
    %v1969 = vld [vmem:[%s208 + $0x152] sm:$0xff]
    %v1970 = vld [vmem:[%s208 + $0x15a] sm:$0xff]
    %v1971 = vld [vmem:[%s208 + $0x16a] sm:$0xff]
    %v1972 = vld [vmem:[%s208 + $0x172] sm:$0xff]
    %v1973 = vld [vmem:[%s208 + $0x1b2] sm:$0xff]
    %v1974 = vld [vmem:[%s208 + $0x1ba] sm:$0xff]
    %v1975 = vld [vmem:[%s208 + $0x1ca] sm:$0xff]
    %v1976 = vld [vmem:[%s208 + $0x1d2] sm:$0xff]
    %v1977 = vld [vmem:[%s208 + $0x1e2] sm:$0xff]
    %v1978 = vld [vmem:[%s208 + $0x1ea] sm:$0xff]
    %v1979 = vld [vmem:[%s208 + $0x1fa] sm:$0xff]
    %v1980 = vld [vmem:[%s208 + $0x202] sm:$0xff]
    %v1981 = vld [vmem:[%s208 + $0x212] sm:$0xff]
    %v1982 = vld [vmem:[%s208 + $0x21a] sm:$0xff]
    %v1983 = vld [vmem:[%s208 + $0x22a] sm:$0xff]
    %v1984 = vld [vmem:[%s208 + $0x232] sm:$0xff]
    %v1985 = vld [vmem:[%s208 + $0x242] sm:$0xff]
    %v1986 = vld [vmem:[%s208 + $0x24a] sm:$0xff]
    %v1987 = vld [vmem:[%s208 + $0x25a] sm:$0xff]
    %v1988 = vld [vmem:[%s208 + $0x262] sm:$0xff]
    %v1989 = vld [vmem:[%s208 + $0x272] sm:$0xff]
    %v1990 = vld [vmem:[%s208 + $0x27a] sm:$0xff]
    %v1991 = vld [vmem:[%s208 + $0x28a] sm:$0xff]
    %v1992 = vld [vmem:[%s208 + $0x292] sm:$0xff]
    %v1993 = vld [vmem:[%s208 + $0x2a2] sm:$0xff]
    %v1994 = vld [vmem:[%s208 + $0x2aa] sm:$0xff]
    %v1995 = vld [vmem:[%s208 + $0x2ba] sm:$0xff]
    %v1996 = vld [vmem:[%s208 + $0x2c2] sm:$0xff]
    %v1997 = vld [vmem:[%s208 + $0x2d2] sm:$0xff]
    %v1998 = vld [vmem:[%s208 + $0x2da] sm:$0xff]
    %v1999 = vld [vmem:[%s208 + $0x2ea] sm:$0xff]
    %v2000 = vld [vmem:[%s208 + $0x2f2] sm:$0xff]
    %v2001 = vld [vmem:[%s208 + $0x302] sm:$0xff]
    %v2002 = vld [vmem:[%s208 + $0x30a] sm:$0xff]
    %v2003 = vld [vmem:[%s208 + $0x31a] sm:$0xff]
    %v2004 = vld [vmem:[%s208 + $0x322] sm:$0xff]
    %2069 = vrot.lane.b32.xlu0 %v1941, 5
    %v2070 = vpop.permute.xlu0 %2069
    %2071 = vrot.lane.b32.xlu0 %v1942, 5
    %v2072 = vpop.permute.xlu0 %2071
    %2073 = vrot.lane.b32.xlu0 %v1943, 5
    %v2074 = vpop.permute.xlu0 %2073
    %2075 = vrot.lane.b32.xlu0 %v1944, 5
    %v2076 = vpop.permute.xlu0 %2075
    %2077 = vrot.lane.b32.xlu0 %v1945, 5
    %v2078 = vpop.permute.xlu0 %2077
    %2079 = vrot.lane.b32.xlu0 %v1946, 5
    %v2080 = vpop.permute.xlu0 %2079
    %2081 = vrot.lane.b32.xlu0 %v1947, 5
    %v2082 = vpop.permute.xlu0 %2081
    %2083 = vrot.lane.b32.xlu0 %v1948, 5
    %v2084 = vpop.permute.xlu0 %2083
    %2085 = vrot.lane.b32.xlu0 %v1949, 5
    %v2086 = vpop.permute.xlu0 %2085
    %2087 = vrot.lane.b32.xlu0 %v1950, 5
    %v2088 = vpop.permute.xlu0 %2087
    %2089 = vrot.lane.b32.xlu0 %v1951, 5
    %v2090 = vpop.permute.xlu0 %2089
    %2091 = vrot.lane.b32.xlu0 %v1952, 5
    %v2092 = vpop.permute.xlu0 %2091
    %2093 = vrot.lane.b32.xlu0 %v1953, 5
    %v2094 = vpop.permute.xlu0 %2093
    %2095 = vrot.lane.b32.xlu0 %v1954, 5
    %v2096 = vpop.permute.xlu0 %2095
    %2097 = vrot.lane.b32.xlu0 %v1955, 5
    %v2098 = vpop.permute.xlu0 %2097
    %2099 = vrot.lane.b32.xlu0 %v1956, 5
    %v2100 = vpop.permute.xlu0 %2099
    %2101 = vrot.lane.b32.xlu0 %v1957, 5
    %v2102 = vpop.permute.xlu0 %2101
    %2103 = vrot.lane.b32.xlu0 %v1958, 5
    %v2104 = vpop.permute.xlu0 %2103
    %2105 = vrot.lane.b32.xlu0 %v1959, 5
    %v2106 = vpop.permute.xlu0 %2105
    %2107 = vrot.lane.b32.xlu0 %v1960, 5
    %v2108 = vpop.permute.xlu0 %2107
    %2109 = vrot.lane.b32.xlu0 %v1961, 5
    %v2110 = vpop.permute.xlu0 %2109
    %2111 = vrot.lane.b32.xlu0 %v1962, 5
    %v2112 = vpop.permute.xlu0 %2111
    %2113 = vrot.lane.b32.xlu0 %v1963, 5
    %v2114 = vpop.permute.xlu0 %2113
    %2115 = vrot.lane.b32.xlu0 %v1964, 5
    %v2116 = vpop.permute.xlu0 %2115
    %2117 = vrot.lane.b32.xlu0 %v1965, 5
    %v2118 = vpop.permute.xlu0 %2117
    %2119 = vrot.lane.b32.xlu0 %v1966, 5
    %v2120 = vpop.permute.xlu0 %2119
    %2121 = vrot.lane.b32.xlu0 %v1967, 5
    %v2122 = vpop.permute.xlu0 %2121
    %2123 = vrot.lane.b32.xlu0 %v1968, 5
    %v2124 = vpop.permute.xlu0 %2123
    %2125 = vrot.lane.b32.xlu0 %v1969, 5
    %v2126 = vpop.permute.xlu0 %2125
    %2127 = vrot.lane.b32.xlu0 %v1970, 5
    %v2128 = vpop.permute.xlu0 %2127
    %2129 = vrot.lane.b32.xlu0 %v1971, 5
    %v2130 = vpop.permute.xlu0 %2129
    %2131 = vrot.lane.b32.xlu0 %v1972, 5
    %v2132 = vpop.permute.xlu0 %2131
    %2133 = vrot.lane.b32.xlu0 %v1973, 5
    %v2134 = vpop.permute.xlu0 %2133
    %2135 = vrot.lane.b32.xlu0 %v1974, 5
    %v2136 = vpop.permute.xlu0 %2135
    %2137 = vrot.lane.b32.xlu0 %v1975, 5
    %v2138 = vpop.permute.xlu0 %2137
    %2139 = vrot.lane.b32.xlu0 %v1976, 5
    %v2140 = vpop.permute.xlu0 %2139
    %2141 = vrot.lane.b32.xlu0 %v1977, 5
    %v2142 = vpop.permute.xlu0 %2141
    %2143 = vrot.lane.b32.xlu0 %v1978, 5
    %v2144 = vpop.permute.xlu0 %2143
    %2145 = vrot.lane.b32.xlu0 %v1979, 5
    %v2146 = vpop.permute.xlu0 %2145
    %2147 = vrot.lane.b32.xlu0 %v1980, 5
    %v2148 = vpop.permute.xlu0 %2147
    %2149 = vrot.lane.b32.xlu0 %v1981, 5
    %v2150 = vpop.permute.xlu0 %2149
    %2151 = vrot.lane.b32.xlu0 %v1982, 5
    %v2152 = vpop.permute.xlu0 %2151
    %2153 = vrot.lane.b32.xlu0 %v1983, 5
    %v2154 = vpop.permute.xlu0 %2153
    %2155 = vrot.lane.b32.xlu0 %v1984, 5
    %v2156 = vpop.permute.xlu0 %2155
    %2157 = vrot.lane.b32.xlu0 %v1985, 5
    %v2158 = vpop.permute.xlu0 %2157
    %2159 = vrot.lane.b32.xlu0 %v1986, 5
    %v2160 = vpop.permute.xlu0 %2159
    %2161 = vrot.lane.b32.xlu0 %v1987, 5
    %v2162 = vpop.permute.xlu0 %2161
    %2163 = vrot.lane.b32.xlu0 %v1988, 5
    %v2164 = vpop.permute.xlu0 %2163
    %2165 = vrot.lane.b32.xlu0 %v1989, 5
    %v2166 = vpop.permute.xlu0 %2165
    %2167 = vrot.lane.b32.xlu0 %v1990, 5
    %v2168 = vpop.permute.xlu0 %2167
    %2169 = vrot.lane.b32.xlu0 %v1991, 5
    %v2170 = vpop.permute.xlu0 %2169
    %2171 = vrot.lane.b32.xlu0 %v1992, 5
    %v2172 = vpop.permute.xlu0 %2171
    %2173 = vrot.lane.b32.xlu0 %v1993, 5
    %v2174 = vpop.permute.xlu0 %2173
    %2175 = vrot.lane.b32.xlu0 %v1994, 5
    %v2176 = vpop.permute.xlu0 %2175
    %2177 = vrot.lane.b32.xlu0 %v1995, 5
    %v2178 = vpop.permute.xlu0 %2177
    %2179 = vrot.lane.b32.xlu0 %v1996, 5
    %v2180 = vpop.permute.xlu0 %2179
    %2181 = vrot.lane.b32.xlu0 %v1997, 5
    %v2182 = vpop.permute.xlu0 %2181
    %2183 = vrot.lane.b32.xlu0 %v1998, 5
    %v2184 = vpop.permute.xlu0 %2183
    %2185 = vrot.lane.b32.xlu0 %v1999, 5
    %v2186 = vpop.permute.xlu0 %2185
    %2187 = vrot.lane.b32.xlu0 %v2000, 5
    %v2188 = vpop.permute.xlu0 %2187
    %2189 = vrot.lane.b32.xlu0 %v2001, 5
    %v2190 = vpop.permute.xlu0 %2189
    %2191 = vrot.lane.b32.xlu0 %v2002, 5
    %v2192 = vpop.permute.xlu0 %2191
    %2193 = vrot.lane.b32.xlu0 %v2003, 5
    %v2194 = vpop.permute.xlu0 %2193
    %2195 = vrot.lane.b32.xlu0 %v2004, 5
    %v2196 = vpop.permute.xlu0 %2195
    %vm2261 = vcmask 48168
    %2262 = vst.msk [vmem:[#allocation3] sm:$0xff] %vm2261, %v2070
    %2263 = vst.msk [vmem:[#allocation3 + $0x8] sm:$0xff] %vm2261, %v2072
    %2264 = vst.msk [vmem:[#allocation3 + $0x10] sm:$0xff] %vm2261, %v2074
    %2265 = vst.msk [vmem:[#allocation3 + $0x18] sm:$0xff] %vm2261, %v2076
    %2266 = vst.msk [vmem:[#allocation3 + $0x20] sm:$0xff] %vm2261, %v2078
    %2267 = vst.msk [vmem:[#allocation3 + $0x28] sm:$0xff] %vm2261, %v2080
    %2268 = vst.msk [vmem:[#allocation3 + $0x30] sm:$0xff] %vm2261, %v2082
    %2269 = vst.msk [vmem:[#allocation3 + $0x38] sm:$0xff] %vm2261, %v2084
    %2270 = vst.msk [vmem:[#allocation3 + $0x40] sm:$0xff] %vm2261, %v2086
    %2271 = vst.msk [vmem:[#allocation3 + $0x48] sm:$0xff] %vm2261, %v2088
    %2272 = vst.msk [vmem:[#allocation3 + $0x50] sm:$0xff] %vm2261, %v2090
    %2273 = vst.msk [vmem:[#allocation3 + $0x58] sm:$0xff] %vm2261, %v2092
    %2274 = vst.msk [vmem:[#allocation3 + $0x60] sm:$0xff] %vm2261, %v2094
    %2275 = vst.msk [vmem:[#allocation3 + $0x68] sm:$0xff] %vm2261, %v2096
    %2276 = vst.msk [vmem:[#allocation3 + $0x70] sm:$0xff] %vm2261, %v2098
    %2277 = vst.msk [vmem:[#allocation3 + $0x78] sm:$0xff] %vm2261, %v2100
    %2278 = vst.msk [vmem:[#allocation3 + $0x80] sm:$0xff] %vm2261, %v2102
    %2279 = vst.msk [vmem:[#allocation3 + $0x88] sm:$0xff] %vm2261, %v2104
    %2280 = vst.msk [vmem:[#allocation3 + $0x90] sm:$0xff] %vm2261, %v2106
    %2281 = vst.msk [vmem:[#allocation3 + $0x98] sm:$0xff] %vm2261, %v2108
    %2282 = vst.msk [vmem:[#allocation3 + $0xa0] sm:$0xff] %vm2261, %v2110
    %2283 = vst.msk [vmem:[#allocation3 + $0xa8] sm:$0xff] %vm2261, %v2112
    %2284 = vst.msk [vmem:[#allocation3 + $0xb0] sm:$0xff] %vm2261, %v2114
    %2285 = vst.msk [vmem:[#allocation3 + $0xb8] sm:$0xff] %vm2261, %v2116
    %2286 = vst.msk [vmem:[#allocation3 + $0xc0] sm:$0xff] %vm2261, %v2118
    %2287 = vst.msk [vmem:[#allocation3 + $0xc8] sm:$0xff] %vm2261, %v2120
    %2288 = vst.msk [vmem:[#allocation3 + $0xd0] sm:$0xff] %vm2261, %v2122
    %2289 = vst.msk [vmem:[#allocation3 + $0xd8] sm:$0xff] %vm2261, %v2124
    %2290 = vst.msk [vmem:[#allocation3 + $0xe0] sm:$0xff] %vm2261, %v2126
    %2291 = vst.msk [vmem:[#allocation3 + $0xe8] sm:$0xff] %vm2261, %v2128
    %2292 = vst.msk [vmem:[#allocation3 + $0xf0] sm:$0xff] %vm2261, %v2130
    %2293 = vst.msk [vmem:[#allocation3 + $0xf8] sm:$0xff] %vm2261, %v2132
    %2294 = vst.msk [vmem:[#allocation3 + $0x100] sm:$0xff] %vm2261, %v2134
    %2295 = vst.msk [vmem:[#allocation3 + $0x108] sm:$0xff] %vm2261, %v2136
    %2296 = vst.msk [vmem:[#allocation3 + $0x110] sm:$0xff] %vm2261, %v2138
    %2297 = vst.msk [vmem:[#allocation3 + $0x118] sm:$0xff] %vm2261, %v2140
    %2298 = vst.msk [vmem:[#allocation3 + $0x120] sm:$0xff] %vm2261, %v2142
    %2299 = vst.msk [vmem:[#allocation3 + $0x128] sm:$0xff] %vm2261, %v2144
    %2300 = vst.msk [vmem:[#allocation3 + $0x130] sm:$0xff] %vm2261, %v2146
    %2301 = vst.msk [vmem:[#allocation3 + $0x138] sm:$0xff] %vm2261, %v2148
    %2302 = vst.msk [vmem:[#allocation3 + $0x140] sm:$0xff] %vm2261, %v2150
    %2303 = vst.msk [vmem:[#allocation3 + $0x148] sm:$0xff] %vm2261, %v2152
    %2304 = vst.msk [vmem:[#allocation3 + $0x150] sm:$0xff] %vm2261, %v2154
    %2305 = vst.msk [vmem:[#allocation3 + $0x158] sm:$0xff] %vm2261, %v2156
    %2306 = vst.msk [vmem:[#allocation3 + $0x160] sm:$0xff] %vm2261, %v2158
    %2307 = vst.msk [vmem:[#allocation3 + $0x168] sm:$0xff] %vm2261, %v2160
    %2308 = vst.msk [vmem:[#allocation3 + $0x170] sm:$0xff] %vm2261, %v2162
    %2309 = vst.msk [vmem:[#allocation3 + $0x178] sm:$0xff] %vm2261, %v2164
    %2310 = vst.msk [vmem:[#allocation3 + $0x180] sm:$0xff] %vm2261, %v2166
    %2311 = vst.msk [vmem:[#allocation3 + $0x188] sm:$0xff] %vm2261, %v2168
    %2312 = vst.msk [vmem:[#allocation3 + $0x190] sm:$0xff] %vm2261, %v2170
    %2313 = vst.msk [vmem:[#allocation3 + $0x198] sm:$0xff] %vm2261, %v2172
    %2314 = vst.msk [vmem:[#allocation3 + $0x1a0] sm:$0xff] %vm2261, %v2174
    %2315 = vst.msk [vmem:[#allocation3 + $0x1a8] sm:$0xff] %vm2261, %v2176
    %2316 = vst.msk [vmem:[#allocation3 + $0x1b0] sm:$0xff] %vm2261, %v2178
    %2317 = vst.msk [vmem:[#allocation3 + $0x1b8] sm:$0xff] %vm2261, %v2180
    %2318 = vst.msk [vmem:[#allocation3 + $0x1c0] sm:$0xff] %vm2261, %v2182
    %2319 = vst.msk [vmem:[#allocation3 + $0x1c8] sm:$0xff] %vm2261, %v2184
    %2320 = vst.msk [vmem:[#allocation3 + $0x1d0] sm:$0xff] %vm2261, %v2186
    %2321 = vst.msk [vmem:[#allocation3 + $0x1d8] sm:$0xff] %vm2261, %v2188
    %2322 = vst.msk [vmem:[#allocation3 + $0x1e0] sm:$0xff] %vm2261, %v2190
    %2323 = vst.msk [vmem:[#allocation3 + $0x1e8] sm:$0xff] %vm2261, %v2192
    %2324 = vst.msk [vmem:[#allocation3 + $0x1f0] sm:$0xff] %vm2261, %v2194
    %2325 = vst.msk [vmem:[#allocation3 + $0x1f8] sm:$0xff] %vm2261, %v2196
    %s2326 = scalar_lea.vmem [#allocation2], 48
    %v2327 = vld [vmem:[%s2326] sm:$0xff]
    %v2328 = vld [vmem:[%s2326 + $0x8] sm:$0xff]
    %v2329 = vld [vmem:[%s2326 + $0x18] sm:$0xff]
    %v2330 = vld [vmem:[%s2326 + $0x20] sm:$0xff]
    %v2331 = vld [vmem:[%s2326 + $0x30] sm:$0xff]
    %v2332 = vld [vmem:[%s2326 + $0x38] sm:$0xff]
    %v2333 = vld [vmem:[%s2326 + $0x48] sm:$0xff]
    %v2334 = vld [vmem:[%s2326 + $0x50] sm:$0xff]
    %v2335 = vld [vmem:[%s2326 + $0x60] sm:$0xff]
    %v2336 = vld [vmem:[%s2326 + $0x68] sm:$0xff]
    %v2337 = vld [vmem:[%s2326 + $0x78] sm:$0xff]
    %v2338 = vld [vmem:[%s2326 + $0x80] sm:$0xff]
    %v2339 = vld [vmem:[%s2326 + $0x90] sm:$0xff]
    %v2340 = vld [vmem:[%s2326 + $0x98] sm:$0xff]
    %v2341 = vld [vmem:[%s2326 + $0xa8] sm:$0xff]
    %v2342 = vld [vmem:[%s2326 + $0xb0] sm:$0xff]
    %v2343 = vld [vmem:[%s2326 + $0xc0] sm:$0xff]
    %v2344 = vld [vmem:[%s2326 + $0xc8] sm:$0xff]
    %v2345 = vld [vmem:[%s2326 + $0xd8] sm:$0xff]
    %v2346 = vld [vmem:[%s2326 + $0xe0] sm:$0xff]
    %v2347 = vld [vmem:[%s2326 + $0xf0] sm:$0xff]
    %v2348 = vld [vmem:[%s2326 + $0xf8] sm:$0xff]
    %v2349 = vld [vmem:[%s2326 + $0x108] sm:$0xff]
    %v2350 = vld [vmem:[%s2326 + $0x110] sm:$0xff]
    %v2351 = vld [vmem:[%s2326 + $0x120] sm:$0xff]
    %v2352 = vld [vmem:[%s2326 + $0x128] sm:$0xff]
    %v2353 = vld [vmem:[%s2326 + $0x138] sm:$0xff]
    %v2354 = vld [vmem:[%s2326 + $0x140] sm:$0xff]
    %v2355 = vld [vmem:[%s2326 + $0x150] sm:$0xff]
    %v2356 = vld [vmem:[%s2326 + $0x158] sm:$0xff]
    %v2357 = vld [vmem:[%s2326 + $0x168] sm:$0xff]
    %v2358 = vld [vmem:[%s2326 + $0x170] sm:$0xff]
    %v2359 = vld [vmem:[%s2326 + $0x1b0] sm:$0xff]
    %v2360 = vld [vmem:[%s2326 + $0x1b8] sm:$0xff]
    %v2361 = vld [vmem:[%s2326 + $0x1c8] sm:$0xff]
    %v2362 = vld [vmem:[%s2326 + $0x1d0] sm:$0xff]
    %v2363 = vld [vmem:[%s2326 + $0x1e0] sm:$0xff]
    %v2364 = vld [vmem:[%s2326 + $0x1e8] sm:$0xff]
    %v2365 = vld [vmem:[%s2326 + $0x1f8] sm:$0xff]
    %v2366 = vld [vmem:[%s2326 + $0x200] sm:$0xff]
    %v2367 = vld [vmem:[%s2326 + $0x210] sm:$0xff]
    %v2368 = vld [vmem:[%s2326 + $0x218] sm:$0xff]
    %v2369 = vld [vmem:[%s2326 + $0x228] sm:$0xff]
    %v2370 = vld [vmem:[%s2326 + $0x230] sm:$0xff]
    %v2371 = vld [vmem:[%s2326 + $0x240] sm:$0xff]
    %v2372 = vld [vmem:[%s2326 + $0x248] sm:$0xff]
    %v2373 = vld [vmem:[%s2326 + $0x258] sm:$0xff]
    %v2374 = vld [vmem:[%s2326 + $0x260] sm:$0xff]
    %v2375 = vld [vmem:[%s2326 + $0x270] sm:$0xff]
    %v2376 = vld [vmem:[%s2326 + $0x278] sm:$0xff]
    %v2377 = vld [vmem:[%s2326 + $0x288] sm:$0xff]
    %v2378 = vld [vmem:[%s2326 + $0x290] sm:$0xff]
    %v2379 = vld [vmem:[%s2326 + $0x2a0] sm:$0xff]
    %v2380 = vld [vmem:[%s2326 + $0x2a8] sm:$0xff]
    %v2381 = vld [vmem:[%s2326 + $0x2b8] sm:$0xff]
    %v2382 = vld [vmem:[%s2326 + $0x2c0] sm:$0xff]
    %v2383 = vld [vmem:[%s2326 + $0x2d0] sm:$0xff]
    %v2384 = vld [vmem:[%s2326 + $0x2d8] sm:$0xff]
    %v2385 = vld [vmem:[%s2326 + $0x2e8] sm:$0xff]
    %v2386 = vld [vmem:[%s2326 + $0x2f0] sm:$0xff]
    %v2387 = vld [vmem:[%s2326 + $0x300] sm:$0xff]
    %v2388 = vld [vmem:[%s2326 + $0x308] sm:$0xff]
    %v2389 = vld [vmem:[%s2326 + $0x318] sm:$0xff]
    %v2390 = vld [vmem:[%s2326 + $0x320] sm:$0xff]
    %2455 = vrot.lane.b32.xlu0 %v2327, 6
    %v2456 = vpop.permute.xlu0 %2455
    %2457 = vrot.lane.b32.xlu0 %v2328, 6
    %v2458 = vpop.permute.xlu0 %2457
    %2459 = vrot.lane.b32.xlu0 %v2329, 6
    %v2460 = vpop.permute.xlu0 %2459
    %2461 = vrot.lane.b32.xlu0 %v2330, 6
    %v2462 = vpop.permute.xlu0 %2461
    %2463 = vrot.lane.b32.xlu0 %v2331, 6
    %v2464 = vpop.permute.xlu0 %2463
    %2465 = vrot.lane.b32.xlu0 %v2332, 6
    %v2466 = vpop.permute.xlu0 %2465
    %2467 = vrot.lane.b32.xlu0 %v2333, 6
    %v2468 = vpop.permute.xlu0 %2467
    %2469 = vrot.lane.b32.xlu0 %v2334, 6
    %v2470 = vpop.permute.xlu0 %2469
    %2471 = vrot.lane.b32.xlu0 %v2335, 6
    %v2472 = vpop.permute.xlu0 %2471
    %2473 = vrot.lane.b32.xlu0 %v2336, 6
    %v2474 = vpop.permute.xlu0 %2473
    %2475 = vrot.lane.b32.xlu0 %v2337, 6
    %v2476 = vpop.permute.xlu0 %2475
    %2477 = vrot.lane.b32.xlu0 %v2338, 6
    %v2478 = vpop.permute.xlu0 %2477
    %2479 = vrot.lane.b32.xlu0 %v2339, 6
    %v2480 = vpop.permute.xlu0 %2479
    %2481 = vrot.lane.b32.xlu0 %v2340, 6
    %v2482 = vpop.permute.xlu0 %2481
    %2483 = vrot.lane.b32.xlu0 %v2341, 6
    %v2484 = vpop.permute.xlu0 %2483
    %2485 = vrot.lane.b32.xlu0 %v2342, 6
    %v2486 = vpop.permute.xlu0 %2485
    %2487 = vrot.lane.b32.xlu0 %v2343, 6
    %v2488 = vpop.permute.xlu0 %2487
    %2489 = vrot.lane.b32.xlu0 %v2344, 6
    %v2490 = vpop.permute.xlu0 %2489
    %2491 = vrot.lane.b32.xlu0 %v2345, 6
    %v2492 = vpop.permute.xlu0 %2491
    %2493 = vrot.lane.b32.xlu0 %v2346, 6
    %v2494 = vpop.permute.xlu0 %2493
    %2495 = vrot.lane.b32.xlu0 %v2347, 6
    %v2496 = vpop.permute.xlu0 %2495
    %2497 = vrot.lane.b32.xlu0 %v2348, 6
    %v2498 = vpop.permute.xlu0 %2497
    %2499 = vrot.lane.b32.xlu0 %v2349, 6
    %v2500 = vpop.permute.xlu0 %2499
    %2501 = vrot.lane.b32.xlu0 %v2350, 6
    %v2502 = vpop.permute.xlu0 %2501
    %2503 = vrot.lane.b32.xlu0 %v2351, 6
    %v2504 = vpop.permute.xlu0 %2503
    %2505 = vrot.lane.b32.xlu0 %v2352, 6
    %v2506 = vpop.permute.xlu0 %2505
    %2507 = vrot.lane.b32.xlu0 %v2353, 6
    %v2508 = vpop.permute.xlu0 %2507
    %2509 = vrot.lane.b32.xlu0 %v2354, 6
    %v2510 = vpop.permute.xlu0 %2509
    %2511 = vrot.lane.b32.xlu0 %v2355, 6
    %v2512 = vpop.permute.xlu0 %2511
    %2513 = vrot.lane.b32.xlu0 %v2356, 6
    %v2514 = vpop.permute.xlu0 %2513
    %2515 = vrot.lane.b32.xlu0 %v2357, 6
    %v2516 = vpop.permute.xlu0 %2515
    %2517 = vrot.lane.b32.xlu0 %v2358, 6
    %v2518 = vpop.permute.xlu0 %2517
    %2519 = vrot.lane.b32.xlu0 %v2359, 6
    %v2520 = vpop.permute.xlu0 %2519
    %2521 = vrot.lane.b32.xlu0 %v2360, 6
    %v2522 = vpop.permute.xlu0 %2521
    %2523 = vrot.lane.b32.xlu0 %v2361, 6
    %v2524 = vpop.permute.xlu0 %2523
    %2525 = vrot.lane.b32.xlu0 %v2362, 6
    %v2526 = vpop.permute.xlu0 %2525
    %2527 = vrot.lane.b32.xlu0 %v2363, 6
    %v2528 = vpop.permute.xlu0 %2527
    %2529 = vrot.lane.b32.xlu0 %v2364, 6
    %v2530 = vpop.permute.xlu0 %2529
    %2531 = vrot.lane.b32.xlu0 %v2365, 6
    %v2532 = vpop.permute.xlu0 %2531
    %2533 = vrot.lane.b32.xlu0 %v2366, 6
    %v2534 = vpop.permute.xlu0 %2533
    %2535 = vrot.lane.b32.xlu0 %v2367, 6
    %v2536 = vpop.permute.xlu0 %2535
    %2537 = vrot.lane.b32.xlu0 %v2368, 6
    %v2538 = vpop.permute.xlu0 %2537
    %2539 = vrot.lane.b32.xlu0 %v2369, 6
    %v2540 = vpop.permute.xlu0 %2539
    %2541 = vrot.lane.b32.xlu0 %v2370, 6
    %v2542 = vpop.permute.xlu0 %2541
    %2543 = vrot.lane.b32.xlu0 %v2371, 6
    %v2544 = vpop.permute.xlu0 %2543
    %2545 = vrot.lane.b32.xlu0 %v2372, 6
    %v2546 = vpop.permute.xlu0 %2545
    %2547 = vrot.lane.b32.xlu0 %v2373, 6
    %v2548 = vpop.permute.xlu0 %2547
    %2549 = vrot.lane.b32.xlu0 %v2374, 6
    %v2550 = vpop.permute.xlu0 %2549
    %2551 = vrot.lane.b32.xlu0 %v2375, 6
    %v2552 = vpop.permute.xlu0 %2551
    %2553 = vrot.lane.b32.xlu0 %v2376, 6
    %v2554 = vpop.permute.xlu0 %2553
    %2555 = vrot.lane.b32.xlu0 %v2377, 6
    %v2556 = vpop.permute.xlu0 %2555
    %2557 = vrot.lane.b32.xlu0 %v2378, 6
    %v2558 = vpop.permute.xlu0 %2557
    %2559 = vrot.lane.b32.xlu0 %v2379, 6
    %v2560 = vpop.permute.xlu0 %2559
    %2561 = vrot.lane.b32.xlu0 %v2380, 6
    %v2562 = vpop.permute.xlu0 %2561
    %2563 = vrot.lane.b32.xlu0 %v2381, 6
    %v2564 = vpop.permute.xlu0 %2563
    %2565 = vrot.lane.b32.xlu0 %v2382, 6
    %v2566 = vpop.permute.xlu0 %2565
    %2567 = vrot.lane.b32.xlu0 %v2383, 6
    %v2568 = vpop.permute.xlu0 %2567
    %2569 = vrot.lane.b32.xlu0 %v2384, 6
    %v2570 = vpop.permute.xlu0 %2569
    %2571 = vrot.lane.b32.xlu0 %v2385, 6
    %v2572 = vpop.permute.xlu0 %2571
    %2573 = vrot.lane.b32.xlu0 %v2386, 6
    %v2574 = vpop.permute.xlu0 %2573
    %2575 = vrot.lane.b32.xlu0 %v2387, 6
    %v2576 = vpop.permute.xlu0 %2575
    %2577 = vrot.lane.b32.xlu0 %v2388, 6
    %v2578 = vpop.permute.xlu0 %2577
    %2579 = vrot.lane.b32.xlu0 %v2389, 6
    %v2580 = vpop.permute.xlu0 %2579
    %2581 = vrot.lane.b32.xlu0 %v2390, 6
    %v2582 = vpop.permute.xlu0 %2581
    %vm2647 = vcmask 56368
    %2648 = vst.msk [vmem:[#allocation3] sm:$0xff] %vm2647, %v2456
    %2649 = vst.msk [vmem:[#allocation3 + $0x8] sm:$0xff] %vm2647, %v2458
    %2650 = vst.msk [vmem:[#allocation3 + $0x10] sm:$0xff] %vm2647, %v2460
    %2651 = vst.msk [vmem:[#allocation3 + $0x18] sm:$0xff] %vm2647, %v2462
    %2652 = vst.msk [vmem:[#allocation3 + $0x20] sm:$0xff] %vm2647, %v2464
    %2653 = vst.msk [vmem:[#allocation3 + $0x28] sm:$0xff] %vm2647, %v2466
    %2654 = vst.msk [vmem:[#allocation3 + $0x30] sm:$0xff] %vm2647, %v2468
    %2655 = vst.msk [vmem:[#allocation3 + $0x38] sm:$0xff] %vm2647, %v2470
    %2656 = vst.msk [vmem:[#allocation3 + $0x40] sm:$0xff] %vm2647, %v2472
    %2657 = vst.msk [vmem:[#allocation3 + $0x48] sm:$0xff] %vm2647, %v2474
    %2658 = vst.msk [vmem:[#allocation3 + $0x50] sm:$0xff] %vm2647, %v2476
    %2659 = vst.msk [vmem:[#allocation3 + $0x58] sm:$0xff] %vm2647, %v2478
    %2660 = vst.msk [vmem:[#allocation3 + $0x60] sm:$0xff] %vm2647, %v2480
    %2661 = vst.msk [vmem:[#allocation3 + $0x68] sm:$0xff] %vm2647, %v2482
    %2662 = vst.msk [vmem:[#allocation3 + $0x70] sm:$0xff] %vm2647, %v2484
    %2663 = vst.msk [vmem:[#allocation3 + $0x78] sm:$0xff] %vm2647, %v2486
    %2664 = vst.msk [vmem:[#allocation3 + $0x80] sm:$0xff] %vm2647, %v2488
    %2665 = vst.msk [vmem:[#allocation3 + $0x88] sm:$0xff] %vm2647, %v2490
    %2666 = vst.msk [vmem:[#allocation3 + $0x90] sm:$0xff] %vm2647, %v2492
    %2667 = vst.msk [vmem:[#allocation3 + $0x98] sm:$0xff] %vm2647, %v2494
    %2668 = vst.msk [vmem:[#allocation3 + $0xa0] sm:$0xff] %vm2647, %v2496
    %2669 = vst.msk [vmem:[#allocation3 + $0xa8] sm:$0xff] %vm2647, %v2498
    %2670 = vst.msk [vmem:[#allocation3 + $0xb0] sm:$0xff] %vm2647, %v2500
    %2671 = vst.msk [vmem:[#allocation3 + $0xb8] sm:$0xff] %vm2647, %v2502
    %2672 = vst.msk [vmem:[#allocation3 + $0xc0] sm:$0xff] %vm2647, %v2504
    %2673 = vst.msk [vmem:[#allocation3 + $0xc8] sm:$0xff] %vm2647, %v2506
    %2674 = vst.msk [vmem:[#allocation3 + $0xd0] sm:$0xff] %vm2647, %v2508
    %2675 = vst.msk [vmem:[#allocation3 + $0xd8] sm:$0xff] %vm2647, %v2510
    %2676 = vst.msk [vmem:[#allocation3 + $0xe0] sm:$0xff] %vm2647, %v2512
    %2677 = vst.msk [vmem:[#allocation3 + $0xe8] sm:$0xff] %vm2647, %v2514
    %2678 = vst.msk [vmem:[#allocation3 + $0xf0] sm:$0xff] %vm2647, %v2516
    %2679 = vst.msk [vmem:[#allocation3 + $0xf8] sm:$0xff] %vm2647, %v2518
    %2680 = vst.msk [vmem:[#allocation3 + $0x100] sm:$0xff] %vm2647, %v2520
    %2681 = vst.msk [vmem:[#allocation3 + $0x108] sm:$0xff] %vm2647, %v2522
    %2682 = vst.msk [vmem:[#allocation3 + $0x110] sm:$0xff] %vm2647, %v2524
    %2683 = vst.msk [vmem:[#allocation3 + $0x118] sm:$0xff] %vm2647, %v2526
    %2684 = vst.msk [vmem:[#allocation3 + $0x120] sm:$0xff] %vm2647, %v2528
    %2685 = vst.msk [vmem:[#allocation3 + $0x128] sm:$0xff] %vm2647, %v2530
    %2686 = vst.msk [vmem:[#allocation3 + $0x130] sm:$0xff] %vm2647, %v2532
    %2687 = vst.msk [vmem:[#allocation3 + $0x138] sm:$0xff] %vm2647, %v2534
    %2688 = vst.msk [vmem:[#allocation3 + $0x140] sm:$0xff] %vm2647, %v2536
    %2689 = vst.msk [vmem:[#allocation3 + $0x148] sm:$0xff] %vm2647, %v2538
    %2690 = vst.msk [vmem:[#allocation3 + $0x150] sm:$0xff] %vm2647, %v2540
    %2691 = vst.msk [vmem:[#allocation3 + $0x158] sm:$0xff] %vm2647, %v2542
    %2692 = vst.msk [vmem:[#allocation3 + $0x160] sm:$0xff] %vm2647, %v2544
    %2693 = vst.msk [vmem:[#allocation3 + $0x168] sm:$0xff] %vm2647, %v2546
    %2694 = vst.msk [vmem:[#allocation3 + $0x170] sm:$0xff] %vm2647, %v2548
    %2695 = vst.msk [vmem:[#allocation3 + $0x178] sm:$0xff] %vm2647, %v2550
    %2696 = vst.msk [vmem:[#allocation3 + $0x180] sm:$0xff] %vm2647, %v2552
    %2697 = vst.msk [vmem:[#allocation3 + $0x188] sm:$0xff] %vm2647, %v2554
    %2698 = vst.msk [vmem:[#allocation3 + $0x190] sm:$0xff] %vm2647, %v2556
    %2699 = vst.msk [vmem:[#allocation3 + $0x198] sm:$0xff] %vm2647, %v2558
    %2700 = vst.msk [vmem:[#allocation3 + $0x1a0] sm:$0xff] %vm2647, %v2560
    %2701 = vst.msk [vmem:[#allocation3 + $0x1a8] sm:$0xff] %vm2647, %v2562
    %2702 = vst.msk [vmem:[#allocation3 + $0x1b0] sm:$0xff] %vm2647, %v2564
    %2703 = vst.msk [vmem:[#allocation3 + $0x1b8] sm:$0xff] %vm2647, %v2566
    %2704 = vst.msk [vmem:[#allocation3 + $0x1c0] sm:$0xff] %vm2647, %v2568
    %2705 = vst.msk [vmem:[#allocation3 + $0x1c8] sm:$0xff] %vm2647, %v2570
    %2706 = vst.msk [vmem:[#allocation3 + $0x1d0] sm:$0xff] %vm2647, %v2572
    %2707 = vst.msk [vmem:[#allocation3 + $0x1d8] sm:$0xff] %vm2647, %v2574
    %2708 = vst.msk [vmem:[#allocation3 + $0x1e0] sm:$0xff] %vm2647, %v2576
    %2709 = vst.msk [vmem:[#allocation3 + $0x1e8] sm:$0xff] %vm2647, %v2578
    %2710 = vst.msk [vmem:[#allocation3 + $0x1f0] sm:$0xff] %vm2647, %v2580
    %2711 = vst.msk [vmem:[#allocation3 + $0x1f8] sm:$0xff] %vm2647, %v2582
    %v2712 = vld [vmem:[%s2326 + $0x1] sm:$0xff]
    %v2713 = vld [vmem:[%s2326 + $0x9] sm:$0xff]
    %v2714 = vld [vmem:[%s2326 + $0x19] sm:$0xff]
    %v2715 = vld [vmem:[%s2326 + $0x21] sm:$0xff]
    %v2716 = vld [vmem:[%s2326 + $0x31] sm:$0xff]
    %v2717 = vld [vmem:[%s2326 + $0x39] sm:$0xff]
    %v2718 = vld [vmem:[%s2326 + $0x49] sm:$0xff]
    %v2719 = vld [vmem:[%s2326 + $0x51] sm:$0xff]
    %v2720 = vld [vmem:[%s2326 + $0x61] sm:$0xff]
    %v2721 = vld [vmem:[%s2326 + $0x69] sm:$0xff]
    %v2722 = vld [vmem:[%s2326 + $0x79] sm:$0xff]
    %v2723 = vld [vmem:[%s2326 + $0x81] sm:$0xff]
    %v2724 = vld [vmem:[%s2326 + $0x91] sm:$0xff]
    %v2725 = vld [vmem:[%s2326 + $0x99] sm:$0xff]
    %v2726 = vld [vmem:[%s2326 + $0xa9] sm:$0xff]
    %v2727 = vld [vmem:[%s2326 + $0xb1] sm:$0xff]
    %v2728 = vld [vmem:[%s2326 + $0xc1] sm:$0xff]
    %v2729 = vld [vmem:[%s2326 + $0xc9] sm:$0xff]
    %v2730 = vld [vmem:[%s2326 + $0xd9] sm:$0xff]
    %v2731 = vld [vmem:[%s2326 + $0xe1] sm:$0xff]
    %v2732 = vld [vmem:[%s2326 + $0xf1] sm:$0xff]
    %v2733 = vld [vmem:[%s2326 + $0xf9] sm:$0xff]
    %v2734 = vld [vmem:[%s2326 + $0x109] sm:$0xff]
    %v2735 = vld [vmem:[%s2326 + $0x111] sm:$0xff]
    %v2736 = vld [vmem:[%s2326 + $0x121] sm:$0xff]
    %v2737 = vld [vmem:[%s2326 + $0x129] sm:$0xff]
    %v2738 = vld [vmem:[%s2326 + $0x139] sm:$0xff]
    %v2739 = vld [vmem:[%s2326 + $0x141] sm:$0xff]
    %v2740 = vld [vmem:[%s2326 + $0x151] sm:$0xff]
    %v2741 = vld [vmem:[%s2326 + $0x159] sm:$0xff]
    %v2742 = vld [vmem:[%s2326 + $0x169] sm:$0xff]
    %v2743 = vld [vmem:[%s2326 + $0x171] sm:$0xff]
    %v2744 = vld [vmem:[%s2326 + $0x1b1] sm:$0xff]
    %v2745 = vld [vmem:[%s2326 + $0x1b9] sm:$0xff]
    %v2746 = vld [vmem:[%s2326 + $0x1c9] sm:$0xff]
    %v2747 = vld [vmem:[%s2326 + $0x1d1] sm:$0xff]
    %v2748 = vld [vmem:[%s2326 + $0x1e1] sm:$0xff]
    %v2749 = vld [vmem:[%s2326 + $0x1e9] sm:$0xff]
    %v2750 = vld [vmem:[%s2326 + $0x1f9] sm:$0xff]
    %v2751 = vld [vmem:[%s2326 + $0x201] sm:$0xff]
    %v2752 = vld [vmem:[%s2326 + $0x211] sm:$0xff]
    %v2753 = vld [vmem:[%s2326 + $0x219] sm:$0xff]
    %v2754 = vld [vmem:[%s2326 + $0x229] sm:$0xff]
    %v2755 = vld [vmem:[%s2326 + $0x231] sm:$0xff]
    %v2756 = vld [vmem:[%s2326 + $0x241] sm:$0xff]
    %v2757 = vld [vmem:[%s2326 + $0x249] sm:$0xff]
    %v2758 = vld [vmem:[%s2326 + $0x259] sm:$0xff]
    %v2759 = vld [vmem:[%s2326 + $0x261] sm:$0xff]
    %v2760 = vld [vmem:[%s2326 + $0x271] sm:$0xff]
    %v2761 = vld [vmem:[%s2326 + $0x279] sm:$0xff]
    %v2762 = vld [vmem:[%s2326 + $0x289] sm:$0xff]
    %v2763 = vld [vmem:[%s2326 + $0x291] sm:$0xff]
    %v2764 = vld [vmem:[%s2326 + $0x2a1] sm:$0xff]
    %v2765 = vld [vmem:[%s2326 + $0x2a9] sm:$0xff]
    %v2766 = vld [vmem:[%s2326 + $0x2b9] sm:$0xff]
    %v2767 = vld [vmem:[%s2326 + $0x2c1] sm:$0xff]
    %v2768 = vld [vmem:[%s2326 + $0x2d1] sm:$0xff]
    %v2769 = vld [vmem:[%s2326 + $0x2d9] sm:$0xff]
    %v2770 = vld [vmem:[%s2326 + $0x2e9] sm:$0xff]
    %v2771 = vld [vmem:[%s2326 + $0x2f1] sm:$0xff]
    %v2772 = vld [vmem:[%s2326 + $0x301] sm:$0xff]
    %v2773 = vld [vmem:[%s2326 + $0x309] sm:$0xff]
    %v2774 = vld [vmem:[%s2326 + $0x319] sm:$0xff]
    %v2775 = vld [vmem:[%s2326 + $0x321] sm:$0xff]
    %2840 = vrot.lane.b32.xlu0 %v2712, 7
    %v2841 = vpop.permute.xlu0 %2840
    %2842 = vrot.lane.b32.xlu0 %v2713, 7
    %v2843 = vpop.permute.xlu0 %2842
    %2844 = vrot.lane.b32.xlu0 %v2714, 7
    %v2845 = vpop.permute.xlu0 %2844
    %2846 = vrot.lane.b32.xlu0 %v2715, 7
    %v2847 = vpop.permute.xlu0 %2846
    %2848 = vrot.lane.b32.xlu0 %v2716, 7
    %v2849 = vpop.permute.xlu0 %2848
    %2850 = vrot.lane.b32.xlu0 %v2717, 7
    %v2851 = vpop.permute.xlu0 %2850
    %2852 = vrot.lane.b32.xlu0 %v2718, 7
    %v2853 = vpop.permute.xlu0 %2852
    %2854 = vrot.lane.b32.xlu0 %v2719, 7
    %v2855 = vpop.permute.xlu0 %2854
    %2856 = vrot.lane.b32.xlu0 %v2720, 7
    %v2857 = vpop.permute.xlu0 %2856
    %2858 = vrot.lane.b32.xlu0 %v2721, 7
    %v2859 = vpop.permute.xlu0 %2858
    %2860 = vrot.lane.b32.xlu0 %v2722, 7
    %v2861 = vpop.permute.xlu0 %2860
    %2862 = vrot.lane.b32.xlu0 %v2723, 7
    %v2863 = vpop.permute.xlu0 %2862
    %2864 = vrot.lane.b32.xlu0 %v2724, 7
    %v2865 = vpop.permute.xlu0 %2864
    %2866 = vrot.lane.b32.xlu0 %v2725, 7
    %v2867 = vpop.permute.xlu0 %2866
    %2868 = vrot.lane.b32.xlu0 %v2726, 7
    %v2869 = vpop.permute.xlu0 %2868
    %2870 = vrot.lane.b32.xlu0 %v2727, 7
    %v2871 = vpop.permute.xlu0 %2870
    %2872 = vrot.lane.b32.xlu0 %v2728, 7
    %v2873 = vpop.permute.xlu0 %2872
    %2874 = vrot.lane.b32.xlu0 %v2729, 7
    %v2875 = vpop.permute.xlu0 %2874
    %2876 = vrot.lane.b32.xlu0 %v2730, 7
    %v2877 = vpop.permute.xlu0 %2876
    %2878 = vrot.lane.b32.xlu0 %v2731, 7
    %v2879 = vpop.permute.xlu0 %2878
    %2880 = vrot.lane.b32.xlu0 %v2732, 7
    %v2881 = vpop.permute.xlu0 %2880
    %2882 = vrot.lane.b32.xlu0 %v2733, 7
    %v2883 = vpop.permute.xlu0 %2882
    %2884 = vrot.lane.b32.xlu0 %v2734, 7
    %v2885 = vpop.permute.xlu0 %2884
    %2886 = vrot.lane.b32.xlu0 %v2735, 7
    %v2887 = vpop.permute.xlu0 %2886
    %2888 = vrot.lane.b32.xlu0 %v2736, 7
    %v2889 = vpop.permute.xlu0 %2888
    %2890 = vrot.lane.b32.xlu0 %v2737, 7
    %v2891 = vpop.permute.xlu0 %2890
    %2892 = vrot.lane.b32.xlu0 %v2738, 7
    %v2893 = vpop.permute.xlu0 %2892
    %2894 = vrot.lane.b32.xlu0 %v2739, 7
    %v2895 = vpop.permute.xlu0 %2894
    %2896 = vrot.lane.b32.xlu0 %v2740, 7
    %v2897 = vpop.permute.xlu0 %2896
    %2898 = vrot.lane.b32.xlu0 %v2741, 7
    %v2899 = vpop.permute.xlu0 %2898
    %2900 = vrot.lane.b32.xlu0 %v2742, 7
    %v2901 = vpop.permute.xlu0 %2900
    %2902 = vrot.lane.b32.xlu0 %v2743, 7
    %v2903 = vpop.permute.xlu0 %2902
    %2904 = vrot.lane.b32.xlu0 %v2744, 7
    %v2905 = vpop.permute.xlu0 %2904
    %2906 = vrot.lane.b32.xlu0 %v2745, 7
    %v2907 = vpop.permute.xlu0 %2906
    %2908 = vrot.lane.b32.xlu0 %v2746, 7
    %v2909 = vpop.permute.xlu0 %2908
    %2910 = vrot.lane.b32.xlu0 %v2747, 7
    %v2911 = vpop.permute.xlu0 %2910
    %2912 = vrot.lane.b32.xlu0 %v2748, 7
    %v2913 = vpop.permute.xlu0 %2912
    %2914 = vrot.lane.b32.xlu0 %v2749, 7
    %v2915 = vpop.permute.xlu0 %2914
    %2916 = vrot.lane.b32.xlu0 %v2750, 7
    %v2917 = vpop.permute.xlu0 %2916
    %2918 = vrot.lane.b32.xlu0 %v2751, 7
    %v2919 = vpop.permute.xlu0 %2918
    %2920 = vrot.lane.b32.xlu0 %v2752, 7
    %v2921 = vpop.permute.xlu0 %2920
    %2922 = vrot.lane.b32.xlu0 %v2753, 7
    %v2923 = vpop.permute.xlu0 %2922
    %2924 = vrot.lane.b32.xlu0 %v2754, 7
    %v2925 = vpop.permute.xlu0 %2924
    %2926 = vrot.lane.b32.xlu0 %v2755, 7
    %v2927 = vpop.permute.xlu0 %2926
    %2928 = vrot.lane.b32.xlu0 %v2756, 7
    %v2929 = vpop.permute.xlu0 %2928
    %2930 = vrot.lane.b32.xlu0 %v2757, 7
    %v2931 = vpop.permute.xlu0 %2930
    %2932 = vrot.lane.b32.xlu0 %v2758, 7
    %v2933 = vpop.permute.xlu0 %2932
    %2934 = vrot.lane.b32.xlu0 %v2759, 7
    %v2935 = vpop.permute.xlu0 %2934
    %2936 = vrot.lane.b32.xlu0 %v2760, 7
    %v2937 = vpop.permute.xlu0 %2936
    %2938 = vrot.lane.b32.xlu0 %v2761, 7
    %v2939 = vpop.permute.xlu0 %2938
    %2940 = vrot.lane.b32.xlu0 %v2762, 7
    %v2941 = vpop.permute.xlu0 %2940
    %2942 = vrot.lane.b32.xlu0 %v2763, 7
    %v2943 = vpop.permute.xlu0 %2942
    %2944 = vrot.lane.b32.xlu0 %v2764, 7
    %v2945 = vpop.permute.xlu0 %2944
    %2946 = vrot.lane.b32.xlu0 %v2765, 7
    %v2947 = vpop.permute.xlu0 %2946
    %2948 = vrot.lane.b32.xlu0 %v2766, 7
    %v2949 = vpop.permute.xlu0 %2948
    %2950 = vrot.lane.b32.xlu0 %v2767, 7
    %v2951 = vpop.permute.xlu0 %2950
    %2952 = vrot.lane.b32.xlu0 %v2768, 7
    %v2953 = vpop.permute.xlu0 %2952
    %2954 = vrot.lane.b32.xlu0 %v2769, 7
    %v2955 = vpop.permute.xlu0 %2954
    %2956 = vrot.lane.b32.xlu0 %v2770, 7
    %v2957 = vpop.permute.xlu0 %2956
    %2958 = vrot.lane.b32.xlu0 %v2771, 7
    %v2959 = vpop.permute.xlu0 %2958
    %2960 = vrot.lane.b32.xlu0 %v2772, 7
    %v2961 = vpop.permute.xlu0 %2960
    %2962 = vrot.lane.b32.xlu0 %v2773, 7
    %v2963 = vpop.permute.xlu0 %2962
    %2964 = vrot.lane.b32.xlu0 %v2774, 7
    %v2965 = vpop.permute.xlu0 %2964
    %2966 = vrot.lane.b32.xlu0 %v2775, 7
    %v2967 = vpop.permute.xlu0 %2966
    %vm3032 = vcmask 64568
    %3033 = vst.msk [vmem:[#allocation3] sm:$0xff] %vm3032, %v2841
    %3034 = vst.msk [vmem:[#allocation3 + $0x8] sm:$0xff] %vm3032, %v2843
    %3035 = vst.msk [vmem:[#allocation3 + $0x10] sm:$0xff] %vm3032, %v2845
    %3036 = vst.msk [vmem:[#allocation3 + $0x18] sm:$0xff] %vm3032, %v2847
    %3037 = vst.msk [vmem:[#allocation3 + $0x20] sm:$0xff] %vm3032, %v2849
    %3038 = vst.msk [vmem:[#allocation3 + $0x28] sm:$0xff] %vm3032, %v2851
    %3039 = vst.msk [vmem:[#allocation3 + $0x30] sm:$0xff] %vm3032, %v2853
    %3040 = vst.msk [vmem:[#allocation3 + $0x38] sm:$0xff] %vm3032, %v2855
    %3041 = vst.msk [vmem:[#allocation3 + $0x40] sm:$0xff] %vm3032, %v2857
    %3042 = vst.msk [vmem:[#allocation3 + $0x48] sm:$0xff] %vm3032, %v2859
    %3043 = vst.msk [vmem:[#allocation3 + $0x50] sm:$0xff] %vm3032, %v2861
    %3044 = vst.msk [vmem:[#allocation3 + $0x58] sm:$0xff] %vm3032, %v2863
    %3045 = vst.msk [vmem:[#allocation3 + $0x60] sm:$0xff] %vm3032, %v2865
    %3046 = vst.msk [vmem:[#allocation3 + $0x68] sm:$0xff] %vm3032, %v2867
    %3047 = vst.msk [vmem:[#allocation3 + $0x70] sm:$0xff] %vm3032, %v2869
    %3048 = vst.msk [vmem:[#allocation3 + $0x78] sm:$0xff] %vm3032, %v2871
    %3049 = vst.msk [vmem:[#allocation3 + $0x80] sm:$0xff] %vm3032, %v2873
    %3050 = vst.msk [vmem:[#allocation3 + $0x88] sm:$0xff] %vm3032, %v2875
    %3051 = vst.msk [vmem:[#allocation3 + $0x90] sm:$0xff] %vm3032, %v2877
    %3052 = vst.msk [vmem:[#allocation3 + $0x98] sm:$0xff] %vm3032, %v2879
    %3053 = vst.msk [vmem:[#allocation3 + $0xa0] sm:$0xff] %vm3032, %v2881
    %3054 = vst.msk [vmem:[#allocation3 + $0xa8] sm:$0xff] %vm3032, %v2883
    %3055 = vst.msk [vmem:[#allocation3 + $0xb0] sm:$0xff] %vm3032, %v2885
    %3056 = vst.msk [vmem:[#allocation3 + $0xb8] sm:$0xff] %vm3032, %v2887
    %3057 = vst.msk [vmem:[#allocation3 + $0xc0] sm:$0xff] %vm3032, %v2889
    %3058 = vst.msk [vmem:[#allocation3 + $0xc8] sm:$0xff] %vm3032, %v2891
    %3059 = vst.msk [vmem:[#allocation3 + $0xd0] sm:$0xff] %vm3032, %v2893
    %3060 = vst.msk [vmem:[#allocation3 + $0xd8] sm:$0xff] %vm3032, %v2895
    %3061 = vst.msk [vmem:[#allocation3 + $0xe0] sm:$0xff] %vm3032, %v2897
    %3062 = vst.msk [vmem:[#allocation3 + $0xe8] sm:$0xff] %vm3032, %v2899
    %3063 = vst.msk [vmem:[#allocation3 + $0xf0] sm:$0xff] %vm3032, %v2901
    %3064 = vst.msk [vmem:[#allocation3 + $0xf8] sm:$0xff] %vm3032, %v2903
    %3065 = vst.msk [vmem:[#allocation3 + $0x100] sm:$0xff] %vm3032, %v2905
    %3066 = vst.msk [vmem:[#allocation3 + $0x108] sm:$0xff] %vm3032, %v2907
    %3067 = vst.msk [vmem:[#allocation3 + $0x110] sm:$0xff] %vm3032, %v2909
    %3068 = vst.msk [vmem:[#allocation3 + $0x118] sm:$0xff] %vm3032, %v2911
    %3069 = vst.msk [vmem:[#allocation3 + $0x120] sm:$0xff] %vm3032, %v2913
    %3070 = vst.msk [vmem:[#allocation3 + $0x128] sm:$0xff] %vm3032, %v2915
    %3071 = vst.msk [vmem:[#allocation3 + $0x130] sm:$0xff] %vm3032, %v2917
    %3072 = vst.msk [vmem:[#allocation3 + $0x138] sm:$0xff] %vm3032, %v2919
    %3073 = vst.msk [vmem:[#allocation3 + $0x140] sm:$0xff] %vm3032, %v2921
    %3074 = vst.msk [vmem:[#allocation3 + $0x148] sm:$0xff] %vm3032, %v2923
    %3075 = vst.msk [vmem:[#allocation3 + $0x150] sm:$0xff] %vm3032, %v2925
    %3076 = vst.msk [vmem:[#allocation3 + $0x158] sm:$0xff] %vm3032, %v2927
    %3077 = vst.msk [vmem:[#allocation3 + $0x160] sm:$0xff] %vm3032, %v2929
    %3078 = vst.msk [vmem:[#allocation3 + $0x168] sm:$0xff] %vm3032, %v2931
    %3079 = vst.msk [vmem:[#allocation3 + $0x170] sm:$0xff] %vm3032, %v2933
    %3080 = vst.msk [vmem:[#allocation3 + $0x178] sm:$0xff] %vm3032, %v2935
    %3081 = vst.msk [vmem:[#allocation3 + $0x180] sm:$0xff] %vm3032, %v2937
    %3082 = vst.msk [vmem:[#allocation3 + $0x188] sm:$0xff] %vm3032, %v2939
    %3083 = vst.msk [vmem:[#allocation3 + $0x190] sm:$0xff] %vm3032, %v2941
    %3084 = vst.msk [vmem:[#allocation3 + $0x198] sm:$0xff] %vm3032, %v2943
    %3085 = vst.msk [vmem:[#allocation3 + $0x1a0] sm:$0xff] %vm3032, %v2945
    %3086 = vst.msk [vmem:[#allocation3 + $0x1a8] sm:$0xff] %vm3032, %v2947
    %3087 = vst.msk [vmem:[#allocation3 + $0x1b0] sm:$0xff] %vm3032, %v2949
    %3088 = vst.msk [vmem:[#allocation3 + $0x1b8] sm:$0xff] %vm3032, %v2951
    %3089 = vst.msk [vmem:[#allocation3 + $0x1c0] sm:$0xff] %vm3032, %v2953
    %3090 = vst.msk [vmem:[#allocation3 + $0x1c8] sm:$0xff] %vm3032, %v2955
    %3091 = vst.msk [vmem:[#allocation3 + $0x1d0] sm:$0xff] %vm3032, %v2957
    %3092 = vst.msk [vmem:[#allocation3 + $0x1d8] sm:$0xff] %vm3032, %v2959
    %3093 = vst.msk [vmem:[#allocation3 + $0x1e0] sm:$0xff] %vm3032, %v2961
    %3094 = vst.msk [vmem:[#allocation3 + $0x1e8] sm:$0xff] %vm3032, %v2963
    %3095 = vst.msk [vmem:[#allocation3 + $0x1f0] sm:$0xff] %vm3032, %v2965
    %3096 = vst.msk [vmem:[#allocation3 + $0x1f8] sm:$0xff] %vm3032, %v2967
    %v3097 = vld [vmem:[%s2326 + $0x2] sm:$0xff]
    %v3098 = vld [vmem:[%s2326 + $0xa] sm:$0xff]
    %v3099 = vld [vmem:[%s2326 + $0x1a] sm:$0xff]
    %v3100 = vld [vmem:[%s2326 + $0x22] sm:$0xff]
    %v3101 = vld [vmem:[%s2326 + $0x32] sm:$0xff]
    %v3102 = vld [vmem:[%s2326 + $0x3a] sm:$0xff]
    %v3103 = vld [vmem:[%s2326 + $0x4a] sm:$0xff]
    %v3104 = vld [vmem:[%s2326 + $0x52] sm:$0xff]
    %v3105 = vld [vmem:[%s2326 + $0x62] sm:$0xff]
    %v3106 = vld [vmem:[%s2326 + $0x6a] sm:$0xff]
    %v3107 = vld [vmem:[%s2326 + $0x7a] sm:$0xff]
    %v3108 = vld [vmem:[%s2326 + $0x82] sm:$0xff]
    %v3109 = vld [vmem:[%s2326 + $0x92] sm:$0xff]
    %v3110 = vld [vmem:[%s2326 + $0x9a] sm:$0xff]
    %v3111 = vld [vmem:[%s2326 + $0xaa] sm:$0xff]
    %v3112 = vld [vmem:[%s2326 + $0xb2] sm:$0xff]
    %v3113 = vld [vmem:[%s2326 + $0xc2] sm:$0xff]
    %v3114 = vld [vmem:[%s2326 + $0xca] sm:$0xff]
    %v3115 = vld [vmem:[%s2326 + $0xda] sm:$0xff]
    %v3116 = vld [vmem:[%s2326 + $0xe2] sm:$0xff]
    %v3117 = vld [vmem:[%s2326 + $0xf2] sm:$0xff]
    %v3118 = vld [vmem:[%s2326 + $0xfa] sm:$0xff]
    %v3119 = vld [vmem:[%s2326 + $0x10a] sm:$0xff]
    %v3120 = vld [vmem:[%s2326 + $0x112] sm:$0xff]
    %v3121 = vld [vmem:[%s2326 + $0x122] sm:$0xff]
    %v3122 = vld [vmem:[%s2326 + $0x12a] sm:$0xff]
    %v3123 = vld [vmem:[%s2326 + $0x13a] sm:$0xff]
    %v3124 = vld [vmem:[%s2326 + $0x142] sm:$0xff]
    %v3125 = vld [vmem:[%s2326 + $0x152] sm:$0xff]
    %v3126 = vld [vmem:[%s2326 + $0x15a] sm:$0xff]
    %v3127 = vld [vmem:[%s2326 + $0x16a] sm:$0xff]
    %v3128 = vld [vmem:[%s2326 + $0x172] sm:$0xff]
    %v3129 = vld [vmem:[%s2326 + $0x1b2] sm:$0xff]
    %v3130 = vld [vmem:[%s2326 + $0x1ba] sm:$0xff]
    %v3131 = vld [vmem:[%s2326 + $0x1ca] sm:$0xff]
    %v3132 = vld [vmem:[%s2326 + $0x1d2] sm:$0xff]
    %v3133 = vld [vmem:[%s2326 + $0x1e2] sm:$0xff]
    %v3134 = vld [vmem:[%s2326 + $0x1ea] sm:$0xff]
    %v3135 = vld [vmem:[%s2326 + $0x1fa] sm:$0xff]
    %v3136 = vld [vmem:[%s2326 + $0x202] sm:$0xff]
    %v3137 = vld [vmem:[%s2326 + $0x212] sm:$0xff]
    %v3138 = vld [vmem:[%s2326 + $0x21a] sm:$0xff]
    %v3139 = vld [vmem:[%s2326 + $0x22a] sm:$0xff]
    %v3140 = vld [vmem:[%s2326 + $0x232] sm:$0xff]
    %v3141 = vld [vmem:[%s2326 + $0x242] sm:$0xff]
    %v3142 = vld [vmem:[%s2326 + $0x24a] sm:$0xff]
    %v3143 = vld [vmem:[%s2326 + $0x25a] sm:$0xff]
    %v3144 = vld [vmem:[%s2326 + $0x262] sm:$0xff]
    %v3145 = vld [vmem:[%s2326 + $0x272] sm:$0xff]
    %v3146 = vld [vmem:[%s2326 + $0x27a] sm:$0xff]
    %v3147 = vld [vmem:[%s2326 + $0x28a] sm:$0xff]
    %v3148 = vld [vmem:[%s2326 + $0x292] sm:$0xff]
    %v3149 = vld [vmem:[%s2326 + $0x2a2] sm:$0xff]
    %v3150 = vld [vmem:[%s2326 + $0x2aa] sm:$0xff]
    %v3151 = vld [vmem:[%s2326 + $0x2ba] sm:$0xff]
    %v3152 = vld [vmem:[%s2326 + $0x2c2] sm:$0xff]
    %v3153 = vld [vmem:[%s2326 + $0x2d2] sm:$0xff]
    %v3154 = vld [vmem:[%s2326 + $0x2da] sm:$0xff]
    %v3155 = vld [vmem:[%s2326 + $0x2ea] sm:$0xff]
    %v3156 = vld [vmem:[%s2326 + $0x2f2] sm:$0xff]
    %v3157 = vld [vmem:[%s2326 + $0x302] sm:$0xff]
    %v3158 = vld [vmem:[%s2326 + $0x30a] sm:$0xff]
    %v3159 = vld [vmem:[%s2326 + $0x31a] sm:$0xff]
    %v3160 = vld [vmem:[%s2326 + $0x322] sm:$0xff]
    %3225 = vrot.lane.b32.xlu0 %v3097, 8
    %v3226 = vpop.permute.xlu0 %3225
    %3227 = vrot.lane.b32.xlu0 %v3098, 8
    %v3228 = vpop.permute.xlu0 %3227
    %3229 = vrot.lane.b32.xlu0 %v3099, 8
    %v3230 = vpop.permute.xlu0 %3229
    %3231 = vrot.lane.b32.xlu0 %v3100, 8
    %v3232 = vpop.permute.xlu0 %3231
    %3233 = vrot.lane.b32.xlu0 %v3101, 8
    %v3234 = vpop.permute.xlu0 %3233
    %3235 = vrot.lane.b32.xlu0 %v3102, 8
    %v3236 = vpop.permute.xlu0 %3235
    %3237 = vrot.lane.b32.xlu0 %v3103, 8
    %v3238 = vpop.permute.xlu0 %3237
    %3239 = vrot.lane.b32.xlu0 %v3104, 8
    %v3240 = vpop.permute.xlu0 %3239
    %3241 = vrot.lane.b32.xlu0 %v3105, 8
    %v3242 = vpop.permute.xlu0 %3241
    %3243 = vrot.lane.b32.xlu0 %v3106, 8
    %v3244 = vpop.permute.xlu0 %3243
    %3245 = vrot.lane.b32.xlu0 %v3107, 8
    %v3246 = vpop.permute.xlu0 %3245
    %3247 = vrot.lane.b32.xlu0 %v3108, 8
    %v3248 = vpop.permute.xlu0 %3247
    %3249 = vrot.lane.b32.xlu0 %v3109, 8
    %v3250 = vpop.permute.xlu0 %3249
    %3251 = vrot.lane.b32.xlu0 %v3110, 8
    %v3252 = vpop.permute.xlu0 %3251
    %3253 = vrot.lane.b32.xlu0 %v3111, 8
    %v3254 = vpop.permute.xlu0 %3253
    %3255 = vrot.lane.b32.xlu0 %v3112, 8
    %v3256 = vpop.permute.xlu0 %3255
    %3257 = vrot.lane.b32.xlu0 %v3113, 8
    %v3258 = vpop.permute.xlu0 %3257
    %3259 = vrot.lane.b32.xlu0 %v3114, 8
    %v3260 = vpop.permute.xlu0 %3259
    %3261 = vrot.lane.b32.xlu0 %v3115, 8
    %v3262 = vpop.permute.xlu0 %3261
    %3263 = vrot.lane.b32.xlu0 %v3116, 8
    %v3264 = vpop.permute.xlu0 %3263
    %3265 = vrot.lane.b32.xlu0 %v3117, 8
    %v3266 = vpop.permute.xlu0 %3265
    %3267 = vrot.lane.b32.xlu0 %v3118, 8
    %v3268 = vpop.permute.xlu0 %3267
    %3269 = vrot.lane.b32.xlu0 %v3119, 8
    %v3270 = vpop.permute.xlu0 %3269
    %3271 = vrot.lane.b32.xlu0 %v3120, 8
    %v3272 = vpop.permute.xlu0 %3271
    %3273 = vrot.lane.b32.xlu0 %v3121, 8
    %v3274 = vpop.permute.xlu0 %3273
    %3275 = vrot.lane.b32.xlu0 %v3122, 8
    %v3276 = vpop.permute.xlu0 %3275
    %3277 = vrot.lane.b32.xlu0 %v3123, 8
    %v3278 = vpop.permute.xlu0 %3277
    %3279 = vrot.lane.b32.xlu0 %v3124, 8
    %v3280 = vpop.permute.xlu0 %3279
    %3281 = vrot.lane.b32.xlu0 %v3125, 8
    %v3282 = vpop.permute.xlu0 %3281
    %3283 = vrot.lane.b32.xlu0 %v3126, 8
    %v3284 = vpop.permute.xlu0 %3283
    %3285 = vrot.lane.b32.xlu0 %v3127, 8
    %v3286 = vpop.permute.xlu0 %3285
    %3287 = vrot.lane.b32.xlu0 %v3128, 8
    %v3288 = vpop.permute.xlu0 %3287
    %3289 = vrot.lane.b32.xlu0 %v3129, 8
    %v3290 = vpop.permute.xlu0 %3289
    %3291 = vrot.lane.b32.xlu0 %v3130, 8
    %v3292 = vpop.permute.xlu0 %3291
    %3293 = vrot.lane.b32.xlu0 %v3131, 8
    %v3294 = vpop.permute.xlu0 %3293
    %3295 = vrot.lane.b32.xlu0 %v3132, 8
    %v3296 = vpop.permute.xlu0 %3295
    %3297 = vrot.lane.b32.xlu0 %v3133, 8
    %v3298 = vpop.permute.xlu0 %3297
    %3299 = vrot.lane.b32.xlu0 %v3134, 8
    %v3300 = vpop.permute.xlu0 %3299
    %3301 = vrot.lane.b32.xlu0 %v3135, 8
    %v3302 = vpop.permute.xlu0 %3301
    %3303 = vrot.lane.b32.xlu0 %v3136, 8
    %v3304 = vpop.permute.xlu0 %3303
    %3305 = vrot.lane.b32.xlu0 %v3137, 8
    %v3306 = vpop.permute.xlu0 %3305
    %3307 = vrot.lane.b32.xlu0 %v3138, 8
    %v3308 = vpop.permute.xlu0 %3307
    %3309 = vrot.lane.b32.xlu0 %v3139, 8
    %v3310 = vpop.permute.xlu0 %3309
    %3311 = vrot.lane.b32.xlu0 %v3140, 8
    %v3312 = vpop.permute.xlu0 %3311
    %3313 = vrot.lane.b32.xlu0 %v3141, 8
    %v3314 = vpop.permute.xlu0 %3313
    %3315 = vrot.lane.b32.xlu0 %v3142, 8
    %v3316 = vpop.permute.xlu0 %3315
    %3317 = vrot.lane.b32.xlu0 %v3143, 8
    %v3318 = vpop.permute.xlu0 %3317
    %3319 = vrot.lane.b32.xlu0 %v3144, 8
    %v3320 = vpop.permute.xlu0 %3319
    %3321 = vrot.lane.b32.xlu0 %v3145, 8
    %v3322 = vpop.permute.xlu0 %3321
    %3323 = vrot.lane.b32.xlu0 %v3146, 8
    %v3324 = vpop.permute.xlu0 %3323
    %3325 = vrot.lane.b32.xlu0 %v3147, 8
    %v3326 = vpop.permute.xlu0 %3325
    %3327 = vrot.lane.b32.xlu0 %v3148, 8
    %v3328 = vpop.permute.xlu0 %3327
    %3329 = vrot.lane.b32.xlu0 %v3149, 8
    %v3330 = vpop.permute.xlu0 %3329
    %3331 = vrot.lane.b32.xlu0 %v3150, 8
    %v3332 = vpop.permute.xlu0 %3331
    %3333 = vrot.lane.b32.xlu0 %v3151, 8
    %v3334 = vpop.permute.xlu0 %3333
    %3335 = vrot.lane.b32.xlu0 %v3152, 8
    %v3336 = vpop.permute.xlu0 %3335
    %3337 = vrot.lane.b32.xlu0 %v3153, 8
    %v3338 = vpop.permute.xlu0 %3337
    %3339 = vrot.lane.b32.xlu0 %v3154, 8
    %v3340 = vpop.permute.xlu0 %3339
    %3341 = vrot.lane.b32.xlu0 %v3155, 8
    %v3342 = vpop.permute.xlu0 %3341
    %3343 = vrot.lane.b32.xlu0 %v3156, 8
    %v3344 = vpop.permute.xlu0 %3343
    %3345 = vrot.lane.b32.xlu0 %v3157, 8
    %v3346 = vpop.permute.xlu0 %3345
    %3347 = vrot.lane.b32.xlu0 %v3158, 8
    %v3348 = vpop.permute.xlu0 %3347
    %3349 = vrot.lane.b32.xlu0 %v3159, 8
    %v3350 = vpop.permute.xlu0 %3349
    %3351 = vrot.lane.b32.xlu0 %v3160, 8
    %v3352 = vpop.permute.xlu0 %3351
    %vm3417 = vcmask 72768
    %3418 = vst.msk [vmem:[#allocation3] sm:$0xff] %vm3417, %v3226
    %3419 = vst.msk [vmem:[#allocation3 + $0x8] sm:$0xff] %vm3417, %v3228
    %3420 = vst.msk [vmem:[#allocation3 + $0x10] sm:$0xff] %vm3417, %v3230
    %3421 = vst.msk [vmem:[#allocation3 + $0x18] sm:$0xff] %vm3417, %v3232
    %3422 = vst.msk [vmem:[#allocation3 + $0x20] sm:$0xff] %vm3417, %v3234
    %3423 = vst.msk [vmem:[#allocation3 + $0x28] sm:$0xff] %vm3417, %v3236
    %3424 = vst.msk [vmem:[#allocation3 + $0x30] sm:$0xff] %vm3417, %v3238
    %3425 = vst.msk [vmem:[#allocation3 + $0x38] sm:$0xff] %vm3417, %v3240
    %3426 = vst.msk [vmem:[#allocation3 + $0x40] sm:$0xff] %vm3417, %v3242
    %3427 = vst.msk [vmem:[#allocation3 + $0x48] sm:$0xff] %vm3417, %v3244
    %3428 = vst.msk [vmem:[#allocation3 + $0x50] sm:$0xff] %vm3417, %v3246
    %3429 = vst.msk [vmem:[#allocation3 + $0x58] sm:$0xff] %vm3417, %v3248
    %3430 = vst.msk [vmem:[#allocation3 + $0x60] sm:$0xff] %vm3417, %v3250
    %3431 = vst.msk [vmem:[#allocation3 + $0x68] sm:$0xff] %vm3417, %v3252
    %3432 = vst.msk [vmem:[#allocation3 + $0x70] sm:$0xff] %vm3417, %v3254
    %3433 = vst.msk [vmem:[#allocation3 + $0x78] sm:$0xff] %vm3417, %v3256
    %3434 = vst.msk [vmem:[#allocation3 + $0x80] sm:$0xff] %vm3417, %v3258
    %3435 = vst.msk [vmem:[#allocation3 + $0x88] sm:$0xff] %vm3417, %v3260
    %3436 = vst.msk [vmem:[#allocation3 + $0x90] sm:$0xff] %vm3417, %v3262
    %3437 = vst.msk [vmem:[#allocation3 + $0x98] sm:$0xff] %vm3417, %v3264
    %3438 = vst.msk [vmem:[#allocation3 + $0xa0] sm:$0xff] %vm3417, %v3266
    %3439 = vst.msk [vmem:[#allocation3 + $0xa8] sm:$0xff] %vm3417, %v3268
    %3440 = vst.msk [vmem:[#allocation3 + $0xb0] sm:$0xff] %vm3417, %v3270
    %3441 = vst.msk [vmem:[#allocation3 + $0xb8] sm:$0xff] %vm3417, %v3272
    %3442 = vst.msk [vmem:[#allocation3 + $0xc0] sm:$0xff] %vm3417, %v3274
    %3443 = vst.msk [vmem:[#allocation3 + $0xc8] sm:$0xff] %vm3417, %v3276
    %3444 = vst.msk [vmem:[#allocation3 + $0xd0] sm:$0xff] %vm3417, %v3278
    %3445 = vst.msk [vmem:[#allocation3 + $0xd8] sm:$0xff] %vm3417, %v3280
    %3446 = vst.msk [vmem:[#allocation3 + $0xe0] sm:$0xff] %vm3417, %v3282
    %3447 = vst.msk [vmem:[#allocation3 + $0xe8] sm:$0xff] %vm3417, %v3284
    %3448 = vst.msk [vmem:[#allocation3 + $0xf0] sm:$0xff] %vm3417, %v3286
    %3449 = vst.msk [vmem:[#allocation3 + $0xf8] sm:$0xff] %vm3417, %v3288
    %3450 = vst.msk [vmem:[#allocation3 + $0x100] sm:$0xff] %vm3417, %v3290
    %3451 = vst.msk [vmem:[#allocation3 + $0x108] sm:$0xff] %vm3417, %v3292
    %3452 = vst.msk [vmem:[#allocation3 + $0x110] sm:$0xff] %vm3417, %v3294
    %3453 = vst.msk [vmem:[#allocation3 + $0x118] sm:$0xff] %vm3417, %v3296
    %3454 = vst.msk [vmem:[#allocation3 + $0x120] sm:$0xff] %vm3417, %v3298
    %3455 = vst.msk [vmem:[#allocation3 + $0x128] sm:$0xff] %vm3417, %v3300
    %3456 = vst.msk [vmem:[#allocation3 + $0x130] sm:$0xff] %vm3417, %v3302
    %3457 = vst.msk [vmem:[#allocation3 + $0x138] sm:$0xff] %vm3417, %v3304
    %3458 = vst.msk [vmem:[#allocation3 + $0x140] sm:$0xff] %vm3417, %v3306
    %3459 = vst.msk [vmem:[#allocation3 + $0x148] sm:$0xff] %vm3417, %v3308
    %3460 = vst.msk [vmem:[#allocation3 + $0x150] sm:$0xff] %vm3417, %v3310
    %3461 = vst.msk [vmem:[#allocation3 + $0x158] sm:$0xff] %vm3417, %v3312
    %3462 = vst.msk [vmem:[#allocation3 + $0x160] sm:$0xff] %vm3417, %v3314
    %3463 = vst.msk [vmem:[#allocation3 + $0x168] sm:$0xff] %vm3417, %v3316
    %3464 = vst.msk [vmem:[#allocation3 + $0x170] sm:$0xff] %vm3417, %v3318
    %3465 = vst.msk [vmem:[#allocation3 + $0x178] sm:$0xff] %vm3417, %v3320
    %3466 = vst.msk [vmem:[#allocation3 + $0x180] sm:$0xff] %vm3417, %v3322
    %3467 = vst.msk [vmem:[#allocation3 + $0x188] sm:$0xff] %vm3417, %v3324
    %3468 = vst.msk [vmem:[#allocation3 + $0x190] sm:$0xff] %vm3417, %v3326
    %3469 = vst.msk [vmem:[#allocation3 + $0x198] sm:$0xff] %vm3417, %v3328
    %3470 = vst.msk [vmem:[#allocation3 + $0x1a0] sm:$0xff] %vm3417, %v3330
    %3471 = vst.msk [vmem:[#allocation3 + $0x1a8] sm:$0xff] %vm3417, %v3332
    %3472 = vst.msk [vmem:[#allocation3 + $0x1b0] sm:$0xff] %vm3417, %v3334
    %3473 = vst.msk [vmem:[#allocation3 + $0x1b8] sm:$0xff] %vm3417, %v3336
    %3474 = vst.msk [vmem:[#allocation3 + $0x1c0] sm:$0xff] %vm3417, %v3338
    %3475 = vst.msk [vmem:[#allocation3 + $0x1c8] sm:$0xff] %vm3417, %v3340
    %3476 = vst.msk [vmem:[#allocation3 + $0x1d0] sm:$0xff] %vm3417, %v3342
    %3477 = vst.msk [vmem:[#allocation3 + $0x1d8] sm:$0xff] %vm3417, %v3344
    %3478 = vst.msk [vmem:[#allocation3 + $0x1e0] sm:$0xff] %vm3417, %v3346
    %3479 = vst.msk [vmem:[#allocation3 + $0x1e8] sm:$0xff] %vm3417, %v3348
    %3480 = vst.msk [vmem:[#allocation3 + $0x1f0] sm:$0xff] %vm3417, %v3350
    %3481 = vst.msk [vmem:[#allocation3 + $0x1f8] sm:$0xff] %vm3417, %v3352
    %v3482 = vld [vmem:[#allocation3] sm:$0xff]
    %v3483 = vld [vmem:[#allocation3 + $0x8] sm:$0xff]
    %v3484 = vld [vmem:[#allocation3 + $0x10] sm:$0xff]
    %v3485 = vld [vmem:[#allocation3 + $0x18] sm:$0xff]
    %v3486 = vld [vmem:[#allocation3 + $0x20] sm:$0xff]
    %v3487 = vld [vmem:[#allocation3 + $0x28] sm:$0xff]
    %v3488 = vld [vmem:[#allocation3 + $0x30] sm:$0xff]
    %v3489 = vld [vmem:[#allocation3 + $0x38] sm:$0xff]
    %v3490 = vld [vmem:[#allocation3 + $0x40] sm:$0xff]
    %v3491 = vld [vmem:[#allocation3 + $0x48] sm:$0xff]
    %v3492 = vld [vmem:[#allocation3 + $0x50] sm:$0xff]
    %v3493 = vld [vmem:[#allocation3 + $0x58] sm:$0xff]
    %v3494 = vld [vmem:[#allocation3 + $0x60] sm:$0xff]
    %v3495 = vld [vmem:[#allocation3 + $0x68] sm:$0xff]
    %v3496 = vld [vmem:[#allocation3 + $0x70] sm:$0xff]
    %v3497 = vld [vmem:[#allocation3 + $0x78] sm:$0xff]
    %v3498 = vld [vmem:[#allocation3 + $0x80] sm:$0xff]
    %v3499 = vld [vmem:[#allocation3 + $0x88] sm:$0xff]
    %v3500 = vld [vmem:[#allocation3 + $0x90] sm:$0xff]
    %v3501 = vld [vmem:[#allocation3 + $0x98] sm:$0xff]
    %v3502 = vld [vmem:[#allocation3 + $0xa0] sm:$0xff]
    %v3503 = vld [vmem:[#allocation3 + $0xa8] sm:$0xff]
    %v3504 = vld [vmem:[#allocation3 + $0xb0] sm:$0xff]
    %v3505 = vld [vmem:[#allocation3 + $0xb8] sm:$0xff]
    %v3506 = vld [vmem:[#allocation3 + $0xc0] sm:$0xff]
    %v3507 = vld [vmem:[#allocation3 + $0xc8] sm:$0xff]
    %v3508 = vld [vmem:[#allocation3 + $0xd0] sm:$0xff]
    %v3509 = vld [vmem:[#allocation3 + $0xd8] sm:$0xff]
    %v3510 = vld [vmem:[#allocation3 + $0xe0] sm:$0xff]
    %v3511 = vld [vmem:[#allocation3 + $0xe8] sm:$0xff]
    %v3512 = vld [vmem:[#allocation3 + $0xf0] sm:$0xff]
    %v3513 = vld [vmem:[#allocation3 + $0xf8] sm:$0xff]
    %v3514 = vld [vmem:[#allocation3 + $0x100] sm:$0xff]
    %v3515 = vld [vmem:[#allocation3 + $0x108] sm:$0xff]
    %v3516 = vld [vmem:[#allocation3 + $0x110] sm:$0xff]
    %v3517 = vld [vmem:[#allocation3 + $0x118] sm:$0xff]
    %v3518 = vld [vmem:[#allocation3 + $0x120] sm:$0xff]
    %v3519 = vld [vmem:[#allocation3 + $0x128] sm:$0xff]
    %v3520 = vld [vmem:[#allocation3 + $0x130] sm:$0xff]
    %v3521 = vld [vmem:[#allocation3 + $0x138] sm:$0xff]
    %v3522 = vld [vmem:[#allocation3 + $0x140] sm:$0xff]
    %v3523 = vld [vmem:[#allocation3 + $0x148] sm:$0xff]
    %v3524 = vld [vmem:[#allocation3 + $0x150] sm:$0xff]
    %v3525 = vld [vmem:[#allocation3 + $0x158] sm:$0xff]
    %v3526 = vld [vmem:[#allocation3 + $0x160] sm:$0xff]
    %v3527 = vld [vmem:[#allocation3 + $0x168] sm:$0xff]
    %v3528 = vld [vmem:[#allocation3 + $0x170] sm:$0xff]
    %v3529 = vld [vmem:[#allocation3 + $0x178] sm:$0xff]
    %v3530 = vld [vmem:[#allocation3 + $0x180] sm:$0xff]
    %v3531 = vld [vmem:[#allocation3 + $0x188] sm:$0xff]
    %v3532 = vld [vmem:[#allocation3 + $0x190] sm:$0xff]
    %v3533 = vld [vmem:[#allocation3 + $0x198] sm:$0xff]
    %v3534 = vld [vmem:[#allocation3 + $0x1a0] sm:$0xff]
    %v3535 = vld [vmem:[#allocation3 + $0x1a8] sm:$0xff]
    %v3536 = vld [vmem:[#allocation3 + $0x1b0] sm:$0xff]
    %v3537 = vld [vmem:[#allocation3 + $0x1b8] sm:$0xff]
    %v3538 = vld [vmem:[#allocation3 + $0x1c0] sm:$0xff]
    %v3539 = vld [vmem:[#allocation3 + $0x1c8] sm:$0xff]
    %v3540 = vld [vmem:[#allocation3 + $0x1d0] sm:$0xff]
    %v3541 = vld [vmem:[#allocation3 + $0x1d8] sm:$0xff]
    %v3542 = vld [vmem:[#allocation3 + $0x1e0] sm:$0xff]
    %v3543 = vld [vmem:[#allocation3 + $0x1e8] sm:$0xff]
    %v3544 = vld [vmem:[#allocation3 + $0x1f0] sm:$0xff]
    %v3545 = vld [vmem:[#allocation3 + $0x1f8] sm:$0xff]
    %v3546 = vpack.c.bf16 %v3483, %v3482
    %v3547 = vpack.c.bf16 %v3485, %v3484
    %v3548 = vpack.c.bf16 %v3487, %v3486
    %v3549 = vpack.c.bf16 %v3489, %v3488
    %v3550 = vpack.c.bf16 %v3491, %v3490
    %v3551 = vpack.c.bf16 %v3493, %v3492
    %v3552 = vpack.c.bf16 %v3495, %v3494
    %v3553 = vpack.c.bf16 %v3497, %v3496
    %v3554 = vpack.c.bf16 %v3499, %v3498
    %v3555 = vpack.c.bf16 %v3501, %v3500
    %v3556 = vpack.c.bf16 %v3503, %v3502
    %v3557 = vpack.c.bf16 %v3505, %v3504
    %v3558 = vpack.c.bf16 %v3507, %v3506
    %v3559 = vpack.c.bf16 %v3509, %v3508
    %v3560 = vpack.c.bf16 %v3511, %v3510
    %v3561 = vpack.c.bf16 %v3513, %v3512
    %v3562 = vpack.c.bf16 %v3515, %v3514
    %v3563 = vpack.c.bf16 %v3517, %v3516
    %v3564 = vpack.c.bf16 %v3519, %v3518
    %v3565 = vpack.c.bf16 %v3521, %v3520
    %v3566 = vpack.c.bf16 %v3523, %v3522
    %v3567 = vpack.c.bf16 %v3525, %v3524
    %v3568 = vpack.c.bf16 %v3527, %v3526
    %v3569 = vpack.c.bf16 %v3529, %v3528
    %v3570 = vpack.c.bf16 %v3531, %v3530
    %v3571 = vpack.c.bf16 %v3533, %v3532
    %v3572 = vpack.c.bf16 %v3535, %v3534
    %v3573 = vpack.c.bf16 %v3537, %v3536
    %v3574 = vpack.c.bf16 %v3539, %v3538
    %v3575 = vpack.c.bf16 %v3541, %v3540
    %v3576 = vpack.c.bf16 %v3543, %v3542
    %v3577 = vpack.c.bf16 %v3545, %v3544
    %v3578 = vld [vmem:[%s1] sm:$0xf]
    %v3579 = vld [vmem:[%s1 + $0x4] sm:$0x1]
    %v3582 = vunpack.c.l.b16 %v3578
    %v3583 = vunpack.c.l.b16 %v3579
    %v3584 = vpack.c.b16 %v3583, %v3582
    %vm3585 = vcmask 72704
    %v3587 = vsel %vm3585, %v3546, 0
    %v3590 = vsel %vm3585, %v3547, 0
    %v3593 = vsel %vm3585, %v3548, 0
    %v3596 = vsel %vm3585, %v3549, 0
    %v3599 = vsel %vm3585, %v3550, 0
    %v3602 = vsel %vm3585, %v3551, 0
    %v3605 = vsel %vm3585, %v3552, 0
    %v3608 = vsel %vm3585, %v3553, 0
    %v3611 = vsel %vm3585, %v3554, 0
    %v3614 = vsel %vm3585, %v3555, 0
    %v3617 = vsel %vm3585, %v3556, 0
    %v3620 = vsel %vm3585, %v3557, 0
    %v3623 = vsel %vm3585, %v3558, 0
    %v3626 = vsel %vm3585, %v3559, 0
    %v3629 = vsel %vm3585, %v3560, 0
    %v3632 = vsel %vm3585, %v3561, 0
    %v3635 = vsel %vm3585, %v3562, 0
    %v3638 = vsel %vm3585, %v3563, 0
    %v3641 = vsel %vm3585, %v3564, 0
    %v3644 = vsel %vm3585, %v3565, 0
    %v3647 = vsel %vm3585, %v3566, 0
    %v3650 = vsel %vm3585, %v3567, 0
    %v3653 = vsel %vm3585, %v3568, 0
    %v3656 = vsel %vm3585, %v3569, 0
    %v3659 = vsel %vm3585, %v3570, 0
    %v3662 = vsel %vm3585, %v3571, 0
    %v3665 = vsel %vm3585, %v3572, 0
    %v3668 = vsel %vm3585, %v3573, 0
    %v3671 = vsel %vm3585, %v3574, 0
    %v3674 = vsel %vm3585, %v3575, 0
    %v3677 = vsel %vm3585, %v3576, 0
    %v3680 = vsel %vm3585, %v3577, 0
    %vm3682 = vcmask 1043456
    %vm3683 = vcmask 1044480
    %v3684 = vsel %vm3682, 4294967295, 65535
    %v3685 = vsel %vm3683, %v3684, 0
    %v3687 = vand.u32 %v3584, %v3685
    %3689 = vmatprep.subr.bf16.mxu0 0
    %3690 = vmatpush1.bf16.msra.mxu0 %v3687
    %3691 = vmatprep.subr.bf16.mxu0 0
    %3692 = vmatpush1.bf16.msra.mxu0 0
    %3693 = vmatprep.subr.bf16.mxu0 0
    %3694 = vmatpush1.bf16.msra.mxu0 0
    %3695 = vmatprep.subr.bf16.mxu0 0
    %3696 = vmatpush1.bf16.msra.mxu0 0
    %3697 = vmatprep.subr.bf16.mxu0 0
    %3698 = vmatpush1.bf16.msra.mxu0 0
    %3699 = vmatprep.subr.bf16.mxu0 0
    %3700 = vmatpush1.bf16.msra.mxu0 0
    %3701 = vmatprep.subr.bf16.mxu0 0
    %3702 = vmatpush1.bf16.msra.mxu0 0
    %3703 = vmatprep.subr.bf16.mxu0 0
    %3704 = vmatpush1.bf16.msra.mxu0 0
    %3705 = vmatprep.subr.bf16.mxu0 0
    %3706 = vmatpush1.bf16.msra.mxu0 0
    %3707 = vmatprep.subr.bf16.mxu0 0
    %3708 = vmatpush1.bf16.msra.mxu0 0
    %3709 = vmatprep.subr.bf16.mxu0 0
    %3710 = vmatpush1.bf16.msra.mxu0 0
    %3711 = vmatprep.subr.bf16.mxu0 0
    %3712 = vmatpush1.bf16.msra.mxu0 0
    %3713 = vmatprep.subr.bf16.mxu0 0
    %3714 = vmatpush1.bf16.msra.mxu0 0
    %3715 = vmatprep.subr.bf16.mxu0 0
    %3716 = vmatpush1.bf16.msra.mxu0 0
    %3717 = vmatprep.subr.bf16.mxu0 0
    %3718 = vmatpush1.bf16.msra.mxu0 0
    %3719 = vmatprep.subr.bf16.mxu0 0
    %3720 = vmatpush1.bf16.msra.mxu0 0
    %3721 = vmatprep.mubr.bf16.mxu0 0
    %3722 = vmatmul.mubr.bf16.gmra.mrb[0].mxu0 %v3587
    %v3723 = vpop.f32.mrb[0].mxu0
    %v3724 = vadd.f32 0.0, %v3723
    %v3725 = vpop.f32.mrb[0].mxu0
    %v3726 = vpop.f32.mrb[0].mxu0
    %v3727 = vadd.f32 0.0, %v3726
    %v3728 = vpop.f32.mrb[0].mxu0
    %3729 = vmatprep.mubr.bf16.mxu0 0
    %3730 = vmatmul.mubr.bf16.gmra.mrb[0].mxu0 %v3590
    %v3731 = vpop.f32.mrb[0].mxu0
    %v3732 = vadd.f32 0.0, %v3731
    %v3733 = vpop.f32.mrb[0].mxu0
    %v3734 = vpop.f32.mrb[0].mxu0
    %v3735 = vadd.f32 0.0, %v3734
    %v3736 = vpop.f32.mrb[0].mxu0
    %3737 = vmatprep.mubr.bf16.mxu0 0
    %3738 = vmatmul.mubr.bf16.gmra.mrb[0].mxu0 %v3593
    %v3739 = vpop.f32.mrb[0].mxu0
    %v3740 = vadd.f32 0.0, %v3739
    %v3741 = vpop.f32.mrb[0].mxu0
    %v3742 = vpop.f32.mrb[0].mxu0
    %v3743 = vadd.f32 0.0, %v3742
    %v3744 = vpop.f32.mrb[0].mxu0
    %3745 = vmatprep.mubr.bf16.mxu0 0
    %3746 = vmatmul.mubr.bf16.gmra.mrb[0].mxu0 %v3596
    %v3747 = vpop.f32.mrb[0].mxu0
    %v3748 = vadd.f32 0.0, %v3747
    %v3749 = vpop.f32.mrb[0].mxu0
    %v3750 = vpop.f32.mrb[0].mxu0
    %v3751 = vadd.f32 0.0, %v3750
    %v3752 = vpop.f32.mrb[0].mxu0
    %3753 = vmatprep.mubr.bf16.mxu0 0
    %3754 = vmatmul.mubr.bf16.gmra.mrb[0].mxu0 %v3599
    %v3755 = vpop.f32.mrb[0].mxu0
    %v3756 = vadd.f32 0.0, %v3755
    %v3757 = vpop.f32.mrb[0].mxu0
    %v3758 = vpop.f32.mrb[0].mxu0
    %v3759 = vadd.f32 0.0, %v3758
    %v3760 = vpop.f32.mrb[0].mxu0
    %3761 = vmatprep.mubr.bf16.mxu0 0
    %3762 = vmatmul.mubr.bf16.gmra.mrb[0].mxu0 %v3602
    %v3763 = vpop.f32.mrb[0].mxu0
    %v3764 = vadd.f32 0.0, %v3763
    %v3765 = vpop.f32.mrb[0].mxu0
    %v3766 = vpop.f32.mrb[0].mxu0
    %v3767 = vadd.f32 0.0, %v3766
    %v3768 = vpop.f32.mrb[0].mxu0
    %3769 = vmatprep.mubr.bf16.mxu0 0
    %3770 = vmatmul.mubr.bf16.gmra.mrb[0].mxu0 %v3605
    %v3771 = vpop.f32.mrb[0].mxu0
    %v3772 = vadd.f32 0.0, %v3771
    %v3773 = vpop.f32.mrb[0].mxu0
    %v3774 = vpop.f32.mrb[0].mxu0
    %v3775 = vadd.f32 0.0, %v3774
    %v3776 = vpop.f32.mrb[0].mxu0
    %3777 = vmatprep.mubr.bf16.mxu0 0
    %3778 = vmatmul.mubr.bf16.gmra.mrb[0].mxu0 %v3608
    %v3779 = vpop.f32.mrb[0].mxu0
    %v3780 = vadd.f32 0.0, %v3779
    %v3781 = vpop.f32.mrb[0].mxu0
    %v3782 = vpop.f32.mrb[0].mxu0
    %v3783 = vadd.f32 0.0, %v3782
    %v3784 = vpop.f32.mrb[0].mxu0
    %3785 = vmatprep.mubr.bf16.mxu0 0
    %3786 = vmatmul.mubr.bf16.gmra.mrb[0].mxu0 %v3611
    %v3787 = vpop.f32.mrb[0].mxu0
    %v3788 = vadd.f32 0.0, %v3787
    %v3789 = vpop.f32.mrb[0].mxu0
    %v3790 = vpop.f32.mrb[0].mxu0
    %v3791 = vadd.f32 0.0, %v3790
    %v3792 = vpop.f32.mrb[0].mxu0
    %3793 = vmatprep.mubr.bf16.mxu0 0
    %3794 = vmatmul.mubr.bf16.gmra.mrb[0].mxu0 %v3614
    %v3795 = vpop.f32.mrb[0].mxu0
    %v3796 = vadd.f32 0.0, %v3795
    %v3797 = vpop.f32.mrb[0].mxu0
    %v3798 = vpop.f32.mrb[0].mxu0
    %v3799 = vadd.f32 0.0, %v3798
    %v3800 = vpop.f32.mrb[0].mxu0
    %3801 = vmatprep.mubr.bf16.mxu0 0
    %3802 = vmatmul.mubr.bf16.gmra.mrb[0].mxu0 %v3617
    %v3803 = vpop.f32.mrb[0].mxu0
    %v3804 = vadd.f32 0.0, %v3803
    %v3805 = vpop.f32.mrb[0].mxu0
    %v3806 = vpop.f32.mrb[0].mxu0
    %v3807 = vadd.f32 0.0, %v3806
    %v3808 = vpop.f32.mrb[0].mxu0
    %3809 = vmatprep.mubr.bf16.mxu0 0
    %3810 = vmatmul.mubr.bf16.gmra.mrb[0].mxu0 %v3620
    %v3811 = vpop.f32.mrb[0].mxu0
    %v3812 = vadd.f32 0.0, %v3811
    %v3813 = vpop.f32.mrb[0].mxu0
    %v3814 = vpop.f32.mrb[0].mxu0
    %v3815 = vadd.f32 0.0, %v3814
    %v3816 = vpop.f32.mrb[0].mxu0
    %3817 = vmatprep.mubr.bf16.mxu0 0
    %3818 = vmatmul.mubr.bf16.gmra.mrb[0].mxu0 %v3623
    %v3819 = vpop.f32.mrb[0].mxu0
    %v3820 = vadd.f32 0.0, %v3819
    %v3821 = vpop.f32.mrb[0].mxu0
    %v3822 = vpop.f32.mrb[0].mxu0
    %v3823 = vadd.f32 0.0, %v3822
    %v3824 = vpop.f32.mrb[0].mxu0
    %3825 = vmatprep.mubr.bf16.mxu0 0
    %3826 = vmatmul.mubr.bf16.gmra.mrb[0].mxu0 %v3626
    %v3827 = vpop.f32.mrb[0].mxu0
    %v3828 = vadd.f32 0.0, %v3827
    %v3829 = vpop.f32.mrb[0].mxu0
    %v3830 = vpop.f32.mrb[0].mxu0
    %v3831 = vadd.f32 0.0, %v3830
    %v3832 = vpop.f32.mrb[0].mxu0
    %3833 = vmatprep.mubr.bf16.mxu0 0
    %3834 = vmatmul.mubr.bf16.gmra.mrb[0].mxu0 %v3629
    %v3835 = vpop.f32.mrb[0].mxu0
    %v3836 = vadd.f32 0.0, %v3835
    %v3837 = vpop.f32.mrb[0].mxu0
    %v3838 = vpop.f32.mrb[0].mxu0
    %v3839 = vadd.f32 0.0, %v3838
    %v3840 = vpop.f32.mrb[0].mxu0
    %3841 = vmatprep.mubr.bf16.mxu0 0
    %3842 = vmatmul.mubr.bf16.gmra.mrb[0].mxu0 %v3632
    %v3843 = vpop.f32.mrb[0].mxu0
    %v3844 = vadd.f32 0.0, %v3843
    %v3845 = vpop.f32.mrb[0].mxu0
    %v3846 = vpop.f32.mrb[0].mxu0
    %v3847 = vadd.f32 0.0, %v3846
    %v3848 = vpop.f32.mrb[0].mxu0
    %3849 = vmatprep.mubr.bf16.mxu0 0
    %3850 = vmatmul.mubr.bf16.gmra.mrb[0].mxu0 %v3635
    %v3851 = vpop.f32.mrb[0].mxu0
    %v3852 = vadd.f32 0.0, %v3851
    %v3853 = vpop.f32.mrb[0].mxu0
    %v3854 = vpop.f32.mrb[0].mxu0
    %v3855 = vadd.f32 0.0, %v3854
    %v3856 = vpop.f32.mrb[0].mxu0
    %3857 = vmatprep.mubr.bf16.mxu0 0
    %3858 = vmatmul.mubr.bf16.gmra.mrb[0].mxu0 %v3638
    %v3859 = vpop.f32.mrb[0].mxu0
    %v3860 = vadd.f32 0.0, %v3859
    %v3861 = vpop.f32.mrb[0].mxu0
    %v3862 = vpop.f32.mrb[0].mxu0
    %v3863 = vadd.f32 0.0, %v3862
    %v3864 = vpop.f32.mrb[0].mxu0
    %3865 = vmatprep.mubr.bf16.mxu0 0
    %3866 = vmatmul.mubr.bf16.gmra.mrb[0].mxu0 %v3641
    %v3867 = vpop.f32.mrb[0].mxu0
    %v3868 = vadd.f32 0.0, %v3867
    %v3869 = vpop.f32.mrb[0].mxu0
    %v3870 = vpop.f32.mrb[0].mxu0
    %v3871 = vadd.f32 0.0, %v3870
    %v3872 = vpop.f32.mrb[0].mxu0
    %3873 = vmatprep.mubr.bf16.mxu0 0
    %3874 = vmatmul.mubr.bf16.gmra.mrb[0].mxu0 %v3644
    %v3875 = vpop.f32.mrb[0].mxu0
    %v3876 = vadd.f32 0.0, %v3875
    %v3877 = vpop.f32.mrb[0].mxu0
    %v3878 = vpop.f32.mrb[0].mxu0
    %v3879 = vadd.f32 0.0, %v3878
    %v3880 = vpop.f32.mrb[0].mxu0
    %3881 = vmatprep.mubr.bf16.mxu0 0
    %3882 = vmatmul.mubr.bf16.gmra.mrb[0].mxu0 %v3647
    %v3883 = vpop.f32.mrb[0].mxu0
    %v3884 = vadd.f32 0.0, %v3883
    %v3885 = vpop.f32.mrb[0].mxu0
    %v3886 = vpop.f32.mrb[0].mxu0
    %v3887 = vadd.f32 0.0, %v3886
    %v3888 = vpop.f32.mrb[0].mxu0
    %3889 = vmatprep.mubr.bf16.mxu0 0
    %3890 = vmatmul.mubr.bf16.gmra.mrb[0].mxu0 %v3650
    %v3891 = vpop.f32.mrb[0].mxu0
    %v3892 = vadd.f32 0.0, %v3891
    %v3893 = vpop.f32.mrb[0].mxu0
    %v3894 = vpop.f32.mrb[0].mxu0
    %v3895 = vadd.f32 0.0, %v3894
    %v3896 = vpop.f32.mrb[0].mxu0
    %3897 = vmatprep.mubr.bf16.mxu0 0
    %3898 = vmatmul.mubr.bf16.gmra.mrb[0].mxu0 %v3653
    %v3899 = vpop.f32.mrb[0].mxu0
    %v3900 = vadd.f32 0.0, %v3899
    %v3901 = vpop.f32.mrb[0].mxu0
    %v3902 = vpop.f32.mrb[0].mxu0
    %v3903 = vadd.f32 0.0, %v3902
    %v3904 = vpop.f32.mrb[0].mxu0
    %3905 = vmatprep.mubr.bf16.mxu0 0
    %3906 = vmatmul.mubr.bf16.gmra.mrb[0].mxu0 %v3656
    %v3907 = vpop.f32.mrb[0].mxu0
    %v3908 = vadd.f32 0.0, %v3907
    %v3909 = vpop.f32.mrb[0].mxu0
    %v3910 = vpop.f32.mrb[0].mxu0
    %v3911 = vadd.f32 0.0, %v3910
    %v3912 = vpop.f32.mrb[0].mxu0
    %3913 = vmatprep.mubr.bf16.mxu0 0
    %3914 = vmatmul.mubr.bf16.gmra.mrb[0].mxu0 %v3659
    %v3915 = vpop.f32.mrb[0].mxu0
    %v3916 = vadd.f32 0.0, %v3915
    %v3917 = vpop.f32.mrb[0].mxu0
    %v3918 = vpop.f32.mrb[0].mxu0
    %v3919 = vadd.f32 0.0, %v3918
    %v3920 = vpop.f32.mrb[0].mxu0
    %3921 = vmatprep.mubr.bf16.mxu0 0
    %3922 = vmatmul.mubr.bf16.gmra.mrb[0].mxu0 %v3662
    %v3923 = vpop.f32.mrb[0].mxu0
    %v3924 = vadd.f32 0.0, %v3923
    %v3925 = vpop.f32.mrb[0].mxu0
    %v3926 = vpop.f32.mrb[0].mxu0
    %v3927 = vadd.f32 0.0, %v3926
    %v3928 = vpop.f32.mrb[0].mxu0
    %3929 = vmatprep.mubr.bf16.mxu0 0
    %3930 = vmatmul.mubr.bf16.gmra.mrb[0].mxu0 %v3665
    %v3931 = vpop.f32.mrb[0].mxu0
    %v3932 = vadd.f32 0.0, %v3931
    %v3933 = vpop.f32.mrb[0].mxu0
    %v3934 = vpop.f32.mrb[0].mxu0
    %v3935 = vadd.f32 0.0, %v3934
    %v3936 = vpop.f32.mrb[0].mxu0
    %3937 = vmatprep.mubr.bf16.mxu0 0
    %3938 = vmatmul.mubr.bf16.gmra.mrb[0].mxu0 %v3668
    %v3939 = vpop.f32.mrb[0].mxu0
    %v3940 = vadd.f32 0.0, %v3939
    %v3941 = vpop.f32.mrb[0].mxu0
    %v3942 = vpop.f32.mrb[0].mxu0
    %v3943 = vadd.f32 0.0, %v3942
    %v3944 = vpop.f32.mrb[0].mxu0
    %3945 = vmatprep.mubr.bf16.mxu0 0
    %3946 = vmatmul.mubr.bf16.gmra.mrb[0].mxu0 %v3671
    %v3947 = vpop.f32.mrb[0].mxu0
    %v3948 = vadd.f32 0.0, %v3947
    %v3949 = vpop.f32.mrb[0].mxu0
    %v3950 = vpop.f32.mrb[0].mxu0
    %v3951 = vadd.f32 0.0, %v3950
    %v3952 = vpop.f32.mrb[0].mxu0
    %3953 = vmatprep.mubr.bf16.mxu0 0
    %3954 = vmatmul.mubr.bf16.gmra.mrb[0].mxu0 %v3674
    %v3955 = vpop.f32.mrb[0].mxu0
    %v3956 = vadd.f32 0.0, %v3955
    %v3957 = vpop.f32.mrb[0].mxu0
    %v3958 = vpop.f32.mrb[0].mxu0
    %v3959 = vadd.f32 0.0, %v3958
    %v3960 = vpop.f32.mrb[0].mxu0
    %3961 = vmatprep.mubr.bf16.mxu0 0
    %3962 = vmatmul.mubr.bf16.gmra.mrb[0].mxu0 %v3677
    %v3963 = vpop.f32.mrb[0].mxu0
    %v3964 = vadd.f32 0.0, %v3963
    %v3965 = vpop.f32.mrb[0].mxu0
    %v3966 = vpop.f32.mrb[0].mxu0
    %v3967 = vadd.f32 0.0, %v3966
    %v3968 = vpop.f32.mrb[0].mxu0
    %3969 = vmatprep.mubr.bf16.mxu0 0
    %3970 = vmatmul.mubr.bf16.gmra.mrb[0].mxu0 %v3680
    %v3971 = vpop.f32.mrb[0].mxu0
    %v3972 = vadd.f32 0.0, %v3971
    %v3973 = vpop.f32.mrb[0].mxu0
    %v3974 = vpop.f32.mrb[0].mxu0
    %v3975 = vadd.f32 0.0, %v3974
    %v3976 = vpop.f32.mrb[0].mxu0
    %3977 = vdwg.mxu0
    %v3978 = vld [vmem:[%s2] sm:$0x1]
    %v3979 = vld [vmem:[%s3] sm:$0x1]
    %vm3980 = vcmask 130048
    %v3981 = vsel %vm3980, %v3724, 0.0
    %v3982 = vsel %vm3980, %v3727, 0.0
    %v3983 = vadd.f32 %v3981, %v3982
    %v3984 = vsel %vm3980, %v3732, 0.0
    %v3985 = vadd.f32 %v3983, %v3984
    %v3986 = vsel %vm3980, %v3735, 0.0
    %v3987 = vadd.f32 %v3985, %v3986
    %v3988 = vsel %vm3980, %v3740, 0.0
    %v3989 = vadd.f32 %v3987, %v3988
    %v3990 = vsel %vm3980, %v3743, 0.0
    %v3991 = vadd.f32 %v3989, %v3990
    %v3992 = vsel %vm3980, %v3748, 0.0
    %v3993 = vadd.f32 %v3991, %v3992
    %v3994 = vsel %vm3980, %v3751, 0.0
    %v3995 = vadd.f32 %v3993, %v3994
    %v3996 = vsel %vm3980, %v3756, 0.0
    %v3997 = vadd.f32 %v3995, %v3996
    %v3998 = vsel %vm3980, %v3759, 0.0
    %v3999 = vadd.f32 %v3997, %v3998
    %v4000 = vsel %vm3980, %v3764, 0.0
    %v4001 = vadd.f32 %v3999, %v4000
    %v4002 = vsel %vm3980, %v3767, 0.0
    %v4003 = vadd.f32 %v4001, %v4002
    %v4004 = vsel %vm3980, %v3772, 0.0
    %v4005 = vadd.f32 %v4003, %v4004
    %v4006 = vsel %vm3980, %v3775, 0.0
    %v4007 = vadd.f32 %v4005, %v4006
    %v4008 = vsel %vm3980, %v3780, 0.0
    %v4009 = vadd.f32 %v4007, %v4008
    %v4010 = vsel %vm3980, %v3783, 0.0
    %v4011 = vadd.f32 %v4009, %v4010
    %v4012 = vsel %vm3980, %v3788, 0.0
    %v4013 = vadd.f32 %v4011, %v4012
    %v4014 = vsel %vm3980, %v3791, 0.0
    %v4015 = vadd.f32 %v4013, %v4014
    %v4016 = vsel %vm3980, %v3796, 0.0
    %v4017 = vadd.f32 %v4015, %v4016
    %v4018 = vsel %vm3980, %v3799, 0.0
    %v4019 = vadd.f32 %v4017, %v4018
    %v4020 = vsel %vm3980, %v3804, 0.0
    %v4021 = vadd.f32 %v4019, %v4020
    %v4022 = vsel %vm3980, %v3807, 0.0
    %v4023 = vadd.f32 %v4021, %v4022
    %v4024 = vsel %vm3980, %v3812, 0.0
    %v4025 = vadd.f32 %v4023, %v4024
    %v4026 = vsel %vm3980, %v3815, 0.0
    %v4027 = vadd.f32 %v4025, %v4026
    %v4028 = vsel %vm3980, %v3820, 0.0
    %v4029 = vadd.f32 %v4027, %v4028
    %v4030 = vsel %vm3980, %v3823, 0.0
    %v4031 = vadd.f32 %v4029, %v4030
    %v4032 = vsel %vm3980, %v3828, 0.0
    %v4033 = vadd.f32 %v4031, %v4032
    %v4034 = vsel %vm3980, %v3831, 0.0
    %v4035 = vadd.f32 %v4033, %v4034
    %v4036 = vsel %vm3980, %v3836, 0.0
    %v4037 = vadd.f32 %v4035, %v4036
    %v4038 = vsel %vm3980, %v3839, 0.0
    %v4039 = vadd.f32 %v4037, %v4038
    %v4040 = vsel %vm3980, %v3844, 0.0
    %v4041 = vadd.f32 %v4039, %v4040
    %v4042 = vsel %vm3980, %v3847, 0.0
    %v4043 = vadd.f32 %v4041, %v4042
    %v4044 = vsel %vm3980, %v3852, 0.0
    %v4045 = vadd.f32 %v4043, %v4044
    %v4046 = vsel %vm3980, %v3855, 0.0
    %v4047 = vadd.f32 %v4045, %v4046
    %v4048 = vsel %vm3980, %v3860, 0.0
    %v4049 = vadd.f32 %v4047, %v4048
    %v4050 = vsel %vm3980, %v3863, 0.0
    %v4051 = vadd.f32 %v4049, %v4050
    %v4052 = vsel %vm3980, %v3868, 0.0
    %v4053 = vadd.f32 %v4051, %v4052
    %v4054 = vsel %vm3980, %v3871, 0.0
    %v4055 = vadd.f32 %v4053, %v4054
    %v4056 = vsel %vm3980, %v3876, 0.0
    %v4057 = vadd.f32 %v4055, %v4056
    %v4058 = vsel %vm3980, %v3879, 0.0
    %v4059 = vadd.f32 %v4057, %v4058
    %v4060 = vsel %vm3980, %v3884, 0.0
    %v4061 = vadd.f32 %v4059, %v4060
    %v4062 = vsel %vm3980, %v3887, 0.0
    %v4063 = vadd.f32 %v4061, %v4062
    %v4064 = vsel %vm3980, %v3892, 0.0
    %v4065 = vadd.f32 %v4063, %v4064
    %v4066 = vsel %vm3980, %v3895, 0.0
    %v4067 = vadd.f32 %v4065, %v4066
    %v4068 = vsel %vm3980, %v3900, 0.0
    %v4069 = vadd.f32 %v4067, %v4068
    %v4070 = vsel %vm3980, %v3903, 0.0
    %v4071 = vadd.f32 %v4069, %v4070
    %v4072 = vsel %vm3980, %v3908, 0.0
    %v4073 = vadd.f32 %v4071, %v4072
    %v4074 = vsel %vm3980, %v3911, 0.0
    %v4075 = vadd.f32 %v4073, %v4074
    %v4076 = vsel %vm3980, %v3916, 0.0
    %v4077 = vadd.f32 %v4075, %v4076
    %v4078 = vsel %vm3980, %v3919, 0.0
    %v4079 = vadd.f32 %v4077, %v4078
    %v4080 = vsel %vm3980, %v3924, 0.0
    %v4081 = vadd.f32 %v4079, %v4080
    %v4082 = vsel %vm3980, %v3927, 0.0
    %v4083 = vadd.f32 %v4081, %v4082
    %v4084 = vsel %vm3980, %v3932, 0.0
    %v4085 = vadd.f32 %v4083, %v4084
    %v4086 = vsel %vm3980, %v3935, 0.0
    %v4087 = vadd.f32 %v4085, %v4086
    %v4088 = vsel %vm3980, %v3940, 0.0
    %v4089 = vadd.f32 %v4087, %v4088
    %v4090 = vsel %vm3980, %v3943, 0.0
    %v4091 = vadd.f32 %v4089, %v4090
    %v4092 = vsel %vm3980, %v3948, 0.0
    %v4093 = vadd.f32 %v4091, %v4092
    %v4094 = vsel %vm3980, %v3951, 0.0
    %v4095 = vadd.f32 %v4093, %v4094
    %v4096 = vsel %vm3980, %v3956, 0.0
    %v4097 = vadd.f32 %v4095, %v4096
    %v4098 = vsel %vm3980, %v3959, 0.0
    %v4099 = vadd.f32 %v4097, %v4098
    %v4100 = vsel %vm3980, %v3964, 0.0
    %v4101 = vadd.f32 %v4099, %v4100
    %v4102 = vsel %vm3980, %v3967, 0.0
    %v4103 = vadd.f32 %v4101, %v4102
    %v4104 = vsel %vm3980, %v3972, 0.0
    %v4105 = vadd.f32 %v4103, %v4104
    %v4106 = vsel %vm3980, %v3975, 0.0
    %v4107 = vadd.f32 %v4105, %v4106
    %v4108 = vrot.slane %v4107, 4
    %v4109 = vadd.f32 %v4107, %v4108
    %v4110 = vrot.slane %v4109, 2
    %v4111 = vadd.f32 %v4109, %v4110
    %v4112 = vrot.slane %v4111, 1
    %v4113 = vadd.f32 %v4111, %v4112
    %v4114 = vmul.f32 %v3724, %v3724
    %v4115 = vmul.f32 %v3727, %v3727
    %v4116 = vmul.f32 %v3732, %v3732
    %v4117 = vmul.f32 %v3735, %v3735
    %v4118 = vmul.f32 %v3740, %v3740
    %v4119 = vmul.f32 %v3743, %v3743
    %v4120 = vmul.f32 %v3748, %v3748
    %v4121 = vmul.f32 %v3751, %v3751
    %v4122 = vmul.f32 %v3756, %v3756
    %v4123 = vmul.f32 %v3759, %v3759
    %v4124 = vmul.f32 %v3764, %v3764
    %v4125 = vmul.f32 %v3767, %v3767
    %v4126 = vmul.f32 %v3772, %v3772
    %v4127 = vmul.f32 %v3775, %v3775
    %v4128 = vmul.f32 %v3780, %v3780
    %v4129 = vmul.f32 %v3783, %v3783
    %v4130 = vmul.f32 %v3788, %v3788
    %v4131 = vmul.f32 %v3791, %v3791
    %v4132 = vmul.f32 %v3796, %v3796
    %v4133 = vmul.f32 %v3799, %v3799
    %v4134 = vmul.f32 %v3804, %v3804
    %v4135 = vmul.f32 %v3807, %v3807
    %v4136 = vmul.f32 %v3812, %v3812
    %v4137 = vmul.f32 %v3815, %v3815
    %v4138 = vmul.f32 %v3820, %v3820
    %v4139 = vmul.f32 %v3823, %v3823
    %v4140 = vmul.f32 %v3828, %v3828
    %v4141 = vmul.f32 %v3831, %v3831
    %v4142 = vmul.f32 %v3836, %v3836
    %v4143 = vmul.f32 %v3839, %v3839
    %v4144 = vmul.f32 %v3844, %v3844
    %v4145 = vmul.f32 %v3847, %v3847
    %v4146 = vmul.f32 %v3852, %v3852
    %v4147 = vmul.f32 %v3855, %v3855
    %v4148 = vmul.f32 %v3860, %v3860
    %v4149 = vmul.f32 %v3863, %v3863
    %v4150 = vmul.f32 %v3868, %v3868
    %v4151 = vmul.f32 %v3871, %v3871
    %v4152 = vmul.f32 %v3876, %v3876
    %v4153 = vmul.f32 %v3879, %v3879
    %v4154 = vmul.f32 %v3884, %v3884
    %v4155 = vmul.f32 %v3887, %v3887
    %v4156 = vmul.f32 %v3892, %v3892
    %v4157 = vmul.f32 %v3895, %v3895
    %v4158 = vmul.f32 %v3900, %v3900
    %v4159 = vmul.f32 %v3903, %v3903
    %v4160 = vmul.f32 %v3908, %v3908
    %v4161 = vmul.f32 %v3911, %v3911
    %v4162 = vmul.f32 %v3916, %v3916
    %v4163 = vmul.f32 %v3919, %v3919
    %v4164 = vmul.f32 %v3924, %v3924
    %v4165 = vmul.f32 %v3927, %v3927
    %v4166 = vmul.f32 %v3932, %v3932
    %v4167 = vmul.f32 %v3935, %v3935
    %v4168 = vmul.f32 %v3940, %v3940
    %v4169 = vmul.f32 %v3943, %v3943
    %v4170 = vmul.f32 %v3948, %v3948
    %v4171 = vmul.f32 %v3951, %v3951
    %v4172 = vmul.f32 %v3956, %v3956
    %v4173 = vmul.f32 %v3959, %v3959
    %v4174 = vmul.f32 %v3964, %v3964
    %v4175 = vmul.f32 %v3967, %v3967
    %v4176 = vmul.f32 %v3972, %v3972
    %v4177 = vmul.f32 %v3975, %v3975
    %v4178 = vsel %vm3980, %v4114, 0.0
    %v4179 = vsel %vm3980, %v4115, 0.0
    %v4180 = vadd.f32 %v4178, %v4179
    %v4181 = vsel %vm3980, %v4116, 0.0
    %v4182 = vadd.f32 %v4180, %v4181
    %v4183 = vsel %vm3980, %v4117, 0.0
    %v4184 = vadd.f32 %v4182, %v4183
    %v4185 = vsel %vm3980, %v4118, 0.0
    %v4186 = vadd.f32 %v4184, %v4185
    %v4187 = vsel %vm3980, %v4119, 0.0
    %v4188 = vadd.f32 %v4186, %v4187
    %v4189 = vsel %vm3980, %v4120, 0.0
    %v4190 = vadd.f32 %v4188, %v4189
    %v4191 = vsel %vm3980, %v4121, 0.0
    %v4192 = vadd.f32 %v4190, %v4191
    %v4193 = vsel %vm3980, %v4122, 0.0
    %v4194 = vadd.f32 %v4192, %v4193
    %v4195 = vsel %vm3980, %v4123, 0.0
    %v4196 = vadd.f32 %v4194, %v4195
    %v4197 = vsel %vm3980, %v4124, 0.0
    %v4198 = vadd.f32 %v4196, %v4197
    %v4199 = vsel %vm3980, %v4125, 0.0
    %v4200 = vadd.f32 %v4198, %v4199
    %v4201 = vsel %vm3980, %v4126, 0.0
    %v4202 = vadd.f32 %v4200, %v4201
    %v4203 = vsel %vm3980, %v4127, 0.0
    %v4204 = vadd.f32 %v4202, %v4203
    %v4205 = vsel %vm3980, %v4128, 0.0
    %v4206 = vadd.f32 %v4204, %v4205
    %v4207 = vsel %vm3980, %v4129, 0.0
    %v4208 = vadd.f32 %v4206, %v4207
    %v4209 = vsel %vm3980, %v4130, 0.0
    %v4210 = vadd.f32 %v4208, %v4209
    %v4211 = vsel %vm3980, %v4131, 0.0
    %v4212 = vadd.f32 %v4210, %v4211
    %v4213 = vsel %vm3980, %v4132, 0.0
    %v4214 = vadd.f32 %v4212, %v4213
    %v4215 = vsel %vm3980, %v4133, 0.0
    %v4216 = vadd.f32 %v4214, %v4215
    %v4217 = vsel %vm3980, %v4134, 0.0
    %v4218 = vadd.f32 %v4216, %v4217
    %v4219 = vsel %vm3980, %v4135, 0.0
    %v4220 = vadd.f32 %v4218, %v4219
    %v4221 = vsel %vm3980, %v4136, 0.0
    %v4222 = vadd.f32 %v4220, %v4221
    %v4223 = vsel %vm3980, %v4137, 0.0
    %v4224 = vadd.f32 %v4222, %v4223
    %v4225 = vsel %vm3980, %v4138, 0.0
    %v4226 = vadd.f32 %v4224, %v4225
    %v4227 = vsel %vm3980, %v4139, 0.0
    %v4228 = vadd.f32 %v4226, %v4227
    %v4229 = vsel %vm3980, %v4140, 0.0
    %v4230 = vadd.f32 %v4228, %v4229
    %v4231 = vsel %vm3980, %v4141, 0.0
    %v4232 = vadd.f32 %v4230, %v4231
    %v4233 = vsel %vm3980, %v4142, 0.0
    %v4234 = vadd.f32 %v4232, %v4233
    %v4235 = vsel %vm3980, %v4143, 0.0
    %v4236 = vadd.f32 %v4234, %v4235
    %v4237 = vsel %vm3980, %v4144, 0.0
    %v4238 = vadd.f32 %v4236, %v4237
    %v4239 = vsel %vm3980, %v4145, 0.0
    %v4240 = vadd.f32 %v4238, %v4239
    %v4241 = vsel %vm3980, %v4146, 0.0
    %v4242 = vadd.f32 %v4240, %v4241
    %v4243 = vsel %vm3980, %v4147, 0.0
    %v4244 = vadd.f32 %v4242, %v4243
    %v4245 = vsel %vm3980, %v4148, 0.0
    %v4246 = vadd.f32 %v4244, %v4245
    %v4247 = vsel %vm3980, %v4149, 0.0
    %v4248 = vadd.f32 %v4246, %v4247
    %v4249 = vsel %vm3980, %v4150, 0.0
    %v4250 = vadd.f32 %v4248, %v4249
    %v4251 = vsel %vm3980, %v4151, 0.0
    %v4252 = vadd.f32 %v4250, %v4251
    %v4253 = vsel %vm3980, %v4152, 0.0
    %v4254 = vadd.f32 %v4252, %v4253
    %v4255 = vsel %vm3980, %v4153, 0.0
    %v4256 = vadd.f32 %v4254, %v4255
    %v4257 = vsel %vm3980, %v4154, 0.0
    %v4258 = vadd.f32 %v4256, %v4257
    %v4259 = vsel %vm3980, %v4155, 0.0
    %v4260 = vadd.f32 %v4258, %v4259
    %v4261 = vsel %vm3980, %v4156, 0.0
    %v4262 = vadd.f32 %v4260, %v4261
    %v4263 = vsel %vm3980, %v4157, 0.0
    %v4264 = vadd.f32 %v4262, %v4263
    %v4265 = vsel %vm3980, %v4158, 0.0
    %v4266 = vadd.f32 %v4264, %v4265
    %v4267 = vsel %vm3980, %v4159, 0.0
    %v4268 = vadd.f32 %v4266, %v4267
    %v4269 = vsel %vm3980, %v4160, 0.0
    %v4270 = vadd.f32 %v4268, %v4269
    %v4271 = vsel %vm3980, %v4161, 0.0
    %v4272 = vadd.f32 %v4270, %v4271
    %v4273 = vsel %vm3980, %v4162, 0.0
    %v4274 = vadd.f32 %v4272, %v4273
    %v4275 = vsel %vm3980, %v4163, 0.0
    %v4276 = vadd.f32 %v4274, %v4275
    %v4277 = vsel %vm3980, %v4164, 0.0
    %v4278 = vadd.f32 %v4276, %v4277
    %v4279 = vsel %vm3980, %v4165, 0.0
    %v4280 = vadd.f32 %v4278, %v4279
    %v4281 = vsel %vm3980, %v4166, 0.0
    %v4282 = vadd.f32 %v4280, %v4281
    %v4283 = vsel %vm3980, %v4167, 0.0
    %v4284 = vadd.f32 %v4282, %v4283
    %v4285 = vsel %vm3980, %v4168, 0.0
    %v4286 = vadd.f32 %v4284, %v4285
    %v4287 = vsel %vm3980, %v4169, 0.0
    %v4288 = vadd.f32 %v4286, %v4287
    %v4289 = vsel %vm3980, %v4170, 0.0
    %v4290 = vadd.f32 %v4288, %v4289
    %v4291 = vsel %vm3980, %v4171, 0.0
    %v4292 = vadd.f32 %v4290, %v4291
    %v4293 = vsel %vm3980, %v4172, 0.0
    %v4294 = vadd.f32 %v4292, %v4293
    %v4295 = vsel %vm3980, %v4173, 0.0
    %v4296 = vadd.f32 %v4294, %v4295
    %v4297 = vsel %vm3980, %v4174, 0.0
    %v4298 = vadd.f32 %v4296, %v4297
    %v4299 = vsel %vm3980, %v4175, 0.0
    %v4300 = vadd.f32 %v4298, %v4299
    %v4301 = vsel %vm3980, %v4176, 0.0
    %v4302 = vadd.f32 %v4300, %v4301
    %v4303 = vsel %vm3980, %v4177, 0.0
    %v4304 = vadd.f32 %v4302, %v4303
    %v4305 = vrot.slane %v4304, 4
    %v4306 = vadd.f32 %v4304, %v4305
    %v4307 = vrot.slane %v4306, 2
    %v4308 = vadd.f32 %v4306, %v4307
    %v4309 = vrot.slane %v4308, 1
    %v4310 = vadd.f32 %v4308, %v4309
    %v4311 = vmul.f32 %v4113, 0.001953125
    %v4312 = vmul.f32 %v4310, 0.001953125
    %v4313 = vmul.f32 %v4311, %v4311
    %v4314 = vsub.f32 %v4312, %v4313
    %v4315 = vmax.f32 %v4314, 0.0
    %v4316 = vadd.f32 %v4315, 1e-05
    %v4317 = vrsqrt.pop %v4316
    %v4318 = vmul.f32 %v3978, %v4317
    %v4319 = vsub.f32 %v3724, %v4311
    %v4320 = vsub.f32 %v3727, %v4311
    %v4321 = vsub.f32 %v3732, %v4311
    %v4322 = vsub.f32 %v3735, %v4311
    %v4323 = vsub.f32 %v3740, %v4311
    %v4324 = vsub.f32 %v3743, %v4311
    %v4325 = vsub.f32 %v3748, %v4311
    %v4326 = vsub.f32 %v3751, %v4311
    %v4327 = vsub.f32 %v3756, %v4311
    %v4328 = vsub.f32 %v3759, %v4311
    %v4329 = vsub.f32 %v3764, %v4311
    %v4330 = vsub.f32 %v3767, %v4311
    %v4331 = vsub.f32 %v3772, %v4311
    %v4332 = vsub.f32 %v3775, %v4311
    %v4333 = vsub.f32 %v3780, %v4311
    %v4334 = vsub.f32 %v3783, %v4311
    %v4335 = vsub.f32 %v3788, %v4311
    %v4336 = vsub.f32 %v3791, %v4311
    %v4337 = vsub.f32 %v3796, %v4311
    %v4338 = vsub.f32 %v3799, %v4311
    %v4339 = vsub.f32 %v3804, %v4311
    %v4340 = vsub.f32 %v3807, %v4311
    %v4341 = vsub.f32 %v3812, %v4311
    %v4342 = vsub.f32 %v3815, %v4311
    %v4343 = vsub.f32 %v3820, %v4311
    %v4344 = vsub.f32 %v3823, %v4311
    %v4345 = vsub.f32 %v3828, %v4311
    %v4346 = vsub.f32 %v3831, %v4311
    %v4347 = vsub.f32 %v3836, %v4311
    %v4348 = vsub.f32 %v3839, %v4311
    %v4349 = vsub.f32 %v3844, %v4311
    %v4350 = vsub.f32 %v3847, %v4311
    %v4351 = vsub.f32 %v3852, %v4311
    %v4352 = vsub.f32 %v3855, %v4311
    %v4353 = vsub.f32 %v3860, %v4311
    %v4354 = vsub.f32 %v3863, %v4311
    %v4355 = vsub.f32 %v3868, %v4311
    %v4356 = vsub.f32 %v3871, %v4311
    %v4357 = vsub.f32 %v3876, %v4311
    %v4358 = vsub.f32 %v3879, %v4311
    %v4359 = vsub.f32 %v3884, %v4311
    %v4360 = vsub.f32 %v3887, %v4311
    %v4361 = vsub.f32 %v3892, %v4311
    %v4362 = vsub.f32 %v3895, %v4311
    %v4363 = vsub.f32 %v3900, %v4311
    %v4364 = vsub.f32 %v3903, %v4311
    %v4365 = vsub.f32 %v3908, %v4311
    %v4366 = vsub.f32 %v3911, %v4311
    %v4367 = vsub.f32 %v3916, %v4311
    %v4368 = vsub.f32 %v3919, %v4311
    %v4369 = vsub.f32 %v3924, %v4311
    %v4370 = vsub.f32 %v3927, %v4311
    %v4371 = vsub.f32 %v3932, %v4311
    %v4372 = vsub.f32 %v3935, %v4311
    %v4373 = vsub.f32 %v3940, %v4311
    %v4374 = vsub.f32 %v3943, %v4311
    %v4375 = vsub.f32 %v3948, %v4311
    %v4376 = vsub.f32 %v3951, %v4311
    %v4377 = vsub.f32 %v3956, %v4311
    %v4378 = vsub.f32 %v3959, %v4311
    %v4379 = vsub.f32 %v3964, %v4311
    %v4380 = vsub.f32 %v3967, %v4311
    %v4381 = vsub.f32 %v3972, %v4311
    %v4382 = vsub.f32 %v3975, %v4311
    %v4384 = vlaneseq
    %v4385 = vshrl.u32 %v4384, 7
    %v4386 = vsub.s32 0, %v4385
    %v4387 = vrot.slane %v4318, %v4386
    %v4389 = vmul.f32 %v4319, %v4387
    %v4390 = vmul.f32 %v4320, %v4387
    %v4391 = vmul.f32 %v4321, %v4387
    %v4392 = vmul.f32 %v4322, %v4387
    %v4393 = vmul.f32 %v4323, %v4387
    %v4394 = vmul.f32 %v4324, %v4387
    %v4395 = vmul.f32 %v4325, %v4387
    %v4396 = vmul.f32 %v4326, %v4387
    %v4397 = vmul.f32 %v4327, %v4387
    %v4398 = vmul.f32 %v4328, %v4387
    %v4399 = vmul.f32 %v4329, %v4387
    %v4400 = vmul.f32 %v4330, %v4387
    %v4401 = vmul.f32 %v4331, %v4387
    %v4402 = vmul.f32 %v4332, %v4387
    %v4403 = vmul.f32 %v4333, %v4387
    %v4404 = vmul.f32 %v4334, %v4387
    %v4405 = vmul.f32 %v4335, %v4387
    %v4406 = vmul.f32 %v4336, %v4387
    %v4407 = vmul.f32 %v4337, %v4387
    %v4408 = vmul.f32 %v4338, %v4387
    %v4409 = vmul.f32 %v4339, %v4387
    %v4410 = vmul.f32 %v4340, %v4387
    %v4411 = vmul.f32 %v4341, %v4387
    %v4412 = vmul.f32 %v4342, %v4387
    %v4413 = vmul.f32 %v4343, %v4387
    %v4414 = vmul.f32 %v4344, %v4387
    %v4415 = vmul.f32 %v4345, %v4387
    %v4416 = vmul.f32 %v4346, %v4387
    %v4417 = vmul.f32 %v4347, %v4387
    %v4418 = vmul.f32 %v4348, %v4387
    %v4419 = vmul.f32 %v4349, %v4387
    %v4420 = vmul.f32 %v4350, %v4387
    %v4421 = vmul.f32 %v4351, %v4387
    %v4422 = vmul.f32 %v4352, %v4387
    %v4423 = vmul.f32 %v4353, %v4387
    %v4424 = vmul.f32 %v4354, %v4387
    %v4425 = vmul.f32 %v4355, %v4387
    %v4426 = vmul.f32 %v4356, %v4387
    %v4427 = vmul.f32 %v4357, %v4387
    %v4428 = vmul.f32 %v4358, %v4387
    %v4429 = vmul.f32 %v4359, %v4387
    %v4430 = vmul.f32 %v4360, %v4387
    %v4431 = vmul.f32 %v4361, %v4387
    %v4432 = vmul.f32 %v4362, %v4387
    %v4433 = vmul.f32 %v4363, %v4387
    %v4434 = vmul.f32 %v4364, %v4387
    %v4435 = vmul.f32 %v4365, %v4387
    %v4436 = vmul.f32 %v4366, %v4387
    %v4437 = vmul.f32 %v4367, %v4387
    %v4438 = vmul.f32 %v4368, %v4387
    %v4439 = vmul.f32 %v4369, %v4387
    %v4440 = vmul.f32 %v4370, %v4387
    %v4441 = vmul.f32 %v4371, %v4387
    %v4442 = vmul.f32 %v4372, %v4387
    %v4443 = vmul.f32 %v4373, %v4387
    %v4444 = vmul.f32 %v4374, %v4387
    %v4445 = vmul.f32 %v4375, %v4387
    %v4446 = vmul.f32 %v4376, %v4387
    %v4447 = vmul.f32 %v4377, %v4387
    %v4448 = vmul.f32 %v4378, %v4387
    %v4449 = vmul.f32 %v4379, %v4387
    %v4450 = vmul.f32 %v4380, %v4387
    %v4451 = vmul.f32 %v4381, %v4387
    %v4452 = vmul.f32 %v4382, %v4387
    %v4454 = vlaneseq
    %v4455 = vshrl.u32 %v4454, 7
    %v4456 = vsub.s32 0, %v4455
    %v4457 = vrot.slane %v3979, %v4456
    %v4459 = vadd.f32 %v4389, %v4457
    %v4460 = vadd.f32 %v4390, %v4457
    %v4461 = vadd.f32 %v4391, %v4457
    %v4462 = vadd.f32 %v4392, %v4457
    %v4463 = vadd.f32 %v4393, %v4457
    %v4464 = vadd.f32 %v4394, %v4457
    %v4465 = vadd.f32 %v4395, %v4457
    %v4466 = vadd.f32 %v4396, %v4457
    %v4467 = vadd.f32 %v4397, %v4457
    %v4468 = vadd.f32 %v4398, %v4457
    %v4469 = vadd.f32 %v4399, %v4457
    %v4470 = vadd.f32 %v4400, %v4457
    %v4471 = vadd.f32 %v4401, %v4457
    %v4472 = vadd.f32 %v4402, %v4457
    %v4473 = vadd.f32 %v4403, %v4457
    %v4474 = vadd.f32 %v4404, %v4457
    %v4475 = vadd.f32 %v4405, %v4457
    %v4476 = vadd.f32 %v4406, %v4457
    %v4477 = vadd.f32 %v4407, %v4457
    %v4478 = vadd.f32 %v4408, %v4457
    %v4479 = vadd.f32 %v4409, %v4457
    %v4480 = vadd.f32 %v4410, %v4457
    %v4481 = vadd.f32 %v4411, %v4457
    %v4482 = vadd.f32 %v4412, %v4457
    %v4483 = vadd.f32 %v4413, %v4457
    %v4484 = vadd.f32 %v4414, %v4457
    %v4485 = vadd.f32 %v4415, %v4457
    %v4486 = vadd.f32 %v4416, %v4457
    %v4487 = vadd.f32 %v4417, %v4457
    %v4488 = vadd.f32 %v4418, %v4457
    %v4489 = vadd.f32 %v4419, %v4457
    %v4490 = vadd.f32 %v4420, %v4457
    %v4491 = vadd.f32 %v4421, %v4457
    %v4492 = vadd.f32 %v4422, %v4457
    %v4493 = vadd.f32 %v4423, %v4457
    %v4494 = vadd.f32 %v4424, %v4457
    %v4495 = vadd.f32 %v4425, %v4457
    %v4496 = vadd.f32 %v4426, %v4457
    %v4497 = vadd.f32 %v4427, %v4457
    %v4498 = vadd.f32 %v4428, %v4457
    %v4499 = vadd.f32 %v4429, %v4457
    %v4500 = vadd.f32 %v4430, %v4457
    %v4501 = vadd.f32 %v4431, %v4457
    %v4502 = vadd.f32 %v4432, %v4457
    %v4503 = vadd.f32 %v4433, %v4457
    %v4504 = vadd.f32 %v4434, %v4457
    %v4505 = vadd.f32 %v4435, %v4457
    %v4506 = vadd.f32 %v4436, %v4457
    %v4507 = vadd.f32 %v4437, %v4457
    %v4508 = vadd.f32 %v4438, %v4457
    %v4509 = vadd.f32 %v4439, %v4457
    %v4510 = vadd.f32 %v4440, %v4457
    %v4511 = vadd.f32 %v4441, %v4457
    %v4512 = vadd.f32 %v4442, %v4457
    %v4513 = vadd.f32 %v4443, %v4457
    %v4514 = vadd.f32 %v4444, %v4457
    %v4515 = vadd.f32 %v4445, %v4457
    %v4516 = vadd.f32 %v4446, %v4457
    %v4517 = vadd.f32 %v4447, %v4457
    %v4518 = vadd.f32 %v4448, %v4457
    %v4519 = vadd.f32 %v4449, %v4457
    %v4520 = vadd.f32 %v4450, %v4457
    %v4521 = vadd.f32 %v4451, %v4457
    %v4522 = vadd.f32 %v4452, %v4457
    %v4523 = vmax.f32 %v4459, 0.0
    %v4524 = vmax.f32 %v4460, 0.0
    %v4525 = vmax.f32 %v4461, 0.0
    %v4526 = vmax.f32 %v4462, 0.0
    %v4527 = vmax.f32 %v4463, 0.0
    %v4528 = vmax.f32 %v4464, 0.0
    %v4529 = vmax.f32 %v4465, 0.0
    %v4530 = vmax.f32 %v4466, 0.0
    %v4531 = vmax.f32 %v4467, 0.0
    %v4532 = vmax.f32 %v4468, 0.0
    %v4533 = vmax.f32 %v4469, 0.0
    %v4534 = vmax.f32 %v4470, 0.0
    %v4535 = vmax.f32 %v4471, 0.0
    %v4536 = vmax.f32 %v4472, 0.0
    %v4537 = vmax.f32 %v4473, 0.0
    %v4538 = vmax.f32 %v4474, 0.0
    %v4539 = vmax.f32 %v4475, 0.0
    %v4540 = vmax.f32 %v4476, 0.0
    %v4541 = vmax.f32 %v4477, 0.0
    %v4542 = vmax.f32 %v4478, 0.0
    %v4543 = vmax.f32 %v4479, 0.0
    %v4544 = vmax.f32 %v4480, 0.0
    %v4545 = vmax.f32 %v4481, 0.0
    %v4546 = vmax.f32 %v4482, 0.0
    %v4547 = vmax.f32 %v4483, 0.0
    %v4548 = vmax.f32 %v4484, 0.0
    %v4549 = vmax.f32 %v4485, 0.0
    %v4550 = vmax.f32 %v4486, 0.0
    %v4551 = vmax.f32 %v4487, 0.0
    %v4552 = vmax.f32 %v4488, 0.0
    %v4553 = vmax.f32 %v4489, 0.0
    %v4554 = vmax.f32 %v4490, 0.0
    %v4555 = vmax.f32 %v4491, 0.0
    %v4556 = vmax.f32 %v4492, 0.0
    %v4557 = vmax.f32 %v4493, 0.0
    %v4558 = vmax.f32 %v4494, 0.0
    %v4559 = vmax.f32 %v4495, 0.0
    %v4560 = vmax.f32 %v4496, 0.0
    %v4561 = vmax.f32 %v4497, 0.0
    %v4562 = vmax.f32 %v4498, 0.0
    %v4563 = vmax.f32 %v4499, 0.0
    %v4564 = vmax.f32 %v4500, 0.0
    %v4565 = vmax.f32 %v4501, 0.0
    %v4566 = vmax.f32 %v4502, 0.0
    %v4567 = vmax.f32 %v4503, 0.0
    %v4568 = vmax.f32 %v4504, 0.0
    %v4569 = vmax.f32 %v4505, 0.0
    %v4570 = vmax.f32 %v4506, 0.0
    %v4571 = vmax.f32 %v4507, 0.0
    %v4572 = vmax.f32 %v4508, 0.0
    %v4573 = vmax.f32 %v4509, 0.0
    %v4574 = vmax.f32 %v4510, 0.0
    %v4575 = vmax.f32 %v4511, 0.0
    %v4576 = vmax.f32 %v4512, 0.0
    %v4577 = vmax.f32 %v4513, 0.0
    %v4578 = vmax.f32 %v4514, 0.0
    %v4579 = vmax.f32 %v4515, 0.0
    %v4580 = vmax.f32 %v4516, 0.0
    %v4581 = vmax.f32 %v4517, 0.0
    %v4582 = vmax.f32 %v4518, 0.0
    %v4583 = vmax.f32 %v4519, 0.0
    %v4584 = vmax.f32 %v4520, 0.0
    %v4585 = vmax.f32 %v4521, 0.0
    %v4586 = vmax.f32 %v4522, 0.0
    %v4587 = vmax.f32 %v4523, %v4525
    %v4588 = vmax.f32 %v4524, %v4526
    %v4589 = vmax.f32 %v4527, %v4529
    %v4590 = vmax.f32 %v4528, %v4530
    %v4591 = vmax.f32 %v4531, %v4533
    %v4592 = vmax.f32 %v4532, %v4534
    %v4593 = vmax.f32 %v4535, %v4537
    %v4594 = vmax.f32 %v4536, %v4538
    %v4595 = vmax.f32 %v4539, %v4541
    %v4596 = vmax.f32 %v4540, %v4542
    %v4597 = vmax.f32 %v4543, %v4545
    %v4598 = vmax.f32 %v4544, %v4546
    %v4599 = vmax.f32 %v4547, %v4549
    %v4600 = vmax.f32 %v4548, %v4550
    %v4601 = vmax.f32 %v4551, %v4553
    %v4602 = vmax.f32 %v4552, %v4554
    %v4603 = vmax.f32 %v4555, %v4557
    %v4604 = vmax.f32 %v4556, %v4558
    %v4605 = vmax.f32 %v4559, %v4561
    %v4606 = vmax.f32 %v4560, %v4562
    %v4607 = vmax.f32 %v4563, %v4565
    %v4608 = vmax.f32 %v4564, %v4566
    %v4609 = vmax.f32 %v4567, %v4569
    %v4610 = vmax.f32 %v4568, %v4570
    %v4611 = vmax.f32 %v4571, %v4573
    %v4612 = vmax.f32 %v4572, %v4574
    %v4613 = vmax.f32 %v4575, %v4577
    %v4614 = vmax.f32 %v4576, %v4578
    %v4615 = vmax.f32 %v4579, %v4581
    %v4616 = vmax.f32 %v4580, %v4582
    %v4617 = vmax.f32 %v4583, %v4585
    %v4618 = vmax.f32 %v4584, %v4586
    %4619 = vst.msk [vmem:[#allocation4] sm:$0xff] %vm3980, %v4587
    %4620 = vst.msk [vmem:[#allocation4 + $0x8] sm:$0xff] %vm3980, %v4588
    %4621 = vst.msk [vmem:[#allocation4 + $0x10] sm:$0xff] %vm3980, %v4589
    %4622 = vst.msk [vmem:[#allocation4 + $0x18] sm:$0xff] %vm3980, %v4590
    %4623 = vst.msk [vmem:[#allocation4 + $0x20] sm:$0xff] %vm3980, %v4591
    %4624 = vst.msk [vmem:[#allocation4 + $0x28] sm:$0xff] %vm3980, %v4592
    %4625 = vst.msk [vmem:[#allocation4 + $0x30] sm:$0xff] %vm3980, %v4593
    %4626 = vst.msk [vmem:[#allocation4 + $0x38] sm:$0xff] %vm3980, %v4594
    %4627 = vst.msk [vmem:[#allocation4 + $0x40] sm:$0xff] %vm3980, %v4595
    %4628 = vst.msk [vmem:[#allocation4 + $0x48] sm:$0xff] %vm3980, %v4596
    %4629 = vst.msk [vmem:[#allocation4 + $0x50] sm:$0xff] %vm3980, %v4597
    %4630 = vst.msk [vmem:[#allocation4 + $0x58] sm:$0xff] %vm3980, %v4598
    %4631 = vst.msk [vmem:[#allocation4 + $0x60] sm:$0xff] %vm3980, %v4599
    %4632 = vst.msk [vmem:[#allocation4 + $0x68] sm:$0xff] %vm3980, %v4600
    %4633 = vst.msk [vmem:[#allocation4 + $0x70] sm:$0xff] %vm3980, %v4601
    %4634 = vst.msk [vmem:[#allocation4 + $0x78] sm:$0xff] %vm3980, %v4602
    %4635 = vst.msk [vmem:[#allocation4 + $0x80] sm:$0xff] %vm3980, %v4603
    %4636 = vst.msk [vmem:[#allocation4 + $0x88] sm:$0xff] %vm3980, %v4604
    %4637 = vst.msk [vmem:[#allocation4 + $0x90] sm:$0xff] %vm3980, %v4605
    %4638 = vst.msk [vmem:[#allocation4 + $0x98] sm:$0xff] %vm3980, %v4606
    %4639 = vst.msk [vmem:[#allocation4 + $0xa0] sm:$0xff] %vm3980, %v4607
    %4640 = vst.msk [vmem:[#allocation4 + $0xa8] sm:$0xff] %vm3980, %v4608
    %4641 = vst.msk [vmem:[#allocation4 + $0xb0] sm:$0xff] %vm3980, %v4609
    %4642 = vst.msk [vmem:[#allocation4 + $0xb8] sm:$0xff] %vm3980, %v4610
    %4643 = vst.msk [vmem:[#allocation4 + $0xc0] sm:$0xff] %vm3980, %v4611
    %4644 = vst.msk [vmem:[#allocation4 + $0xc8] sm:$0xff] %vm3980, %v4612
    %4645 = vst.msk [vmem:[#allocation4 + $0xd0] sm:$0xff] %vm3980, %v4613
    %4646 = vst.msk [vmem:[#allocation4 + $0xd8] sm:$0xff] %vm3980, %v4614
    %4647 = vst.msk [vmem:[#allocation4 + $0xe0] sm:$0xff] %vm3980, %v4615
    %4648 = vst.msk [vmem:[#allocation4 + $0xe8] sm:$0xff] %vm3980, %v4616
    %4649 = vst.msk [vmem:[#allocation4 + $0xf0] sm:$0xff] %vm3980, %v4617
    %4650 = vst.msk [vmem:[#allocation4 + $0xf8] sm:$0xff] %vm3980, %v4618
    %4651 = vst.msk [vmem:[#allocation5] sm:$0xff] %vm3980, 0.0
    %vm4652 = vcmask 123904
    %4653 = vst.msk [vmem:[#allocation5 + $0x8] sm:$0x3] %vm4652, 0.0
    %4654 = vst.msk [vmem:[#allocation5 + $0x10] sm:$0xff] %vm3980, 0.0
    %4655 = vst.msk [vmem:[#allocation5 + $0x18] sm:$0x3] %vm4652, 0.0
    %4656 = vst.msk [vmem:[#allocation5 + $0x20] sm:$0xff] %vm3980, 0.0
    %4657 = vst.msk [vmem:[#allocation5 + $0x28] sm:$0x3] %vm4652, 0.0
    %4658 = vst.msk [vmem:[#allocation5 + $0x30] sm:$0xff] %vm3980, 0.0
    %4659 = vst.msk [vmem:[#allocation5 + $0x38] sm:$0x3] %vm4652, 0.0
    %4660 = vst.msk [vmem:[#allocation5 + $0x40] sm:$0xff] %vm3980, 0.0
    %4661 = vst.msk [vmem:[#allocation5 + $0x48] sm:$0x3] %vm4652, 0.0
    %4662 = vst.msk [vmem:[#allocation5 + $0x50] sm:$0xff] %vm3980, 0.0
    %4663 = vst.msk [vmem:[#allocation5 + $0x58] sm:$0x3] %vm4652, 0.0
    %4664 = vst.msk [vmem:[#allocation5 + $0x60] sm:$0xff] %vm3980, 0.0
    %4665 = vst.msk [vmem:[#allocation5 + $0x68] sm:$0x3] %vm4652, 0.0
    %4666 = vst.msk [vmem:[#allocation5 + $0x70] sm:$0xff] %vm3980, 0.0
    %4667 = vst.msk [vmem:[#allocation5 + $0x78] sm:$0x3] %vm4652, 0.0
    %4668 = vst.msk [vmem:[#allocation5 + $0x80] sm:$0xff] %vm3980, 0.0
    %4669 = vst.msk [vmem:[#allocation5 + $0x88] sm:$0x3] %vm4652, 0.0
    %4670 = vst.msk [vmem:[#allocation5 + $0x90] sm:$0xff] %vm3980, 0.0
    %4671 = vst.msk [vmem:[#allocation5 + $0x98] sm:$0x3] %vm4652, 0.0
    %4672 = vst.msk [vmem:[#allocation5 + $0xa0] sm:$0xff] %vm3980, 0.0
    %4673 = vst.msk [vmem:[#allocation5 + $0xa8] sm:$0x3] %vm4652, 0.0
    %4674 = vst.msk [vmem:[#allocation5 + $0xb0] sm:$0xff] %vm3980, 0.0
    %4675 = vst.msk [vmem:[#allocation5 + $0xb8] sm:$0x3] %vm4652, 0.0
    %4676 = vst.msk [vmem:[#allocation5 + $0xc0] sm:$0xff] %vm3980, 0.0
    %4677 = vst.msk [vmem:[#allocation5 + $0xc8] sm:$0x3] %vm4652, 0.0
    %4678 = vst.msk [vmem:[#allocation5 + $0xd0] sm:$0xff] %vm3980, 0.0
    %4679 = vst.msk [vmem:[#allocation5 + $0xd8] sm:$0x3] %vm4652, 0.0
    %4680 = vst.msk [vmem:[#allocation5 + $0xe0] sm:$0xff] %vm3980, 0.0
    %4681 = vst.msk [vmem:[#allocation5 + $0xe8] sm:$0x3] %vm4652, 0.0
    %4682 = vst.msk [vmem:[#allocation5 + $0xf0] sm:$0xff] %vm3980, 0.0
    %4683 = vst.msk [vmem:[#allocation5 + $0xf8] sm:$0x3] %vm4652, 0.0
    %4684 = vst.msk [vmem:[#allocation5 + $0x100] sm:$0xff] %vm3980, 0.0
    %4685 = vst.msk [vmem:[#allocation5 + $0x108] sm:$0x3] %vm4652, 0.0
    %4686 = vst.msk [vmem:[#allocation5 + $0x110] sm:$0xff] %vm3980, 0.0
    %4687 = vst.msk [vmem:[#allocation5 + $0x118] sm:$0x3] %vm4652, 0.0
    %4688 = vst.msk [vmem:[#allocation5 + $0x120] sm:$0xff] %vm3980, 0.0
    %4689 = vst.msk [vmem:[#allocation5 + $0x128] sm:$0x3] %vm4652, 0.0
    %4690 = vst.msk [vmem:[#allocation5 + $0x130] sm:$0xff] %vm3980, 0.0
    %4691 = vst.msk [vmem:[#allocation5 + $0x138] sm:$0x3] %vm4652, 0.0
    %v4692 = vld [vmem:[#allocation4] sm:$0x1]
    %v4693 = vld [vmem:[#allocation4 + $0x10] sm:$0x1]
    %v4694 = vld [vmem:[#allocation4 + $0x20] sm:$0x1]
    %v4695 = vld [vmem:[#allocation4 + $0x30] sm:$0x1]
    %v4696 = vld [vmem:[#allocation4 + $0x40] sm:$0x1]
    %v4697 = vld [vmem:[#allocation4 + $0x50] sm:$0x1]
    %v4698 = vld [vmem:[#allocation4 + $0x60] sm:$0x1]
    %v4699 = vld [vmem:[#allocation4 + $0x70] sm:$0x1]
    %v4700 = vld [vmem:[#allocation4 + $0x80] sm:$0x1]
    %v4701 = vld [vmem:[#allocation4 + $0x90] sm:$0x1]
    %v4702 = vld [vmem:[#allocation4 + $0xa0] sm:$0x1]
    %v4703 = vld [vmem:[#allocation4 + $0xb0] sm:$0x1]
    %v4704 = vld [vmem:[#allocation4 + $0xc0] sm:$0x1]
    %v4705 = vld [vmem:[#allocation4 + $0xd0] sm:$0x1]
    %v4706 = vld [vmem:[#allocation4 + $0xe0] sm:$0x1]
    %v4707 = vld [vmem:[#allocation4 + $0xf0] sm:$0x1]
    %v4708 = vld [vmem:[#allocation4 + $0x1] sm:$0x1]
    %v4709 = vld [vmem:[#allocation4 + $0x11] sm:$0x1]
    %v4710 = vld [vmem:[#allocation4 + $0x21] sm:$0x1]
    %v4711 = vld [vmem:[#allocation4 + $0x31] sm:$0x1]
    %v4712 = vld [vmem:[#allocation4 + $0x41] sm:$0x1]
    %v4713 = vld [vmem:[#allocation4 + $0x51] sm:$0x1]
    %v4714 = vld [vmem:[#allocation4 + $0x61] sm:$0x1]
    %v4715 = vld [vmem:[#allocation4 + $0x71] sm:$0x1]
    %v4716 = vld [vmem:[#allocation4 + $0x81] sm:$0x1]
    %v4717 = vld [vmem:[#allocation4 + $0x91] sm:$0x1]
    %v4718 = vld [vmem:[#allocation4 + $0xa1] sm:$0x1]
    %v4719 = vld [vmem:[#allocation4 + $0xb1] sm:$0x1]
    %v4720 = vld [vmem:[#allocation4 + $0xc1] sm:$0x1]
    %v4721 = vld [vmem:[#allocation4 + $0xd1] sm:$0x1]
    %v4722 = vld [vmem:[#allocation4 + $0xe1] sm:$0x1]
    %v4723 = vld [vmem:[#allocation4 + $0xf1] sm:$0x1]
    %v4724 = vmax.f32 %v4692, %v4708
    %v4725 = vmax.f32 %v4693, %v4709
    %v4726 = vmax.f32 %v4694, %v4710
    %v4727 = vmax.f32 %v4695, %v4711
    %v4728 = vmax.f32 %v4696, %v4712
    %v4729 = vmax.f32 %v4697, %v4713
    %v4730 = vmax.f32 %v4698, %v4714
    %v4731 = vmax.f32 %v4699, %v4715
    %v4732 = vmax.f32 %v4700, %v4716
    %v4733 = vmax.f32 %v4701, %v4717
    %v4734 = vmax.f32 %v4702, %v4718
    %v4735 = vmax.f32 %v4703, %v4719
    %v4736 = vmax.f32 %v4704, %v4720
    %v4737 = vmax.f32 %v4705, %v4721
    %v4738 = vmax.f32 %v4706, %v4722
    %v4739 = vmax.f32 %v4707, %v4723
    %v4756 = vrot.slane %v4725, 7
    %vm4757 = vcmask 1041409
    %v4758 = vsel %vm4757, %v4756, %v4724
    %v4759 = vrot.slane %v4726, 6
    %vm4760 = vcmask 1042434
    %v4761 = vsel %vm4760, %v4759, %v4758
    %v4762 = vrot.slane %v4727, 5
    %vm4763 = vcmask 1043459
    %v4764 = vsel %vm4763, %v4762, %v4761
    %v4765 = vrot.slane %v4728, 4
    %vm4766 = vcmask 1044484
    %v4767 = vsel %vm4766, %v4765, %v4764
    %v4768 = vrot.slane %v4729, 3
    %vm4769 = vcmask 1045509
    %v4770 = vsel %vm4769, %v4768, %v4767
    %v4771 = vrot.slane %v4730, 2
    %vm4772 = vcmask 1046534
    %v4773 = vsel %vm4772, %v4771, %v4770
    %v4774 = vrot.slane %v4731, 1
    %vm4775 = vcmask 1047559
    %v4776 = vsel %vm4775, %v4774, %v4773
    %v4777 = vrot.slane %v4733, 7
    %v4778 = vsel %vm4757, %v4777, %v4732
    %v4779 = vrot.slane %v4734, 6
    %v4780 = vsel %vm4760, %v4779, %v4778
    %v4781 = vrot.slane %v4735, 5
    %v4782 = vsel %vm4763, %v4781, %v4780
    %v4783 = vrot.slane %v4736, 4
    %v4784 = vsel %vm4766, %v4783, %v4782
    %v4785 = vrot.slane %v4737, 3
    %v4786 = vsel %vm4769, %v4785, %v4784
    %v4787 = vrot.slane %v4738, 2
    %v4788 = vsel %vm4772, %v4787, %v4786
    %v4789 = vrot.slane %v4739, 1
    %v4790 = vsel %vm4775, %v4789, %v4788
    %s4793 = scalar_lea.vmem [#allocation5], 16
    %4794 = vst.msk [vmem:[%s4793 + $0x1] sm:$0xff] %vm3980, %v4776
    %4795 = vst.msk [vmem:[%s4793 + $0xa1] sm:$0xff] %vm3980, %v4790
    %v4796 = vld [vmem:[#allocation4 + $0x2] sm:$0x1]
    %v4797 = vld [vmem:[#allocation4 + $0x12] sm:$0x1]
    %v4798 = vld [vmem:[#allocation4 + $0x22] sm:$0x1]
    %v4799 = vld [vmem:[#allocation4 + $0x32] sm:$0x1]
    %v4800 = vld [vmem:[#allocation4 + $0x42] sm:$0x1]
    %v4801 = vld [vmem:[#allocation4 + $0x52] sm:$0x1]
    %v4802 = vld [vmem:[#allocation4 + $0x62] sm:$0x1]
    %v4803 = vld [vmem:[#allocation4 + $0x72] sm:$0x1]
    %v4804 = vld [vmem:[#allocation4 + $0x82] sm:$0x1]
    %v4805 = vld [vmem:[#allocation4 + $0x92] sm:$0x1]
    %v4806 = vld [vmem:[#allocation4 + $0xa2] sm:$0x1]
    %v4807 = vld [vmem:[#allocation4 + $0xb2] sm:$0x1]
    %v4808 = vld [vmem:[#allocation4 + $0xc2] sm:$0x1]
    %v4809 = vld [vmem:[#allocation4 + $0xd2] sm:$0x1]
    %v4810 = vld [vmem:[#allocation4 + $0xe2] sm:$0x1]
    %v4811 = vld [vmem:[#allocation4 + $0xf2] sm:$0x1]
    %v4812 = vld [vmem:[#allocation4 + $0x3] sm:$0x1]
    %v4813 = vld [vmem:[#allocation4 + $0x13] sm:$0x1]
    %v4814 = vld [vmem:[#allocation4 + $0x23] sm:$0x1]
    %v4815 = vld [vmem:[#allocation4 + $0x33] sm:$0x1]
    %v4816 = vld [vmem:[#allocation4 + $0x43] sm:$0x1]
    %v4817 = vld [vmem:[#allocation4 + $0x53] sm:$0x1]
    %v4818 = vld [vmem:[#allocation4 + $0x63] sm:$0x1]
    %v4819 = vld [vmem:[#allocation4 + $0x73] sm:$0x1]
    %v4820 = vld [vmem:[#allocation4 + $0x83] sm:$0x1]
    %v4821 = vld [vmem:[#allocation4 + $0x93] sm:$0x1]
    %v4822 = vld [vmem:[#allocation4 + $0xa3] sm:$0x1]
    %v4823 = vld [vmem:[#allocation4 + $0xb3] sm:$0x1]
    %v4824 = vld [vmem:[#allocation4 + $0xc3] sm:$0x1]
    %v4825 = vld [vmem:[#allocation4 + $0xd3] sm:$0x1]
    %v4826 = vld [vmem:[#allocation4 + $0xe3] sm:$0x1]
    %v4827 = vld [vmem:[#allocation4 + $0xf3] sm:$0x1]
    %v4828 = vmax.f32 %v4796, %v4812
    %v4829 = vmax.f32 %v4797, %v4813
    %v4830 = vmax.f32 %v4798, %v4814
    %v4831 = vmax.f32 %v4799, %v4815
    %v4832 = vmax.f32 %v4800, %v4816
    %v4833 = vmax.f32 %v4801, %v4817
    %v4834 = vmax.f32 %v4802, %v4818
    %v4835 = vmax.f32 %v4803, %v4819
    %v4836 = vmax.f32 %v4804, %v4820
    %v4837 = vmax.f32 %v4805, %v4821
    %v4838 = vmax.f32 %v4806, %v4822
    %v4839 = vmax.f32 %v4807, %v4823
    %v4840 = vmax.f32 %v4808, %v4824
    %v4841 = vmax.f32 %v4809, %v4825
    %v4842 = vmax.f32 %v4810, %v4826
    %v4843 = vmax.f32 %v4811, %v4827
    %v4860 = vrot.slane %v4829, 7
    %v4861 = vsel %vm4757, %v4860, %v4828
    %v4862 = vrot.slane %v4830, 6
    %v4863 = vsel %vm4760, %v4862, %v4861
    %v4864 = vrot.slane %v4831, 5
    %v4865 = vsel %vm4763, %v4864, %v4863
    %v4866 = vrot.slane %v4832, 4
    %v4867 = vsel %vm4766, %v4866, %v4865
    %v4868 = vrot.slane %v4833, 3
    %v4869 = vsel %vm4769, %v4868, %v4867
    %v4870 = vrot.slane %v4834, 2
    %v4871 = vsel %vm4772, %v4870, %v4869
    %v4872 = vrot.slane %v4835, 1
    %v4873 = vsel %vm4775, %v4872, %v4871
    %v4874 = vrot.slane %v4837, 7
    %v4875 = vsel %vm4757, %v4874, %v4836
    %v4876 = vrot.slane %v4838, 6
    %v4877 = vsel %vm4760, %v4876, %v4875
    %v4878 = vrot.slane %v4839, 5
    %v4879 = vsel %vm4763, %v4878, %v4877
    %v4880 = vrot.slane %v4840, 4
    %v4881 = vsel %vm4766, %v4880, %v4879
    %v4882 = vrot.slane %v4841, 3
    %v4883 = vsel %vm4769, %v4882, %v4881
    %v4884 = vrot.slane %v4842, 2
    %v4885 = vsel %vm4772, %v4884, %v4883
    %v4886 = vrot.slane %v4843, 1
    %v4887 = vsel %vm4775, %v4886, %v4885
    %s4890 = scalar_lea.vmem [#allocation5], 32
    %4891 = vst.msk [vmem:[%s4890 + $0x1] sm:$0xff] %vm3980, %v4873
    %4892 = vst.msk [vmem:[%s4890 + $0xa1] sm:$0xff] %vm3980, %v4887
    %v4893 = vld [vmem:[#allocation4 + $0x4] sm:$0x1]
    %v4894 = vld [vmem:[#allocation4 + $0x14] sm:$0x1]
    %v4895 = vld [vmem:[#allocation4 + $0x24] sm:$0x1]
    %v4896 = vld [vmem:[#allocation4 + $0x34] sm:$0x1]
    %v4897 = vld [vmem:[#allocation4 + $0x44] sm:$0x1]
    %v4898 = vld [vmem:[#allocation4 + $0x54] sm:$0x1]
    %v4899 = vld [vmem:[#allocation4 + $0x64] sm:$0x1]
    %v4900 = vld [vmem:[#allocation4 + $0x74] sm:$0x1]
    %v4901 = vld [vmem:[#allocation4 + $0x84] sm:$0x1]
    %v4902 = vld [vmem:[#allocation4 + $0x94] sm:$0x1]
    %v4903 = vld [vmem:[#allocation4 + $0xa4] sm:$0x1]
    %v4904 = vld [vmem:[#allocation4 + $0xb4] sm:$0x1]
    %v4905 = vld [vmem:[#allocation4 + $0xc4] sm:$0x1]
    %v4906 = vld [vmem:[#allocation4 + $0xd4] sm:$0x1]
    %v4907 = vld [vmem:[#allocation4 + $0xe4] sm:$0x1]
    %v4908 = vld [vmem:[#allocation4 + $0xf4] sm:$0x1]
    %v4909 = vld [vmem:[#allocation4 + $0x5] sm:$0x1]
    %v4910 = vld [vmem:[#allocation4 + $0x15] sm:$0x1]
    %v4911 = vld [vmem:[#allocation4 + $0x25] sm:$0x1]
    %v4912 = vld [vmem:[#allocation4 + $0x35] sm:$0x1]
    %v4913 = vld [vmem:[#allocation4 + $0x45] sm:$0x1]
    %v4914 = vld [vmem:[#allocation4 + $0x55] sm:$0x1]
    %v4915 = vld [vmem:[#allocation4 + $0x65] sm:$0x1]
    %v4916 = vld [vmem:[#allocation4 + $0x75] sm:$0x1]
    %v4917 = vld [vmem:[#allocation4 + $0x85] sm:$0x1]
    %v4918 = vld [vmem:[#allocation4 + $0x95] sm:$0x1]
    %v4919 = vld [vmem:[#allocation4 + $0xa5] sm:$0x1]
    %v4920 = vld [vmem:[#allocation4 + $0xb5] sm:$0x1]
    %v4921 = vld [vmem:[#allocation4 + $0xc5] sm:$0x1]
    %v4922 = vld [vmem:[#allocation4 + $0xd5] sm:$0x1]
    %v4923 = vld [vmem:[#allocation4 + $0xe5] sm:$0x1]
    %v4924 = vld [vmem:[#allocation4 + $0xf5] sm:$0x1]
    %v4925 = vmax.f32 %v4893, %v4909
    %v4926 = vmax.f32 %v4894, %v4910
    %v4927 = vmax.f32 %v4895, %v4911
    %v4928 = vmax.f32 %v4896, %v4912
    %v4929 = vmax.f32 %v4897, %v4913
    %v4930 = vmax.f32 %v4898, %v4914
    %v4931 = vmax.f32 %v4899, %v4915
    %v4932 = vmax.f32 %v4900, %v4916
    %v4933 = vmax.f32 %v4901, %v4917
    %v4934 = vmax.f32 %v4902, %v4918
    %v4935 = vmax.f32 %v4903, %v4919
    %v4936 = vmax.f32 %v4904, %v4920
    %v4937 = vmax.f32 %v4905, %v4921
    %v4938 = vmax.f32 %v4906, %v4922
    %v4939 = vmax.f32 %v4907, %v4923
    %v4940 = vmax.f32 %v4908, %v4924
    %v4957 = vrot.slane %v4926, 7
    %v4958 = vsel %vm4757, %v4957, %v4925
    %v4959 = vrot.slane %v4927, 6
    %v4960 = vsel %vm4760, %v4959, %v4958
    %v4961 = vrot.slane %v4928, 5
    %v4962 = vsel %vm4763, %v4961, %v4960
    %v4963 = vrot.slane %v4929, 4
    %v4964 = vsel %vm4766, %v4963, %v4962
    %v4965 = vrot.slane %v4930, 3
    %v4966 = vsel %vm4769, %v4965, %v4964
    %v4967 = vrot.slane %v4931, 2
    %v4968 = vsel %vm4772, %v4967, %v4966
    %v4969 = vrot.slane %v4932, 1
    %v4970 = vsel %vm4775, %v4969, %v4968
    %v4971 = vrot.slane %v4934, 7
    %v4972 = vsel %vm4757, %v4971, %v4933
    %v4973 = vrot.slane %v4935, 6
    %v4974 = vsel %vm4760, %v4973, %v4972
    %v4975 = vrot.slane %v4936, 5
    %v4976 = vsel %vm4763, %v4975, %v4974
    %v4977 = vrot.slane %v4937, 4
    %v4978 = vsel %vm4766, %v4977, %v4976
    %v4979 = vrot.slane %v4938, 3
    %v4980 = vsel %vm4769, %v4979, %v4978
    %v4981 = vrot.slane %v4939, 2
    %v4982 = vsel %vm4772, %v4981, %v4980
    %v4983 = vrot.slane %v4940, 1
    %v4984 = vsel %vm4775, %v4983, %v4982
    %s4987 = scalar_lea.vmem [#allocation5], 48
    %4988 = vst.msk [vmem:[%s4987 + $0x1] sm:$0xff] %vm3980, %v4970
    %4989 = vst.msk [vmem:[%s4987 + $0xa1] sm:$0xff] %vm3980, %v4984
    %v4990 = vld [vmem:[#allocation4 + $0x6] sm:$0x1]
    %v4991 = vld [vmem:[#allocation4 + $0x16] sm:$0x1]
    %v4992 = vld [vmem:[#allocation4 + $0x26] sm:$0x1]
    %v4993 = vld [vmem:[#allocation4 + $0x36] sm:$0x1]
    %v4994 = vld [vmem:[#allocation4 + $0x46] sm:$0x1]
    %v4995 = vld [vmem:[#allocation4 + $0x56] sm:$0x1]
    %v4996 = vld [vmem:[#allocation4 + $0x66] sm:$0x1]
    %v4997 = vld [vmem:[#allocation4 + $0x76] sm:$0x1]
    %v4998 = vld [vmem:[#allocation4 + $0x86] sm:$0x1]
    %v4999 = vld [vmem:[#allocation4 + $0x96] sm:$0x1]
    %v5000 = vld [vmem:[#allocation4 + $0xa6] sm:$0x1]
    %v5001 = vld [vmem:[#allocation4 + $0xb6] sm:$0x1]
    %v5002 = vld [vmem:[#allocation4 + $0xc6] sm:$0x1]
    %v5003 = vld [vmem:[#allocation4 + $0xd6] sm:$0x1]
    %v5004 = vld [vmem:[#allocation4 + $0xe6] sm:$0x1]
    %v5005 = vld [vmem:[#allocation4 + $0xf6] sm:$0x1]
    %v5006 = vld [vmem:[#allocation4 + $0x7] sm:$0x1]
    %v5007 = vld [vmem:[#allocation4 + $0x17] sm:$0x1]
    %v5008 = vld [vmem:[#allocation4 + $0x27] sm:$0x1]
    %v5009 = vld [vmem:[#allocation4 + $0x37] sm:$0x1]
    %v5010 = vld [vmem:[#allocation4 + $0x47] sm:$0x1]
    %v5011 = vld [vmem:[#allocation4 + $0x57] sm:$0x1]
    %v5012 = vld [vmem:[#allocation4 + $0x67] sm:$0x1]
    %v5013 = vld [vmem:[#allocation4 + $0x77] sm:$0x1]
    %v5014 = vld [vmem:[#allocation4 + $0x87] sm:$0x1]
    %v5015 = vld [vmem:[#allocation4 + $0x97] sm:$0x1]
    %v5016 = vld [vmem:[#allocation4 + $0xa7] sm:$0x1]
    %v5017 = vld [vmem:[#allocation4 + $0xb7] sm:$0x1]
    %v5018 = vld [vmem:[#allocation4 + $0xc7] sm:$0x1]
    %v5019 = vld [vmem:[#allocation4 + $0xd7] sm:$0x1]
    %v5020 = vld [vmem:[#allocation4 + $0xe7] sm:$0x1]
    %v5021 = vld [vmem:[#allocation4 + $0xf7] sm:$0x1]
    %v5022 = vmax.f32 %v4990, %v5006
    %v5023 = vmax.f32 %v4991, %v5007
    %v5024 = vmax.f32 %v4992, %v5008
    %v5025 = vmax.f32 %v4993, %v5009
    %v5026 = vmax.f32 %v4994, %v5010
    %v5027 = vmax.f32 %v4995, %v5011
    %v5028 = vmax.f32 %v4996, %v5012
    %v5029 = vmax.f32 %v4997, %v5013
    %v5030 = vmax.f32 %v4998, %v5014
    %v5031 = vmax.f32 %v4999, %v5015
    %v5032 = vmax.f32 %v5000, %v5016
    %v5033 = vmax.f32 %v5001, %v5017
    %v5034 = vmax.f32 %v5002, %v5018
    %v5035 = vmax.f32 %v5003, %v5019
    %v5036 = vmax.f32 %v5004, %v5020
    %v5037 = vmax.f32 %v5005, %v5021
    %v5054 = vrot.slane %v5023, 7
    %v5055 = vsel %vm4757, %v5054, %v5022
    %v5056 = vrot.slane %v5024, 6
    %v5057 = vsel %vm4760, %v5056, %v5055
    %v5058 = vrot.slane %v5025, 5
    %v5059 = vsel %vm4763, %v5058, %v5057
    %v5060 = vrot.slane %v5026, 4
    %v5061 = vsel %vm4766, %v5060, %v5059
    %v5062 = vrot.slane %v5027, 3
    %v5063 = vsel %vm4769, %v5062, %v5061
    %v5064 = vrot.slane %v5028, 2
    %v5065 = vsel %vm4772, %v5064, %v5063
    %v5066 = vrot.slane %v5029, 1
    %v5067 = vsel %vm4775, %v5066, %v5065
    %v5068 = vrot.slane %v5031, 7
    %v5069 = vsel %vm4757, %v5068, %v5030
    %v5070 = vrot.slane %v5032, 6
    %v5071 = vsel %vm4760, %v5070, %v5069
    %v5072 = vrot.slane %v5033, 5
    %v5073 = vsel %vm4763, %v5072, %v5071
    %v5074 = vrot.slane %v5034, 4
    %v5075 = vsel %vm4766, %v5074, %v5073
    %v5076 = vrot.slane %v5035, 3
    %v5077 = vsel %vm4769, %v5076, %v5075
    %v5078 = vrot.slane %v5036, 2
    %v5079 = vsel %vm4772, %v5078, %v5077
    %v5080 = vrot.slane %v5037, 1
    %v5081 = vsel %vm4775, %v5080, %v5079
    %s5084 = scalar_lea.vmem [#allocation5], 64
    %5085 = vst.msk [vmem:[%s5084 + $0x1] sm:$0xff] %vm3980, %v5067
    %5086 = vst.msk [vmem:[%s5084 + $0xa1] sm:$0xff] %vm3980, %v5081
    %v5087 = vld [vmem:[#allocation4 + $0x8] sm:$0x1]
    %v5088 = vld [vmem:[#allocation4 + $0x18] sm:$0x1]
    %v5089 = vld [vmem:[#allocation4 + $0x28] sm:$0x1]
    %v5090 = vld [vmem:[#allocation4 + $0x38] sm:$0x1]
    %v5091 = vld [vmem:[#allocation4 + $0x48] sm:$0x1]
    %v5092 = vld [vmem:[#allocation4 + $0x58] sm:$0x1]
    %v5093 = vld [vmem:[#allocation4 + $0x68] sm:$0x1]
    %v5094 = vld [vmem:[#allocation4 + $0x78] sm:$0x1]
    %v5095 = vld [vmem:[#allocation4 + $0x88] sm:$0x1]
    %v5096 = vld [vmem:[#allocation4 + $0x98] sm:$0x1]
    %v5097 = vld [vmem:[#allocation4 + $0xa8] sm:$0x1]
    %v5098 = vld [vmem:[#allocation4 + $0xb8] sm:$0x1]
    %v5099 = vld [vmem:[#allocation4 + $0xc8] sm:$0x1]
    %v5100 = vld [vmem:[#allocation4 + $0xd8] sm:$0x1]
    %v5101 = vld [vmem:[#allocation4 + $0xe8] sm:$0x1]
    %v5102 = vld [vmem:[#allocation4 + $0xf8] sm:$0x1]
    %v5103 = vld [vmem:[#allocation4 + $0x9] sm:$0x1]
    %v5104 = vld [vmem:[#allocation4 + $0x19] sm:$0x1]
    %v5105 = vld [vmem:[#allocation4 + $0x29] sm:$0x1]
    %v5106 = vld [vmem:[#allocation4 + $0x39] sm:$0x1]
    %v5107 = vld [vmem:[#allocation4 + $0x49] sm:$0x1]
    %v5108 = vld [vmem:[#allocation4 + $0x59] sm:$0x1]
    %v5109 = vld [vmem:[#allocation4 + $0x69] sm:$0x1]
    %v5110 = vld [vmem:[#allocation4 + $0x79] sm:$0x1]
    %v5111 = vld [vmem:[#allocation4 + $0x89] sm:$0x1]
    %v5112 = vld [vmem:[#allocation4 + $0x99] sm:$0x1]
    %v5113 = vld [vmem:[#allocation4 + $0xa9] sm:$0x1]
    %v5114 = vld [vmem:[#allocation4 + $0xb9] sm:$0x1]
    %v5115 = vld [vmem:[#allocation4 + $0xc9] sm:$0x1]
    %v5116 = vld [vmem:[#allocation4 + $0xd9] sm:$0x1]
    %v5117 = vld [vmem:[#allocation4 + $0xe9] sm:$0x1]
    %v5118 = vld [vmem:[#allocation4 + $0xf9] sm:$0x1]
    %v5119 = vmax.f32 %v5087, %v5103
    %v5120 = vmax.f32 %v5088, %v5104
    %v5121 = vmax.f32 %v5089, %v5105
    %v5122 = vmax.f32 %v5090, %v5106
    %v5123 = vmax.f32 %v5091, %v5107
    %v5124 = vmax.f32 %v5092, %v5108
    %v5125 = vmax.f32 %v5093, %v5109
    %v5126 = vmax.f32 %v5094, %v5110
    %v5127 = vmax.f32 %v5095, %v5111
    %v5128 = vmax.f32 %v5096, %v5112
    %v5129 = vmax.f32 %v5097, %v5113
    %v5130 = vmax.f32 %v5098, %v5114
    %v5131 = vmax.f32 %v5099, %v5115
    %v5132 = vmax.f32 %v5100, %v5116
    %v5133 = vmax.f32 %v5101, %v5117
    %v5134 = vmax.f32 %v5102, %v5118
    %v5151 = vrot.slane %v5120, 7
    %v5152 = vsel %vm4757, %v5151, %v5119
    %v5153 = vrot.slane %v5121, 6
    %v5154 = vsel %vm4760, %v5153, %v5152
    %v5155 = vrot.slane %v5122, 5
    %v5156 = vsel %vm4763, %v5155, %v5154
    %v5157 = vrot.slane %v5123, 4
    %v5158 = vsel %vm4766, %v5157, %v5156
    %v5159 = vrot.slane %v5124, 3
    %v5160 = vsel %vm4769, %v5159, %v5158
    %v5161 = vrot.slane %v5125, 2
    %v5162 = vsel %vm4772, %v5161, %v5160
    %v5163 = vrot.slane %v5126, 1
    %v5164 = vsel %vm4775, %v5163, %v5162
    %v5165 = vrot.slane %v5128, 7
    %v5166 = vsel %vm4757, %v5165, %v5127
    %v5167 = vrot.slane %v5129, 6
    %v5168 = vsel %vm4760, %v5167, %v5166
    %v5169 = vrot.slane %v5130, 5
    %v5170 = vsel %vm4763, %v5169, %v5168
    %v5171 = vrot.slane %v5131, 4
    %v5172 = vsel %vm4766, %v5171, %v5170
    %v5173 = vrot.slane %v5132, 3
    %v5174 = vsel %vm4769, %v5173, %v5172
    %v5175 = vrot.slane %v5133, 2
    %v5176 = vsel %vm4772, %v5175, %v5174
    %v5177 = vrot.slane %v5134, 1
    %v5178 = vsel %vm4775, %v5177, %v5176
    %s5181 = scalar_lea.vmem [#allocation5], 80
    %5182 = vst.msk [vmem:[%s5181 + $0x1] sm:$0xff] %vm3980, %v5164
    %5183 = vst.msk [vmem:[%s5181 + $0xa1] sm:$0xff] %vm3980, %v5178
    %v5184 = vld [vmem:[#allocation4 + $0xa] sm:$0x1]
    %v5185 = vld [vmem:[#allocation4 + $0x1a] sm:$0x1]
    %v5186 = vld [vmem:[#allocation4 + $0x2a] sm:$0x1]
    %v5187 = vld [vmem:[#allocation4 + $0x3a] sm:$0x1]
    %v5188 = vld [vmem:[#allocation4 + $0x4a] sm:$0x1]
    %v5189 = vld [vmem:[#allocation4 + $0x5a] sm:$0x1]
    %v5190 = vld [vmem:[#allocation4 + $0x6a] sm:$0x1]
    %v5191 = vld [vmem:[#allocation4 + $0x7a] sm:$0x1]
    %v5192 = vld [vmem:[#allocation4 + $0x8a] sm:$0x1]
    %v5193 = vld [vmem:[#allocation4 + $0x9a] sm:$0x1]
    %v5194 = vld [vmem:[#allocation4 + $0xaa] sm:$0x1]
    %v5195 = vld [vmem:[#allocation4 + $0xba] sm:$0x1]
    %v5196 = vld [vmem:[#allocation4 + $0xca] sm:$0x1]
    %v5197 = vld [vmem:[#allocation4 + $0xda] sm:$0x1]
    %v5198 = vld [vmem:[#allocation4 + $0xea] sm:$0x1]
    %v5199 = vld [vmem:[#allocation4 + $0xfa] sm:$0x1]
    %v5200 = vld [vmem:[#allocation4 + $0xb] sm:$0x1]
    %v5201 = vld [vmem:[#allocation4 + $0x1b] sm:$0x1]
    %v5202 = vld [vmem:[#allocation4 + $0x2b] sm:$0x1]
    %v5203 = vld [vmem:[#allocation4 + $0x3b] sm:$0x1]
    %v5204 = vld [vmem:[#allocation4 + $0x4b] sm:$0x1]
    %v5205 = vld [vmem:[#allocation4 + $0x5b] sm:$0x1]
    %v5206 = vld [vmem:[#allocation4 + $0x6b] sm:$0x1]
    %v5207 = vld [vmem:[#allocation4 + $0x7b] sm:$0x1]
    %v5208 = vld [vmem:[#allocation4 + $0x8b] sm:$0x1]
    %v5209 = vld [vmem:[#allocation4 + $0x9b] sm:$0x1]
    %v5210 = vld [vmem:[#allocation4 + $0xab] sm:$0x1]
    %v5211 = vld [vmem:[#allocation4 + $0xbb] sm:$0x1]
    %v5212 = vld [vmem:[#allocation4 + $0xcb] sm:$0x1]
    %v5213 = vld [vmem:[#allocation4 + $0xdb] sm:$0x1]
    %v5214 = vld [vmem:[#allocation4 + $0xeb] sm:$0x1]
    %v5215 = vld [vmem:[#allocation4 + $0xfb] sm:$0x1]
    %v5216 = vmax.f32 %v5184, %v5200
    %v5217 = vmax.f32 %v5185, %v5201
    %v5218 = vmax.f32 %v5186, %v5202
    %v5219 = vmax.f32 %v5187, %v5203
    %v5220 = vmax.f32 %v5188, %v5204
    %v5221 = vmax.f32 %v5189, %v5205
    %v5222 = vmax.f32 %v5190, %v5206
    %v5223 = vmax.f32 %v5191, %v5207
    %v5224 = vmax.f32 %v5192, %v5208
    %v5225 = vmax.f32 %v5193, %v5209
    %v5226 = vmax.f32 %v5194, %v5210
    %v5227 = vmax.f32 %v5195, %v5211
    %v5228 = vmax.f32 %v5196, %v5212
    %v5229 = vmax.f32 %v5197, %v5213
    %v5230 = vmax.f32 %v5198, %v5214
    %v5231 = vmax.f32 %v5199, %v5215
    %v5248 = vrot.slane %v5217, 7
    %v5249 = vsel %vm4757, %v5248, %v5216
    %v5250 = vrot.slane %v5218, 6
    %v5251 = vsel %vm4760, %v5250, %v5249
    %v5252 = vrot.slane %v5219, 5
    %v5253 = vsel %vm4763, %v5252, %v5251
    %v5254 = vrot.slane %v5220, 4
    %v5255 = vsel %vm4766, %v5254, %v5253
    %v5256 = vrot.slane %v5221, 3
    %v5257 = vsel %vm4769, %v5256, %v5255
    %v5258 = vrot.slane %v5222, 2
    %v5259 = vsel %vm4772, %v5258, %v5257
    %v5260 = vrot.slane %v5223, 1
    %v5261 = vsel %vm4775, %v5260, %v5259
    %v5262 = vrot.slane %v5225, 7
    %v5263 = vsel %vm4757, %v5262, %v5224
    %v5264 = vrot.slane %v5226, 6
    %v5265 = vsel %vm4760, %v5264, %v5263
    %v5266 = vrot.slane %v5227, 5
    %v5267 = vsel %vm4763, %v5266, %v5265
    %v5268 = vrot.slane %v5228, 4
    %v5269 = vsel %vm4766, %v5268, %v5267
    %v5270 = vrot.slane %v5229, 3
    %v5271 = vsel %vm4769, %v5270, %v5269
    %v5272 = vrot.slane %v5230, 2
    %v5273 = vsel %vm4772, %v5272, %v5271
    %v5274 = vrot.slane %v5231, 1
    %v5275 = vsel %vm4775, %v5274, %v5273
    %s5278 = scalar_lea.vmem [#allocation5], 96
    %5279 = vst.msk [vmem:[%s5278 + $0x1] sm:$0xff] %vm3980, %v5261
    %5280 = vst.msk [vmem:[%s5278 + $0xa1] sm:$0xff] %vm3980, %v5275
    %v5281 = vld [vmem:[#allocation4 + $0xc] sm:$0x1]
    %v5282 = vld [vmem:[#allocation4 + $0x1c] sm:$0x1]
    %v5283 = vld [vmem:[#allocation4 + $0x2c] sm:$0x1]
    %v5284 = vld [vmem:[#allocation4 + $0x3c] sm:$0x1]
    %v5285 = vld [vmem:[#allocation4 + $0x4c] sm:$0x1]
    %v5286 = vld [vmem:[#allocation4 + $0x5c] sm:$0x1]
    %v5287 = vld [vmem:[#allocation4 + $0x6c] sm:$0x1]
    %v5288 = vld [vmem:[#allocation4 + $0x7c] sm:$0x1]
    %v5289 = vld [vmem:[#allocation4 + $0x8c] sm:$0x1]
    %v5290 = vld [vmem:[#allocation4 + $0x9c] sm:$0x1]
    %v5291 = vld [vmem:[#allocation4 + $0xac] sm:$0x1]
    %v5292 = vld [vmem:[#allocation4 + $0xbc] sm:$0x1]
    %v5293 = vld [vmem:[#allocation4 + $0xcc] sm:$0x1]
    %v5294 = vld [vmem:[#allocation4 + $0xdc] sm:$0x1]
    %v5295 = vld [vmem:[#allocation4 + $0xec] sm:$0x1]
    %v5296 = vld [vmem:[#allocation4 + $0xfc] sm:$0x1]
    %v5297 = vld [vmem:[#allocation4 + $0xd] sm:$0x1]
    %v5298 = vld [vmem:[#allocation4 + $0x1d] sm:$0x1]
    %v5299 = vld [vmem:[#allocation4 + $0x2d] sm:$0x1]
    %v5300 = vld [vmem:[#allocation4 + $0x3d] sm:$0x1]
    %v5301 = vld [vmem:[#allocation4 + $0x4d] sm:$0x1]
    %v5302 = vld [vmem:[#allocation4 + $0x5d] sm:$0x1]
    %v5303 = vld [vmem:[#allocation4 + $0x6d] sm:$0x1]
    %v5304 = vld [vmem:[#allocation4 + $0x7d] sm:$0x1]
    %v5305 = vld [vmem:[#allocation4 + $0x8d] sm:$0x1]
    %v5306 = vld [vmem:[#allocation4 + $0x9d] sm:$0x1]
    %v5307 = vld [vmem:[#allocation4 + $0xad] sm:$0x1]
    %v5308 = vld [vmem:[#allocation4 + $0xbd] sm:$0x1]
    %v5309 = vld [vmem:[#allocation4 + $0xcd] sm:$0x1]
    %v5310 = vld [vmem:[#allocation4 + $0xdd] sm:$0x1]
    %v5311 = vld [vmem:[#allocation4 + $0xed] sm:$0x1]
    %v5312 = vld [vmem:[#allocation4 + $0xfd] sm:$0x1]
    %v5313 = vmax.f32 %v5281, %v5297
    %v5314 = vmax.f32 %v5282, %v5298
    %v5315 = vmax.f32 %v5283, %v5299
    %v5316 = vmax.f32 %v5284, %v5300
    %v5317 = vmax.f32 %v5285, %v5301
    %v5318 = vmax.f32 %v5286, %v5302
    %v5319 = vmax.f32 %v5287, %v5303
    %v5320 = vmax.f32 %v5288, %v5304
    %v5321 = vmax.f32 %v5289, %v5305
    %v5322 = vmax.f32 %v5290, %v5306
    %v5323 = vmax.f32 %v5291, %v5307
    %v5324 = vmax.f32 %v5292, %v5308
    %v5325 = vmax.f32 %v5293, %v5309
    %v5326 = vmax.f32 %v5294, %v5310
    %v5327 = vmax.f32 %v5295, %v5311
    %v5328 = vmax.f32 %v5296, %v5312
    %v5345 = vrot.slane %v5314, 7
    %v5346 = vsel %vm4757, %v5345, %v5313
    %v5347 = vrot.slane %v5315, 6
    %v5348 = vsel %vm4760, %v5347, %v5346
    %v5349 = vrot.slane %v5316, 5
    %v5350 = vsel %vm4763, %v5349, %v5348
    %v5351 = vrot.slane %v5317, 4
    %v5352 = vsel %vm4766, %v5351, %v5350
    %v5353 = vrot.slane %v5318, 3
    %v5354 = vsel %vm4769, %v5353, %v5352
    %v5355 = vrot.slane %v5319, 2
    %v5356 = vsel %vm4772, %v5355, %v5354
    %v5357 = vrot.slane %v5320, 1
    %v5358 = vsel %vm4775, %v5357, %v5356
    %v5359 = vrot.slane %v5322, 7
    %v5360 = vsel %vm4757, %v5359, %v5321
    %v5361 = vrot.slane %v5323, 6
    %v5362 = vsel %vm4760, %v5361, %v5360
    %v5363 = vrot.slane %v5324, 5
    %v5364 = vsel %vm4763, %v5363, %v5362
    %v5365 = vrot.slane %v5325, 4
    %v5366 = vsel %vm4766, %v5365, %v5364
    %v5367 = vrot.slane %v5326, 3
    %v5368 = vsel %vm4769, %v5367, %v5366
    %v5369 = vrot.slane %v5327, 2
    %v5370 = vsel %vm4772, %v5369, %v5368
    %v5371 = vrot.slane %v5328, 1
    %v5372 = vsel %vm4775, %v5371, %v5370
    %s5375 = scalar_lea.vmem [#allocation5], 112
    %5376 = vst.msk [vmem:[%s5375 + $0x1] sm:$0xff] %vm3980, %v5358
    %5377 = vst.msk [vmem:[%s5375 + $0xa1] sm:$0xff] %vm3980, %v5372
    %v5378 = vld [vmem:[#allocation4 + $0xe] sm:$0x1]
    %v5379 = vld [vmem:[#allocation4 + $0x1e] sm:$0x1]
    %v5380 = vld [vmem:[#allocation4 + $0x2e] sm:$0x1]
    %v5381 = vld [vmem:[#allocation4 + $0x3e] sm:$0x1]
    %v5382 = vld [vmem:[#allocation4 + $0x4e] sm:$0x1]
    %v5383 = vld [vmem:[#allocation4 + $0x5e] sm:$0x1]
    %v5384 = vld [vmem:[#allocation4 + $0x6e] sm:$0x1]
    %v5385 = vld [vmem:[#allocation4 + $0x7e] sm:$0x1]
    %v5386 = vld [vmem:[#allocation4 + $0x8e] sm:$0x1]
    %v5387 = vld [vmem:[#allocation4 + $0x9e] sm:$0x1]
    %v5388 = vld [vmem:[#allocation4 + $0xae] sm:$0x1]
    %v5389 = vld [vmem:[#allocation4 + $0xbe] sm:$0x1]
    %v5390 = vld [vmem:[#allocation4 + $0xce] sm:$0x1]
    %v5391 = vld [vmem:[#allocation4 + $0xde] sm:$0x1]
    %v5392 = vld [vmem:[#allocation4 + $0xee] sm:$0x1]
    %v5393 = vld [vmem:[#allocation4 + $0xfe] sm:$0x1]
    %v5394 = vld [vmem:[#allocation4 + $0xf] sm:$0x1]
    %v5395 = vld [vmem:[#allocation4 + $0x1f] sm:$0x1]
    %v5396 = vld [vmem:[#allocation4 + $0x2f] sm:$0x1]
    %v5397 = vld [vmem:[#allocation4 + $0x3f] sm:$0x1]
    %v5398 = vld [vmem:[#allocation4 + $0x4f] sm:$0x1]
    %v5399 = vld [vmem:[#allocation4 + $0x5f] sm:$0x1]
    %v5400 = vld [vmem:[#allocation4 + $0x6f] sm:$0x1]
    %v5401 = vld [vmem:[#allocation4 + $0x7f] sm:$0x1]
    %v5402 = vld [vmem:[#allocation4 + $0x8f] sm:$0x1]
    %v5403 = vld [vmem:[#allocation4 + $0x9f] sm:$0x1]
    %v5404 = vld [vmem:[#allocation4 + $0xaf] sm:$0x1]
    %v5405 = vld [vmem:[#allocation4 + $0xbf] sm:$0x1]
    %v5406 = vld [vmem:[#allocation4 + $0xcf] sm:$0x1]
    %v5407 = vld [vmem:[#allocation4 + $0xdf] sm:$0x1]
    %v5408 = vld [vmem:[#allocation4 + $0xef] sm:$0x1]
    %v5409 = vld [vmem:[#allocation4 + $0xff] sm:$0x1]
    %v5410 = vmax.f32 %v5378, %v5394
    %v5411 = vmax.f32 %v5379, %v5395
    %v5412 = vmax.f32 %v5380, %v5396
    %v5413 = vmax.f32 %v5381, %v5397
    %v5414 = vmax.f32 %v5382, %v5398
    %v5415 = vmax.f32 %v5383, %v5399
    %v5416 = vmax.f32 %v5384, %v5400
    %v5417 = vmax.f32 %v5385, %v5401
    %v5418 = vmax.f32 %v5386, %v5402
    %v5419 = vmax.f32 %v5387, %v5403
    %v5420 = vmax.f32 %v5388, %v5404
    %v5421 = vmax.f32 %v5389, %v5405
    %v5422 = vmax.f32 %v5390, %v5406
    %v5423 = vmax.f32 %v5391, %v5407
    %v5424 = vmax.f32 %v5392, %v5408
    %v5425 = vmax.f32 %v5393, %v5409
    %v5442 = vrot.slane %v5411, 7
    %v5443 = vsel %vm4757, %v5442, %v5410
    %v5444 = vrot.slane %v5412, 6
    %v5445 = vsel %vm4760, %v5444, %v5443
    %v5446 = vrot.slane %v5413, 5
    %v5447 = vsel %vm4763, %v5446, %v5445
    %v5448 = vrot.slane %v5414, 4
    %v5449 = vsel %vm4766, %v5448, %v5447
    %v5450 = vrot.slane %v5415, 3
    %v5451 = vsel %vm4769, %v5450, %v5449
    %v5452 = vrot.slane %v5416, 2
    %v5453 = vsel %vm4772, %v5452, %v5451
    %v5454 = vrot.slane %v5417, 1
    %v5455 = vsel %vm4775, %v5454, %v5453
    %v5456 = vrot.slane %v5419, 7
    %v5457 = vsel %vm4757, %v5456, %v5418
    %v5458 = vrot.slane %v5420, 6
    %v5459 = vsel %vm4760, %v5458, %v5457
    %v5460 = vrot.slane %v5421, 5
    %v5461 = vsel %vm4763, %v5460, %v5459
    %v5462 = vrot.slane %v5422, 4
    %v5463 = vsel %vm4766, %v5462, %v5461
    %v5464 = vrot.slane %v5423, 3
    %v5465 = vsel %vm4769, %v5464, %v5463
    %v5466 = vrot.slane %v5424, 2
    %v5467 = vsel %vm4772, %v5466, %v5465
    %v5468 = vrot.slane %v5425, 1
    %v5469 = vsel %vm4775, %v5468, %v5467
    %s5472 = scalar_lea.vmem [#allocation5], 128
    %5473 = vst.msk [vmem:[%s5472 + $0x1] sm:$0xff] %vm3980, %v5455
    %5474 = vst.msk [vmem:[%s5472 + $0xa1] sm:$0xff] %vm3980, %v5469
    %v5475 = vld [vmem:[#allocation5] sm:$0xff]
    %v5476 = vld [vmem:[#allocation5 + $0x10] sm:$0xff]
    %v5477 = vld [vmem:[#allocation5 + $0x20] sm:$0xff]
    %v5478 = vld [vmem:[#allocation5 + $0x30] sm:$0xff]
    %v5479 = vld [vmem:[#allocation5 + $0x40] sm:$0xff]
    %v5480 = vld [vmem:[#allocation5 + $0x50] sm:$0xff]
    %v5481 = vld [vmem:[#allocation5 + $0x60] sm:$0xff]
    %v5482 = vld [vmem:[#allocation5 + $0x70] sm:$0xff]
    %v5483 = vld [vmem:[#allocation5 + $0xa0] sm:$0xff]
    %v5484 = vld [vmem:[#allocation5 + $0xb0] sm:$0xff]
    %v5485 = vld [vmem:[#allocation5 + $0xc0] sm:$0xff]
    %v5486 = vld [vmem:[#allocation5 + $0xd0] sm:$0xff]
    %v5487 = vld [vmem:[#allocation5 + $0xe0] sm:$0xff]
    %v5488 = vld [vmem:[#allocation5 + $0xf0] sm:$0xff]
    %v5489 = vld [vmem:[#allocation5 + $0x100] sm:$0xff]
    %v5490 = vld [vmem:[#allocation5 + $0x110] sm:$0xff]
    %5491 = vst.msk [vmem:[#allocation6] sm:$0xff] %vm3980, %v5475
    %5492 = vst.msk [vmem:[#allocation6 + $0x10] sm:$0xff] %vm3980, %v5476
    %5493 = vst.msk [vmem:[#allocation6 + $0x20] sm:$0xff] %vm3980, %v5477
    %5494 = vst.msk [vmem:[#allocation6 + $0x30] sm:$0xff] %vm3980, %v5478
    %5495 = vst.msk [vmem:[#allocation6 + $0x40] sm:$0xff] %vm3980, %v5479
    %5496 = vst.msk [vmem:[#allocation6 + $0x50] sm:$0xff] %vm3980, %v5480
    %5497 = vst.msk [vmem:[#allocation6 + $0x60] sm:$0xff] %vm3980, %v5481
    %5498 = vst.msk [vmem:[#allocation6 + $0x70] sm:$0xff] %vm3980, %v5482
    %5499 = vst.msk [vmem:[#allocation6 + $0x80] sm:$0xff] %vm3980, %v5483
    %5500 = vst.msk [vmem:[#allocation6 + $0x90] sm:$0xff] %vm3980, %v5484
    %5501 = vst.msk [vmem:[#allocation6 + $0xa0] sm:$0xff] %vm3980, %v5485
    %5502 = vst.msk [vmem:[#allocation6 + $0xb0] sm:$0xff] %vm3980, %v5486
    %5503 = vst.msk [vmem:[#allocation6 + $0xc0] sm:$0xff] %vm3980, %v5487
    %5504 = vst.msk [vmem:[#allocation6 + $0xd0] sm:$0xff] %vm3980, %v5488
    %5505 = vst.msk [vmem:[#allocation6 + $0xe0] sm:$0xff] %vm3980, %v5489
    %5506 = vst.msk [vmem:[#allocation6 + $0xf0] sm:$0xff] %vm3980, %v5490
    %v5507 = vld [vmem:[%s4793] sm:$0xff]
    %v5508 = vld [vmem:[%s4793 + $0x10] sm:$0xff]
    %v5509 = vld [vmem:[%s4793 + $0x20] sm:$0xff]
    %v5510 = vld [vmem:[%s4793 + $0x30] sm:$0xff]
    %v5511 = vld [vmem:[%s4793 + $0x40] sm:$0xff]
    %v5512 = vld [vmem:[%s4793 + $0x50] sm:$0xff]
    %v5513 = vld [vmem:[%s4793 + $0x60] sm:$0xff]
    %v5514 = vld [vmem:[%s4793 + $0x70] sm:$0xff]
    %v5515 = vld [vmem:[%s4793 + $0xa0] sm:$0xff]
    %v5516 = vld [vmem:[%s4793 + $0xb0] sm:$0xff]
    %v5517 = vld [vmem:[%s4793 + $0xc0] sm:$0xff]
    %v5518 = vld [vmem:[%s4793 + $0xd0] sm:$0xff]
    %v5519 = vld [vmem:[%s4793 + $0xe0] sm:$0xff]
    %v5520 = vld [vmem:[%s4793 + $0xf0] sm:$0xff]
    %v5521 = vld [vmem:[%s4793 + $0x100] sm:$0xff]
    %v5522 = vld [vmem:[%s4793 + $0x110] sm:$0xff]
    %5539 = vrot.lane.b32.xlu0 %v5507, 16
    %v5540 = vpop.permute.xlu0 %5539
    %5541 = vrot.lane.b32.xlu0 %v5508, 16
    %v5542 = vpop.permute.xlu0 %5541
    %5543 = vrot.lane.b32.xlu0 %v5509, 16
    %v5544 = vpop.permute.xlu0 %5543
    %5545 = vrot.lane.b32.xlu0 %v5510, 16
    %v5546 = vpop.permute.xlu0 %5545
    %5547 = vrot.lane.b32.xlu0 %v5511, 16
    %v5548 = vpop.permute.xlu0 %5547
    %5549 = vrot.lane.b32.xlu0 %v5512, 16
    %v5550 = vpop.permute.xlu0 %5549
    %5551 = vrot.lane.b32.xlu0 %v5513, 16
    %v5552 = vpop.permute.xlu0 %5551
    %5553 = vrot.lane.b32.xlu0 %v5514, 16
    %v5554 = vpop.permute.xlu0 %5553
    %5555 = vrot.lane.b32.xlu0 %v5515, 16
    %v5556 = vpop.permute.xlu0 %5555
    %5557 = vrot.lane.b32.xlu0 %v5516, 16
    %v5558 = vpop.permute.xlu0 %5557
    %5559 = vrot.lane.b32.xlu0 %v5517, 16
    %v5560 = vpop.permute.xlu0 %5559
    %5561 = vrot.lane.b32.xlu0 %v5518, 16
    %v5562 = vpop.permute.xlu0 %5561
    %5563 = vrot.lane.b32.xlu0 %v5519, 16
    %v5564 = vpop.permute.xlu0 %5563
    %5565 = vrot.lane.b32.xlu0 %v5520, 16
    %v5566 = vpop.permute.xlu0 %5565
    %5567 = vrot.lane.b32.xlu0 %v5521, 16
    %v5568 = vpop.permute.xlu0 %5567
    %5569 = vrot.lane.b32.xlu0 %v5522, 16
    %v5570 = vpop.permute.xlu0 %5569
    %vm5587 = vcmask 261248
    %5588 = vst.msk [vmem:[#allocation6] sm:$0xff] %vm5587, %v5540
    %5589 = vst.msk [vmem:[#allocation6 + $0x10] sm:$0xff] %vm5587, %v5542
    %5590 = vst.msk [vmem:[#allocation6 + $0x20] sm:$0xff] %vm5587, %v5544
    %5591 = vst.msk [vmem:[#allocation6 + $0x30] sm:$0xff] %vm5587, %v5546
    %5592 = vst.msk [vmem:[#allocation6 + $0x40] sm:$0xff] %vm5587, %v5548
    %5593 = vst.msk [vmem:[#allocation6 + $0x50] sm:$0xff] %vm5587, %v5550
    %5594 = vst.msk [vmem:[#allocation6 + $0x60] sm:$0xff] %vm5587, %v5552
    %5595 = vst.msk [vmem:[#allocation6 + $0x70] sm:$0xff] %vm5587, %v5554
    %5596 = vst.msk [vmem:[#allocation6 + $0x80] sm:$0xff] %vm5587, %v5556
    %5597 = vst.msk [vmem:[#allocation6 + $0x90] sm:$0xff] %vm5587, %v5558
    %5598 = vst.msk [vmem:[#allocation6 + $0xa0] sm:$0xff] %vm5587, %v5560
    %5599 = vst.msk [vmem:[#allocation6 + $0xb0] sm:$0xff] %vm5587, %v5562
    %5600 = vst.msk [vmem:[#allocation6 + $0xc0] sm:$0xff] %vm5587, %v5564
    %5601 = vst.msk [vmem:[#allocation6 + $0xd0] sm:$0xff] %vm5587, %v5566
    %5602 = vst.msk [vmem:[#allocation6 + $0xe0] sm:$0xff] %vm5587, %v5568
    %5603 = vst.msk [vmem:[#allocation6 + $0xf0] sm:$0xff] %vm5587, %v5570
    %v5604 = vld [vmem:[%s4890] sm:$0xff]
    %v5605 = vld [vmem:[%s4890 + $0x10] sm:$0xff]
    %v5606 = vld [vmem:[%s4890 + $0x20] sm:$0xff]
    %v5607 = vld [vmem:[%s4890 + $0x30] sm:$0xff]
    %v5608 = vld [vmem:[%s4890 + $0x40] sm:$0xff]
    %v5609 = vld [vmem:[%s4890 + $0x50] sm:$0xff]
    %v5610 = vld [vmem:[%s4890 + $0x60] sm:$0xff]
    %v5611 = vld [vmem:[%s4890 + $0x70] sm:$0xff]
    %v5612 = vld [vmem:[%s4890 + $0xa0] sm:$0xff]
    %v5613 = vld [vmem:[%s4890 + $0xb0] sm:$0xff]
    %v5614 = vld [vmem:[%s4890 + $0xc0] sm:$0xff]
    %v5615 = vld [vmem:[%s4890 + $0xd0] sm:$0xff]
    %v5616 = vld [vmem:[%s4890 + $0xe0] sm:$0xff]
    %v5617 = vld [vmem:[%s4890 + $0xf0] sm:$0xff]
    %v5618 = vld [vmem:[%s4890 + $0x100] sm:$0xff]
    %v5619 = vld [vmem:[%s4890 + $0x110] sm:$0xff]
    %5636 = vrot.lane.b32.xlu0 %v5604, 32
    %v5637 = vpop.permute.xlu0 %5636
    %5638 = vrot.lane.b32.xlu0 %v5605, 32
    %v5639 = vpop.permute.xlu0 %5638
    %5640 = vrot.lane.b32.xlu0 %v5606, 32
    %v5641 = vpop.permute.xlu0 %5640
    %5642 = vrot.lane.b32.xlu0 %v5607, 32
    %v5643 = vpop.permute.xlu0 %5642
    %5644 = vrot.lane.b32.xlu0 %v5608, 32
    %v5645 = vpop.permute.xlu0 %5644
    %5646 = vrot.lane.b32.xlu0 %v5609, 32
    %v5647 = vpop.permute.xlu0 %5646
    %5648 = vrot.lane.b32.xlu0 %v5610, 32
    %v5649 = vpop.permute.xlu0 %5648
    %5650 = vrot.lane.b32.xlu0 %v5611, 32
    %v5651 = vpop.permute.xlu0 %5650
    %5652 = vrot.lane.b32.xlu0 %v5612, 32
    %v5653 = vpop.permute.xlu0 %5652
    %5654 = vrot.lane.b32.xlu0 %v5613, 32
    %v5655 = vpop.permute.xlu0 %5654
    %5656 = vrot.lane.b32.xlu0 %v5614, 32
    %v5657 = vpop.permute.xlu0 %5656
    %5658 = vrot.lane.b32.xlu0 %v5615, 32
    %v5659 = vpop.permute.xlu0 %5658
    %5660 = vrot.lane.b32.xlu0 %v5616, 32
    %v5661 = vpop.permute.xlu0 %5660
    %5662 = vrot.lane.b32.xlu0 %v5617, 32
    %v5663 = vpop.permute.xlu0 %5662
    %5664 = vrot.lane.b32.xlu0 %v5618, 32
    %v5665 = vpop.permute.xlu0 %5664
    %5666 = vrot.lane.b32.xlu0 %v5619, 32
    %v5667 = vpop.permute.xlu0 %5666
    %vm5684 = vcmask 392448
    %5685 = vst.msk [vmem:[#allocation6] sm:$0xff] %vm5684, %v5637
    %5686 = vst.msk [vmem:[#allocation6 + $0x10] sm:$0xff] %vm5684, %v5639
    %5687 = vst.msk [vmem:[#allocation6 + $0x20] sm:$0xff] %vm5684, %v5641
    %5688 = vst.msk [vmem:[#allocation6 + $0x30] sm:$0xff] %vm5684, %v5643
    %5689 = vst.msk [vmem:[#allocation6 + $0x40] sm:$0xff] %vm5684, %v5645
    %5690 = vst.msk [vmem:[#allocation6 + $0x50] sm:$0xff] %vm5684, %v5647
    %5691 = vst.msk [vmem:[#allocation6 + $0x60] sm:$0xff] %vm5684, %v5649
    %5692 = vst.msk [vmem:[#allocation6 + $0x70] sm:$0xff] %vm5684, %v5651
    %5693 = vst.msk [vmem:[#allocation6 + $0x80] sm:$0xff] %vm5684, %v5653
    %5694 = vst.msk [vmem:[#allocation6 + $0x90] sm:$0xff] %vm5684, %v5655
    %5695 = vst.msk [vmem:[#allocation6 + $0xa0] sm:$0xff] %vm5684, %v5657
    %5696 = vst.msk [vmem:[#allocation6 + $0xb0] sm:$0xff] %vm5684, %v5659
    %5697 = vst.msk [vmem:[#allocation6 + $0xc0] sm:$0xff] %vm5684, %v5661
    %5698 = vst.msk [vmem:[#allocation6 + $0xd0] sm:$0xff] %vm5684, %v5663
    %5699 = vst.msk [vmem:[#allocation6 + $0xe0] sm:$0xff] %vm5684, %v5665
    %5700 = vst.msk [vmem:[#allocation6 + $0xf0] sm:$0xff] %vm5684, %v5667
    %v5701 = vld [vmem:[#allocation5 + $0x1] sm:$0xff]
    %v5702 = vld [vmem:[#allocation5 + $0x11] sm:$0xff]
    %v5703 = vld [vmem:[#allocation5 + $0x21] sm:$0xff]
    %v5704 = vld [vmem:[#allocation5 + $0x31] sm:$0xff]
    %v5705 = vld [vmem:[#allocation5 + $0x41] sm:$0xff]
    %v5706 = vld [vmem:[#allocation5 + $0x51] sm:$0xff]
    %v5707 = vld [vmem:[#allocation5 + $0x61] sm:$0xff]
    %v5708 = vld [vmem:[#allocation5 + $0x71] sm:$0xff]
    %v5709 = vld [vmem:[#allocation5 + $0xa1] sm:$0xff]
    %v5710 = vld [vmem:[#allocation5 + $0xb1] sm:$0xff]
    %v5711 = vld [vmem:[#allocation5 + $0xc1] sm:$0xff]
    %v5712 = vld [vmem:[#allocation5 + $0xd1] sm:$0xff]
    %v5713 = vld [vmem:[#allocation5 + $0xe1] sm:$0xff]
    %v5714 = vld [vmem:[#allocation5 + $0xf1] sm:$0xff]
    %v5715 = vld [vmem:[#allocation5 + $0x101] sm:$0xff]
    %v5716 = vld [vmem:[#allocation5 + $0x111] sm:$0xff]
    %5733 = vrot.lane.b32.xlu0 %v5701, 48
    %v5734 = vpop.permute.xlu0 %5733
    %5735 = vrot.lane.b32.xlu0 %v5702, 48
    %v5736 = vpop.permute.xlu0 %5735
    %5737 = vrot.lane.b32.xlu0 %v5703, 48
    %v5738 = vpop.permute.xlu0 %5737
    %5739 = vrot.lane.b32.xlu0 %v5704, 48
    %v5740 = vpop.permute.xlu0 %5739
    %5741 = vrot.lane.b32.xlu0 %v5705, 48
    %v5742 = vpop.permute.xlu0 %5741
    %5743 = vrot.lane.b32.xlu0 %v5706, 48
    %v5744 = vpop.permute.xlu0 %5743
    %5745 = vrot.lane.b32.xlu0 %v5707, 48
    %v5746 = vpop.permute.xlu0 %5745
    %5747 = vrot.lane.b32.xlu0 %v5708, 48
    %v5748 = vpop.permute.xlu0 %5747
    %5749 = vrot.lane.b32.xlu0 %v5709, 48
    %v5750 = vpop.permute.xlu0 %5749
    %5751 = vrot.lane.b32.xlu0 %v5710, 48
    %v5752 = vpop.permute.xlu0 %5751
    %5753 = vrot.lane.b32.xlu0 %v5711, 48
    %v5754 = vpop.permute.xlu0 %5753
    %5755 = vrot.lane.b32.xlu0 %v5712, 48
    %v5756 = vpop.permute.xlu0 %5755
    %5757 = vrot.lane.b32.xlu0 %v5713, 48
    %v5758 = vpop.permute.xlu0 %5757
    %5759 = vrot.lane.b32.xlu0 %v5714, 48
    %v5760 = vpop.permute.xlu0 %5759
    %5761 = vrot.lane.b32.xlu0 %v5715, 48
    %v5762 = vpop.permute.xlu0 %5761
    %5763 = vrot.lane.b32.xlu0 %v5716, 48
    %v5764 = vpop.permute.xlu0 %5763
    %vm5781 = vcmask 523648
    %5782 = vst.msk [vmem:[#allocation6] sm:$0xff] %vm5781, %v5734
    %5783 = vst.msk [vmem:[#allocation6 + $0x10] sm:$0xff] %vm5781, %v5736
    %5784 = vst.msk [vmem:[#allocation6 + $0x20] sm:$0xff] %vm5781, %v5738
    %5785 = vst.msk [vmem:[#allocation6 + $0x30] sm:$0xff] %vm5781, %v5740
    %5786 = vst.msk [vmem:[#allocation6 + $0x40] sm:$0xff] %vm5781, %v5742
    %5787 = vst.msk [vmem:[#allocation6 + $0x50] sm:$0xff] %vm5781, %v5744
    %5788 = vst.msk [vmem:[#allocation6 + $0x60] sm:$0xff] %vm5781, %v5746
    %5789 = vst.msk [vmem:[#allocation6 + $0x70] sm:$0xff] %vm5781, %v5748
    %5790 = vst.msk [vmem:[#allocation6 + $0x80] sm:$0xff] %vm5781, %v5750
    %5791 = vst.msk [vmem:[#allocation6 + $0x90] sm:$0xff] %vm5781, %v5752
    %5792 = vst.msk [vmem:[#allocation6 + $0xa0] sm:$0xff] %vm5781, %v5754
    %5793 = vst.msk [vmem:[#allocation6 + $0xb0] sm:$0xff] %vm5781, %v5756
    %5794 = vst.msk [vmem:[#allocation6 + $0xc0] sm:$0xff] %vm5781, %v5758
    %5795 = vst.msk [vmem:[#allocation6 + $0xd0] sm:$0xff] %vm5781, %v5760
    %5796 = vst.msk [vmem:[#allocation6 + $0xe0] sm:$0xff] %vm5781, %v5762
    %5797 = vst.msk [vmem:[#allocation6 + $0xf0] sm:$0xff] %vm5781, %v5764
    %v5798 = vld [vmem:[%s4793 + $0x1] sm:$0xff]
    %v5799 = vld [vmem:[%s4793 + $0x11] sm:$0xff]
    %v5800 = vld [vmem:[%s4793 + $0x21] sm:$0xff]
    %v5801 = vld [vmem:[%s4793 + $0x31] sm:$0xff]
    %v5802 = vld [vmem:[%s4793 + $0x41] sm:$0xff]
    %v5803 = vld [vmem:[%s4793 + $0x51] sm:$0xff]
    %v5804 = vld [vmem:[%s4793 + $0x61] sm:$0xff]
    %v5805 = vld [vmem:[%s4793 + $0x71] sm:$0xff]
    %v5806 = vld [vmem:[%s4793 + $0xa1] sm:$0xff]
    %v5807 = vld [vmem:[%s4793 + $0xb1] sm:$0xff]
    %v5808 = vld [vmem:[%s4793 + $0xc1] sm:$0xff]
    %v5809 = vld [vmem:[%s4793 + $0xd1] sm:$0xff]
    %v5810 = vld [vmem:[%s4793 + $0xe1] sm:$0xff]
    %v5811 = vld [vmem:[%s4793 + $0xf1] sm:$0xff]
    %v5812 = vld [vmem:[%s4793 + $0x101] sm:$0xff]
    %v5813 = vld [vmem:[%s4793 + $0x111] sm:$0xff]
    %5830 = vrot.lane.b32.xlu0 %v5798, 64
    %v5831 = vpop.permute.xlu0 %5830
    %5832 = vrot.lane.b32.xlu0 %v5799, 64
    %v5833 = vpop.permute.xlu0 %5832
    %5834 = vrot.lane.b32.xlu0 %v5800, 64
    %v5835 = vpop.permute.xlu0 %5834
    %5836 = vrot.lane.b32.xlu0 %v5801, 64
    %v5837 = vpop.permute.xlu0 %5836
    %5838 = vrot.lane.b32.xlu0 %v5802, 64
    %v5839 = vpop.permute.xlu0 %5838
    %5840 = vrot.lane.b32.xlu0 %v5803, 64
    %v5841 = vpop.permute.xlu0 %5840
    %5842 = vrot.lane.b32.xlu0 %v5804, 64
    %v5843 = vpop.permute.xlu0 %5842
    %5844 = vrot.lane.b32.xlu0 %v5805, 64
    %v5845 = vpop.permute.xlu0 %5844
    %5846 = vrot.lane.b32.xlu0 %v5806, 64
    %v5847 = vpop.permute.xlu0 %5846
    %5848 = vrot.lane.b32.xlu0 %v5807, 64
    %v5849 = vpop.permute.xlu0 %5848
    %5850 = vrot.lane.b32.xlu0 %v5808, 64
    %v5851 = vpop.permute.xlu0 %5850
    %5852 = vrot.lane.b32.xlu0 %v5809, 64
    %v5853 = vpop.permute.xlu0 %5852
    %5854 = vrot.lane.b32.xlu0 %v5810, 64
    %v5855 = vpop.permute.xlu0 %5854
    %5856 = vrot.lane.b32.xlu0 %v5811, 64
    %v5857 = vpop.permute.xlu0 %5856
    %5858 = vrot.lane.b32.xlu0 %v5812, 64
    %v5859 = vpop.permute.xlu0 %5858
    %5860 = vrot.lane.b32.xlu0 %v5813, 64
    %v5861 = vpop.permute.xlu0 %5860
    %vm5878 = vcmask 654848
    %5879 = vst.msk [vmem:[#allocation6] sm:$0xff] %vm5878, %v5831
    %5880 = vst.msk [vmem:[#allocation6 + $0x10] sm:$0xff] %vm5878, %v5833
    %5881 = vst.msk [vmem:[#allocation6 + $0x20] sm:$0xff] %vm5878, %v5835
    %5882 = vst.msk [vmem:[#allocation6 + $0x30] sm:$0xff] %vm5878, %v5837
    %5883 = vst.msk [vmem:[#allocation6 + $0x40] sm:$0xff] %vm5878, %v5839
    %5884 = vst.msk [vmem:[#allocation6 + $0x50] sm:$0xff] %vm5878, %v5841
    %5885 = vst.msk [vmem:[#allocation6 + $0x60] sm:$0xff] %vm5878, %v5843
    %5886 = vst.msk [vmem:[#allocation6 + $0x70] sm:$0xff] %vm5878, %v5845
    %5887 = vst.msk [vmem:[#allocation6 + $0x80] sm:$0xff] %vm5878, %v5847
    %5888 = vst.msk [vmem:[#allocation6 + $0x90] sm:$0xff] %vm5878, %v5849
    %5889 = vst.msk [vmem:[#allocation6 + $0xa0] sm:$0xff] %vm5878, %v5851
    %5890 = vst.msk [vmem:[#allocation6 + $0xb0] sm:$0xff] %vm5878, %v5853
    %5891 = vst.msk [vmem:[#allocation6 + $0xc0] sm:$0xff] %vm5878, %v5855
    %5892 = vst.msk [vmem:[#allocation6 + $0xd0] sm:$0xff] %vm5878, %v5857
    %5893 = vst.msk [vmem:[#allocation6 + $0xe0] sm:$0xff] %vm5878, %v5859
    %5894 = vst.msk [vmem:[#allocation6 + $0xf0] sm:$0xff] %vm5878, %v5861
    %v5895 = vld [vmem:[%s4890 + $0x1] sm:$0xff]
    %v5896 = vld [vmem:[%s4890 + $0x11] sm:$0xff]
    %v5897 = vld [vmem:[%s4890 + $0x21] sm:$0xff]
    %v5898 = vld [vmem:[%s4890 + $0x31] sm:$0xff]
    %v5899 = vld [vmem:[%s4890 + $0x41] sm:$0xff]
    %v5900 = vld [vmem:[%s4890 + $0x51] sm:$0xff]
    %v5901 = vld [vmem:[%s4890 + $0x61] sm:$0xff]
    %v5902 = vld [vmem:[%s4890 + $0x71] sm:$0xff]
    %v5903 = vld [vmem:[%s4890 + $0xa1] sm:$0xff]
    %v5904 = vld [vmem:[%s4890 + $0xb1] sm:$0xff]
    %v5905 = vld [vmem:[%s4890 + $0xc1] sm:$0xff]
    %v5906 = vld [vmem:[%s4890 + $0xd1] sm:$0xff]
    %v5907 = vld [vmem:[%s4890 + $0xe1] sm:$0xff]
    %v5908 = vld [vmem:[%s4890 + $0xf1] sm:$0xff]
    %v5909 = vld [vmem:[%s4890 + $0x101] sm:$0xff]
    %v5910 = vld [vmem:[%s4890 + $0x111] sm:$0xff]
    %5927 = vrot.lane.b32.xlu0 %v5895, 80
    %v5928 = vpop.permute.xlu0 %5927
    %5929 = vrot.lane.b32.xlu0 %v5896, 80
    %v5930 = vpop.permute.xlu0 %5929
    %5931 = vrot.lane.b32.xlu0 %v5897, 80
    %v5932 = vpop.permute.xlu0 %5931
    %5933 = vrot.lane.b32.xlu0 %v5898, 80
    %v5934 = vpop.permute.xlu0 %5933
    %5935 = vrot.lane.b32.xlu0 %v5899, 80
    %v5936 = vpop.permute.xlu0 %5935
    %5937 = vrot.lane.b32.xlu0 %v5900, 80
    %v5938 = vpop.permute.xlu0 %5937
    %5939 = vrot.lane.b32.xlu0 %v5901, 80
    %v5940 = vpop.permute.xlu0 %5939
    %5941 = vrot.lane.b32.xlu0 %v5902, 80
    %v5942 = vpop.permute.xlu0 %5941
    %5943 = vrot.lane.b32.xlu0 %v5903, 80
    %v5944 = vpop.permute.xlu0 %5943
    %5945 = vrot.lane.b32.xlu0 %v5904, 80
    %v5946 = vpop.permute.xlu0 %5945
    %5947 = vrot.lane.b32.xlu0 %v5905, 80
    %v5948 = vpop.permute.xlu0 %5947
    %5949 = vrot.lane.b32.xlu0 %v5906, 80
    %v5950 = vpop.permute.xlu0 %5949
    %5951 = vrot.lane.b32.xlu0 %v5907, 80
    %v5952 = vpop.permute.xlu0 %5951
    %5953 = vrot.lane.b32.xlu0 %v5908, 80
    %v5954 = vpop.permute.xlu0 %5953
    %5955 = vrot.lane.b32.xlu0 %v5909, 80
    %v5956 = vpop.permute.xlu0 %5955
    %5957 = vrot.lane.b32.xlu0 %v5910, 80
    %v5958 = vpop.permute.xlu0 %5957
    %vm5975 = vcmask 786048
    %5976 = vst.msk [vmem:[#allocation6] sm:$0xff] %vm5975, %v5928
    %5977 = vst.msk [vmem:[#allocation6 + $0x10] sm:$0xff] %vm5975, %v5930
    %5978 = vst.msk [vmem:[#allocation6 + $0x20] sm:$0xff] %vm5975, %v5932
    %5979 = vst.msk [vmem:[#allocation6 + $0x30] sm:$0xff] %vm5975, %v5934
    %5980 = vst.msk [vmem:[#allocation6 + $0x40] sm:$0xff] %vm5975, %v5936
    %5981 = vst.msk [vmem:[#allocation6 + $0x50] sm:$0xff] %vm5975, %v5938
    %5982 = vst.msk [vmem:[#allocation6 + $0x60] sm:$0xff] %vm5975, %v5940
    %5983 = vst.msk [vmem:[#allocation6 + $0x70] sm:$0xff] %vm5975, %v5942
    %5984 = vst.msk [vmem:[#allocation6 + $0x80] sm:$0xff] %vm5975, %v5944
    %5985 = vst.msk [vmem:[#allocation6 + $0x90] sm:$0xff] %vm5975, %v5946
    %5986 = vst.msk [vmem:[#allocation6 + $0xa0] sm:$0xff] %vm5975, %v5948
    %5987 = vst.msk [vmem:[#allocation6 + $0xb0] sm:$0xff] %vm5975, %v5950
    %5988 = vst.msk [vmem:[#allocation6 + $0xc0] sm:$0xff] %vm5975, %v5952
    %5989 = vst.msk [vmem:[#allocation6 + $0xd0] sm:$0xff] %vm5975, %v5954
    %5990 = vst.msk [vmem:[#allocation6 + $0xe0] sm:$0xff] %vm5975, %v5956
    %5991 = vst.msk [vmem:[#allocation6 + $0xf0] sm:$0xff] %vm5975, %v5958
    %v5992 = vld [vmem:[#allocation5 + $0x2] sm:$0xff]
    %v5993 = vld [vmem:[#allocation5 + $0x12] sm:$0xff]
    %v5994 = vld [vmem:[#allocation5 + $0x22] sm:$0xff]
    %v5995 = vld [vmem:[#allocation5 + $0x32] sm:$0xff]
    %v5996 = vld [vmem:[#allocation5 + $0x42] sm:$0xff]
    %v5997 = vld [vmem:[#allocation5 + $0x52] sm:$0xff]
    %v5998 = vld [vmem:[#allocation5 + $0x62] sm:$0xff]
    %v5999 = vld [vmem:[#allocation5 + $0x72] sm:$0xff]
    %v6000 = vld [vmem:[#allocation5 + $0xa2] sm:$0xff]
    %v6001 = vld [vmem:[#allocation5 + $0xb2] sm:$0xff]
    %v6002 = vld [vmem:[#allocation5 + $0xc2] sm:$0xff]
    %v6003 = vld [vmem:[#allocation5 + $0xd2] sm:$0xff]
    %v6004 = vld [vmem:[#allocation5 + $0xe2] sm:$0xff]
    %v6005 = vld [vmem:[#allocation5 + $0xf2] sm:$0xff]
    %v6006 = vld [vmem:[#allocation5 + $0x102] sm:$0xff]
    %v6007 = vld [vmem:[#allocation5 + $0x112] sm:$0xff]
    %6024 = vrot.lane.b32.xlu0 %v5992, 96
    %v6025 = vpop.permute.xlu0 %6024
    %6026 = vrot.lane.b32.xlu0 %v5993, 96
    %v6027 = vpop.permute.xlu0 %6026
    %6028 = vrot.lane.b32.xlu0 %v5994, 96
    %v6029 = vpop.permute.xlu0 %6028
    %6030 = vrot.lane.b32.xlu0 %v5995, 96
    %v6031 = vpop.permute.xlu0 %6030
    %6032 = vrot.lane.b32.xlu0 %v5996, 96
    %v6033 = vpop.permute.xlu0 %6032
    %6034 = vrot.lane.b32.xlu0 %v5997, 96
    %v6035 = vpop.permute.xlu0 %6034
    %6036 = vrot.lane.b32.xlu0 %v5998, 96
    %v6037 = vpop.permute.xlu0 %6036
    %6038 = vrot.lane.b32.xlu0 %v5999, 96
    %v6039 = vpop.permute.xlu0 %6038
    %6040 = vrot.lane.b32.xlu0 %v6000, 96
    %v6041 = vpop.permute.xlu0 %6040
    %6042 = vrot.lane.b32.xlu0 %v6001, 96
    %v6043 = vpop.permute.xlu0 %6042
    %6044 = vrot.lane.b32.xlu0 %v6002, 96
    %v6045 = vpop.permute.xlu0 %6044
    %6046 = vrot.lane.b32.xlu0 %v6003, 96
    %v6047 = vpop.permute.xlu0 %6046
    %6048 = vrot.lane.b32.xlu0 %v6004, 96
    %v6049 = vpop.permute.xlu0 %6048
    %6050 = vrot.lane.b32.xlu0 %v6005, 96
    %v6051 = vpop.permute.xlu0 %6050
    %6052 = vrot.lane.b32.xlu0 %v6006, 96
    %v6053 = vpop.permute.xlu0 %6052
    %6054 = vrot.lane.b32.xlu0 %v6007, 96
    %v6055 = vpop.permute.xlu0 %6054
    %vm6072 = vcmask 917248
    %6073 = vst.msk [vmem:[#allocation6] sm:$0xff] %vm6072, %v6025
    %6074 = vst.msk [vmem:[#allocation6 + $0x10] sm:$0xff] %vm6072, %v6027
    %6075 = vst.msk [vmem:[#allocation6 + $0x20] sm:$0xff] %vm6072, %v6029
    %6076 = vst.msk [vmem:[#allocation6 + $0x30] sm:$0xff] %vm6072, %v6031
    %6077 = vst.msk [vmem:[#allocation6 + $0x40] sm:$0xff] %vm6072, %v6033
    %6078 = vst.msk [vmem:[#allocation6 + $0x50] sm:$0xff] %vm6072, %v6035
    %6079 = vst.msk [vmem:[#allocation6 + $0x60] sm:$0xff] %vm6072, %v6037
    %6080 = vst.msk [vmem:[#allocation6 + $0x70] sm:$0xff] %vm6072, %v6039
    %6081 = vst.msk [vmem:[#allocation6 + $0x80] sm:$0xff] %vm6072, %v6041
    %6082 = vst.msk [vmem:[#allocation6 + $0x90] sm:$0xff] %vm6072, %v6043
    %6083 = vst.msk [vmem:[#allocation6 + $0xa0] sm:$0xff] %vm6072, %v6045
    %6084 = vst.msk [vmem:[#allocation6 + $0xb0] sm:$0xff] %vm6072, %v6047
    %6085 = vst.msk [vmem:[#allocation6 + $0xc0] sm:$0xff] %vm6072, %v6049
    %6086 = vst.msk [vmem:[#allocation6 + $0xd0] sm:$0xff] %vm6072, %v6051
    %6087 = vst.msk [vmem:[#allocation6 + $0xe0] sm:$0xff] %vm6072, %v6053
    %6088 = vst.msk [vmem:[#allocation6 + $0xf0] sm:$0xff] %vm6072, %v6055
    %v6089 = vld [vmem:[%s4793 + $0x2] sm:$0xff]
    %v6090 = vld [vmem:[%s4793 + $0x12] sm:$0xff]
    %v6091 = vld [vmem:[%s4793 + $0x22] sm:$0xff]
    %v6092 = vld [vmem:[%s4793 + $0x32] sm:$0xff]
    %v6093 = vld [vmem:[%s4793 + $0x42] sm:$0xff]
    %v6094 = vld [vmem:[%s4793 + $0x52] sm:$0xff]
    %v6095 = vld [vmem:[%s4793 + $0x62] sm:$0xff]
    %v6096 = vld [vmem:[%s4793 + $0x72] sm:$0xff]
    %v6097 = vld [vmem:[%s4793 + $0xa2] sm:$0xff]
    %v6098 = vld [vmem:[%s4793 + $0xb2] sm:$0xff]
    %v6099 = vld [vmem:[%s4793 + $0xc2] sm:$0xff]
    %v6100 = vld [vmem:[%s4793 + $0xd2] sm:$0xff]
    %v6101 = vld [vmem:[%s4793 + $0xe2] sm:$0xff]
    %v6102 = vld [vmem:[%s4793 + $0xf2] sm:$0xff]
    %v6103 = vld [vmem:[%s4793 + $0x102] sm:$0xff]
    %v6104 = vld [vmem:[%s4793 + $0x112] sm:$0xff]
    %6121 = vrot.lane.b32.xlu0 %v6089, 112
    %v6122 = vpop.permute.xlu0 %6121
    %6123 = vrot.lane.b32.xlu0 %v6090, 112
    %v6124 = vpop.permute.xlu0 %6123
    %6125 = vrot.lane.b32.xlu0 %v6091, 112
    %v6126 = vpop.permute.xlu0 %6125
    %6127 = vrot.lane.b32.xlu0 %v6092, 112
    %v6128 = vpop.permute.xlu0 %6127
    %6129 = vrot.lane.b32.xlu0 %v6093, 112
    %v6130 = vpop.permute.xlu0 %6129
    %6131 = vrot.lane.b32.xlu0 %v6094, 112
    %v6132 = vpop.permute.xlu0 %6131
    %6133 = vrot.lane.b32.xlu0 %v6095, 112
    %v6134 = vpop.permute.xlu0 %6133
    %6135 = vrot.lane.b32.xlu0 %v6096, 112
    %v6136 = vpop.permute.xlu0 %6135
    %6137 = vrot.lane.b32.xlu0 %v6097, 112
    %v6138 = vpop.permute.xlu0 %6137
    %6139 = vrot.lane.b32.xlu0 %v6098, 112
    %v6140 = vpop.permute.xlu0 %6139
    %6141 = vrot.lane.b32.xlu0 %v6099, 112
    %v6142 = vpop.permute.xlu0 %6141
    %6143 = vrot.lane.b32.xlu0 %v6100, 112
    %v6144 = vpop.permute.xlu0 %6143
    %6145 = vrot.lane.b32.xlu0 %v6101, 112
    %v6146 = vpop.permute.xlu0 %6145
    %6147 = vrot.lane.b32.xlu0 %v6102, 112
    %v6148 = vpop.permute.xlu0 %6147
    %6149 = vrot.lane.b32.xlu0 %v6103, 112
    %v6150 = vpop.permute.xlu0 %6149
    %6151 = vrot.lane.b32.xlu0 %v6104, 112
    %v6152 = vpop.permute.xlu0 %6151
    %vm6169 = vcmask 1048448
    %6170 = vst.msk [vmem:[#allocation6] sm:$0xff] %vm6169, %v6122
    %6171 = vst.msk [vmem:[#allocation6 + $0x10] sm:$0xff] %vm6169, %v6124
    %6172 = vst.msk [vmem:[#allocation6 + $0x20] sm:$0xff] %vm6169, %v6126
    %6173 = vst.msk [vmem:[#allocation6 + $0x30] sm:$0xff] %vm6169, %v6128
    %6174 = vst.msk [vmem:[#allocation6 + $0x40] sm:$0xff] %vm6169, %v6130
    %6175 = vst.msk [vmem:[#allocation6 + $0x50] sm:$0xff] %vm6169, %v6132
    %6176 = vst.msk [vmem:[#allocation6 + $0x60] sm:$0xff] %vm6169, %v6134
    %6177 = vst.msk [vmem:[#allocation6 + $0x70] sm:$0xff] %vm6169, %v6136
    %6178 = vst.msk [vmem:[#allocation6 + $0x80] sm:$0xff] %vm6169, %v6138
    %6179 = vst.msk [vmem:[#allocation6 + $0x90] sm:$0xff] %vm6169, %v6140
    %6180 = vst.msk [vmem:[#allocation6 + $0xa0] sm:$0xff] %vm6169, %v6142
    %6181 = vst.msk [vmem:[#allocation6 + $0xb0] sm:$0xff] %vm6169, %v6144
    %6182 = vst.msk [vmem:[#allocation6 + $0xc0] sm:$0xff] %vm6169, %v6146
    %6183 = vst.msk [vmem:[#allocation6 + $0xd0] sm:$0xff] %vm6169, %v6148
    %6184 = vst.msk [vmem:[#allocation6 + $0xe0] sm:$0xff] %vm6169, %v6150
    %6185 = vst.msk [vmem:[#allocation6 + $0xf0] sm:$0xff] %vm6169, %v6152
    %v6186 = vld [vmem:[%s4890 + $0x2] sm:$0xff]
    %v6187 = vld [vmem:[%s4890 + $0x12] sm:$0xff]
    %v6188 = vld [vmem:[%s4890 + $0x22] sm:$0xff]
    %v6189 = vld [vmem:[%s4890 + $0x32] sm:$0xff]
    %v6190 = vld [vmem:[%s4890 + $0x42] sm:$0xff]
    %v6191 = vld [vmem:[%s4890 + $0x52] sm:$0xff]
    %v6192 = vld [vmem:[%s4890 + $0x62] sm:$0xff]
    %v6193 = vld [vmem:[%s4890 + $0x72] sm:$0xff]
    %v6194 = vld [vmem:[%s4890 + $0xa2] sm:$0xff]
    %v6195 = vld [vmem:[%s4890 + $0xb2] sm:$0xff]
    %v6196 = vld [vmem:[%s4890 + $0xc2] sm:$0xff]
    %v6197 = vld [vmem:[%s4890 + $0xd2] sm:$0xff]
    %v6198 = vld [vmem:[%s4890 + $0xe2] sm:$0xff]
    %v6199 = vld [vmem:[%s4890 + $0xf2] sm:$0xff]
    %v6200 = vld [vmem:[%s4890 + $0x102] sm:$0xff]
    %v6201 = vld [vmem:[%s4890 + $0x112] sm:$0xff]
    %6202 = vst.msk [vmem:[#allocation6 + $0x8] sm:$0xff] %vm3980, %v6186
    %6203 = vst.msk [vmem:[#allocation6 + $0x18] sm:$0xff] %vm3980, %v6187
    %6204 = vst.msk [vmem:[#allocation6 + $0x28] sm:$0xff] %vm3980, %v6188
    %6205 = vst.msk [vmem:[#allocation6 + $0x38] sm:$0xff] %vm3980, %v6189
    %6206 = vst.msk [vmem:[#allocation6 + $0x48] sm:$0xff] %vm3980, %v6190
    %6207 = vst.msk [vmem:[#allocation6 + $0x58] sm:$0xff] %vm3980, %v6191
    %6208 = vst.msk [vmem:[#allocation6 + $0x68] sm:$0xff] %vm3980, %v6192
    %6209 = vst.msk [vmem:[#allocation6 + $0x78] sm:$0xff] %vm3980, %v6193
    %6210 = vst.msk [vmem:[#allocation6 + $0x88] sm:$0xff] %vm3980, %v6194
    %6211 = vst.msk [vmem:[#allocation6 + $0x98] sm:$0xff] %vm3980, %v6195
    %6212 = vst.msk [vmem:[#allocation6 + $0xa8] sm:$0xff] %vm3980, %v6196
    %6213 = vst.msk [vmem:[#allocation6 + $0xb8] sm:$0xff] %vm3980, %v6197
    %6214 = vst.msk [vmem:[#allocation6 + $0xc8] sm:$0xff] %vm3980, %v6198
    %6215 = vst.msk [vmem:[#allocation6 + $0xd8] sm:$0xff] %vm3980, %v6199
    %6216 = vst.msk [vmem:[#allocation6 + $0xe8] sm:$0xff] %vm3980, %v6200
    %6217 = vst.msk [vmem:[#allocation6 + $0xf8] sm:$0xff] %vm3980, %v6201
    %v6218 = vld [vmem:[#allocation6] sm:$0xff]
    %v6219 = vld [vmem:[#allocation6 + $0x8] sm:$0xff]
    %v6220 = vld [vmem:[#allocation6 + $0x10] sm:$0xff]
    %v6221 = vld [vmem:[#allocation6 + $0x18] sm:$0xff]
    %v6222 = vld [vmem:[#allocation6 + $0x20] sm:$0xff]
    %v6223 = vld [vmem:[#allocation6 + $0x28] sm:$0xff]
    %v6224 = vld [vmem:[#allocation6 + $0x30] sm:$0xff]
    %v6225 = vld [vmem:[#allocation6 + $0x38] sm:$0xff]
    %v6226 = vld [vmem:[#allocation6 + $0x40] sm:$0xff]
    %v6227 = vld [vmem:[#allocation6 + $0x48] sm:$0xff]
    %v6228 = vld [vmem:[#allocation6 + $0x50] sm:$0xff]
    %v6229 = vld [vmem:[#allocation6 + $0x58] sm:$0xff]
    %v6230 = vld [vmem:[#allocation6 + $0x60] sm:$0xff]
    %v6231 = vld [vmem:[#allocation6 + $0x68] sm:$0xff]
    %v6232 = vld [vmem:[#allocation6 + $0x70] sm:$0xff]
    %v6233 = vld [vmem:[#allocation6 + $0x78] sm:$0xff]
    %v6234 = vld [vmem:[#allocation6 + $0x80] sm:$0xff]
    %v6235 = vld [vmem:[#allocation6 + $0x88] sm:$0xff]
    %v6236 = vld [vmem:[#allocation6 + $0x90] sm:$0xff]
    %v6237 = vld [vmem:[#allocation6 + $0x98] sm:$0xff]
    %v6238 = vld [vmem:[#allocation6 + $0xa0] sm:$0xff]
    %v6239 = vld [vmem:[#allocation6 + $0xa8] sm:$0xff]
    %v6240 = vld [vmem:[#allocation6 + $0xb0] sm:$0xff]
    %v6241 = vld [vmem:[#allocation6 + $0xb8] sm:$0xff]
    %v6242 = vld [vmem:[#allocation6 + $0xc0] sm:$0xff]
    %v6243 = vld [vmem:[#allocation6 + $0xc8] sm:$0xff]
    %v6244 = vld [vmem:[#allocation6 + $0xd0] sm:$0xff]
    %v6245 = vld [vmem:[#allocation6 + $0xd8] sm:$0xff]
    %v6246 = vld [vmem:[#allocation6 + $0xe0] sm:$0xff]
    %v6247 = vld [vmem:[#allocation6 + $0xe8] sm:$0xff]
    %v6248 = vld [vmem:[#allocation6 + $0xf0] sm:$0xff]
    %v6249 = vld [vmem:[#allocation6 + $0xf8] sm:$0xff]
    %v6250 = vpack.c.bf16 %v6220, %v6218
    %v6251 = vpack.c.bf16 %v6221, %v6219
    %v6252 = vpack.c.bf16 %v6224, %v6222
    %v6253 = vpack.c.bf16 %v6225, %v6223
    %v6254 = vpack.c.bf16 %v6228, %v6226
    %v6255 = vpack.c.bf16 %v6229, %v6227
    %v6256 = vpack.c.bf16 %v6232, %v6230
    %v6257 = vpack.c.bf16 %v6233, %v6231
    %v6258 = vpack.c.bf16 %v6236, %v6234
    %v6259 = vpack.c.bf16 %v6237, %v6235
    %v6260 = vpack.c.bf16 %v6240, %v6238
    %v6261 = vpack.c.bf16 %v6241, %v6239
    %v6262 = vpack.c.bf16 %v6244, %v6242
    %v6263 = vpack.c.bf16 %v6245, %v6243
    %v6264 = vpack.c.bf16 %v6248, %v6246
    %v6265 = vpack.c.bf16 %v6249, %v6247
    %v6266 = vld [vmem:[%s4] sm:$0xf]
    %v6267 = vld [vmem:[%s4 + $0x4] sm:$0xf]
    %v6268 = vld [vmem:[%s4 + $0x8] sm:$0xf]
    %v6269 = vld [vmem:[%s4 + $0xc] sm:$0xf]
    %v6270 = vld [vmem:[%s4 + $0x10] sm:$0xf]
    %v6271 = vld [vmem:[%s4 + $0x14] sm:$0xf]
    %v6272 = vld [vmem:[%s4 + $0x18] sm:$0xf]
    %v6273 = vld [vmem:[%s4 + $0x1c] sm:$0xf]
    %v6274 = vld [vmem:[%s4 + $0x20] sm:$0xf]
    %v6275 = vld [vmem:[%s4 + $0x24] sm:$0xf]
    %v6276 = vld [vmem:[%s4 + $0x28] sm:$0xf]
    %v6277 = vld [vmem:[%s4 + $0x2c] sm:$0xf]
    %v6278 = vld [vmem:[%s4 + $0x30] sm:$0xf]
    %v6279 = vld [vmem:[%s4 + $0x34] sm:$0xf]
    %v6280 = vld [vmem:[%s4 + $0x38] sm:$0xf]
    %v6281 = vld [vmem:[%s4 + $0x3c] sm:$0xf]
    %v6282 = vld [vmem:[%s4 + $0x40] sm:$0xf]
    %v6283 = vld [vmem:[%s4 + $0x44] sm:$0xf]
    %v6302 = vunpack.c.l.b16 %v6266
    %v6303 = vunpack.c.l.b16 %v6267
    %v6304 = vunpack.c.l.b16 %v6268
    %v6305 = vunpack.c.l.b16 %v6269
    %v6306 = vunpack.c.l.b16 %v6270
    %v6307 = vunpack.c.l.b16 %v6271
    %v6308 = vunpack.c.l.b16 %v6272
    %v6309 = vunpack.c.l.b16 %v6273
    %v6310 = vunpack.c.l.b16 %v6274
    %v6311 = vunpack.c.l.b16 %v6275
    %v6312 = vunpack.c.l.b16 %v6276
    %v6313 = vunpack.c.l.b16 %v6277
    %v6314 = vunpack.c.l.b16 %v6278
    %v6315 = vunpack.c.l.b16 %v6279
    %v6316 = vunpack.c.l.b16 %v6280
    %v6317 = vunpack.c.l.b16 %v6281
    %v6318 = vunpack.c.l.b16 %v6282
    %v6319 = vunpack.c.l.b16 %v6283
    %v6320 = vpack.c.b16 %v6303, %v6302
    %v6321 = vpack.c.b16 %v6305, %v6304
    %v6322 = vpack.c.b16 %v6307, %v6306
    %v6323 = vpack.c.b16 %v6309, %v6308
    %v6324 = vpack.c.b16 %v6311, %v6310
    %v6325 = vpack.c.b16 %v6313, %v6312
    %v6326 = vpack.c.b16 %v6315, %v6314
    %v6327 = vpack.c.b16 %v6317, %v6316
    %v6328 = vpack.c.b16 %v6319, %v6318
    %v6339 = vsel %vm3980, %v6251, 0
    %v6342 = vsel %vm3980, %v6253, 0
    %v6345 = vsel %vm3980, %v6255, 0
    %v6348 = vsel %vm3980, %v6257, 0
    %v6351 = vsel %vm3980, %v6259, 0
    %v6354 = vsel %vm3980, %v6261, 0
    %v6357 = vsel %vm3980, %v6263, 0
    %v6360 = vsel %vm3980, %v6265, 0
    %6362 = vmatprep.subr.bf16.mxu0 0
    %6363 = vmatpush1.bf16.msra.mxu0 %v6320
    %6364 = vmatprep.subr.bf16.mxu0 0
    %6365 = vmatpush1.bf16.msra.mxu0 %v6321
    %6366 = vmatprep.subr.bf16.mxu0 0
    %6367 = vmatpush1.bf16.msra.mxu0 %v6322
    %6368 = vmatprep.subr.bf16.mxu0 0
    %6369 = vmatpush1.bf16.msra.mxu0 %v6323
    %6370 = vmatprep.subr.bf16.mxu0 0
    %6371 = vmatpush1.bf16.msra.mxu0 %v6324
    %6372 = vmatprep.subr.bf16.mxu0 0
    %6373 = vmatpush1.bf16.msra.mxu0 %v6325
    %6374 = vmatprep.subr.bf16.mxu0 0
    %6375 = vmatpush1.bf16.msra.mxu0 %v6326
    %6376 = vmatprep.subr.bf16.mxu0 0
    %6377 = vmatpush1.bf16.msra.mxu0 %v6327
    %6378 = vmatprep.subr.bf16.mxu0 0
    %6379 = vmatpush1.bf16.msra.mxu0 %v6328
    %6380 = vmatprep.subr.bf16.mxu0 0
    %6381 = vmatpush1.bf16.msra.mxu0 0
    %6382 = vmatprep.subr.bf16.mxu0 0
    %6383 = vmatpush1.bf16.msra.mxu0 0
    %6384 = vmatprep.subr.bf16.mxu0 0
    %6385 = vmatpush1.bf16.msra.mxu0 0
    %6386 = vmatprep.subr.bf16.mxu0 0
    %6387 = vmatpush1.bf16.msra.mxu0 0
    %6388 = vmatprep.subr.bf16.mxu0 0
    %6389 = vmatpush1.bf16.msra.mxu0 0
    %6390 = vmatprep.subr.bf16.mxu0 0
    %6391 = vmatpush1.bf16.msra.mxu0 0
    %6392 = vmatprep.subr.bf16.mxu0 0
    %6393 = vmatpush1.bf16.msra.mxu0 0
    %6394 = vmatprep.mubr.bf16.mxu0 %v6339
    %6395 = vmatmul.mubr.bf16.gmra.mrb[0].mxu0 %v6250
    %v6396 = vpop.f32.mrb[0].mxu0
    %v6397 = vadd.f32 0.0, %v6396
    %v6398 = vpop.f32.mrb[0].mxu0
    %v6399 = vpop.f32.mrb[0].mxu0
    %v6400 = vadd.f32 0.0, %v6399
    %v6401 = vpop.f32.mrb[0].mxu0
    %6402 = vmatprep.mubr.bf16.mxu0 %v6342
    %6403 = vmatmul.mubr.bf16.gmra.mrb[0].mxu0 %v6252
    %v6404 = vpop.f32.mrb[0].mxu0
    %v6405 = vadd.f32 0.0, %v6404
    %v6406 = vpop.f32.mrb[0].mxu0
    %v6407 = vpop.f32.mrb[0].mxu0
    %v6408 = vadd.f32 0.0, %v6407
    %v6409 = vpop.f32.mrb[0].mxu0
    %6410 = vmatprep.mubr.bf16.mxu0 %v6345
    %6411 = vmatmul.mubr.bf16.gmra.mrb[0].mxu0 %v6254
    %v6412 = vpop.f32.mrb[0].mxu0
    %v6413 = vadd.f32 0.0, %v6412
    %v6414 = vpop.f32.mrb[0].mxu0
    %v6415 = vpop.f32.mrb[0].mxu0
    %v6416 = vadd.f32 0.0, %v6415
    %v6417 = vpop.f32.mrb[0].mxu0
    %6418 = vmatprep.mubr.bf16.mxu0 %v6348
    %6419 = vmatmul.mubr.bf16.gmra.mrb[0].mxu0 %v6256
    %v6420 = vpop.f32.mrb[0].mxu0
    %v6421 = vadd.f32 0.0, %v6420
    %v6422 = vpop.f32.mrb[0].mxu0
    %v6423 = vpop.f32.mrb[0].mxu0
    %v6424 = vadd.f32 0.0, %v6423
    %v6425 = vpop.f32.mrb[0].mxu0
    %6426 = vmatprep.mubr.bf16.mxu0 %v6351
    %6427 = vmatmul.mubr.bf16.gmra.mrb[0].mxu0 %v6258
    %v6428 = vpop.f32.mrb[0].mxu0
    %v6429 = vadd.f32 0.0, %v6428
    %v6430 = vpop.f32.mrb[0].mxu0
    %v6431 = vpop.f32.mrb[0].mxu0
    %v6432 = vadd.f32 0.0, %v6431
    %v6433 = vpop.f32.mrb[0].mxu0
    %6434 = vmatprep.mubr.bf16.mxu0 %v6354
    %6435 = vmatmul.mubr.bf16.gmra.mrb[0].mxu0 %v6260
    %v6436 = vpop.f32.mrb[0].mxu0
    %v6437 = vadd.f32 0.0, %v6436
    %v6438 = vpop.f32.mrb[0].mxu0
    %v6439 = vpop.f32.mrb[0].mxu0
    %v6440 = vadd.f32 0.0, %v6439
    %v6441 = vpop.f32.mrb[0].mxu0
    %6442 = vmatprep.mubr.bf16.mxu0 %v6357
    %6443 = vmatmul.mubr.bf16.gmra.mrb[0].mxu0 %v6262
    %v6444 = vpop.f32.mrb[0].mxu0
    %v6445 = vadd.f32 0.0, %v6444
    %v6446 = vpop.f32.mrb[0].mxu0
    %v6447 = vpop.f32.mrb[0].mxu0
    %v6448 = vadd.f32 0.0, %v6447
    %v6449 = vpop.f32.mrb[0].mxu0
    %6450 = vmatprep.mubr.bf16.mxu0 %v6360
    %6451 = vmatmul.mubr.bf16.gmra.mrb[0].mxu0 %v6264
    %v6452 = vpop.f32.mrb[0].mxu0
    %v6453 = vadd.f32 0.0, %v6452
    %v6454 = vpop.f32.mrb[0].mxu0
    %v6455 = vpop.f32.mrb[0].mxu0
    %v6456 = vadd.f32 0.0, %v6455
    %v6457 = vpop.f32.mrb[0].mxu0
    %6458 = vdwg.mxu0
    %v6459 = vld [vmem:[%s5] sm:$0x1]
    %v6460 = vld [vmem:[%s6] sm:$0x1]
    %vm6461 = vcmask 261120
    %v6462 = vsel %vm6461, %v6397, 0.0
    %v6463 = vsel %vm6461, %v6400, 0.0
    %v6464 = vadd.f32 %v6462, %v6463
    %v6465 = vsel %vm6461, %v6405, 0.0
    %v6466 = vadd.f32 %v6464, %v6465
    %v6467 = vsel %vm6461, %v6408, 0.0
    %v6468 = vadd.f32 %v6466, %v6467
    %v6469 = vsel %vm6461, %v6413, 0.0
    %v6470 = vadd.f32 %v6468, %v6469
    %v6471 = vsel %vm6461, %v6416, 0.0
    %v6472 = vadd.f32 %v6470, %v6471
    %v6473 = vsel %vm6461, %v6421, 0.0
    %v6474 = vadd.f32 %v6472, %v6473
    %v6475 = vsel %vm6461, %v6424, 0.0
    %v6476 = vadd.f32 %v6474, %v6475
    %v6477 = vsel %vm6461, %v6429, 0.0
    %v6478 = vadd.f32 %v6476, %v6477
    %v6479 = vsel %vm6461, %v6432, 0.0
    %v6480 = vadd.f32 %v6478, %v6479
    %v6481 = vsel %vm6461, %v6437, 0.0
    %v6482 = vadd.f32 %v6480, %v6481
    %v6483 = vsel %vm6461, %v6440, 0.0
    %v6484 = vadd.f32 %v6482, %v6483
    %v6485 = vsel %vm6461, %v6445, 0.0
    %v6486 = vadd.f32 %v6484, %v6485
    %v6487 = vsel %vm6461, %v6448, 0.0
    %v6488 = vadd.f32 %v6486, %v6487
    %v6489 = vsel %vm6461, %v6453, 0.0
    %v6490 = vadd.f32 %v6488, %v6489
    %v6491 = vsel %vm6461, %v6456, 0.0
    %v6492 = vadd.f32 %v6490, %v6491
    %v6493 = vrot.slane %v6492, 4
    %v6494 = vadd.f32 %v6492, %v6493
    %v6495 = vrot.slane %v6494, 2
    %v6496 = vadd.f32 %v6494, %v6495
    %v6497 = vrot.slane %v6496, 1
    %v6498 = vadd.f32 %v6496, %v6497
    %v6499 = vmul.f32 %v6397, %v6397
    %v6500 = vmul.f32 %v6400, %v6400
    %v6501 = vmul.f32 %v6405, %v6405
    %v6502 = vmul.f32 %v6408, %v6408
    %v6503 = vmul.f32 %v6413, %v6413
    %v6504 = vmul.f32 %v6416, %v6416
    %v6505 = vmul.f32 %v6421, %v6421
    %v6506 = vmul.f32 %v6424, %v6424
    %v6507 = vmul.f32 %v6429, %v6429
    %v6508 = vmul.f32 %v6432, %v6432
    %v6509 = vmul.f32 %v6437, %v6437
    %v6510 = vmul.f32 %v6440, %v6440
    %v6511 = vmul.f32 %v6445, %v6445
    %v6512 = vmul.f32 %v6448, %v6448
    %v6513 = vmul.f32 %v6453, %v6453
    %v6514 = vmul.f32 %v6456, %v6456
    %v6515 = vsel %vm6461, %v6499, 0.0
    %v6516 = vsel %vm6461, %v6500, 0.0
    %v6517 = vadd.f32 %v6515, %v6516
    %v6518 = vsel %vm6461, %v6501, 0.0
    %v6519 = vadd.f32 %v6517, %v6518
    %v6520 = vsel %vm6461, %v6502, 0.0
    %v6521 = vadd.f32 %v6519, %v6520
    %v6522 = vsel %vm6461, %v6503, 0.0
    %v6523 = vadd.f32 %v6521, %v6522
    %v6524 = vsel %vm6461, %v6504, 0.0
    %v6525 = vadd.f32 %v6523, %v6524
    %v6526 = vsel %vm6461, %v6505, 0.0
    %v6527 = vadd.f32 %v6525, %v6526
    %v6528 = vsel %vm6461, %v6506, 0.0
    %v6529 = vadd.f32 %v6527, %v6528
    %v6530 = vsel %vm6461, %v6507, 0.0
    %v6531 = vadd.f32 %v6529, %v6530
    %v6532 = vsel %vm6461, %v6508, 0.0
    %v6533 = vadd.f32 %v6531, %v6532
    %v6534 = vsel %vm6461, %v6509, 0.0
    %v6535 = vadd.f32 %v6533, %v6534
    %v6536 = vsel %vm6461, %v6510, 0.0
    %v6537 = vadd.f32 %v6535, %v6536
    %v6538 = vsel %vm6461, %v6511, 0.0
    %v6539 = vadd.f32 %v6537, %v6538
    %v6540 = vsel %vm6461, %v6512, 0.0
    %v6541 = vadd.f32 %v6539, %v6540
    %v6542 = vsel %vm6461, %v6513, 0.0
    %v6543 = vadd.f32 %v6541, %v6542
    %v6544 = vsel %vm6461, %v6514, 0.0
    %v6545 = vadd.f32 %v6543, %v6544
    %v6546 = vrot.slane %v6545, 4
    %v6547 = vadd.f32 %v6545, %v6546
    %v6548 = vrot.slane %v6547, 2
    %v6549 = vadd.f32 %v6547, %v6548
    %v6550 = vrot.slane %v6549, 1
    %v6551 = vadd.f32 %v6549, %v6550
    %v6552 = vmul.f32 %v6498, 0.0078125
    %v6553 = vmul.f32 %v6551, 0.0078125
    %v6554 = vmul.f32 %v6552, %v6552
    %v6555 = vsub.f32 %v6553, %v6554
    %v6556 = vmax.f32 %v6555, 0.0
    %v6557 = vadd.f32 %v6556, 1e-05
    %v6558 = vrsqrt.pop %v6557
    %v6559 = vmul.f32 %v6459, %v6558
    %v6560 = vsub.f32 %v6397, %v6552
    %v6561 = vsub.f32 %v6400, %v6552
    %v6562 = vsub.f32 %v6405, %v6552
    %v6563 = vsub.f32 %v6408, %v6552
    %v6564 = vsub.f32 %v6413, %v6552
    %v6565 = vsub.f32 %v6416, %v6552
    %v6566 = vsub.f32 %v6421, %v6552
    %v6567 = vsub.f32 %v6424, %v6552
    %v6568 = vsub.f32 %v6429, %v6552
    %v6569 = vsub.f32 %v6432, %v6552
    %v6570 = vsub.f32 %v6437, %v6552
    %v6571 = vsub.f32 %v6440, %v6552
    %v6572 = vsub.f32 %v6445, %v6552
    %v6573 = vsub.f32 %v6448, %v6552
    %v6574 = vsub.f32 %v6453, %v6552
    %v6575 = vsub.f32 %v6456, %v6552
    %v6577 = vlaneseq
    %v6578 = vshrl.u32 %v6577, 7
    %v6579 = vsub.s32 0, %v6578
    %v6580 = vrot.slane %v6559, %v6579
    %v6582 = vmul.f32 %v6560, %v6580
    %v6583 = vmul.f32 %v6561, %v6580
    %v6584 = vmul.f32 %v6562, %v6580
    %v6585 = vmul.f32 %v6563, %v6580
    %v6586 = vmul.f32 %v6564, %v6580
    %v6587 = vmul.f32 %v6565, %v6580
    %v6588 = vmul.f32 %v6566, %v6580
    %v6589 = vmul.f32 %v6567, %v6580
    %v6590 = vmul.f32 %v6568, %v6580
    %v6591 = vmul.f32 %v6569, %v6580
    %v6592 = vmul.f32 %v6570, %v6580
    %v6593 = vmul.f32 %v6571, %v6580
    %v6594 = vmul.f32 %v6572, %v6580
    %v6595 = vmul.f32 %v6573, %v6580
    %v6596 = vmul.f32 %v6574, %v6580
    %v6597 = vmul.f32 %v6575, %v6580
    %v6599 = vlaneseq
    %v6600 = vshrl.u32 %v6599, 7
    %v6601 = vsub.s32 0, %v6600
    %v6602 = vrot.slane %v6460, %v6601
    %v6604 = vadd.f32 %v6582, %v6602
    %v6605 = vadd.f32 %v6583, %v6602
    %v6606 = vadd.f32 %v6584, %v6602
    %v6607 = vadd.f32 %v6585, %v6602
    %v6608 = vadd.f32 %v6586, %v6602
    %v6609 = vadd.f32 %v6587, %v6602
    %v6610 = vadd.f32 %v6588, %v6602
    %v6611 = vadd.f32 %v6589, %v6602
    %v6612 = vadd.f32 %v6590, %v6602
    %v6613 = vadd.f32 %v6591, %v6602
    %v6614 = vadd.f32 %v6592, %v6602
    %v6615 = vadd.f32 %v6593, %v6602
    %v6616 = vadd.f32 %v6594, %v6602
    %v6617 = vadd.f32 %v6595, %v6602
    %v6618 = vadd.f32 %v6596, %v6602
    %v6619 = vadd.f32 %v6597, %v6602
    %v6620 = vmax.f32 %v6604, 0.0
    %v6621 = vmax.f32 %v6605, 0.0
    %v6622 = vmax.f32 %v6606, 0.0
    %v6623 = vmax.f32 %v6607, 0.0
    %v6624 = vmax.f32 %v6608, 0.0
    %v6625 = vmax.f32 %v6609, 0.0
    %v6626 = vmax.f32 %v6610, 0.0
    %v6627 = vmax.f32 %v6611, 0.0
    %v6628 = vmax.f32 %v6612, 0.0
    %v6629 = vmax.f32 %v6613, 0.0
    %v6630 = vmax.f32 %v6614, 0.0
    %v6631 = vmax.f32 %v6615, 0.0
    %v6632 = vmax.f32 %v6616, 0.0
    %v6633 = vmax.f32 %v6617, 0.0
    %v6634 = vmax.f32 %v6618, 0.0
    %v6635 = vmax.f32 %v6619, 0.0
    %v6636 = vmax.f32 %v6620, %v6621
    %v6637 = vmax.f32 %v6622, %v6623
    %v6638 = vmax.f32 %v6624, %v6625
    %v6639 = vmax.f32 %v6626, %v6627
    %6640 = vst.msk [vmem:[#allocation7] sm:$0xff] %vm6461, %v6636
    %6641 = vst.msk [vmem:[#allocation7 + $0x8] sm:$0xff] %vm6461, %v6637
    %6642 = vst.msk [vmem:[#allocation7 + $0x10] sm:$0xff] %vm6461, %v6638
    %6643 = vst.msk [vmem:[#allocation7 + $0x18] sm:$0xff] %vm6461, %v6639
    %v6644 = vmax.f32 %v6628, %v6629
    %v6645 = vmax.f32 %v6630, %v6631
    %v6646 = vmax.f32 %v6632, %v6633
    %v6647 = vmax.f32 %v6634, %v6635
    %s6648 = scalar_lea.vmem [#allocation7], 32
    %6649 = vst.msk [vmem:[%s6648] sm:$0xff] %vm6461, %v6644
    %6650 = vst.msk [vmem:[%s6648 + $0x8] sm:$0xff] %vm6461, %v6645
    %6651 = vst.msk [vmem:[%s6648 + $0x10] sm:$0xff] %vm6461, %v6646
    %6652 = vst.msk [vmem:[%s6648 + $0x18] sm:$0xff] %vm6461, %v6647
    %v6653 = vld [vmem:[#allocation7] sm:$0x1]
    %v6654 = vld [vmem:[#allocation7 + $0x8] sm:$0x1]
    %v6655 = vld [vmem:[#allocation7 + $0x10] sm:$0x1]
    %v6656 = vld [vmem:[#allocation7 + $0x18] sm:$0x1]
    %v6657 = vld [vmem:[#allocation7 + $0x1] sm:$0x1]
    %v6658 = vld [vmem:[#allocation7 + $0x9] sm:$0x1]
    %v6659 = vld [vmem:[#allocation7 + $0x11] sm:$0x1]
    %v6660 = vld [vmem:[#allocation7 + $0x19] sm:$0x1]
    %v6661 = vmax.f32 %v6653, %v6657
    %v6662 = vmax.f32 %v6654, %v6658
    %v6663 = vmax.f32 %v6655, %v6659
    %v6664 = vmax.f32 %v6656, %v6660
    %v6669 = vrot.slane %v6662, 7
    %v6670 = vsel %vm4757, %v6669, %v6661
    %v6671 = vrot.slane %v6663, 6
    %v6672 = vsel %vm4760, %v6671, %v6670
    %v6673 = vrot.slane %v6664, 5
    %v6674 = vsel %vm4763, %v6673, %v6672
    %vm6676 = vcmask 257024
    %6677 = vst.msk [vmem:[#allocation8] sm:$0xf] %vm6676, %v6674
    %v6678 = vld [vmem:[#allocation7 + $0x2] sm:$0x1]
    %v6679 = vld [vmem:[#allocation7 + $0xa] sm:$0x1]
    %v6680 = vld [vmem:[#allocation7 + $0x12] sm:$0x1]
    %v6681 = vld [vmem:[#allocation7 + $0x1a] sm:$0x1]
    %v6682 = vld [vmem:[#allocation7 + $0x3] sm:$0x1]
    %v6683 = vld [vmem:[#allocation7 + $0xb] sm:$0x1]
    %v6684 = vld [vmem:[#allocation7 + $0x13] sm:$0x1]
    %v6685 = vld [vmem:[#allocation7 + $0x1b] sm:$0x1]
    %v6686 = vmax.f32 %v6678, %v6682
    %v6687 = vmax.f32 %v6679, %v6683
    %v6688 = vmax.f32 %v6680, %v6684
    %v6689 = vmax.f32 %v6681, %v6685
    %v6694 = vrot.slane %v6687, 7
    %v6695 = vsel %vm4757, %v6694, %v6686
    %v6696 = vrot.slane %v6688, 6
    %v6697 = vsel %vm4760, %v6696, %v6695
    %v6698 = vrot.slane %v6689, 5
    %v6699 = vsel %vm4763, %v6698, %v6697
    %6701 = vst.msk [vmem:[#allocation8 + $0x4] sm:$0xf] %vm6676, %v6699
    %v6702 = vld [vmem:[#allocation7 + $0x4] sm:$0x1]
    %v6703 = vld [vmem:[#allocation7 + $0xc] sm:$0x1]
    %v6704 = vld [vmem:[#allocation7 + $0x14] sm:$0x1]
    %v6705 = vld [vmem:[#allocation7 + $0x1c] sm:$0x1]
    %v6706 = vld [vmem:[#allocation7 + $0x5] sm:$0x1]
    %v6707 = vld [vmem:[#allocation7 + $0xd] sm:$0x1]
    %v6708 = vld [vmem:[#allocation7 + $0x15] sm:$0x1]
    %v6709 = vld [vmem:[#allocation7 + $0x1d] sm:$0x1]
    %v6710 = vmax.f32 %v6702, %v6706
    %v6711 = vmax.f32 %v6703, %v6707
    %v6712 = vmax.f32 %v6704, %v6708
    %v6713 = vmax.f32 %v6705, %v6709
    %v6718 = vrot.slane %v6711, 7
    %v6719 = vsel %vm4757, %v6718, %v6710
    %v6720 = vrot.slane %v6712, 6
    %v6721 = vsel %vm4760, %v6720, %v6719
    %v6722 = vrot.slane %v6713, 5
    %v6723 = vsel %vm4763, %v6722, %v6721
    %6725 = vst.msk [vmem:[#allocation8 + $0x8] sm:$0xf] %vm6676, %v6723
    %v6726 = vld [vmem:[#allocation7 + $0x6] sm:$0x1]
    %v6727 = vld [vmem:[#allocation7 + $0xe] sm:$0x1]
    %v6728 = vld [vmem:[#allocation7 + $0x16] sm:$0x1]
    %v6729 = vld [vmem:[#allocation7 + $0x1e] sm:$0x1]
    %v6730 = vld [vmem:[#allocation7 + $0x7] sm:$0x1]
    %v6731 = vld [vmem:[#allocation7 + $0xf] sm:$0x1]
    %v6732 = vld [vmem:[#allocation7 + $0x17] sm:$0x1]
    %v6733 = vld [vmem:[#allocation7 + $0x1f] sm:$0x1]
    %v6734 = vmax.f32 %v6726, %v6730
    %v6735 = vmax.f32 %v6727, %v6731
    %v6736 = vmax.f32 %v6728, %v6732
    %v6737 = vmax.f32 %v6729, %v6733
    %v6742 = vrot.slane %v6735, 7
    %v6743 = vsel %vm4757, %v6742, %v6734
    %v6744 = vrot.slane %v6736, 6
    %v6745 = vsel %vm4760, %v6744, %v6743
    %v6746 = vrot.slane %v6737, 5
    %v6747 = vsel %vm4763, %v6746, %v6745
    %6749 = vst.msk [vmem:[#allocation8 + $0xc] sm:$0xf] %vm6676, %v6747
    %v6750 = vld [vmem:[%s6648] sm:$0x1]
    %v6751 = vld [vmem:[%s6648 + $0x8] sm:$0x1]
    %v6752 = vld [vmem:[%s6648 + $0x10] sm:$0x1]
    %v6753 = vld [vmem:[%s6648 + $0x18] sm:$0x1]
    %v6754 = vld [vmem:[%s6648 + $0x1] sm:$0x1]
    %v6755 = vld [vmem:[%s6648 + $0x9] sm:$0x1]
    %v6756 = vld [vmem:[%s6648 + $0x11] sm:$0x1]
    %v6757 = vld [vmem:[%s6648 + $0x19] sm:$0x1]
    %v6758 = vmax.f32 %v6750, %v6754
    %v6759 = vmax.f32 %v6751, %v6755
    %v6760 = vmax.f32 %v6752, %v6756
    %v6761 = vmax.f32 %v6753, %v6757
    %v6766 = vrot.slane %v6759, 7
    %v6767 = vsel %vm4757, %v6766, %v6758
    %v6768 = vrot.slane %v6760, 6
    %v6769 = vsel %vm4760, %v6768, %v6767
    %v6770 = vrot.slane %v6761, 5
    %v6771 = vsel %vm4763, %v6770, %v6769
    %s6773 = scalar_lea.vmem [#allocation8], 16
    %6774 = vst.msk [vmem:[%s6773] sm:$0xf] %vm6676, %v6771
    %v6775 = vld [vmem:[%s6648 + $0x2] sm:$0x1]
    %v6776 = vld [vmem:[%s6648 + $0xa] sm:$0x1]
    %v6777 = vld [vmem:[%s6648 + $0x12] sm:$0x1]
    %v6778 = vld [vmem:[%s6648 + $0x1a] sm:$0x1]
    %v6779 = vld [vmem:[%s6648 + $0x3] sm:$0x1]
    %v6780 = vld [vmem:[%s6648 + $0xb] sm:$0x1]
    %v6781 = vld [vmem:[%s6648 + $0x13] sm:$0x1]
    %v6782 = vld [vmem:[%s6648 + $0x1b] sm:$0x1]
    %v6783 = vmax.f32 %v6775, %v6779
    %v6784 = vmax.f32 %v6776, %v6780
    %v6785 = vmax.f32 %v6777, %v6781
    %v6786 = vmax.f32 %v6778, %v6782
    %v6791 = vrot.slane %v6784, 7
    %v6792 = vsel %vm4757, %v6791, %v6783
    %v6793 = vrot.slane %v6785, 6
    %v6794 = vsel %vm4760, %v6793, %v6792
    %v6795 = vrot.slane %v6786, 5
    %v6796 = vsel %vm4763, %v6795, %v6794
    %6798 = vst.msk [vmem:[%s6773 + $0x4] sm:$0xf] %vm6676, %v6796
    %v6799 = vld [vmem:[%s6648 + $0x4] sm:$0x1]
    %v6800 = vld [vmem:[%s6648 + $0xc] sm:$0x1]
    %v6801 = vld [vmem:[%s6648 + $0x14] sm:$0x1]
    %v6802 = vld [vmem:[%s6648 + $0x1c] sm:$0x1]
    %v6803 = vld [vmem:[%s6648 + $0x5] sm:$0x1]
    %v6804 = vld [vmem:[%s6648 + $0xd] sm:$0x1]
    %v6805 = vld [vmem:[%s6648 + $0x15] sm:$0x1]
    %v6806 = vld [vmem:[%s6648 + $0x1d] sm:$0x1]
    %v6807 = vmax.f32 %v6799, %v6803
    %v6808 = vmax.f32 %v6800, %v6804
    %v6809 = vmax.f32 %v6801, %v6805
    %v6810 = vmax.f32 %v6802, %v6806
    %v6815 = vrot.slane %v6808, 7
    %v6816 = vsel %vm4757, %v6815, %v6807
    %v6817 = vrot.slane %v6809, 6
    %v6818 = vsel %vm4760, %v6817, %v6816
    %v6819 = vrot.slane %v6810, 5
    %v6820 = vsel %vm4763, %v6819, %v6818
    %6822 = vst.msk [vmem:[%s6773 + $0x8] sm:$0xf] %vm6676, %v6820
    %v6823 = vld [vmem:[%s6648 + $0x6] sm:$0x1]
    %v6824 = vld [vmem:[%s6648 + $0xe] sm:$0x1]
    %v6825 = vld [vmem:[%s6648 + $0x16] sm:$0x1]
    %v6826 = vld [vmem:[%s6648 + $0x1e] sm:$0x1]
    %v6827 = vld [vmem:[%s6648 + $0x7] sm:$0x1]
    %v6828 = vld [vmem:[%s6648 + $0xf] sm:$0x1]
    %v6829 = vld [vmem:[%s6648 + $0x17] sm:$0x1]
    %v6830 = vld [vmem:[%s6648 + $0x1f] sm:$0x1]
    %v6831 = vmax.f32 %v6823, %v6827
    %v6832 = vmax.f32 %v6824, %v6828
    %v6833 = vmax.f32 %v6825, %v6829
    %v6834 = vmax.f32 %v6826, %v6830
    %v6839 = vrot.slane %v6832, 7
    %v6840 = vsel %vm4757, %v6839, %v6831
    %v6841 = vrot.slane %v6833, 6
    %v6842 = vsel %vm4760, %v6841, %v6840
    %v6843 = vrot.slane %v6834, 5
    %v6844 = vsel %vm4763, %v6843, %v6842
    %6846 = vst.msk [vmem:[%s6773 + $0xc] sm:$0xf] %vm6676, %v6844
    %v6847 = vld [vmem:[#allocation8] sm:$0x1]
    %v6848 = vld [vmem:[#allocation8 + $0x10] sm:$0x1]
    %v6849 = vpack.c.bf16 %v6847, %v6847
    %v6850 = vpack.c.bf16 %v6848, %v6848
    %v6851 = vld [vmem:[%s7] sm:$0xf]
    %v6852 = vld [vmem:[%s7 + $0x4] sm:$0xf]
    %v6853 = vld [vmem:[%s7 + $0x8] sm:$0xf]
    %v6854 = vld [vmem:[%s7 + $0xc] sm:$0xf]
    %v6855 = vld [vmem:[#allocation8 + $0x1] sm:$0x1]
    %v6856 = vld [vmem:[#allocation8 + $0x11] sm:$0x1]
    %v6857 = vpack.c.bf16 %v6855, %v6855
    %v6858 = vpack.c.bf16 %v6856, %v6856
    %s6859 = scalar_lea.vmem %s7, 16
    %v6860 = vld [vmem:[%s6859] sm:$0xf]
    %v6861 = vld [vmem:[%s6859 + $0x4] sm:$0xf]
    %v6862 = vld [vmem:[%s6859 + $0x8] sm:$0xf]
    %v6863 = vld [vmem:[%s6859 + $0xc] sm:$0xf]
    %v6866 = vunpack.c.l.b16 %v6857
    %v6867 = vunpack.c.l.b16 %v6858
    %v6868 = vrot.slane %v6867, 7
    %v6869 = vsel %vm4757, %v6868, %v6866
    %v6870 = vpack.c.b16 %v6869, %v6869
    %v6875 = vunpack.c.l.b16 %v6860
    %v6876 = vunpack.c.l.b16 %v6861
    %v6877 = vunpack.c.l.b16 %v6862
    %v6878 = vunpack.c.l.b16 %v6863
    %v6879 = vpack.c.b16 %v6876, %v6875
    %v6880 = vpack.c.b16 %v6878, %v6877
    %v6884 = vsel %vm6461, %v6870, 0
    %6886 = vmatprep.subr.bf16.mxu0 0
    %6887 = vmatpush1.bf16.msra.mxu0 %v6879
    %6888 = vmatprep.subr.bf16.mxu0 0
    %6889 = vmatpush1.bf16.msra.mxu0 %v6880
    %6890 = vmatprep.subr.bf16.mxu0 0
    %6891 = vmatpush1.bf16.msra.mxu0 0
    %6892 = vmatprep.subr.bf16.mxu0 0
    %6893 = vmatpush1.bf16.msra.mxu0 0
    %6894 = vmatprep.subr.bf16.mxu0 0
    %6895 = vmatpush1.bf16.msra.mxu0 0
    %6896 = vmatprep.subr.bf16.mxu0 0
    %6897 = vmatpush1.bf16.msra.mxu0 0
    %6898 = vmatprep.subr.bf16.mxu0 0
    %6899 = vmatpush1.bf16.msra.mxu0 0
    %6900 = vmatprep.subr.bf16.mxu0 0
    %6901 = vmatpush1.bf16.msra.mxu0 0
    %6902 = vmatprep.subr.bf16.mxu0 0
    %6903 = vmatpush1.bf16.msra.mxu0 0
    %6904 = vmatprep.subr.bf16.mxu0 0
    %6905 = vmatpush1.bf16.msra.mxu0 0
    %6906 = vmatprep.subr.bf16.mxu0 0
    %6907 = vmatpush1.bf16.msra.mxu0 0
    %6908 = vmatprep.subr.bf16.mxu0 0
    %6909 = vmatpush1.bf16.msra.mxu0 0
    %6910 = vmatprep.subr.bf16.mxu0 0
    %6911 = vmatpush1.bf16.msra.mxu0 0
    %6912 = vmatprep.subr.bf16.mxu0 0
    %6913 = vmatpush1.bf16.msra.mxu0 0
    %6914 = vmatprep.subr.bf16.mxu0 0
    %6915 = vmatpush1.bf16.msra.mxu0 0
    %6916 = vmatprep.subr.bf16.mxu0 0
    %6917 = vmatpush1.bf16.msra.mxu0 0
    %6918 = vmatprep.mubr.bf16.mxu0 0
    %6919 = vmatmul.mubr.bf16.gmra.mrb[0].mxu0 %v6884
    %v6920 = vpop.f32.mrb[0].mxu0
    %v6921 = vadd.f32 0.0, %v6920
    %v6922 = vpop.f32.mrb[0].mxu0
    %v6923 = vpop.f32.mrb[0].mxu0
    %v6924 = vpop.f32.mrb[0].mxu0
    %6925 = vdwg.mxu0
    %v6928 = vunpack.c.l.b16 %v6849
    %v6929 = vunpack.c.l.b16 %v6850
    %v6930 = vrot.slane %v6929, 7
    %v6931 = vsel %vm4757, %v6930, %v6928
    %v6932 = vpack.c.b16 %v6931, %v6931
    %v6937 = vunpack.c.l.b16 %v6851
    %v6938 = vunpack.c.l.b16 %v6852
    %v6939 = vunpack.c.l.b16 %v6853
    %v6940 = vunpack.c.l.b16 %v6854
    %v6941 = vpack.c.b16 %v6938, %v6937
    %v6942 = vpack.c.b16 %v6940, %v6939
    %v6946 = vsel %vm6461, %v6932, 0
    %6948 = vmatprep.subr.bf16.mxu0 0
    %6949 = vmatpush1.bf16.msra.mxu0 %v6941
    %6950 = vmatprep.subr.bf16.mxu0 0
    %6951 = vmatpush1.bf16.msra.mxu0 %v6942
    %6952 = vmatprep.subr.bf16.mxu0 0
    %6953 = vmatpush1.bf16.msra.mxu0 0
    %6954 = vmatprep.subr.bf16.mxu0 0
    %6955 = vmatpush1.bf16.msra.mxu0 0
    %6956 = vmatprep.subr.bf16.mxu0 0
    %6957 = vmatpush1.bf16.msra.mxu0 0
    %6958 = vmatprep.subr.bf16.mxu0 0
    %6959 = vmatpush1.bf16.msra.mxu0 0
    %6960 = vmatprep.subr.bf16.mxu0 0
    %6961 = vmatpush1.bf16.msra.mxu0 0
    %6962 = vmatprep.subr.bf16.mxu0 0
    %6963 = vmatpush1.bf16.msra.mxu0 0
    %6964 = vmatprep.subr.bf16.mxu0 0
    %6965 = vmatpush1.bf16.msra.mxu0 0
    %6966 = vmatprep.subr.bf16.mxu0 0
    %6967 = vmatpush1.bf16.msra.mxu0 0
    %6968 = vmatprep.subr.bf16.mxu0 0
    %6969 = vmatpush1.bf16.msra.mxu0 0
    %6970 = vmatprep.subr.bf16.mxu0 0
    %6971 = vmatpush1.bf16.msra.mxu0 0
    %6972 = vmatprep.subr.bf16.mxu0 0
    %6973 = vmatpush1.bf16.msra.mxu0 0
    %6974 = vmatprep.subr.bf16.mxu0 0
    %6975 = vmatpush1.bf16.msra.mxu0 0
    %6976 = vmatprep.subr.bf16.mxu0 0
    %6977 = vmatpush1.bf16.msra.mxu0 0
    %6978 = vmatprep.subr.bf16.mxu0 0
    %6979 = vmatpush1.bf16.msra.mxu0 0
    %6980 = vmatprep.mubr.bf16.mxu0 0
    %6981 = vmatmul.mubr.bf16.gmra.mrb[0].mxu0 %v6946
    %v6982 = vpop.f32.mrb[0].mxu0
    %v6983 = vadd.f32 %v6921, %v6982
    %v6984 = vpop.f32.mrb[0].mxu0
    %v6985 = vpop.f32.mrb[0].mxu0
    %v6986 = vpop.f32.mrb[0].mxu0
    %6987 = vdwg.mxu0
    %v6988 = vld [vmem:[#allocation8 + $0x2] sm:$0x1]
    %v6989 = vld [vmem:[#allocation8 + $0x12] sm:$0x1]
    %v6990 = vpack.c.bf16 %v6988, %v6988
    %v6991 = vpack.c.bf16 %v6989, %v6989
    %s6992 = scalar_lea.vmem %s7, 32
    %v6993 = vld [vmem:[%s6992] sm:$0xf]
    %v6994 = vld [vmem:[%s6992 + $0x4] sm:$0xf]
    %v6995 = vld [vmem:[%s6992 + $0x8] sm:$0xf]
    %v6996 = vld [vmem:[%s6992 + $0xc] sm:$0xf]
    %v6999 = vunpack.c.l.b16 %v6990
    %v7000 = vunpack.c.l.b16 %v6991
    %v7001 = vrot.slane %v7000, 7
    %v7002 = vsel %vm4757, %v7001, %v6999
    %v7003 = vpack.c.b16 %v7002, %v7002
    %v7008 = vunpack.c.l.b16 %v6993
    %v7009 = vunpack.c.l.b16 %v6994
    %v7010 = vunpack.c.l.b16 %v6995
    %v7011 = vunpack.c.l.b16 %v6996
    %v7012 = vpack.c.b16 %v7009, %v7008
    %v7013 = vpack.c.b16 %v7011, %v7010
    %v7017 = vsel %vm6461, %v7003, 0
    %7019 = vmatprep.subr.bf16.mxu0 0
    %7020 = vmatpush1.bf16.msra.mxu0 %v7012
    %7021 = vmatprep.subr.bf16.mxu0 0
    %7022 = vmatpush1.bf16.msra.mxu0 %v7013
    %7023 = vmatprep.subr.bf16.mxu0 0
    %7024 = vmatpush1.bf16.msra.mxu0 0
    %7025 = vmatprep.subr.bf16.mxu0 0
    %7026 = vmatpush1.bf16.msra.mxu0 0
    %7027 = vmatprep.subr.bf16.mxu0 0
    %7028 = vmatpush1.bf16.msra.mxu0 0
    %7029 = vmatprep.subr.bf16.mxu0 0
    %7030 = vmatpush1.bf16.msra.mxu0 0
    %7031 = vmatprep.subr.bf16.mxu0 0
    %7032 = vmatpush1.bf16.msra.mxu0 0
    %7033 = vmatprep.subr.bf16.mxu0 0
    %7034 = vmatpush1.bf16.msra.mxu0 0
    %7035 = vmatprep.subr.bf16.mxu0 0
    %7036 = vmatpush1.bf16.msra.mxu0 0
    %7037 = vmatprep.subr.bf16.mxu0 0
    %7038 = vmatpush1.bf16.msra.mxu0 0
    %7039 = vmatprep.subr.bf16.mxu0 0
    %7040 = vmatpush1.bf16.msra.mxu0 0
    %7041 = vmatprep.subr.bf16.mxu0 0
    %7042 = vmatpush1.bf16.msra.mxu0 0
    %7043 = vmatprep.subr.bf16.mxu0 0
    %7044 = vmatpush1.bf16.msra.mxu0 0
    %7045 = vmatprep.subr.bf16.mxu0 0
    %7046 = vmatpush1.bf16.msra.mxu0 0
    %7047 = vmatprep.subr.bf16.mxu0 0
    %7048 = vmatpush1.bf16.msra.mxu0 0
    %7049 = vmatprep.subr.bf16.mxu0 0
    %7050 = vmatpush1.bf16.msra.mxu0 0
    %7051 = vmatprep.mubr.bf16.mxu0 0
    %7052 = vmatmul.mubr.bf16.gmra.mrb[0].mxu0 %v7017
    %v7053 = vpop.f32.mrb[0].mxu0
    %v7054 = vadd.f32 0.0, %v7053
    %v7055 = vpop.f32.mrb[0].mxu0
    %v7056 = vpop.f32.mrb[0].mxu0
    %v7057 = vpop.f32.mrb[0].mxu0
    %7058 = vdwg.mxu0
    %v7059 = vadd.f32 %v6983, %v7054
    %v7060 = vld [vmem:[#allocation8 + $0x3] sm:$0x1]
    %v7061 = vld [vmem:[#allocation8 + $0x13] sm:$0x1]
    %v7062 = vpack.c.bf16 %v7060, %v7060
    %v7063 = vpack.c.bf16 %v7061, %v7061
    %s7064 = scalar_lea.vmem %s7, 48
    %v7065 = vld [vmem:[%s7064] sm:$0xf]
    %v7066 = vld [vmem:[%s7064 + $0x4] sm:$0xf]
    %v7067 = vld [vmem:[%s7064 + $0x8] sm:$0xf]
    %v7068 = vld [vmem:[%s7064 + $0xc] sm:$0xf]
    %v7071 = vunpack.c.l.b16 %v7062
    %v7072 = vunpack.c.l.b16 %v7063
    %v7073 = vrot.slane %v7072, 7
    %v7074 = vsel %vm4757, %v7073, %v7071
    %v7075 = vpack.c.b16 %v7074, %v7074
    %v7080 = vunpack.c.l.b16 %v7065
    %v7081 = vunpack.c.l.b16 %v7066
    %v7082 = vunpack.c.l.b16 %v7067
    %v7083 = vunpack.c.l.b16 %v7068
    %v7084 = vpack.c.b16 %v7081, %v7080
    %v7085 = vpack.c.b16 %v7083, %v7082
    %v7089 = vsel %vm6461, %v7075, 0
    %7091 = vmatprep.subr.bf16.mxu0 0
    %7092 = vmatpush1.bf16.msra.mxu0 %v7084
    %7093 = vmatprep.subr.bf16.mxu0 0
    %7094 = vmatpush1.bf16.msra.mxu0 %v7085
    %7095 = vmatprep.subr.bf16.mxu0 0
    %7096 = vmatpush1.bf16.msra.mxu0 0
    %7097 = vmatprep.subr.bf16.mxu0 0
    %7098 = vmatpush1.bf16.msra.mxu0 0
    %7099 = vmatprep.subr.bf16.mxu0 0
    %7100 = vmatpush1.bf16.msra.mxu0 0
    %7101 = vmatprep.subr.bf16.mxu0 0
    %7102 = vmatpush1.bf16.msra.mxu0 0
    %7103 = vmatprep.subr.bf16.mxu0 0
    %7104 = vmatpush1.bf16.msra.mxu0 0
    %7105 = vmatprep.subr.bf16.mxu0 0
    %7106 = vmatpush1.bf16.msra.mxu0 0
    %7107 = vmatprep.subr.bf16.mxu0 0
    %7108 = vmatpush1.bf16.msra.mxu0 0
    %7109 = vmatprep.subr.bf16.mxu0 0
    %7110 = vmatpush1.bf16.msra.mxu0 0
    %7111 = vmatprep.subr.bf16.mxu0 0
    %7112 = vmatpush1.bf16.msra.mxu0 0
    %7113 = vmatprep.subr.bf16.mxu0 0
    %7114 = vmatpush1.bf16.msra.mxu0 0
    %7115 = vmatprep.subr.bf16.mxu0 0
    %7116 = vmatpush1.bf16.msra.mxu0 0
    %7117 = vmatprep.subr.bf16.mxu0 0
    %7118 = vmatpush1.bf16.msra.mxu0 0
    %7119 = vmatprep.subr.bf16.mxu0 0
    %7120 = vmatpush1.bf16.msra.mxu0 0
    %7121 = vmatprep.subr.bf16.mxu0 0
    %7122 = vmatpush1.bf16.msra.mxu0 0
    %7123 = vmatprep.mubr.bf16.mxu0 0
    %7124 = vmatmul.mubr.bf16.gmra.mrb[0].mxu0 %v7089
    %v7125 = vpop.f32.mrb[0].mxu0
    %v7126 = vadd.f32 0.0, %v7125
    %v7127 = vpop.f32.mrb[0].mxu0
    %v7128 = vpop.f32.mrb[0].mxu0
    %v7129 = vpop.f32.mrb[0].mxu0
    %7130 = vdwg.mxu0
    %v7131 = vadd.f32 %v7059, %v7126
    %v7132 = vld [vmem:[#allocation8 + $0x4] sm:$0x1]
    %v7133 = vld [vmem:[#allocation8 + $0x14] sm:$0x1]
    %v7134 = vpack.c.bf16 %v7132, %v7132
    %v7135 = vpack.c.bf16 %v7133, %v7133
    %s7136 = scalar_lea.vmem %s7, 64
    %v7137 = vld [vmem:[%s7136] sm:$0xf]
    %v7138 = vld [vmem:[%s7136 + $0x4] sm:$0xf]
    %v7139 = vld [vmem:[%s7136 + $0x8] sm:$0xf]
    %v7140 = vld [vmem:[%s7136 + $0xc] sm:$0xf]
    %v7143 = vunpack.c.l.b16 %v7134
    %v7144 = vunpack.c.l.b16 %v7135
    %v7145 = vrot.slane %v7144, 7
    %v7146 = vsel %vm4757, %v7145, %v7143
    %v7147 = vpack.c.b16 %v7146, %v7146
    %v7152 = vunpack.c.l.b16 %v7137
    %v7153 = vunpack.c.l.b16 %v7138
    %v7154 = vunpack.c.l.b16 %v7139
    %v7155 = vunpack.c.l.b16 %v7140
    %v7156 = vpack.c.b16 %v7153, %v7152
    %v7157 = vpack.c.b16 %v7155, %v7154
    %v7161 = vsel %vm6461, %v7147, 0
    %7163 = vmatprep.subr.bf16.mxu0 0
    %7164 = vmatpush1.bf16.msra.mxu0 %v7156
    %7165 = vmatprep.subr.bf16.mxu0 0
    %7166 = vmatpush1.bf16.msra.mxu0 %v7157
    %7167 = vmatprep.subr.bf16.mxu0 0
    %7168 = vmatpush1.bf16.msra.mxu0 0
    %7169 = vmatprep.subr.bf16.mxu0 0
    %7170 = vmatpush1.bf16.msra.mxu0 0
    %7171 = vmatprep.subr.bf16.mxu0 0
    %7172 = vmatpush1.bf16.msra.mxu0 0
    %7173 = vmatprep.subr.bf16.mxu0 0
    %7174 = vmatpush1.bf16.msra.mxu0 0
    %7175 = vmatprep.subr.bf16.mxu0 0
    %7176 = vmatpush1.bf16.msra.mxu0 0
    %7177 = vmatprep.subr.bf16.mxu0 0
    %7178 = vmatpush1.bf16.msra.mxu0 0
    %7179 = vmatprep.subr.bf16.mxu0 0
    %7180 = vmatpush1.bf16.msra.mxu0 0
    %7181 = vmatprep.subr.bf16.mxu0 0
    %7182 = vmatpush1.bf16.msra.mxu0 0
    %7183 = vmatprep.subr.bf16.mxu0 0
    %7184 = vmatpush1.bf16.msra.mxu0 0
    %7185 = vmatprep.subr.bf16.mxu0 0
    %7186 = vmatpush1.bf16.msra.mxu0 0
    %7187 = vmatprep.subr.bf16.mxu0 0
    %7188 = vmatpush1.bf16.msra.mxu0 0
    %7189 = vmatprep.subr.bf16.mxu0 0
    %7190 = vmatpush1.bf16.msra.mxu0 0
    %7191 = vmatprep.subr.bf16.mxu0 0
    %7192 = vmatpush1.bf16.msra.mxu0 0
    %7193 = vmatprep.subr.bf16.mxu0 0
    %7194 = vmatpush1.bf16.msra.mxu0 0
    %7195 = vmatprep.mubr.bf16.mxu0 0
    %7196 = vmatmul.mubr.bf16.gmra.mrb[0].mxu0 %v7161
    %v7197 = vpop.f32.mrb[0].mxu0
    %v7198 = vadd.f32 0.0, %v7197
    %v7199 = vpop.f32.mrb[0].mxu0
    %v7200 = vpop.f32.mrb[0].mxu0
    %v7201 = vpop.f32.mrb[0].mxu0
    %7202 = vdwg.mxu0
    %v7203 = vadd.f32 %v7131, %v7198
    %v7204 = vld [vmem:[#allocation8 + $0x5] sm:$0x1]
    %v7205 = vld [vmem:[#allocation8 + $0x15] sm:$0x1]
    %v7206 = vpack.c.bf16 %v7204, %v7204
    %v7207 = vpack.c.bf16 %v7205, %v7205
    %s7208 = scalar_lea.vmem %s7, 80
    %v7209 = vld [vmem:[%s7208] sm:$0xf]
    %v7210 = vld [vmem:[%s7208 + $0x4] sm:$0xf]
    %v7211 = vld [vmem:[%s7208 + $0x8] sm:$0xf]
    %v7212 = vld [vmem:[%s7208 + $0xc] sm:$0xf]
    %v7215 = vunpack.c.l.b16 %v7206
    %v7216 = vunpack.c.l.b16 %v7207
    %v7217 = vrot.slane %v7216, 7
    %v7218 = vsel %vm4757, %v7217, %v7215
    %v7219 = vpack.c.b16 %v7218, %v7218
    %v7224 = vunpack.c.l.b16 %v7209
    %v7225 = vunpack.c.l.b16 %v7210
    %v7226 = vunpack.c.l.b16 %v7211
    %v7227 = vunpack.c.l.b16 %v7212
    %v7228 = vpack.c.b16 %v7225, %v7224
    %v7229 = vpack.c.b16 %v7227, %v7226
    %v7233 = vsel %vm6461, %v7219, 0
    %7235 = vmatprep.subr.bf16.mxu0 0
    %7236 = vmatpush1.bf16.msra.mxu0 %v7228
    %7237 = vmatprep.subr.bf16.mxu0 0
    %7238 = vmatpush1.bf16.msra.mxu0 %v7229
    %7239 = vmatprep.subr.bf16.mxu0 0
    %7240 = vmatpush1.bf16.msra.mxu0 0
    %7241 = vmatprep.subr.bf16.mxu0 0
    %7242 = vmatpush1.bf16.msra.mxu0 0
    %7243 = vmatprep.subr.bf16.mxu0 0
    %7244 = vmatpush1.bf16.msra.mxu0 0
    %7245 = vmatprep.subr.bf16.mxu0 0
    %7246 = vmatpush1.bf16.msra.mxu0 0
    %7247 = vmatprep.subr.bf16.mxu0 0
    %7248 = vmatpush1.bf16.msra.mxu0 0
    %7249 = vmatprep.subr.bf16.mxu0 0
    %7250 = vmatpush1.bf16.msra.mxu0 0
    %7251 = vmatprep.subr.bf16.mxu0 0
    %7252 = vmatpush1.bf16.msra.mxu0 0
    %7253 = vmatprep.subr.bf16.mxu0 0
    %7254 = vmatpush1.bf16.msra.mxu0 0
    %7255 = vmatprep.subr.bf16.mxu0 0
    %7256 = vmatpush1.bf16.msra.mxu0 0
    %7257 = vmatprep.subr.bf16.mxu0 0
    %7258 = vmatpush1.bf16.msra.mxu0 0
    %7259 = vmatprep.subr.bf16.mxu0 0
    %7260 = vmatpush1.bf16.msra.mxu0 0
    %7261 = vmatprep.subr.bf16.mxu0 0
    %7262 = vmatpush1.bf16.msra.mxu0 0
    %7263 = vmatprep.subr.bf16.mxu0 0
    %7264 = vmatpush1.bf16.msra.mxu0 0
    %7265 = vmatprep.subr.bf16.mxu0 0
    %7266 = vmatpush1.bf16.msra.mxu0 0
    %7267 = vmatprep.mubr.bf16.mxu0 0
    %7268 = vmatmul.mubr.bf16.gmra.mrb[0].mxu0 %v7233
    %v7269 = vpop.f32.mrb[0].mxu0
    %v7270 = vadd.f32 0.0, %v7269
    %v7271 = vpop.f32.mrb[0].mxu0
    %v7272 = vpop.f32.mrb[0].mxu0
    %v7273 = vpop.f32.mrb[0].mxu0
    %7274 = vdwg.mxu0
    %v7275 = vadd.f32 %v7203, %v7270
    %v7276 = vld [vmem:[#allocation8 + $0x6] sm:$0x1]
    %v7277 = vld [vmem:[#allocation8 + $0x16] sm:$0x1]
    %v7278 = vpack.c.bf16 %v7276, %v7276
    %v7279 = vpack.c.bf16 %v7277, %v7277
    %s7280 = scalar_lea.vmem %s7, 96
    %v7281 = vld [vmem:[%s7280] sm:$0xf]
    %v7282 = vld [vmem:[%s7280 + $0x4] sm:$0xf]
    %v7283 = vld [vmem:[%s7280 + $0x8] sm:$0xf]
    %v7284 = vld [vmem:[%s7280 + $0xc] sm:$0xf]
    %v7287 = vunpack.c.l.b16 %v7278
    %v7288 = vunpack.c.l.b16 %v7279
    %v7289 = vrot.slane %v7288, 7
    %v7290 = vsel %vm4757, %v7289, %v7287
    %v7291 = vpack.c.b16 %v7290, %v7290
    %v7296 = vunpack.c.l.b16 %v7281
    %v7297 = vunpack.c.l.b16 %v7282
    %v7298 = vunpack.c.l.b16 %v7283
    %v7299 = vunpack.c.l.b16 %v7284
    %v7300 = vpack.c.b16 %v7297, %v7296
    %v7301 = vpack.c.b16 %v7299, %v7298
    %v7305 = vsel %vm6461, %v7291, 0
    %7307 = vmatprep.subr.bf16.mxu0 0
    %7308 = vmatpush1.bf16.msra.mxu0 %v7300
    %7309 = vmatprep.subr.bf16.mxu0 0
    %7310 = vmatpush1.bf16.msra.mxu0 %v7301
    %7311 = vmatprep.subr.bf16.mxu0 0
    %7312 = vmatpush1.bf16.msra.mxu0 0
    %7313 = vmatprep.subr.bf16.mxu0 0
    %7314 = vmatpush1.bf16.msra.mxu0 0
    %7315 = vmatprep.subr.bf16.mxu0 0
    %7316 = vmatpush1.bf16.msra.mxu0 0
    %7317 = vmatprep.subr.bf16.mxu0 0
    %7318 = vmatpush1.bf16.msra.mxu0 0
    %7319 = vmatprep.subr.bf16.mxu0 0
    %7320 = vmatpush1.bf16.msra.mxu0 0
    %7321 = vmatprep.subr.bf16.mxu0 0
    %7322 = vmatpush1.bf16.msra.mxu0 0
    %7323 = vmatprep.subr.bf16.mxu0 0
    %7324 = vmatpush1.bf16.msra.mxu0 0
    %7325 = vmatprep.subr.bf16.mxu0 0
    %7326 = vmatpush1.bf16.msra.mxu0 0
    %7327 = vmatprep.subr.bf16.mxu0 0
    %7328 = vmatpush1.bf16.msra.mxu0 0
    %7329 = vmatprep.subr.bf16.mxu0 0
    %7330 = vmatpush1.bf16.msra.mxu0 0
    %7331 = vmatprep.subr.bf16.mxu0 0
    %7332 = vmatpush1.bf16.msra.mxu0 0
    %7333 = vmatprep.subr.bf16.mxu0 0
    %7334 = vmatpush1.bf16.msra.mxu0 0
    %7335 = vmatprep.subr.bf16.mxu0 0
    %7336 = vmatpush1.bf16.msra.mxu0 0
    %7337 = vmatprep.subr.bf16.mxu0 0
    %7338 = vmatpush1.bf16.msra.mxu0 0
    %7339 = vmatprep.mubr.bf16.mxu0 0
    %7340 = vmatmul.mubr.bf16.gmra.mrb[0].mxu0 %v7305
    %v7341 = vpop.f32.mrb[0].mxu0
    %v7342 = vadd.f32 0.0, %v7341
    %v7343 = vpop.f32.mrb[0].mxu0
    %v7344 = vpop.f32.mrb[0].mxu0
    %v7345 = vpop.f32.mrb[0].mxu0
    %7346 = vdwg.mxu0
    %v7347 = vadd.f32 %v7275, %v7342
    %v7348 = vld [vmem:[#allocation8 + $0x7] sm:$0x1]
    %v7349 = vld [vmem:[#allocation8 + $0x17] sm:$0x1]
    %v7350 = vpack.c.bf16 %v7348, %v7348
    %v7351 = vpack.c.bf16 %v7349, %v7349
    %s7352 = scalar_lea.vmem %s7, 112
    %v7353 = vld [vmem:[%s7352] sm:$0xf]
    %v7354 = vld [vmem:[%s7352 + $0x4] sm:$0xf]
    %v7355 = vld [vmem:[%s7352 + $0x8] sm:$0xf]
    %v7356 = vld [vmem:[%s7352 + $0xc] sm:$0xf]
    %v7359 = vunpack.c.l.b16 %v7350
    %v7360 = vunpack.c.l.b16 %v7351
    %v7361 = vrot.slane %v7360, 7
    %v7362 = vsel %vm4757, %v7361, %v7359
    %v7363 = vpack.c.b16 %v7362, %v7362
    %v7368 = vunpack.c.l.b16 %v7353
    %v7369 = vunpack.c.l.b16 %v7354
    %v7370 = vunpack.c.l.b16 %v7355
    %v7371 = vunpack.c.l.b16 %v7356
    %v7372 = vpack.c.b16 %v7369, %v7368
    %v7373 = vpack.c.b16 %v7371, %v7370
    %v7377 = vsel %vm6461, %v7363, 0
    %7379 = vmatprep.subr.bf16.mxu0 0
    %7380 = vmatpush1.bf16.msra.mxu0 %v7372
    %7381 = vmatprep.subr.bf16.mxu0 0
    %7382 = vmatpush1.bf16.msra.mxu0 %v7373
    %7383 = vmatprep.subr.bf16.mxu0 0
    %7384 = vmatpush1.bf16.msra.mxu0 0
    %7385 = vmatprep.subr.bf16.mxu0 0
    %7386 = vmatpush1.bf16.msra.mxu0 0
    %7387 = vmatprep.subr.bf16.mxu0 0
    %7388 = vmatpush1.bf16.msra.mxu0 0
    %7389 = vmatprep.subr.bf16.mxu0 0
    %7390 = vmatpush1.bf16.msra.mxu0 0
    %7391 = vmatprep.subr.bf16.mxu0 0
    %7392 = vmatpush1.bf16.msra.mxu0 0
    %7393 = vmatprep.subr.bf16.mxu0 0
    %7394 = vmatpush1.bf16.msra.mxu0 0
    %7395 = vmatprep.subr.bf16.mxu0 0
    %7396 = vmatpush1.bf16.msra.mxu0 0
    %7397 = vmatprep.subr.bf16.mxu0 0
    %7398 = vmatpush1.bf16.msra.mxu0 0
    %7399 = vmatprep.subr.bf16.mxu0 0
    %7400 = vmatpush1.bf16.msra.mxu0 0
    %7401 = vmatprep.subr.bf16.mxu0 0
    %7402 = vmatpush1.bf16.msra.mxu0 0
    %7403 = vmatprep.subr.bf16.mxu0 0
    %7404 = vmatpush1.bf16.msra.mxu0 0
    %7405 = vmatprep.subr.bf16.mxu0 0
    %7406 = vmatpush1.bf16.msra.mxu0 0
    %7407 = vmatprep.subr.bf16.mxu0 0
    %7408 = vmatpush1.bf16.msra.mxu0 0
    %7409 = vmatprep.subr.bf16.mxu0 0
    %7410 = vmatpush1.bf16.msra.mxu0 0
    %7411 = vmatprep.mubr.bf16.mxu0 0
    %7412 = vmatmul.mubr.bf16.gmra.mrb[0].mxu0 %v7377
    %v7413 = vpop.f32.mrb[0].mxu0
    %v7414 = vadd.f32 0.0, %v7413
    %v7415 = vpop.f32.mrb[0].mxu0
    %v7416 = vpop.f32.mrb[0].mxu0
    %v7417 = vpop.f32.mrb[0].mxu0
    %7418 = vdwg.mxu0
    %v7419 = vadd.f32 %v7347, %v7414
    %v7420 = vld [vmem:[#allocation8 + $0x8] sm:$0x1]
    %v7421 = vld [vmem:[#allocation8 + $0x18] sm:$0x1]
    %v7422 = vpack.c.bf16 %v7420, %v7420
    %v7423 = vpack.c.bf16 %v7421, %v7421
    %s7424 = scalar_lea.vmem %s7, 128
    %v7425 = vld [vmem:[%s7424] sm:$0xf]
    %v7426 = vld [vmem:[%s7424 + $0x4] sm:$0xf]
    %v7427 = vld [vmem:[%s7424 + $0x8] sm:$0xf]
    %v7428 = vld [vmem:[%s7424 + $0xc] sm:$0xf]
    %v7431 = vunpack.c.l.b16 %v7422
    %v7432 = vunpack.c.l.b16 %v7423
    %v7433 = vrot.slane %v7432, 7
    %v7434 = vsel %vm4757, %v7433, %v7431
    %v7435 = vpack.c.b16 %v7434, %v7434
    %v7440 = vunpack.c.l.b16 %v7425
    %v7441 = vunpack.c.l.b16 %v7426
    %v7442 = vunpack.c.l.b16 %v7427
    %v7443 = vunpack.c.l.b16 %v7428
    %v7444 = vpack.c.b16 %v7441, %v7440
    %v7445 = vpack.c.b16 %v7443, %v7442
    %v7449 = vsel %vm6461, %v7435, 0
    %7451 = vmatprep.subr.bf16.mxu0 0
    %7452 = vmatpush1.bf16.msra.mxu0 %v7444
    %7453 = vmatprep.subr.bf16.mxu0 0
    %7454 = vmatpush1.bf16.msra.mxu0 %v7445
    %7455 = vmatprep.subr.bf16.mxu0 0
    %7456 = vmatpush1.bf16.msra.mxu0 0
    %7457 = vmatprep.subr.bf16.mxu0 0
    %7458 = vmatpush1.bf16.msra.mxu0 0
    %7459 = vmatprep.subr.bf16.mxu0 0
    %7460 = vmatpush1.bf16.msra.mxu0 0
    %7461 = vmatprep.subr.bf16.mxu0 0
    %7462 = vmatpush1.bf16.msra.mxu0 0
    %7463 = vmatprep.subr.bf16.mxu0 0
    %7464 = vmatpush1.bf16.msra.mxu0 0
    %7465 = vmatprep.subr.bf16.mxu0 0
    %7466 = vmatpush1.bf16.msra.mxu0 0
    %7467 = vmatprep.subr.bf16.mxu0 0
    %7468 = vmatpush1.bf16.msra.mxu0 0
    %7469 = vmatprep.subr.bf16.mxu0 0
    %7470 = vmatpush1.bf16.msra.mxu0 0
    %7471 = vmatprep.subr.bf16.mxu0 0
    %7472 = vmatpush1.bf16.msra.mxu0 0
    %7473 = vmatprep.subr.bf16.mxu0 0
    %7474 = vmatpush1.bf16.msra.mxu0 0
    %7475 = vmatprep.subr.bf16.mxu0 0
    %7476 = vmatpush1.bf16.msra.mxu0 0
    %7477 = vmatprep.subr.bf16.mxu0 0
    %7478 = vmatpush1.bf16.msra.mxu0 0
    %7479 = vmatprep.subr.bf16.mxu0 0
    %7480 = vmatpush1.bf16.msra.mxu0 0
    %7481 = vmatprep.subr.bf16.mxu0 0
    %7482 = vmatpush1.bf16.msra.mxu0 0
    %7483 = vmatprep.mubr.bf16.mxu0 0
    %7484 = vmatmul.mubr.bf16.gmra.mrb[0].mxu0 %v7449
    %v7485 = vpop.f32.mrb[0].mxu0
    %v7486 = vadd.f32 0.0, %v7485
    %v7487 = vpop.f32.mrb[0].mxu0
    %v7488 = vpop.f32.mrb[0].mxu0
    %v7489 = vpop.f32.mrb[0].mxu0
    %7490 = vdwg.mxu0
    %v7491 = vadd.f32 %v7419, %v7486
    %v7492 = vld [vmem:[#allocation8 + $0x9] sm:$0x1]
    %v7493 = vld [vmem:[#allocation8 + $0x19] sm:$0x1]
    %v7494 = vpack.c.bf16 %v7492, %v7492
    %v7495 = vpack.c.bf16 %v7493, %v7493
    %s7496 = scalar_lea.vmem %s7, 144
    %v7497 = vld [vmem:[%s7496] sm:$0xf]
    %v7498 = vld [vmem:[%s7496 + $0x4] sm:$0xf]
    %v7499 = vld [vmem:[%s7496 + $0x8] sm:$0xf]
    %v7500 = vld [vmem:[%s7496 + $0xc] sm:$0xf]
    %v7503 = vunpack.c.l.b16 %v7494
    %v7504 = vunpack.c.l.b16 %v7495
    %v7505 = vrot.slane %v7504, 7
    %v7506 = vsel %vm4757, %v7505, %v7503
    %v7507 = vpack.c.b16 %v7506, %v7506
    %v7512 = vunpack.c.l.b16 %v7497
    %v7513 = vunpack.c.l.b16 %v7498
    %v7514 = vunpack.c.l.b16 %v7499
    %v7515 = vunpack.c.l.b16 %v7500
    %v7516 = vpack.c.b16 %v7513, %v7512
    %v7517 = vpack.c.b16 %v7515, %v7514
    %v7521 = vsel %vm6461, %v7507, 0
    %7523 = vmatprep.subr.bf16.mxu0 0
    %7524 = vmatpush1.bf16.msra.mxu0 %v7516
    %7525 = vmatprep.subr.bf16.mxu0 0
    %7526 = vmatpush1.bf16.msra.mxu0 %v7517
    %7527 = vmatprep.subr.bf16.mxu0 0
    %7528 = vmatpush1.bf16.msra.mxu0 0
    %7529 = vmatprep.subr.bf16.mxu0 0
    %7530 = vmatpush1.bf16.msra.mxu0 0
    %7531 = vmatprep.subr.bf16.mxu0 0
    %7532 = vmatpush1.bf16.msra.mxu0 0
    %7533 = vmatprep.subr.bf16.mxu0 0
    %7534 = vmatpush1.bf16.msra.mxu0 0
    %7535 = vmatprep.subr.bf16.mxu0 0
    %7536 = vmatpush1.bf16.msra.mxu0 0
    %7537 = vmatprep.subr.bf16.mxu0 0
    %7538 = vmatpush1.bf16.msra.mxu0 0
    %7539 = vmatprep.subr.bf16.mxu0 0
    %7540 = vmatpush1.bf16.msra.mxu0 0
    %7541 = vmatprep.subr.bf16.mxu0 0
    %7542 = vmatpush1.bf16.msra.mxu0 0
    %7543 = vmatprep.subr.bf16.mxu0 0
    %7544 = vmatpush1.bf16.msra.mxu0 0
    %7545 = vmatprep.subr.bf16.mxu0 0
    %7546 = vmatpush1.bf16.msra.mxu0 0
    %7547 = vmatprep.subr.bf16.mxu0 0
    %7548 = vmatpush1.bf16.msra.mxu0 0
    %7549 = vmatprep.subr.bf16.mxu0 0
    %7550 = vmatpush1.bf16.msra.mxu0 0
    %7551 = vmatprep.subr.bf16.mxu0 0
    %7552 = vmatpush1.bf16.msra.mxu0 0
    %7553 = vmatprep.subr.bf16.mxu0 0
    %7554 = vmatpush1.bf16.msra.mxu0 0
    %7555 = vmatprep.mubr.bf16.mxu0 0
    %7556 = vmatmul.mubr.bf16.gmra.mrb[0].mxu0 %v7521
    %v7557 = vpop.f32.mrb[0].mxu0
    %v7558 = vadd.f32 0.0, %v7557
    %v7559 = vpop.f32.mrb[0].mxu0
    %v7560 = vpop.f32.mrb[0].mxu0
    %v7561 = vpop.f32.mrb[0].mxu0
    %7562 = vdwg.mxu0
    %v7563 = vadd.f32 %v7491, %v7558
    %v7564 = vld [vmem:[#allocation8 + $0xa] sm:$0x1]
    %v7565 = vld [vmem:[#allocation8 + $0x1a] sm:$0x1]
    %v7566 = vpack.c.bf16 %v7564, %v7564
    %v7567 = vpack.c.bf16 %v7565, %v7565
    %s7568 = scalar_lea.vmem %s7, 160
    %v7569 = vld [vmem:[%s7568] sm:$0xf]
    %v7570 = vld [vmem:[%s7568 + $0x4] sm:$0xf]
    %v7571 = vld [vmem:[%s7568 + $0x8] sm:$0xf]
    %v7572 = vld [vmem:[%s7568 + $0xc] sm:$0xf]
    %v7575 = vunpack.c.l.b16 %v7566
    %v7576 = vunpack.c.l.b16 %v7567
    %v7577 = vrot.slane %v7576, 7
    %v7578 = vsel %vm4757, %v7577, %v7575
    %v7579 = vpack.c.b16 %v7578, %v7578
    %v7584 = vunpack.c.l.b16 %v7569
    %v7585 = vunpack.c.l.b16 %v7570
    %v7586 = vunpack.c.l.b16 %v7571
    %v7587 = vunpack.c.l.b16 %v7572
    %v7588 = vpack.c.b16 %v7585, %v7584
    %v7589 = vpack.c.b16 %v7587, %v7586
    %v7593 = vsel %vm6461, %v7579, 0
    %7595 = vmatprep.subr.bf16.mxu0 0
    %7596 = vmatpush1.bf16.msra.mxu0 %v7588
    %7597 = vmatprep.subr.bf16.mxu0 0
    %7598 = vmatpush1.bf16.msra.mxu0 %v7589
    %7599 = vmatprep.subr.bf16.mxu0 0
    %7600 = vmatpush1.bf16.msra.mxu0 0
    %7601 = vmatprep.subr.bf16.mxu0 0
    %7602 = vmatpush1.bf16.msra.mxu0 0
    %7603 = vmatprep.subr.bf16.mxu0 0
    %7604 = vmatpush1.bf16.msra.mxu0 0
    %7605 = vmatprep.subr.bf16.mxu0 0
    %7606 = vmatpush1.bf16.msra.mxu0 0
    %7607 = vmatprep.subr.bf16.mxu0 0
    %7608 = vmatpush1.bf16.msra.mxu0 0
    %7609 = vmatprep.subr.bf16.mxu0 0
    %7610 = vmatpush1.bf16.msra.mxu0 0
    %7611 = vmatprep.subr.bf16.mxu0 0
    %7612 = vmatpush1.bf16.msra.mxu0 0
    %7613 = vmatprep.subr.bf16.mxu0 0
    %7614 = vmatpush1.bf16.msra.mxu0 0
    %7615 = vmatprep.subr.bf16.mxu0 0
    %7616 = vmatpush1.bf16.msra.mxu0 0
    %7617 = vmatprep.subr.bf16.mxu0 0
    %7618 = vmatpush1.bf16.msra.mxu0 0
    %7619 = vmatprep.subr.bf16.mxu0 0
    %7620 = vmatpush1.bf16.msra.mxu0 0
    %7621 = vmatprep.subr.bf16.mxu0 0
    %7622 = vmatpush1.bf16.msra.mxu0 0
    %7623 = vmatprep.subr.bf16.mxu0 0
    %7624 = vmatpush1.bf16.msra.mxu0 0
    %7625 = vmatprep.subr.bf16.mxu0 0
    %7626 = vmatpush1.bf16.msra.mxu0 0
    %7627 = vmatprep.mubr.bf16.mxu0 0
    %7628 = vmatmul.mubr.bf16.gmra.mrb[0].mxu0 %v7593
    %v7629 = vpop.f32.mrb[0].mxu0
    %v7630 = vadd.f32 0.0, %v7629
    %v7631 = vpop.f32.mrb[0].mxu0
    %v7632 = vpop.f32.mrb[0].mxu0
    %v7633 = vpop.f32.mrb[0].mxu0
    %7634 = vdwg.mxu0
    %v7635 = vadd.f32 %v7563, %v7630
    %v7636 = vld [vmem:[#allocation8 + $0xb] sm:$0x1]
    %v7637 = vld [vmem:[#allocation8 + $0x1b] sm:$0x1]
    %v7638 = vpack.c.bf16 %v7636, %v7636
    %v7639 = vpack.c.bf16 %v7637, %v7637
    %s7640 = scalar_lea.vmem %s7, 176
    %v7641 = vld [vmem:[%s7640] sm:$0xf]
    %v7642 = vld [vmem:[%s7640 + $0x4] sm:$0xf]
    %v7643 = vld [vmem:[%s7640 + $0x8] sm:$0xf]
    %v7644 = vld [vmem:[%s7640 + $0xc] sm:$0xf]
    %v7647 = vunpack.c.l.b16 %v7638
    %v7648 = vunpack.c.l.b16 %v7639
    %v7649 = vrot.slane %v7648, 7
    %v7650 = vsel %vm4757, %v7649, %v7647
    %v7651 = vpack.c.b16 %v7650, %v7650
    %v7656 = vunpack.c.l.b16 %v7641
    %v7657 = vunpack.c.l.b16 %v7642
    %v7658 = vunpack.c.l.b16 %v7643
    %v7659 = vunpack.c.l.b16 %v7644
    %v7660 = vpack.c.b16 %v7657, %v7656
    %v7661 = vpack.c.b16 %v7659, %v7658
    %v7665 = vsel %vm6461, %v7651, 0
    %7667 = vmatprep.subr.bf16.mxu0 0
    %7668 = vmatpush1.bf16.msra.mxu0 %v7660
    %7669 = vmatprep.subr.bf16.mxu0 0
    %7670 = vmatpush1.bf16.msra.mxu0 %v7661
    %7671 = vmatprep.subr.bf16.mxu0 0
    %7672 = vmatpush1.bf16.msra.mxu0 0
    %7673 = vmatprep.subr.bf16.mxu0 0
    %7674 = vmatpush1.bf16.msra.mxu0 0
    %7675 = vmatprep.subr.bf16.mxu0 0
    %7676 = vmatpush1.bf16.msra.mxu0 0
    %7677 = vmatprep.subr.bf16.mxu0 0
    %7678 = vmatpush1.bf16.msra.mxu0 0
    %7679 = vmatprep.subr.bf16.mxu0 0
    %7680 = vmatpush1.bf16.msra.mxu0 0
    %7681 = vmatprep.subr.bf16.mxu0 0
    %7682 = vmatpush1.bf16.msra.mxu0 0
    %7683 = vmatprep.subr.bf16.mxu0 0
    %7684 = vmatpush1.bf16.msra.mxu0 0
    %7685 = vmatprep.subr.bf16.mxu0 0
    %7686 = vmatpush1.bf16.msra.mxu0 0
    %7687 = vmatprep.subr.bf16.mxu0 0
    %7688 = vmatpush1.bf16.msra.mxu0 0
    %7689 = vmatprep.subr.bf16.mxu0 0
    %7690 = vmatpush1.bf16.msra.mxu0 0
    %7691 = vmatprep.subr.bf16.mxu0 0
    %7692 = vmatpush1.bf16.msra.mxu0 0
    %7693 = vmatprep.subr.bf16.mxu0 0
    %7694 = vmatpush1.bf16.msra.mxu0 0
    %7695 = vmatprep.subr.bf16.mxu0 0
    %7696 = vmatpush1.bf16.msra.mxu0 0
    %7697 = vmatprep.subr.bf16.mxu0 0
    %7698 = vmatpush1.bf16.msra.mxu0 0
    %7699 = vmatprep.mubr.bf16.mxu0 0
    %7700 = vmatmul.mubr.bf16.gmra.mrb[0].mxu0 %v7665
    %v7701 = vpop.f32.mrb[0].mxu0
    %v7702 = vadd.f32 0.0, %v7701
    %v7703 = vpop.f32.mrb[0].mxu0
    %v7704 = vpop.f32.mrb[0].mxu0
    %v7705 = vpop.f32.mrb[0].mxu0
    %7706 = vdwg.mxu0
    %v7707 = vadd.f32 %v7635, %v7702
    %v7708 = vld [vmem:[#allocation8 + $0xc] sm:$0x1]
    %v7709 = vld [vmem:[#allocation8 + $0x1c] sm:$0x1]
    %v7710 = vpack.c.bf16 %v7708, %v7708
    %v7711 = vpack.c.bf16 %v7709, %v7709
    %s7712 = scalar_lea.vmem %s7, 192
    %v7713 = vld [vmem:[%s7712] sm:$0xf]
    %v7714 = vld [vmem:[%s7712 + $0x4] sm:$0xf]
    %v7715 = vld [vmem:[%s7712 + $0x8] sm:$0xf]
    %v7716 = vld [vmem:[%s7712 + $0xc] sm:$0xf]
    %v7719 = vunpack.c.l.b16 %v7710
    %v7720 = vunpack.c.l.b16 %v7711
    %v7721 = vrot.slane %v7720, 7
    %v7722 = vsel %vm4757, %v7721, %v7719
    %v7723 = vpack.c.b16 %v7722, %v7722
    %v7728 = vunpack.c.l.b16 %v7713
    %v7729 = vunpack.c.l.b16 %v7714
    %v7730 = vunpack.c.l.b16 %v7715
    %v7731 = vunpack.c.l.b16 %v7716
    %v7732 = vpack.c.b16 %v7729, %v7728
    %v7733 = vpack.c.b16 %v7731, %v7730
    %v7737 = vsel %vm6461, %v7723, 0
    %7739 = vmatprep.subr.bf16.mxu0 0
    %7740 = vmatpush1.bf16.msra.mxu0 %v7732
    %7741 = vmatprep.subr.bf16.mxu0 0
    %7742 = vmatpush1.bf16.msra.mxu0 %v7733
    %7743 = vmatprep.subr.bf16.mxu0 0
    %7744 = vmatpush1.bf16.msra.mxu0 0
    %7745 = vmatprep.subr.bf16.mxu0 0
    %7746 = vmatpush1.bf16.msra.mxu0 0
    %7747 = vmatprep.subr.bf16.mxu0 0
    %7748 = vmatpush1.bf16.msra.mxu0 0
    %7749 = vmatprep.subr.bf16.mxu0 0
    %7750 = vmatpush1.bf16.msra.mxu0 0
    %7751 = vmatprep.subr.bf16.mxu0 0
    %7752 = vmatpush1.bf16.msra.mxu0 0
    %7753 = vmatprep.subr.bf16.mxu0 0
    %7754 = vmatpush1.bf16.msra.mxu0 0
    %7755 = vmatprep.subr.bf16.mxu0 0
    %7756 = vmatpush1.bf16.msra.mxu0 0
    %7757 = vmatprep.subr.bf16.mxu0 0
    %7758 = vmatpush1.bf16.msra.mxu0 0
    %7759 = vmatprep.subr.bf16.mxu0 0
    %7760 = vmatpush1.bf16.msra.mxu0 0
    %7761 = vmatprep.subr.bf16.mxu0 0
    %7762 = vmatpush1.bf16.msra.mxu0 0
    %7763 = vmatprep.subr.bf16.mxu0 0
    %7764 = vmatpush1.bf16.msra.mxu0 0
    %7765 = vmatprep.subr.bf16.mxu0 0
    %7766 = vmatpush1.bf16.msra.mxu0 0
    %7767 = vmatprep.subr.bf16.mxu0 0
    %7768 = vmatpush1.bf16.msra.mxu0 0
    %7769 = vmatprep.subr.bf16.mxu0 0
    %7770 = vmatpush1.bf16.msra.mxu0 0
    %7771 = vmatprep.mubr.bf16.mxu0 0
    %7772 = vmatmul.mubr.bf16.gmra.mrb[0].mxu0 %v7737
    %v7773 = vpop.f32.mrb[0].mxu0
    %v7774 = vadd.f32 0.0, %v7773
    %v7775 = vpop.f32.mrb[0].mxu0
    %v7776 = vpop.f32.mrb[0].mxu0
    %v7777 = vpop.f32.mrb[0].mxu0
    %7778 = vdwg.mxu0
    %v7779 = vadd.f32 %v7707, %v7774
    %v7780 = vld [vmem:[#allocation8 + $0xd] sm:$0x1]
    %v7781 = vld [vmem:[#allocation8 + $0x1d] sm:$0x1]
    %v7782 = vpack.c.bf16 %v7780, %v7780
    %v7783 = vpack.c.bf16 %v7781, %v7781
    %s7784 = scalar_lea.vmem %s7, 208
    %v7785 = vld [vmem:[%s7784] sm:$0xf]
    %v7786 = vld [vmem:[%s7784 + $0x4] sm:$0xf]
    %v7787 = vld [vmem:[%s7784 + $0x8] sm:$0xf]
    %v7788 = vld [vmem:[%s7784 + $0xc] sm:$0xf]
    %v7791 = vunpack.c.l.b16 %v7782
    %v7792 = vunpack.c.l.b16 %v7783
    %v7793 = vrot.slane %v7792, 7
    %v7794 = vsel %vm4757, %v7793, %v7791
    %v7795 = vpack.c.b16 %v7794, %v7794
    %v7800 = vunpack.c.l.b16 %v7785
    %v7801 = vunpack.c.l.b16 %v7786
    %v7802 = vunpack.c.l.b16 %v7787
    %v7803 = vunpack.c.l.b16 %v7788
    %v7804 = vpack.c.b16 %v7801, %v7800
    %v7805 = vpack.c.b16 %v7803, %v7802
    %v7809 = vsel %vm6461, %v7795, 0
    %7811 = vmatprep.subr.bf16.mxu0 0
    %7812 = vmatpush1.bf16.msra.mxu0 %v7804
    %7813 = vmatprep.subr.bf16.mxu0 0
    %7814 = vmatpush1.bf16.msra.mxu0 %v7805
    %7815 = vmatprep.subr.bf16.mxu0 0
    %7816 = vmatpush1.bf16.msra.mxu0 0
    %7817 = vmatprep.subr.bf16.mxu0 0
    %7818 = vmatpush1.bf16.msra.mxu0 0
    %7819 = vmatprep.subr.bf16.mxu0 0
    %7820 = vmatpush1.bf16.msra.mxu0 0
    %7821 = vmatprep.subr.bf16.mxu0 0
    %7822 = vmatpush1.bf16.msra.mxu0 0
    %7823 = vmatprep.subr.bf16.mxu0 0
    %7824 = vmatpush1.bf16.msra.mxu0 0
    %7825 = vmatprep.subr.bf16.mxu0 0
    %7826 = vmatpush1.bf16.msra.mxu0 0
    %7827 = vmatprep.subr.bf16.mxu0 0
    %7828 = vmatpush1.bf16.msra.mxu0 0
    %7829 = vmatprep.subr.bf16.mxu0 0
    %7830 = vmatpush1.bf16.msra.mxu0 0
    %7831 = vmatprep.subr.bf16.mxu0 0
    %7832 = vmatpush1.bf16.msra.mxu0 0
    %7833 = vmatprep.subr.bf16.mxu0 0
    %7834 = vmatpush1.bf16.msra.mxu0 0
    %7835 = vmatprep.subr.bf16.mxu0 0
    %7836 = vmatpush1.bf16.msra.mxu0 0
    %7837 = vmatprep.subr.bf16.mxu0 0
    %7838 = vmatpush1.bf16.msra.mxu0 0
    %7839 = vmatprep.subr.bf16.mxu0 0
    %7840 = vmatpush1.bf16.msra.mxu0 0
    %7841 = vmatprep.subr.bf16.mxu0 0
    %7842 = vmatpush1.bf16.msra.mxu0 0
    %7843 = vmatprep.mubr.bf16.mxu0 0
    %7844 = vmatmul.mubr.bf16.gmra.mrb[0].mxu0 %v7809
    %v7845 = vpop.f32.mrb[0].mxu0
    %v7846 = vadd.f32 0.0, %v7845
    %v7847 = vpop.f32.mrb[0].mxu0
    %v7848 = vpop.f32.mrb[0].mxu0
    %v7849 = vpop.f32.mrb[0].mxu0
    %7850 = vdwg.mxu0
    %v7851 = vadd.f32 %v7779, %v7846
    %v7852 = vld [vmem:[#allocation8 + $0xe] sm:$0x1]
    %v7853 = vld [vmem:[#allocation8 + $0x1e] sm:$0x1]
    %v7854 = vpack.c.bf16 %v7852, %v7852
    %v7855 = vpack.c.bf16 %v7853, %v7853
    %s7856 = scalar_lea.vmem %s7, 224
    %v7857 = vld [vmem:[%s7856] sm:$0xf]
    %v7858 = vld [vmem:[%s7856 + $0x4] sm:$0xf]
    %v7859 = vld [vmem:[%s7856 + $0x8] sm:$0xf]
    %v7860 = vld [vmem:[%s7856 + $0xc] sm:$0xf]
    %v7863 = vunpack.c.l.b16 %v7854
    %v7864 = vunpack.c.l.b16 %v7855
    %v7865 = vrot.slane %v7864, 7
    %v7866 = vsel %vm4757, %v7865, %v7863
    %v7867 = vpack.c.b16 %v7866, %v7866
    %v7872 = vunpack.c.l.b16 %v7857
    %v7873 = vunpack.c.l.b16 %v7858
    %v7874 = vunpack.c.l.b16 %v7859
    %v7875 = vunpack.c.l.b16 %v7860
    %v7876 = vpack.c.b16 %v7873, %v7872
    %v7877 = vpack.c.b16 %v7875, %v7874
    %v7881 = vsel %vm6461, %v7867, 0
    %7883 = vmatprep.subr.bf16.mxu0 0
    %7884 = vmatpush1.bf16.msra.mxu0 %v7876
    %7885 = vmatprep.subr.bf16.mxu0 0
    %7886 = vmatpush1.bf16.msra.mxu0 %v7877
    %7887 = vmatprep.subr.bf16.mxu0 0
    %7888 = vmatpush1.bf16.msra.mxu0 0
    %7889 = vmatprep.subr.bf16.mxu0 0
    %7890 = vmatpush1.bf16.msra.mxu0 0
    %7891 = vmatprep.subr.bf16.mxu0 0
    %7892 = vmatpush1.bf16.msra.mxu0 0
    %7893 = vmatprep.subr.bf16.mxu0 0
    %7894 = vmatpush1.bf16.msra.mxu0 0
    %7895 = vmatprep.subr.bf16.mxu0 0
    %7896 = vmatpush1.bf16.msra.mxu0 0
    %7897 = vmatprep.subr.bf16.mxu0 0
    %7898 = vmatpush1.bf16.msra.mxu0 0
    %7899 = vmatprep.subr.bf16.mxu0 0
    %7900 = vmatpush1.bf16.msra.mxu0 0
    %7901 = vmatprep.subr.bf16.mxu0 0
    %7902 = vmatpush1.bf16.msra.mxu0 0
    %7903 = vmatprep.subr.bf16.mxu0 0
    %7904 = vmatpush1.bf16.msra.mxu0 0
    %7905 = vmatprep.subr.bf16.mxu0 0
    %7906 = vmatpush1.bf16.msra.mxu0 0
    %7907 = vmatprep.subr.bf16.mxu0 0
    %7908 = vmatpush1.bf16.msra.mxu0 0
    %7909 = vmatprep.subr.bf16.mxu0 0
    %7910 = vmatpush1.bf16.msra.mxu0 0
    %7911 = vmatprep.subr.bf16.mxu0 0
    %7912 = vmatpush1.bf16.msra.mxu0 0
    %7913 = vmatprep.subr.bf16.mxu0 0
    %7914 = vmatpush1.bf16.msra.mxu0 0
    %7915 = vmatprep.mubr.bf16.mxu0 0
    %7916 = vmatmul.mubr.bf16.gmra.mrb[0].mxu0 %v7881
    %v7917 = vpop.f32.mrb[0].mxu0
    %v7918 = vadd.f32 0.0, %v7917
    %v7919 = vpop.f32.mrb[0].mxu0
    %v7920 = vpop.f32.mrb[0].mxu0
    %v7921 = vpop.f32.mrb[0].mxu0
    %7922 = vdwg.mxu0
    %v7923 = vadd.f32 %v7851, %v7918
    %v7924 = vld [vmem:[#allocation8 + $0xf] sm:$0x1]
    %v7925 = vld [vmem:[#allocation8 + $0x1f] sm:$0x1]
    %v7926 = vpack.c.bf16 %v7924, %v7924
    %v7927 = vpack.c.bf16 %v7925, %v7925
    %s7928 = scalar_lea.vmem %s7, 240
    %v7929 = vld [vmem:[%s7928] sm:$0xf]
    %v7930 = vld [vmem:[%s7928 + $0x4] sm:$0xf]
    %v7931 = vld [vmem:[%s7928 + $0x8] sm:$0xf]
    %v7932 = vld [vmem:[%s7928 + $0xc] sm:$0xf]
    %v7935 = vunpack.c.l.b16 %v7926
    %v7936 = vunpack.c.l.b16 %v7927
    %v7937 = vrot.slane %v7936, 7
    %v7938 = vsel %vm4757, %v7937, %v7935
    %v7939 = vpack.c.b16 %v7938, %v7938
    %v7944 = vunpack.c.l.b16 %v7929
    %v7945 = vunpack.c.l.b16 %v7930
    %v7946 = vunpack.c.l.b16 %v7931
    %v7947 = vunpack.c.l.b16 %v7932
    %v7948 = vpack.c.b16 %v7945, %v7944
    %v7949 = vpack.c.b16 %v7947, %v7946
    %v7953 = vsel %vm6461, %v7939, 0
    %7955 = vmatprep.subr.bf16.mxu0 0
    %7956 = vmatpush1.bf16.msra.mxu0 %v7948
    %7957 = vmatprep.subr.bf16.mxu0 0
    %7958 = vmatpush1.bf16.msra.mxu0 %v7949
    %7959 = vmatprep.subr.bf16.mxu0 0
    %7960 = vmatpush1.bf16.msra.mxu0 0
    %7961 = vmatprep.subr.bf16.mxu0 0
    %7962 = vmatpush1.bf16.msra.mxu0 0
    %7963 = vmatprep.subr.bf16.mxu0 0
    %7964 = vmatpush1.bf16.msra.mxu0 0
    %7965 = vmatprep.subr.bf16.mxu0 0
    %7966 = vmatpush1.bf16.msra.mxu0 0
    %7967 = vmatprep.subr.bf16.mxu0 0
    %7968 = vmatpush1.bf16.msra.mxu0 0
    %7969 = vmatprep.subr.bf16.mxu0 0
    %7970 = vmatpush1.bf16.msra.mxu0 0
    %7971 = vmatprep.subr.bf16.mxu0 0
    %7972 = vmatpush1.bf16.msra.mxu0 0
    %7973 = vmatprep.subr.bf16.mxu0 0
    %7974 = vmatpush1.bf16.msra.mxu0 0
    %7975 = vmatprep.subr.bf16.mxu0 0
    %7976 = vmatpush1.bf16.msra.mxu0 0
    %7977 = vmatprep.subr.bf16.mxu0 0
    %7978 = vmatpush1.bf16.msra.mxu0 0
    %7979 = vmatprep.subr.bf16.mxu0 0
    %7980 = vmatpush1.bf16.msra.mxu0 0
    %7981 = vmatprep.subr.bf16.mxu0 0
    %7982 = vmatpush1.bf16.msra.mxu0 0
    %7983 = vmatprep.subr.bf16.mxu0 0
    %7984 = vmatpush1.bf16.msra.mxu0 0
    %7985 = vmatprep.subr.bf16.mxu0 0
    %7986 = vmatpush1.bf16.msra.mxu0 0
    %7987 = vmatprep.mubr.bf16.mxu0 0
    %7988 = vmatmul.mubr.bf16.gmra.mrb[0].mxu0 %v7953
    %v7989 = vpop.f32.mrb[0].mxu0
    %v7990 = vadd.f32 0.0, %v7989
    %v7991 = vpop.f32.mrb[0].mxu0
    %v7992 = vpop.f32.mrb[0].mxu0
    %v7993 = vpop.f32.mrb[0].mxu0
    %7994 = vdwg.mxu0
    %v7995 = vadd.f32 %v7923, %v7990
    %v7996 = vld [vmem:[%s8] sm:$0x1]
    %v7998 = vlaneseq
    %v7999 = vshrl.u32 %v7998, 7
    %v8000 = vsub.s32 0, %v7999
    %v8001 = vrot.slane %v7996, %v8000
    %v8003 = vadd.f32 %v7995, %v8001
    %vm8004 = vcmask 74752
    %v8005 = vsel %vm8004, %v8003, -inf
    %8006 = vmax.xlane.f32.xlu0 %v8005
    %v8007 = vpop.xlane.xlu0 %8006
    %v8008 = vsub.f32 %v8003, %v8007
    %v8009 = vmul.f32 %v8008, 1.442695
    %v8010 = vpow.pop %v8009
    %v8011 = vsel %vm8004, %v8010, 0.0
    %8012 = vadd.xlane.f32.xlu0 %v8011
    %v8013 = vpop.xlane.xlu0 %8012
    %v8014 = vrcp.pop %v8013
    %v8015 = vmul.f32 %v8010, %v8014
    %8016 = vst.msk [vmem:[#allocation9] sm:$0x3] %vm8004, %v8015
    // Predicated region
    $region38: #{gaussian_classifier_forward.1} parent=1 // pred_check
      _
    $region39: #{gaussian_classifier_forward.1} parent=1 // pred_check_branch
      %8018 = sbr.rel (0) target = $region41
    $region40: #{gaussian_classifier_forward.1} parent=1 // pred_region
      %s8020 = ssub.s32 32, 32
      %8021 = vsyncadd [#allocation10], %s8020
      %s8023 = sshll.u32 [#allocation9], 4
      %s8024 = int_to_ptr.vmem [resolvable:$true] %s8023
      %8026 = dma.vmem_to_hbm [thread:$0]  %s8024, 32, %s9, [#allocation10]
    $region41: #{gaussian_classifier_forward.1} parent=1 // pred_fallthru
      _
    // Predicated region
    $region42: #{gaussian_classifier_forward.1} parent=1 // pred_check
      _
    $region43: #{gaussian_classifier_forward.1} parent=1 // pred_check_branch
      %8028 = sbr.rel (0) target = $region45
    $region44: #{gaussian_classifier_forward.1} parent=1 // pred_region
      %8029 = dma.done [#allocation10], 32
    $region45: #{gaussian_classifier_forward.1} parent=1 // pred_fallthru
      _
    %8030 = vsyncpa [#allocation10], 1

</llo_original>
